<compile_context>
chip_gen: v7x
topology: tpu7x:2x2x1
jax: 0.10.0
libtpu: 0.0.40
codegen_flags: <defaults>
</compile_context>

<pallas_src>
import functools
import numpy as np
import jax
import jax.numpy as jnp
from jax.experimental import pallas as pl
from jax.experimental.pallas import tpu as pltpu


# ----------------------------- kernel helpers -----------------------------

def _layernorm(x, w, b, eps=1e-5):
    mu = jnp.mean(x, axis=-1, keepdims=True)
    var = jnp.mean((x - mu) ** 2, axis=-1, keepdims=True)  # biased var, like torch LayerNorm
    return (x - mu) * jax.lax.rsqrt(var + eps) * w + b


# ----------------------------- the Pallas kernel -----------------------------

def instrument_classifier_kernel(nhead,
                                 x_ref, embw_ref, embb_ref,
                                 wq_ref, wk_ref, wv_ref, bq_ref, bk_ref, bv_ref,
                                 opw_ref, opb_ref,
                                 l1w_ref, l1b_ref, l2w_ref, l2b_ref,
                                 n1w_ref, n1b_ref, n2w_ref, n2b_ref,
                                 ow_ref, ob_ref,
                                 hmask_ref, blk_ref, abias_ref,
                                 out_ref):
    TB, S, F = x_ref.shape                       # one batch tile per grid step
    D = embw_ref.shape[1]
    HS = nhead * S
    cdt = jnp.bfloat16                           # MXU compute dtype (f32 accumulation)

    head_mask = hmask_ref[...]                   # (HS, D)         bf16, precomputed
    blk_sum = blk_ref[...]                       # (TB*HS, TB*HS)  bf16, precomputed
    attn_bias = abias_ref[...]                   # (TB*S, TB*HS)   f32,  0 same-batch / -1e30 cross-batch

    # ---- embedding on the flattened (TB*S, F) slab ----
    x = x_ref[...].reshape(TB * S, F)
    h = jnp.dot(x.astype(cdt), embw_ref[...],
                preferred_element_type=jnp.float32) + embb_ref[0]    # (TB*S, D) f32

    num_layers = wq_ref.shape[0]
    for l in range(num_layers):                  # static Python loop over encoder layers
        hs = h.astype(cdt)
        # 1/sqrt(head_dim) already folded into wq / bq
        q = jnp.dot(hs, wq_ref[l], preferred_element_type=jnp.float32) + bq_ref[l]
        k = jnp.dot(hs, wk_ref[l], preferred_element_type=jnp.float32) + bk_ref[l]
        v = jnp.dot(hs, wv_ref[l], preferred_element_type=jnp.float32) + bv_ref[l]

        # head-separated K / V in bf16: row b*HS + h*S + j holds key/value j of batch b,
        # masked to head h's feature slice (broadcast + reshape, no concat copies)
        k3 = k.astype(cdt).reshape(TB, 1, S, D)
        v3 = v.astype(cdt).reshape(TB, 1, S, D)
        k_sep = (jnp.broadcast_to(k3, (TB, nhead, S, D)).reshape(TB, HS, D)
                 * head_mask[None]).reshape(TB * HS, D)              # (TB*HS, D) bf16
        v_sep = (jnp.broadcast_to(v3, (TB, nhead, S, D)).reshape(TB, HS, D)
                 * head_mask[None]).reshape(TB * HS, D)              # (TB*HS, D) bf16

        # full-lane 2-D scores: (TB*S, TB*HS); cross-batch entries pushed to -1e30
        s = jnp.einsum('qd,rd->qr', q.astype(cdt), k_sep,
                       preferred_element_type=jnp.float32) + attn_bias
        m = jnp.max(s, axis=-1, keepdims=True)                       # row max (valid only)
        e = jnp.exp(s - m)                                           # cross-batch -> exactly 0
        # per-(batch, head) softmax denominators via one bf16 matmul against blk_sum;
        # +1e-20 guards a fully-underflowed head block (gives 0, never NaN)
        den = jnp.dot(e.astype(cdt), blk_sum,
                      preferred_element_type=jnp.float32) + 1e-20
        p = (e * pl.reciprocal(den, approx=True)).astype(cdt)        # (TB*S, TB*HS) bf16

        # attention output lands directly in concatenated-head layout
        attn = jnp.dot(p, v_sep, preferred_element_type=jnp.float32)                  # (TB*S, D)
        attn = jnp.dot(attn.astype(cdt), opw_ref[l],
                       preferred_element_type=jnp.float32) + opb_ref[l]
        h = _layernorm(h + attn, n1w_ref[l], n1b_ref[l])

        # ---------- feed-forward (ReLU) ----------
        f = jnp.dot(h.astype(cdt), l1w_ref[l], preferred_element_type=jnp.float32) + l1b_ref[l]
        f = jnp.maximum(f, 0.0)
        f = jnp.dot(f.astype(cdt), l2w_ref[l], preferred_element_type=jnp.float32) + l2b_ref[l]
        h = _layernorm(h + f, n2w_ref[l], n2b_ref[l])

    # ---------- token 0 per batch element, output head (lane-dense Cpad=128), sigmoid ----
    t0 = h.reshape(TB, S, D)[:, 0, :]                                                  # (TB, D)
    logits = jnp.dot(t0.astype(cdt), ow_ref[...],
                     preferred_element_type=jnp.float32) + ob_ref[0]                   # (TB, Cpad)
    out_ref[...] = jax.nn.sigmoid(logits)                                              # (8,128) vreg store


# ----------------------------- one-time parameter / mask preparation -----------------------------

def prepare_params(params, nhead, seq_len, block_batch):
    """One-time (cacheable) weight prep: split in_proj, transpose to (in,out), cast to bf16,
    fold the 1/sqrt(hd) score scale into Wq/bq, pad the class head to 128 lanes, and
    precompute the attention masks for a batch tile of `block_batch` elements."""
    D, F = params["emb_w"].shape
    C = params["out_w"].shape[0]
    L = params["in_proj_w"].shape[0]
    dff = params["linear1_w"].shape[1]
    S = int(seq_len)
    TB = int(block_batch)
    HS = nhead * S
    hd = D // nhead
    scale = 1.0 / float(hd) ** 0.5
    wdt = jnp.bfloat16
    f32 = jnp.float32
    Cpad = max(128, ((C + 127) // 128) * 128)

    ipw = params["in_proj_w"]                                            # (L, 3D, D)
    ipb = params["in_proj_b"]                                            # (L, 3D)
    prep = {
        "emb_w": params["emb_w"].T.astype(wdt),                          # (F, D)
        "emb_b": params["emb_b"].reshape(1, D).astype(f32),
        "wq": (jnp.transpose(ipw[:, :D, :], (0, 2, 1)) * scale).astype(wdt),   # scale folded
        "wk": jnp.transpose(ipw[:, D:2 * D, :], (0, 2, 1)).astype(wdt),
        "wv": jnp.transpose(ipw[:, 2 * D:, :], (0, 2, 1)).astype(wdt),
        "bq": (ipb[:, :D] * scale).astype(f32),                                 # scale folded
        "bk": ipb[:, D:2 * D].astype(f32),
        "bv": ipb[:, 2 * D:].astype(f32),
        "opw": jnp.transpose(params["out_proj_w"], (0, 2, 1)).astype(wdt),
        "opb": params["out_proj_b"].astype(f32),
        "l1w": jnp.transpose(params["linear1_w"], (0, 2, 1)).astype(wdt),
        "l1b": params["linear1_b"].astype(f32),
        "l2w": jnp.transpose(params["linear2_w"], (0, 2, 1)).astype(wdt),
        "l2b": params["linear2_b"].astype(f32),
        "n1w": params["norm1_w"].astype(f32), "n1b": params["norm1_b"].astype(f32),
        "n2w": params["norm2_w"].astype(f32), "n2b": params["norm2_b"].astype(f32),
        "ow": jnp.pad(params["out_w"].T, ((0, 0), (0, Cpad - C))).astype(wdt),
        "ob": jnp.pad(params["out_b"].reshape(1, C), ((0, 0), (0, Cpad - C))).astype(f32),
    }

    # head_mask[h*S + j, d] = 1 iff feature d belongs to head h
    hm = (np.arange(D)[None, :] // hd) == (np.arange(HS)[:, None] // S)
    prep["head_mask"] = jnp.asarray(hm.astype(np.float32), dtype=wdt)            # (HS, D) bf16

    # blk_sum[r1, r2] = 1 iff columns r1, r2 belong to the same (batch, head) S-block
    r = np.arange(TB * HS)
    prep["blk_sum"] = jnp.asarray(((r[:, None] // S) == (r[None, :] // S)).astype(np.float32),
                                  dtype=wdt)                                     # (TB*HS, TB*HS) bf16

    # attn_bias[b*S+q, b'*HS+h*S+j] = 0 if b == b' else -1e30 (kills cross-batch scores)
    rows = np.arange(TB * S) // S
    cols = np.arange(TB * HS) // HS
    prep["attn_bias"] = jnp.asarray(
        np.where(rows[:, None] == cols[None, :], 0.0, -1e30).astype(np.float32)) # (TB*S, TB*HS) f32

    prep["meta"] = dict(nhead=int(nhead), S=S, TB=TB, D=int(D), F=int(F),
                        C=int(C), Cpad=int(Cpad), L=int(L), dff=int(dff))
    return prep


# ----------------------------- forward wrapper -----------------------------

def instrument_classifier_forward(x, prep):
    meta = prep["meta"]
    nhead, S, TB = meta["nhead"], meta["S"], meta["TB"]
    D, F, C, Cpad = meta["D"], meta["F"], meta["C"], meta["Cpad"]
    L, dff = meta["L"], meta["dff"]
    B = x.shape[0]
    assert x.shape[1] == S and x.shape[2] == F

    # pad batch to a multiple of the tile size (padded rows run + get sliced off)
    Bp = ((B + TB - 1) // TB) * TB
    if Bp != B:
        x = jnp.pad(x, ((0, Bp - B), (0, 0), (0, 0)))
    n_tiles = Bp // TB
    HS = nhead * S

    def full_spec(shape):
        n = len(shape)
        return pl.BlockSpec(shape, lambda b: (0,) * n)   # constant block -> DMA'd once

    kernel = functools.partial(instrument_classifier_kernel, nhead)

    operands = (x,
                prep["emb_w"], prep["emb_b"],
                prep["wq"], prep["wk"], prep["wv"], prep["bq"], prep["bk"], prep["bv"],
                prep["opw"], prep["opb"],
                prep["l1w"], prep["l1b"], prep["l2w"], prep["l2b"],
                prep["n1w"], prep["n1b"], prep["n2w"], prep["n2b"],
                prep["ow"], prep["ob"],
                prep["head_mask"], prep["blk_sum"], prep["attn_bias"])

    in_specs = [pl.BlockSpec((TB, S, F), lambda b: (b, 0, 0))] + \
               [full_spec(tuple(op.shape)) for op in operands[1:]]

    # advisory cost estimate for the XLA scheduler
    TBS, TBHS = TB * S, TB * HS
    flops_tile = (2 * TBS * F * D
                  + L * (6 * TBS * D * D           # q/k/v projections
                         + 2 * TBS * TBHS * D      # scores
                         + 2 * TBS * TBHS * TBHS   # softmax denominator matmul
                         + 2 * TBS * TBHS * D      # attention output
                         + 2 * TBS * D * D         # out_proj
                         + 4 * TBS * D * dff)      # FFN
                  + 2 * TB * D * Cpad)
    trans_tile = L * 2 * TBS * TBHS + TB * Cpad
    bytes_accessed = (sum(int(np.prod(op.shape)) * op.dtype.itemsize for op in operands)
                      + Bp * Cpad * 4)

    out = pl.pallas_call(
        kernel,
        out_shape=jax.ShapeDtypeStruct((Bp, Cpad), jnp.float32),
        grid=(n_tiles,),
        in_specs=in_specs,
        out_specs=pl.BlockSpec((TB, Cpad), lambda b: (b, 0)),
        compiler_params=pltpu.CompilerParams(
            dimension_semantics=("parallel",)),           # batch tiles are independent
        cost_estimate=pl.CostEstimate(flops=int(n_tiles * flops_tile),
                                      transcendentals=int(n_tiles * trans_tile),
                                      bytes_accessed=int(bytes_accessed)),
    )(*operands)

    return out[:B, :C]


# ----------------------------- deterministic parameter init -----------------------------

def init_params(key, num_features, num_classes, dim_model, num_layers, dim_ff):
    n_keys = 4 + num_layers * 8
    keys = iter(jax.random.split(key, n_keys))

    def w(shape, scale=0.02):
        return scale * jax.random.normal(next(keys), shape, dtype=jnp.float32)

    p = {
        "emb_w": w((dim_model, num_features)),
        "emb_b": w((dim_model,)),
        "out_w": w((num_classes, dim_model)),
        "out_b": w((num_classes,)),
    }
    per_layer = {k: [] for k in [
        "in_proj_w", "in_proj_b", "out_proj_w", "out_proj_b",
        "linear1_w", "linear1_b", "linear2_w", "linear2_b",
        "norm1_w", "norm1_b", "norm2_w", "norm2_b"]}
    for _ in range(num_layers):
        per_layer["in_proj_w"].append(w((3 * dim_model, dim_model)))
        per_layer["in_proj_b"].append(w((3 * dim_model,)))
        per_layer["out_proj_w"].append(w((dim_model, dim_model)))
        per_layer["out_proj_b"].append(w((dim_model,)))
        per_layer["linear1_w"].append(w((dim_ff, dim_model)))
        per_layer["linear1_b"].append(w((dim_ff,)))
        per_layer["linear2_w"].append(w((dim_model, dim_ff)))
        per_layer["linear2_b"].append(w((dim_model,)))
        per_layer["norm1_w"].append(jnp.ones((dim_model,), jnp.float32))
        per_layer["norm1_b"].append(jnp.zeros((dim_model,), jnp.float32))
        per_layer["norm2_w"].append(jnp.ones((dim_model,), jnp.float32))
        per_layer["norm2_b"].append(jnp.zeros((dim_model,), jnp.float32))
    for k, v in per_layer.items():
        p[k] = jnp.stack(v, axis=0)
    return p


# ----------------------------- pure-JAX reference (mirrors PyTorch eval forward, f32) ---------

def reference_forward(x, params, nhead):
    D = params["emb_w"].shape[0]
    hd = D // nhead
    h = x @ params["emb_w"].T + params["emb_b"]
    L = params["in_proj_w"].shape[0]
    for l in range(L):
        qkv = h @ params["in_proj_w"][l].T + params["in_proj_b"][l]
        q, k, v = jnp.split(qkv, 3, axis=-1)

        def sh(t):
            B, S, _ = t.shape
            return t.reshape(B, S, nhead, hd).transpose(0, 2, 1, 3)

        qh, kh, vh = sh(q), sh(k), sh(v)
        s = jnp.einsum("bhqd,bhkd->bhqk", qh, kh) / (float(hd) ** 0.5)
        p = jax.nn.softmax(s, axis=-1)
        o = jnp.einsum("bhqk,bhkd->bhqd", p, vh).transpose(0, 2, 1, 3).reshape(h.shape)
        o = o @ params["out_proj_w"][l].T + params["out_proj_b"][l]
        h = _layernorm(h + o, params["norm1_w"][l], params["norm1_b"][l])
        f = jax.nn.relu(h @ params["linear1_w"][l].T + params["linear1_b"][l])
        f = f @ params["linear2_w"][l].T + params["linear2_b"][l]
        h = _layernorm(h + f, params["norm2_w"][l], params["norm2_b"][l])
    logits = h[:, 0, :] @ params["out_w"].T + params["out_b"]
    return jax.nn.sigmoid(logits)


# ----------------------------- main -----------------------------

if __name__ == "__main__":
    # small shapes consistent with the module
    batch, seq = 8, 8
    num_features, num_classes = 16, 6
    dim_model, nhead, num_layers = 32, 4, 2
    dim_ff = 2048  # PyTorch TransformerEncoderLayer default dim_feedforward
    # dropout is an eval-mode identity in this forward

    key = jax.random.PRNGKey(0)
    k_x, k_p = jax.random.split(key)
    x = jax.random.normal(k_x, (batch, seq, num_features), dtype=jnp.float32)
    params = init_params(k_p, num_features, num_classes, dim_model, num_layers, dim_ff)

    # One-time (cacheable) weight / mask preparation.
    # block_batch = batch -> TB=8, grid=1: best for single-TC v5e/v6e and gives a full
    # (8,128) output vreg. On v7x use block_batch = -(-batch // 2) so each TensorCore
    # gets an independent parallel batch tile.
    prep = prepare_params(params, nhead=nhead, seq_len=seq, block_batch=batch)

    out = instrument_classifier_forward(x, prep)
    out = jax.block_until_ready(out)

    ref = jax.block_until_ready(reference_forward(x, params, nhead))
    assert out.shape == (batch, num_classes)
    # bf16 weights / matmuls (incl. bf16 softmax denominator) vs f32 reference -> modest tolerance
    np.testing.assert_allclose(np.asarray(out), np.asarray(ref), rtol=2e-2, atol=2e-2)

    print("KERNEL_OK")
</pallas_src>

<mosaic_0001>
module attributes {stable_mosaic.version = 11 : i64} {
  func.func @instrument_classifier_kernel(%arg0: i32, %arg1: memref<8x8x16xf32, #tpu.memory_space<vmem>>, %arg2: memref<16x32xbf16, #tpu.memory_space<vmem>>, %arg3: memref<1x32xf32, #tpu.memory_space<vmem>>, %arg4: memref<2x32x32xbf16, #tpu.memory_space<vmem>>, %arg5: memref<2x32x32xbf16, #tpu.memory_space<vmem>>, %arg6: memref<2x32x32xbf16, #tpu.memory_space<vmem>>, %arg7: memref<2x32xf32, #tpu.memory_space<vmem>>, %arg8: memref<2x32xf32, #tpu.memory_space<vmem>>, %arg9: memref<2x32xf32, #tpu.memory_space<vmem>>, %arg10: memref<2x32x32xbf16, #tpu.memory_space<vmem>>, %arg11: memref<2x32xf32, #tpu.memory_space<vmem>>, %arg12: memref<2x32x2048xbf16, #tpu.memory_space<vmem>>, %arg13: memref<2x2048xf32, #tpu.memory_space<vmem>>, %arg14: memref<2x2048x32xbf16, #tpu.memory_space<vmem>>, %arg15: memref<2x32xf32, #tpu.memory_space<vmem>>, %arg16: memref<2x32xf32, #tpu.memory_space<vmem>>, %arg17: memref<2x32xf32, #tpu.memory_space<vmem>>, %arg18: memref<2x32xf32, #tpu.memory_space<vmem>>, %arg19: memref<2x32xf32, #tpu.memory_space<vmem>>, %arg20: memref<32x128xbf16, #tpu.memory_space<vmem>>, %arg21: memref<1x128xf32, #tpu.memory_space<vmem>>, %arg22: memref<32x32xbf16, #tpu.memory_space<vmem>>, %arg23: memref<256x256xbf16, #tpu.memory_space<vmem>>, %arg24: memref<64x256xf32, #tpu.memory_space<vmem>>, %arg25: memref<8x128xf32, #tpu.memory_space<vmem>>) attributes {dimension_semantics = [#tpu.dimension_semantics<parallel>], iteration_bounds = array<i64: 1>, scalar_prefetch = 0 : i64, scratch_operands = 0 : i64, tpu.core_type = #tpu.core_type<tc>, window_params = [{transform_indices = @transform_0, window_bounds = array<i64: 8, 8, 16>}, {pipeline_mode = #tpu.pipeline_mode<synchronous>, transform_indices = @transform_1, window_bounds = array<i64: 16, 32>}, {pipeline_mode = #tpu.pipeline_mode<synchronous>, transform_indices = @transform_2, window_bounds = array<i64: 1, 32>}, {pipeline_mode = #tpu.pipeline_mode<synchronous>, transform_indices = @transform_3, window_bounds = array<i64: 2, 32, 32>}, {pipeline_mode = #tpu.pipeline_mode<synchronous>, transform_indices = @transform_4, window_bounds = array<i64: 2, 32, 32>}, {pipeline_mode = #tpu.pipeline_mode<synchronous>, transform_indices = @transform_5, window_bounds = array<i64: 2, 32, 32>}, {pipeline_mode = #tpu.pipeline_mode<synchronous>, transform_indices = @transform_6, window_bounds = array<i64: 2, 32>}, {pipeline_mode = #tpu.pipeline_mode<synchronous>, transform_indices = @transform_7, window_bounds = array<i64: 2, 32>}, {pipeline_mode = #tpu.pipeline_mode<synchronous>, transform_indices = @transform_8, window_bounds = array<i64: 2, 32>}, {pipeline_mode = #tpu.pipeline_mode<synchronous>, transform_indices = @transform_9, window_bounds = array<i64: 2, 32, 32>}, {pipeline_mode = #tpu.pipeline_mode<synchronous>, transform_indices = @transform_10, window_bounds = array<i64: 2, 32>}, {pipeline_mode = #tpu.pipeline_mode<synchronous>, transform_indices = @transform_11, window_bounds = array<i64: 2, 32, 2048>}, {pipeline_mode = #tpu.pipeline_mode<synchronous>, transform_indices = @transform_12, window_bounds = array<i64: 2, 2048>}, {pipeline_mode = #tpu.pipeline_mode<synchronous>, transform_indices = @transform_13, window_bounds = array<i64: 2, 2048, 32>}, {pipeline_mode = #tpu.pipeline_mode<synchronous>, transform_indices = @transform_14, window_bounds = array<i64: 2, 32>}, {pipeline_mode = #tpu.pipeline_mode<synchronous>, transform_indices = @transform_15, window_bounds = array<i64: 2, 32>}, {pipeline_mode = #tpu.pipeline_mode<synchronous>, transform_indices = @transform_16, window_bounds = array<i64: 2, 32>}, {pipeline_mode = #tpu.pipeline_mode<synchronous>, transform_indices = @transform_17, window_bounds = array<i64: 2, 32>}, {pipeline_mode = #tpu.pipeline_mode<synchronous>, transform_indices = @transform_18, window_bounds = array<i64: 2, 32>}, {pipeline_mode = #tpu.pipeline_mode<synchronous>, transform_indices = @transform_19, window_bounds = array<i64: 32, 128>}, {pipeline_mode = #tpu.pipeline_mode<synchronous>, transform_indices = @transform_20, window_bounds = array<i64: 1, 128>}, {pipeline_mode = #tpu.pipeline_mode<synchronous>, transform_indices = @transform_21, window_bounds = array<i64: 32, 32>}, {pipeline_mode = #tpu.pipeline_mode<synchronous>, transform_indices = @transform_22, window_bounds = array<i64: 256, 256>}, {pipeline_mode = #tpu.pipeline_mode<synchronous>, transform_indices = @transform_23, window_bounds = array<i64: 64, 256>}, {transform_indices = @transform_24, window_bounds = array<i64: 8, 128>}]} {
    %c0 = arith.constant 0 : index
    %c0_0 = arith.constant 0 : index
    %0 = vector.load %arg22[%c0, %c0_0] : memref<32x32xbf16, #tpu.memory_space<vmem>>, vector<32x32xbf16>
    %c0_1 = arith.constant 0 : index
    %c0_2 = arith.constant 0 : index
    %1 = vector.load %arg23[%c0_1, %c0_2] : memref<256x256xbf16, #tpu.memory_space<vmem>>, vector<256x256xbf16>
    %c0_3 = arith.constant 0 : index
    %c0_4 = arith.constant 0 : index
    %2 = vector.load %arg24[%c0_3, %c0_4] : memref<64x256xf32, #tpu.memory_space<vmem>>, vector<64x256xf32>
    %c0_5 = arith.constant 0 : index
    %c0_6 = arith.constant 0 : index
    %c0_7 = arith.constant 0 : index
    %3 = vector.load %arg1[%c0_5, %c0_6, %c0_7] : memref<8x8x16xf32, #tpu.memory_space<vmem>>, vector<8x8x16xf32>
    %4 = vector.shape_cast %3 : vector<8x8x16xf32> to vector<64x16xf32>
    %5 = arith.truncf %4 : vector<64x16xf32> to vector<64x16xbf16>
    %c0_8 = arith.constant 0 : index
    %c0_9 = arith.constant 0 : index
    %6 = vector.load %arg2[%c0_8, %c0_9] : memref<16x32xbf16, #tpu.memory_space<vmem>>, vector<16x32xbf16>
    %cst = arith.constant dense<0.000000e+00> : vector<64x32xf32>
    %7 = tpu.matmul %5, %6, %cst {dimension_numbers = #tpu.dot_dimension_numbers<[1], [0], [0], [1], [0, 0, 1, 1], [], []>} : vector<64x16xbf16>, vector<16x32xbf16>, vector<64x32xf32> -> vector<64x32xf32>
    %c0_10 = arith.constant 0 : index
    %c0_11 = arith.constant 0 : index
    %8 = vector.load %arg3[%c0_10, %c0_11] : memref<1x32xf32, #tpu.memory_space<vmem>>, vector<1x32xf32>
    %9 = vector.shape_cast %8 : vector<1x32xf32> to vector<32xf32>
    %10 = vector.shape_cast %9 : vector<32xf32> to vector<1x32xf32>
    %11 = vector.broadcast %10 : vector<1x32xf32> to vector<64x32xf32>
    %12 = arith.addf %7, %11 : vector<64x32xf32>
    %13 = arith.truncf %12 : vector<64x32xf32> to vector<64x32xbf16>
    %c0_12 = arith.constant 0 : index
    %c0_13 = arith.constant 0 : index
    %c0_14 = arith.constant 0 : index
    %14 = vector.load %arg4[%c0_12, %c0_13, %c0_14] : memref<2x32x32xbf16, #tpu.memory_space<vmem>>, vector<1x32x32xbf16>
    %15 = vector.shape_cast %14 : vector<1x32x32xbf16> to vector<32x32xbf16>
    %cst_15 = arith.constant dense<0.000000e+00> : vector<64x32xf32>
    %16 = tpu.matmul %13, %15, %cst_15 {dimension_numbers = #tpu.dot_dimension_numbers<[1], [0], [0], [1], [0, 0, 1, 1], [], []>} : vector<64x32xbf16>, vector<32x32xbf16>, vector<64x32xf32> -> vector<64x32xf32>
    %c0_16 = arith.constant 0 : index
    %c0_17 = arith.constant 0 : index
    %17 = vector.load %arg7[%c0_16, %c0_17] : memref<2x32xf32, #tpu.memory_space<vmem>>, vector<1x32xf32>
    %18 = vector.shape_cast %17 : vector<1x32xf32> to vector<32xf32>
    %19 = vector.shape_cast %18 : vector<32xf32> to vector<1x32xf32>
    %20 = vector.broadcast %19 : vector<1x32xf32> to vector<64x32xf32>
    %21 = arith.addf %16, %20 : vector<64x32xf32>
    %c0_18 = arith.constant 0 : index
    %c0_19 = arith.constant 0 : index
    %c0_20 = arith.constant 0 : index
    %22 = vector.load %arg5[%c0_18, %c0_19, %c0_20] : memref<2x32x32xbf16, #tpu.memory_space<vmem>>, vector<1x32x32xbf16>
    %23 = vector.shape_cast %22 : vector<1x32x32xbf16> to vector<32x32xbf16>
    %cst_21 = arith.constant dense<0.000000e+00> : vector<64x32xf32>
    %24 = tpu.matmul %13, %23, %cst_21 {dimension_numbers = #tpu.dot_dimension_numbers<[1], [0], [0], [1], [0, 0, 1, 1], [], []>} : vector<64x32xbf16>, vector<32x32xbf16>, vector<64x32xf32> -> vector<64x32xf32>
    %c0_22 = arith.constant 0 : index
    %c0_23 = arith.constant 0 : index
    %25 = vector.load %arg8[%c0_22, %c0_23] : memref<2x32xf32, #tpu.memory_space<vmem>>, vector<1x32xf32>
    %26 = vector.shape_cast %25 : vector<1x32xf32> to vector<32xf32>
    %27 = vector.shape_cast %26 : vector<32xf32> to vector<1x32xf32>
    %28 = vector.broadcast %27 : vector<1x32xf32> to vector<64x32xf32>
    %29 = arith.addf %24, %28 : vector<64x32xf32>
    %c0_24 = arith.constant 0 : index
    %c0_25 = arith.constant 0 : index
    %c0_26 = arith.constant 0 : index
    %30 = vector.load %arg6[%c0_24, %c0_25, %c0_26] : memref<2x32x32xbf16, #tpu.memory_space<vmem>>, vector<1x32x32xbf16>
    %31 = vector.shape_cast %30 : vector<1x32x32xbf16> to vector<32x32xbf16>
    %cst_27 = arith.constant dense<0.000000e+00> : vector<64x32xf32>
    %32 = tpu.matmul %13, %31, %cst_27 {dimension_numbers = #tpu.dot_dimension_numbers<[1], [0], [0], [1], [0, 0, 1, 1], [], []>} : vector<64x32xbf16>, vector<32x32xbf16>, vector<64x32xf32> -> vector<64x32xf32>
    %c0_28 = arith.constant 0 : index
    %c0_29 = arith.constant 0 : index
    %33 = vector.load %arg9[%c0_28, %c0_29] : memref<2x32xf32, #tpu.memory_space<vmem>>, vector<1x32xf32>
    %34 = vector.shape_cast %33 : vector<1x32xf32> to vector<32xf32>
    %35 = vector.shape_cast %34 : vector<32xf32> to vector<1x32xf32>
    %36 = vector.broadcast %35 : vector<1x32xf32> to vector<64x32xf32>
    %37 = arith.addf %32, %36 : vector<64x32xf32>
    %38 = arith.truncf %29 : vector<64x32xf32> to vector<64x32xbf16>
    %39 = vector.shape_cast %38 : vector<64x32xbf16> to vector<8x1x8x32xbf16>
    %40 = arith.truncf %37 : vector<64x32xf32> to vector<64x32xbf16>
    %41 = vector.shape_cast %40 : vector<64x32xbf16> to vector<8x1x8x32xbf16>
    %42 = vector.shape_cast %39 : vector<8x1x8x32xbf16> to vector<8x1x8x32xbf16>
    %43 = vector.broadcast %42 : vector<8x1x8x32xbf16> to vector<8x4x8x32xbf16>
    %44 = vector.shape_cast %43 : vector<8x4x8x32xbf16> to vector<8x32x32xbf16>
    %45 = vector.shape_cast %0 : vector<32x32xbf16> to vector<1x32x32xbf16>
    %46 = vector.broadcast %45 : vector<1x32x32xbf16> to vector<8x32x32xbf16>
    %47 = arith.mulf %44, %46 : vector<8x32x32xbf16>
    %48 = vector.shape_cast %47 : vector<8x32x32xbf16> to vector<256x32xbf16>
    %49 = vector.shape_cast %41 : vector<8x1x8x32xbf16> to vector<8x1x8x32xbf16>
    %50 = vector.broadcast %49 : vector<8x1x8x32xbf16> to vector<8x4x8x32xbf16>
    %51 = vector.shape_cast %50 : vector<8x4x8x32xbf16> to vector<8x32x32xbf16>
    %52 = vector.shape_cast %0 : vector<32x32xbf16> to vector<1x32x32xbf16>
    %53 = vector.broadcast %52 : vector<1x32x32xbf16> to vector<8x32x32xbf16>
    %54 = arith.mulf %51, %53 : vector<8x32x32xbf16>
    %55 = vector.shape_cast %54 : vector<8x32x32xbf16> to vector<256x32xbf16>
    %56 = arith.truncf %21 : vector<64x32xf32> to vector<64x32xbf16>
    "tpu.trace_start"() <{level = 10 : i32, message = "qd,rd->qr"}> : () -> ()
    %cst_30 = arith.constant dense<0.000000e+00> : vector<64x256xf32>
    %57 = tpu.matmul %56, %48, %cst_30 {dimension_numbers = #tpu.dot_dimension_numbers<[1], [1], [0], [0], [0, 0, 1, 0], [], []>} : vector<64x32xbf16>, vector<256x32xbf16>, vector<64x256xf32> -> vector<64x256xf32>
    "tpu.trace_stop"() : () -> ()
    %58 = arith.addf %57, %2 : vector<64x256xf32>
    %cst_31 = arith.constant dense<0xFF800000> : vector<64xf32>
    %59 = vector.multi_reduction <maximumf>, %58, %cst_31 [1] : vector<64x256xf32> to vector<64xf32>
    %60 = vector.shape_cast %59 : vector<64xf32> to vector<64x1xf32>
    %61 = vector.broadcast %60 : vector<64x1xf32> to vector<64x256xf32>
    %62 = arith.subf %58, %61 : vector<64x256xf32>
    %63 = math.exp %62 : vector<64x256xf32>
    %64 = arith.truncf %63 : vector<64x256xf32> to vector<64x256xbf16>
    %cst_32 = arith.constant dense<0.000000e+00> : vector<64x256xf32>
    %65 = tpu.matmul %64, %1, %cst_32 {dimension_numbers = #tpu.dot_dimension_numbers<[1], [0], [0], [1], [0, 0, 1, 1], [], []>} : vector<64x256xbf16>, vector<256x256xbf16>, vector<64x256xf32> -> vector<64x256xf32>
    %cst_33 = arith.constant 9.99999968E-21 : f32
    %66 = vector.broadcast %cst_33 : f32 to vector<64x256xf32>
    %67 = arith.addf %65, %66 : vector<64x256xf32>
    %68 = tpu.reciprocal %67 {approx = true} : vector<64x256xf32> -> vector<64x256xf32>
    %69 = arith.mulf %63, %68 : vector<64x256xf32>
    %70 = arith.truncf %69 : vector<64x256xf32> to vector<64x256xbf16>
    %cst_34 = arith.constant dense<0.000000e+00> : vector<64x32xf32>
    %71 = tpu.matmul %70, %55, %cst_34 {dimension_numbers = #tpu.dot_dimension_numbers<[1], [0], [0], [1], [0, 0, 1, 1], [], []>} : vector<64x256xbf16>, vector<256x32xbf16>, vector<64x32xf32> -> vector<64x32xf32>
    %72 = arith.truncf %71 : vector<64x32xf32> to vector<64x32xbf16>
    %c0_35 = arith.constant 0 : index
    %c0_36 = arith.constant 0 : index
    %c0_37 = arith.constant 0 : index
    %73 = vector.load %arg10[%c0_35, %c0_36, %c0_37] : memref<2x32x32xbf16, #tpu.memory_space<vmem>>, vector<1x32x32xbf16>
    %74 = vector.shape_cast %73 : vector<1x32x32xbf16> to vector<32x32xbf16>
    %cst_38 = arith.constant dense<0.000000e+00> : vector<64x32xf32>
    %75 = tpu.matmul %72, %74, %cst_38 {dimension_numbers = #tpu.dot_dimension_numbers<[1], [0], [0], [1], [0, 0, 1, 1], [], []>} : vector<64x32xbf16>, vector<32x32xbf16>, vector<64x32xf32> -> vector<64x32xf32>
    %c0_39 = arith.constant 0 : index
    %c0_40 = arith.constant 0 : index
    %76 = vector.load %arg11[%c0_39, %c0_40] : memref<2x32xf32, #tpu.memory_space<vmem>>, vector<1x32xf32>
    %77 = vector.shape_cast %76 : vector<1x32xf32> to vector<32xf32>
    %78 = vector.shape_cast %77 : vector<32xf32> to vector<1x32xf32>
    %79 = vector.broadcast %78 : vector<1x32xf32> to vector<64x32xf32>
    %80 = arith.addf %75, %79 : vector<64x32xf32>
    %81 = arith.addf %12, %80 : vector<64x32xf32>
    %c0_41 = arith.constant 0 : index
    %c0_42 = arith.constant 0 : index
    %82 = vector.load %arg16[%c0_41, %c0_42] : memref<2x32xf32, #tpu.memory_space<vmem>>, vector<1x32xf32>
    %83 = vector.shape_cast %82 : vector<1x32xf32> to vector<32xf32>
    %c0_43 = arith.constant 0 : index
    %c0_44 = arith.constant 0 : index
    %84 = vector.load %arg17[%c0_43, %c0_44] : memref<2x32xf32, #tpu.memory_space<vmem>>, vector<1x32xf32>
    %85 = vector.shape_cast %84 : vector<1x32xf32> to vector<32xf32>
    %cst_45 = arith.constant dense<0.000000e+00> : vector<64xf32>
    %86 = vector.multi_reduction <add>, %81, %cst_45 [1] : vector<64x32xf32> to vector<64xf32>
    %87 = vector.shape_cast %86 : vector<64xf32> to vector<64x1xf32>
    %cst_46 = arith.constant 3.200000e+01 : f32
    %88 = vector.broadcast %cst_46 : f32 to vector<64x1xf32>
    %89 = arith.divf %87, %88 : vector<64x1xf32>
    %90 = vector.broadcast %89 : vector<64x1xf32> to vector<64x32xf32>
    %91 = arith.subf %81, %90 : vector<64x32xf32>
    %92 = arith.mulf %91, %91 : vector<64x32xf32>
    %cst_47 = arith.constant dense<0.000000e+00> : vector<64xf32>
    %93 = vector.multi_reduction <add>, %92, %cst_47 [1] : vector<64x32xf32> to vector<64xf32>
    %94 = vector.shape_cast %93 : vector<64xf32> to vector<64x1xf32>
    %cst_48 = arith.constant 3.200000e+01 : f32
    %95 = vector.broadcast %cst_48 : f32 to vector<64x1xf32>
    %96 = arith.divf %94, %95 : vector<64x1xf32>
    %97 = vector.broadcast %89 : vector<64x1xf32> to vector<64x32xf32>
    %98 = arith.subf %81, %97 : vector<64x32xf32>
    %cst_49 = arith.constant 9.99999974E-6 : f32
    %99 = vector.broadcast %cst_49 : f32 to vector<64x1xf32>
    %100 = arith.addf %96, %99 : vector<64x1xf32>
    %101 = math.rsqrt %100 : vector<64x1xf32>
    %102 = vector.broadcast %101 : vector<64x1xf32> to vector<64x32xf32>
    %103 = arith.mulf %98, %102 : vector<64x32xf32>
    %104 = vector.shape_cast %83 : vector<32xf32> to vector<1x32xf32>
    %105 = vector.broadcast %104 : vector<1x32xf32> to vector<64x32xf32>
    %106 = arith.mulf %103, %105 : vector<64x32xf32>
    %107 = vector.shape_cast %85 : vector<32xf32> to vector<1x32xf32>
    %108 = vector.broadcast %107 : vector<1x32xf32> to vector<64x32xf32>
    %109 = arith.addf %106, %108 : vector<64x32xf32>
    %110 = arith.truncf %109 : vector<64x32xf32> to vector<64x32xbf16>
    %c0_50 = arith.constant 0 : index
    %c0_51 = arith.constant 0 : index
    %c0_52 = arith.constant 0 : index
    %111 = vector.load %arg12[%c0_50, %c0_51, %c0_52] : memref<2x32x2048xbf16, #tpu.memory_space<vmem>>, vector<1x32x2048xbf16>
    %112 = vector.shape_cast %111 : vector<1x32x2048xbf16> to vector<32x2048xbf16>
    %cst_53 = arith.constant dense<0.000000e+00> : vector<64x2048xf32>
    %113 = tpu.matmul %110, %112, %cst_53 {dimension_numbers = #tpu.dot_dimension_numbers<[1], [0], [0], [1], [0, 0, 1, 1], [], []>} : vector<64x32xbf16>, vector<32x2048xbf16>, vector<64x2048xf32> -> vector<64x2048xf32>
    %c0_54 = arith.constant 0 : index
    %c0_55 = arith.constant 0 : index
    %114 = vector.load %arg13[%c0_54, %c0_55] : memref<2x2048xf32, #tpu.memory_space<vmem>>, vector<1x2048xf32>
    %115 = vector.shape_cast %114 : vector<1x2048xf32> to vector<2048xf32>
    %116 = vector.shape_cast %115 : vector<2048xf32> to vector<1x2048xf32>
    %117 = vector.broadcast %116 : vector<1x2048xf32> to vector<64x2048xf32>
    %118 = arith.addf %113, %117 : vector<64x2048xf32>
    %cst_56 = arith.constant 0.000000e+00 : f32
    %119 = vector.broadcast %cst_56 : f32 to vector<64x2048xf32>
    %120 = arith.maximumf %118, %119 : vector<64x2048xf32>
    %121 = arith.truncf %120 : vector<64x2048xf32> to vector<64x2048xbf16>
    %c0_57 = arith.constant 0 : index
    %c0_58 = arith.constant 0 : index
    %c0_59 = arith.constant 0 : index
    %122 = vector.load %arg14[%c0_57, %c0_58, %c0_59] : memref<2x2048x32xbf16, #tpu.memory_space<vmem>>, vector<1x2048x32xbf16>
    %123 = vector.shape_cast %122 : vector<1x2048x32xbf16> to vector<2048x32xbf16>
    %cst_60 = arith.constant dense<0.000000e+00> : vector<64x32xf32>
    %124 = tpu.matmul %121, %123, %cst_60 {dimension_numbers = #tpu.dot_dimension_numbers<[1], [0], [0], [1], [0, 0, 1, 1], [], []>} : vector<64x2048xbf16>, vector<2048x32xbf16>, vector<64x32xf32> -> vector<64x32xf32>
    %c0_61 = arith.constant 0 : index
    %c0_62 = arith.constant 0 : index
    %125 = vector.load %arg15[%c0_61, %c0_62] : memref<2x32xf32, #tpu.memory_space<vmem>>, vector<1x32xf32>
    %126 = vector.shape_cast %125 : vector<1x32xf32> to vector<32xf32>
    %127 = vector.shape_cast %126 : vector<32xf32> to vector<1x32xf32>
    %128 = vector.broadcast %127 : vector<1x32xf32> to vector<64x32xf32>
    %129 = arith.addf %124, %128 : vector<64x32xf32>
    %130 = arith.addf %109, %129 : vector<64x32xf32>
    %c0_63 = arith.constant 0 : index
    %c0_64 = arith.constant 0 : index
    %131 = vector.load %arg18[%c0_63, %c0_64] : memref<2x32xf32, #tpu.memory_space<vmem>>, vector<1x32xf32>
    %132 = vector.shape_cast %131 : vector<1x32xf32> to vector<32xf32>
    %c0_65 = arith.constant 0 : index
    %c0_66 = arith.constant 0 : index
    %133 = vector.load %arg19[%c0_65, %c0_66] : memref<2x32xf32, #tpu.memory_space<vmem>>, vector<1x32xf32>
    %134 = vector.shape_cast %133 : vector<1x32xf32> to vector<32xf32>
    %cst_67 = arith.constant dense<0.000000e+00> : vector<64xf32>
    %135 = vector.multi_reduction <add>, %130, %cst_67 [1] : vector<64x32xf32> to vector<64xf32>
    %136 = vector.shape_cast %135 : vector<64xf32> to vector<64x1xf32>
    %cst_68 = arith.constant 3.200000e+01 : f32
    %137 = vector.broadcast %cst_68 : f32 to vector<64x1xf32>
    %138 = arith.divf %136, %137 : vector<64x1xf32>
    %139 = vector.broadcast %138 : vector<64x1xf32> to vector<64x32xf32>
    %140 = arith.subf %130, %139 : vector<64x32xf32>
    %141 = arith.mulf %140, %140 : vector<64x32xf32>
    %cst_69 = arith.constant dense<0.000000e+00> : vector<64xf32>
    %142 = vector.multi_reduction <add>, %141, %cst_69 [1] : vector<64x32xf32> to vector<64xf32>
    %143 = vector.shape_cast %142 : vector<64xf32> to vector<64x1xf32>
    %cst_70 = arith.constant 3.200000e+01 : f32
    %144 = vector.broadcast %cst_70 : f32 to vector<64x1xf32>
    %145 = arith.divf %143, %144 : vector<64x1xf32>
    %146 = vector.broadcast %138 : vector<64x1xf32> to vector<64x32xf32>
    %147 = arith.subf %130, %146 : vector<64x32xf32>
    %cst_71 = arith.constant 9.99999974E-6 : f32
    %148 = vector.broadcast %cst_71 : f32 to vector<64x1xf32>
    %149 = arith.addf %145, %148 : vector<64x1xf32>
    %150 = math.rsqrt %149 : vector<64x1xf32>
    %151 = vector.broadcast %150 : vector<64x1xf32> to vector<64x32xf32>
    %152 = arith.mulf %147, %151 : vector<64x32xf32>
    %153 = vector.shape_cast %132 : vector<32xf32> to vector<1x32xf32>
    %154 = vector.broadcast %153 : vector<1x32xf32> to vector<64x32xf32>
    %155 = arith.mulf %152, %154 : vector<64x32xf32>
    %156 = vector.shape_cast %134 : vector<32xf32> to vector<1x32xf32>
    %157 = vector.broadcast %156 : vector<1x32xf32> to vector<64x32xf32>
    %158 = arith.addf %155, %157 : vector<64x32xf32>
    %159 = arith.truncf %158 : vector<64x32xf32> to vector<64x32xbf16>
    %c1 = arith.constant 1 : index
    %c0_72 = arith.constant 0 : index
    %c0_73 = arith.constant 0 : index
    %160 = vector.load %arg4[%c1, %c0_72, %c0_73] : memref<2x32x32xbf16, #tpu.memory_space<vmem>>, vector<1x32x32xbf16>
    %161 = vector.shape_cast %160 : vector<1x32x32xbf16> to vector<32x32xbf16>
    %cst_74 = arith.constant dense<0.000000e+00> : vector<64x32xf32>
    %162 = tpu.matmul %159, %161, %cst_74 {dimension_numbers = #tpu.dot_dimension_numbers<[1], [0], [0], [1], [0, 0, 1, 1], [], []>} : vector<64x32xbf16>, vector<32x32xbf16>, vector<64x32xf32> -> vector<64x32xf32>
    %c1_75 = arith.constant 1 : index
    %c0_76 = arith.constant 0 : index
    %163 = vector.load %arg7[%c1_75, %c0_76] : memref<2x32xf32, #tpu.memory_space<vmem>>, vector<1x32xf32>
    %164 = vector.shape_cast %163 : vector<1x32xf32> to vector<32xf32>
    %165 = vector.shape_cast %164 : vector<32xf32> to vector<1x32xf32>
    %166 = vector.broadcast %165 : vector<1x32xf32> to vector<64x32xf32>
    %167 = arith.addf %162, %166 : vector<64x32xf32>
    %c1_77 = arith.constant 1 : index
    %c0_78 = arith.constant 0 : index
    %c0_79 = arith.constant 0 : index
    %168 = vector.load %arg5[%c1_77, %c0_78, %c0_79] : memref<2x32x32xbf16, #tpu.memory_space<vmem>>, vector<1x32x32xbf16>
    %169 = vector.shape_cast %168 : vector<1x32x32xbf16> to vector<32x32xbf16>
    %cst_80 = arith.constant dense<0.000000e+00> : vector<64x32xf32>
    %170 = tpu.matmul %159, %169, %cst_80 {dimension_numbers = #tpu.dot_dimension_numbers<[1], [0], [0], [1], [0, 0, 1, 1], [], []>} : vector<64x32xbf16>, vector<32x32xbf16>, vector<64x32xf32> -> vector<64x32xf32>
    %c1_81 = arith.constant 1 : index
    %c0_82 = arith.constant 0 : index
    %171 = vector.load %arg8[%c1_81, %c0_82] : memref<2x32xf32, #tpu.memory_space<vmem>>, vector<1x32xf32>
    %172 = vector.shape_cast %171 : vector<1x32xf32> to vector<32xf32>
    %173 = vector.shape_cast %172 : vector<32xf32> to vector<1x32xf32>
    %174 = vector.broadcast %173 : vector<1x32xf32> to vector<64x32xf32>
    %175 = arith.addf %170, %174 : vector<64x32xf32>
    %c1_83 = arith.constant 1 : index
    %c0_84 = arith.constant 0 : index
    %c0_85 = arith.constant 0 : index
    %176 = vector.load %arg6[%c1_83, %c0_84, %c0_85] : memref<2x32x32xbf16, #tpu.memory_space<vmem>>, vector<1x32x32xbf16>
    %177 = vector.shape_cast %176 : vector<1x32x32xbf16> to vector<32x32xbf16>
    %cst_86 = arith.constant dense<0.000000e+00> : vector<64x32xf32>
    %178 = tpu.matmul %159, %177, %cst_86 {dimension_numbers = #tpu.dot_dimension_numbers<[1], [0], [0], [1], [0, 0, 1, 1], [], []>} : vector<64x32xbf16>, vector<32x32xbf16>, vector<64x32xf32> -> vector<64x32xf32>
    %c1_87 = arith.constant 1 : index
    %c0_88 = arith.constant 0 : index
    %179 = vector.load %arg9[%c1_87, %c0_88] : memref<2x32xf32, #tpu.memory_space<vmem>>, vector<1x32xf32>
    %180 = vector.shape_cast %179 : vector<1x32xf32> to vector<32xf32>
    %181 = vector.shape_cast %180 : vector<32xf32> to vector<1x32xf32>
    %182 = vector.broadcast %181 : vector<1x32xf32> to vector<64x32xf32>
    %183 = arith.addf %178, %182 : vector<64x32xf32>
    %184 = arith.truncf %175 : vector<64x32xf32> to vector<64x32xbf16>
    %185 = vector.shape_cast %184 : vector<64x32xbf16> to vector<8x1x8x32xbf16>
    %186 = arith.truncf %183 : vector<64x32xf32> to vector<64x32xbf16>
    %187 = vector.shape_cast %186 : vector<64x32xbf16> to vector<8x1x8x32xbf16>
    %188 = vector.shape_cast %185 : vector<8x1x8x32xbf16> to vector<8x1x8x32xbf16>
    %189 = vector.broadcast %188 : vector<8x1x8x32xbf16> to vector<8x4x8x32xbf16>
    %190 = vector.shape_cast %189 : vector<8x4x8x32xbf16> to vector<8x32x32xbf16>
    %191 = vector.shape_cast %0 : vector<32x32xbf16> to vector<1x32x32xbf16>
    %192 = vector.broadcast %191 : vector<1x32x32xbf16> to vector<8x32x32xbf16>
    %193 = arith.mulf %190, %192 : vector<8x32x32xbf16>
    %194 = vector.shape_cast %193 : vector<8x32x32xbf16> to vector<256x32xbf16>
    %195 = vector.shape_cast %187 : vector<8x1x8x32xbf16> to vector<8x1x8x32xbf16>
    %196 = vector.broadcast %195 : vector<8x1x8x32xbf16> to vector<8x4x8x32xbf16>
    %197 = vector.shape_cast %196 : vector<8x4x8x32xbf16> to vector<8x32x32xbf16>
    %198 = vector.shape_cast %0 : vector<32x32xbf16> to vector<1x32x32xbf16>
    %199 = vector.broadcast %198 : vector<1x32x32xbf16> to vector<8x32x32xbf16>
    %200 = arith.mulf %197, %199 : vector<8x32x32xbf16>
    %201 = vector.shape_cast %200 : vector<8x32x32xbf16> to vector<256x32xbf16>
    %202 = arith.truncf %167 : vector<64x32xf32> to vector<64x32xbf16>
    "tpu.trace_start"() <{level = 10 : i32, message = "qd,rd->qr"}> : () -> ()
    %cst_89 = arith.constant dense<0.000000e+00> : vector<64x256xf32>
    %203 = tpu.matmul %202, %194, %cst_89 {dimension_numbers = #tpu.dot_dimension_numbers<[1], [1], [0], [0], [0, 0, 1, 0], [], []>} : vector<64x32xbf16>, vector<256x32xbf16>, vector<64x256xf32> -> vector<64x256xf32>
    "tpu.trace_stop"() : () -> ()
    %204 = arith.addf %203, %2 : vector<64x256xf32>
    %cst_90 = arith.constant dense<0xFF800000> : vector<64xf32>
    %205 = vector.multi_reduction <maximumf>, %204, %cst_90 [1] : vector<64x256xf32> to vector<64xf32>
    %206 = vector.shape_cast %205 : vector<64xf32> to vector<64x1xf32>
    %207 = vector.broadcast %206 : vector<64x1xf32> to vector<64x256xf32>
    %208 = arith.subf %204, %207 : vector<64x256xf32>
    %209 = math.exp %208 : vector<64x256xf32>
    %210 = arith.truncf %209 : vector<64x256xf32> to vector<64x256xbf16>
    %cst_91 = arith.constant dense<0.000000e+00> : vector<64x256xf32>
    %211 = tpu.matmul %210, %1, %cst_91 {dimension_numbers = #tpu.dot_dimension_numbers<[1], [0], [0], [1], [0, 0, 1, 1], [], []>} : vector<64x256xbf16>, vector<256x256xbf16>, vector<64x256xf32> -> vector<64x256xf32>
    %cst_92 = arith.constant 9.99999968E-21 : f32
    %212 = vector.broadcast %cst_92 : f32 to vector<64x256xf32>
    %213 = arith.addf %211, %212 : vector<64x256xf32>
    %214 = tpu.reciprocal %213 {approx = true} : vector<64x256xf32> -> vector<64x256xf32>
    %215 = arith.mulf %209, %214 : vector<64x256xf32>
    %216 = arith.truncf %215 : vector<64x256xf32> to vector<64x256xbf16>
    %cst_93 = arith.constant dense<0.000000e+00> : vector<64x32xf32>
    %217 = tpu.matmul %216, %201, %cst_93 {dimension_numbers = #tpu.dot_dimension_numbers<[1], [0], [0], [1], [0, 0, 1, 1], [], []>} : vector<64x256xbf16>, vector<256x32xbf16>, vector<64x32xf32> -> vector<64x32xf32>
    %218 = arith.truncf %217 : vector<64x32xf32> to vector<64x32xbf16>
    %c1_94 = arith.constant 1 : index
    %c0_95 = arith.constant 0 : index
    %c0_96 = arith.constant 0 : index
    %219 = vector.load %arg10[%c1_94, %c0_95, %c0_96] : memref<2x32x32xbf16, #tpu.memory_space<vmem>>, vector<1x32x32xbf16>
    %220 = vector.shape_cast %219 : vector<1x32x32xbf16> to vector<32x32xbf16>
    %cst_97 = arith.constant dense<0.000000e+00> : vector<64x32xf32>
    %221 = tpu.matmul %218, %220, %cst_97 {dimension_numbers = #tpu.dot_dimension_numbers<[1], [0], [0], [1], [0, 0, 1, 1], [], []>} : vector<64x32xbf16>, vector<32x32xbf16>, vector<64x32xf32> -> vector<64x32xf32>
    %c1_98 = arith.constant 1 : index
    %c0_99 = arith.constant 0 : index
    %222 = vector.load %arg11[%c1_98, %c0_99] : memref<2x32xf32, #tpu.memory_space<vmem>>, vector<1x32xf32>
    %223 = vector.shape_cast %222 : vector<1x32xf32> to vector<32xf32>
    %224 = vector.shape_cast %223 : vector<32xf32> to vector<1x32xf32>
    %225 = vector.broadcast %224 : vector<1x32xf32> to vector<64x32xf32>
    %226 = arith.addf %221, %225 : vector<64x32xf32>
    %227 = arith.addf %158, %226 : vector<64x32xf32>
    %c1_100 = arith.constant 1 : index
    %c0_101 = arith.constant 0 : index
    %228 = vector.load %arg16[%c1_100, %c0_101] : memref<2x32xf32, #tpu.memory_space<vmem>>, vector<1x32xf32>
    %229 = vector.shape_cast %228 : vector<1x32xf32> to vector<32xf32>
    %c1_102 = arith.constant 1 : index
    %c0_103 = arith.constant 0 : index
    %230 = vector.load %arg17[%c1_102, %c0_103] : memref<2x32xf32, #tpu.memory_space<vmem>>, vector<1x32xf32>
    %231 = vector.shape_cast %230 : vector<1x32xf32> to vector<32xf32>
    %cst_104 = arith.constant dense<0.000000e+00> : vector<64xf32>
    %232 = vector.multi_reduction <add>, %227, %cst_104 [1] : vector<64x32xf32> to vector<64xf32>
    %233 = vector.shape_cast %232 : vector<64xf32> to vector<64x1xf32>
    %cst_105 = arith.constant 3.200000e+01 : f32
    %234 = vector.broadcast %cst_105 : f32 to vector<64x1xf32>
    %235 = arith.divf %233, %234 : vector<64x1xf32>
    %236 = vector.broadcast %235 : vector<64x1xf32> to vector<64x32xf32>
    %237 = arith.subf %227, %236 : vector<64x32xf32>
    %238 = arith.mulf %237, %237 : vector<64x32xf32>
    %cst_106 = arith.constant dense<0.000000e+00> : vector<64xf32>
    %239 = vector.multi_reduction <add>, %238, %cst_106 [1] : vector<64x32xf32> to vector<64xf32>
    %240 = vector.shape_cast %239 : vector<64xf32> to vector<64x1xf32>
    %cst_107 = arith.constant 3.200000e+01 : f32
    %241 = vector.broadcast %cst_107 : f32 to vector<64x1xf32>
    %242 = arith.divf %240, %241 : vector<64x1xf32>
    %243 = vector.broadcast %235 : vector<64x1xf32> to vector<64x32xf32>
    %244 = arith.subf %227, %243 : vector<64x32xf32>
    %cst_108 = arith.constant 9.99999974E-6 : f32
    %245 = vector.broadcast %cst_108 : f32 to vector<64x1xf32>
    %246 = arith.addf %242, %245 : vector<64x1xf32>
    %247 = math.rsqrt %246 : vector<64x1xf32>
    %248 = vector.broadcast %247 : vector<64x1xf32> to vector<64x32xf32>
    %249 = arith.mulf %244, %248 : vector<64x32xf32>
    %250 = vector.shape_cast %229 : vector<32xf32> to vector<1x32xf32>
    %251 = vector.broadcast %250 : vector<1x32xf32> to vector<64x32xf32>
    %252 = arith.mulf %249, %251 : vector<64x32xf32>
    %253 = vector.shape_cast %231 : vector<32xf32> to vector<1x32xf32>
    %254 = vector.broadcast %253 : vector<1x32xf32> to vector<64x32xf32>
    %255 = arith.addf %252, %254 : vector<64x32xf32>
    %256 = arith.truncf %255 : vector<64x32xf32> to vector<64x32xbf16>
    %c1_109 = arith.constant 1 : index
    %c0_110 = arith.constant 0 : index
    %c0_111 = arith.constant 0 : index
    %257 = vector.load %arg12[%c1_109, %c0_110, %c0_111] : memref<2x32x2048xbf16, #tpu.memory_space<vmem>>, vector<1x32x2048xbf16>
    %258 = vector.shape_cast %257 : vector<1x32x2048xbf16> to vector<32x2048xbf16>
    %cst_112 = arith.constant dense<0.000000e+00> : vector<64x2048xf32>
    %259 = tpu.matmul %256, %258, %cst_112 {dimension_numbers = #tpu.dot_dimension_numbers<[1], [0], [0], [1], [0, 0, 1, 1], [], []>} : vector<64x32xbf16>, vector<32x2048xbf16>, vector<64x2048xf32> -> vector<64x2048xf32>
    %c1_113 = arith.constant 1 : index
    %c0_114 = arith.constant 0 : index
    %260 = vector.load %arg13[%c1_113, %c0_114] : memref<2x2048xf32, #tpu.memory_space<vmem>>, vector<1x2048xf32>
    %261 = vector.shape_cast %260 : vector<1x2048xf32> to vector<2048xf32>
    %262 = vector.shape_cast %261 : vector<2048xf32> to vector<1x2048xf32>
    %263 = vector.broadcast %262 : vector<1x2048xf32> to vector<64x2048xf32>
    %264 = arith.addf %259, %263 : vector<64x2048xf32>
    %cst_115 = arith.constant 0.000000e+00 : f32
    %265 = vector.broadcast %cst_115 : f32 to vector<64x2048xf32>
    %266 = arith.maximumf %264, %265 : vector<64x2048xf32>
    %267 = arith.truncf %266 : vector<64x2048xf32> to vector<64x2048xbf16>
    %c1_116 = arith.constant 1 : index
    %c0_117 = arith.constant 0 : index
    %c0_118 = arith.constant 0 : index
    %268 = vector.load %arg14[%c1_116, %c0_117, %c0_118] : memref<2x2048x32xbf16, #tpu.memory_space<vmem>>, vector<1x2048x32xbf16>
    %269 = vector.shape_cast %268 : vector<1x2048x32xbf16> to vector<2048x32xbf16>
    %cst_119 = arith.constant dense<0.000000e+00> : vector<64x32xf32>
    %270 = tpu.matmul %267, %269, %cst_119 {dimension_numbers = #tpu.dot_dimension_numbers<[1], [0], [0], [1], [0, 0, 1, 1], [], []>} : vector<64x2048xbf16>, vector<2048x32xbf16>, vector<64x32xf32> -> vector<64x32xf32>
    %c1_120 = arith.constant 1 : index
    %c0_121 = arith.constant 0 : index
    %271 = vector.load %arg15[%c1_120, %c0_121] : memref<2x32xf32, #tpu.memory_space<vmem>>, vector<1x32xf32>
    %272 = vector.shape_cast %271 : vector<1x32xf32> to vector<32xf32>
    %273 = vector.shape_cast %272 : vector<32xf32> to vector<1x32xf32>
    %274 = vector.broadcast %273 : vector<1x32xf32> to vector<64x32xf32>
    %275 = arith.addf %270, %274 : vector<64x32xf32>
    %276 = arith.addf %255, %275 : vector<64x32xf32>
    %c1_122 = arith.constant 1 : index
    %c0_123 = arith.constant 0 : index
    %277 = vector.load %arg18[%c1_122, %c0_123] : memref<2x32xf32, #tpu.memory_space<vmem>>, vector<1x32xf32>
    %278 = vector.shape_cast %277 : vector<1x32xf32> to vector<32xf32>
    %c1_124 = arith.constant 1 : index
    %c0_125 = arith.constant 0 : index
    %279 = vector.load %arg19[%c1_124, %c0_125] : memref<2x32xf32, #tpu.memory_space<vmem>>, vector<1x32xf32>
    %280 = vector.shape_cast %279 : vector<1x32xf32> to vector<32xf32>
    %cst_126 = arith.constant dense<0.000000e+00> : vector<64xf32>
    %281 = vector.multi_reduction <add>, %276, %cst_126 [1] : vector<64x32xf32> to vector<64xf32>
    %282 = vector.shape_cast %281 : vector<64xf32> to vector<64x1xf32>
    %cst_127 = arith.constant 3.200000e+01 : f32
    %283 = vector.broadcast %cst_127 : f32 to vector<64x1xf32>
    %284 = arith.divf %282, %283 : vector<64x1xf32>
    %285 = vector.broadcast %284 : vector<64x1xf32> to vector<64x32xf32>
    %286 = arith.subf %276, %285 : vector<64x32xf32>
    %287 = arith.mulf %286, %286 : vector<64x32xf32>
    %cst_128 = arith.constant dense<0.000000e+00> : vector<64xf32>
    %288 = vector.multi_reduction <add>, %287, %cst_128 [1] : vector<64x32xf32> to vector<64xf32>
    %289 = vector.shape_cast %288 : vector<64xf32> to vector<64x1xf32>
    %cst_129 = arith.constant 3.200000e+01 : f32
    %290 = vector.broadcast %cst_129 : f32 to vector<64x1xf32>
    %291 = arith.divf %289, %290 : vector<64x1xf32>
    %292 = vector.broadcast %284 : vector<64x1xf32> to vector<64x32xf32>
    %293 = arith.subf %276, %292 : vector<64x32xf32>
    %cst_130 = arith.constant 9.99999974E-6 : f32
    %294 = vector.broadcast %cst_130 : f32 to vector<64x1xf32>
    %295 = arith.addf %291, %294 : vector<64x1xf32>
    %296 = math.rsqrt %295 : vector<64x1xf32>
    %297 = vector.broadcast %296 : vector<64x1xf32> to vector<64x32xf32>
    %298 = arith.mulf %293, %297 : vector<64x32xf32>
    %299 = vector.shape_cast %278 : vector<32xf32> to vector<1x32xf32>
    %300 = vector.broadcast %299 : vector<1x32xf32> to vector<64x32xf32>
    %301 = arith.mulf %298, %300 : vector<64x32xf32>
    %302 = vector.shape_cast %280 : vector<32xf32> to vector<1x32xf32>
    %303 = vector.broadcast %302 : vector<1x32xf32> to vector<64x32xf32>
    %304 = arith.addf %301, %303 : vector<64x32xf32>
    %305 = vector.shape_cast %304 : vector<64x32xf32> to vector<8x8x32xf32>
    %306 = vector.extract_strided_slice %305 {offsets = [0, 0, 0], sizes = [8, 1, 32], strides = [1, 1, 1]} : vector<8x8x32xf32> to vector<8x1x32xf32>
    %307 = vector.shape_cast %306 : vector<8x1x32xf32> to vector<8x32xf32>
    %308 = arith.truncf %307 : vector<8x32xf32> to vector<8x32xbf16>
    %c0_131 = arith.constant 0 : index
    %c0_132 = arith.constant 0 : index
    %309 = vector.load %arg20[%c0_131, %c0_132] : memref<32x128xbf16, #tpu.memory_space<vmem>>, vector<32x128xbf16>
    %cst_133 = arith.constant dense<0.000000e+00> : vector<8x128xf32>
    %310 = tpu.matmul %308, %309, %cst_133 {dimension_numbers = #tpu.dot_dimension_numbers<[1], [0], [0], [1], [0, 0, 1, 1], [], []>} : vector<8x32xbf16>, vector<32x128xbf16>, vector<8x128xf32> -> vector<8x128xf32>
    %c0_134 = arith.constant 0 : index
    %c0_135 = arith.constant 0 : index
    %311 = vector.load %arg21[%c0_134, %c0_135] : memref<1x128xf32, #tpu.memory_space<vmem>>, vector<1x128xf32>
    %312 = vector.shape_cast %311 : vector<1x128xf32> to vector<128xf32>
    %313 = vector.shape_cast %312 : vector<128xf32> to vector<1x128xf32>
    %314 = vector.broadcast %313 : vector<1x128xf32> to vector<8x128xf32>
    %315 = arith.addf %310, %314 : vector<8x128xf32>
    %316 = arith.negf %315 : vector<8x128xf32>
    %317 = math.exp %316 : vector<8x128xf32>
    %cst_136 = arith.constant 1.000000e+00 : f32
    %318 = vector.broadcast %cst_136 : f32 to vector<8x128xf32>
    %319 = arith.addf %318, %317 : vector<8x128xf32>
    %320 = arith.divf %318, %319 : vector<8x128xf32>
    %c0_137 = arith.constant 0 : index
    %c0_138 = arith.constant 0 : index
    %321 = vector.load %arg25[%c0_137, %c0_138] : memref<8x128xf32, #tpu.memory_space<vmem>>, vector<8x128xf32>
    tpu.vector_store %arg25[%c0_137, %c0_138], %320 {strides = array<i32>} : memref<8x128xf32, #tpu.memory_space<vmem>>, vector<8x128xf32>,
    return
  }
  func.func @transform_0(%arg0: i32) -> (i32, i32, i32) {
    %c0_i32 = arith.constant 0 : i32
    %c0_i32_0 = arith.constant 0 : i32
    %c0_i32_1 = arith.constant 0 : i32
    return %arg0, %c0_i32, %c0_i32_0 : i32, i32, i32
  }
  func.func @transform_1(%arg0: i32) -> (i32, i32) {
    %c0_i32 = arith.constant 0 : i32
    %c0_i32_0 = arith.constant 0 : i32
    %c0_i32_1 = arith.constant 0 : i32
    return %c0_i32, %c0_i32_0 : i32, i32
  }
  func.func @transform_2(%arg0: i32) -> (i32, i32) {
    %c0_i32 = arith.constant 0 : i32
    %c0_i32_0 = arith.constant 0 : i32
    %c0_i32_1 = arith.constant 0 : i32
    return %c0_i32, %c0_i32_0 : i32, i32
  }
  func.func @transform_3(%arg0: i32) -> (i32, i32, i32) {
    %c0_i32 = arith.constant 0 : i32
    %c0_i32_0 = arith.constant 0 : i32
    %c0_i32_1 = arith.constant 0 : i32
    %c0_i32_2 = arith.constant 0 : i32
    return %c0_i32, %c0_i32_0, %c0_i32_1 : i32, i32, i32
  }
  func.func @transform_4(%arg0: i32) -> (i32, i32, i32) {
    %c0_i32 = arith.constant 0 : i32
    %c0_i32_0 = arith.constant 0 : i32
    %c0_i32_1 = arith.constant 0 : i32
    %c0_i32_2 = arith.constant 0 : i32
    return %c0_i32, %c0_i32_0, %c0_i32_1 : i32, i32, i32
  }
  func.func @transform_5(%arg0: i32) -> (i32, i32, i32) {
    %c0_i32 = arith.constant 0 : i32
    %c0_i32_0 = arith.constant 0 : i32
    %c0_i32_1 = arith.constant 0 : i32
    %c0_i32_2 = arith.constant 0 : i32
    return %c0_i32, %c0_i32_0, %c0_i32_1 : i32, i32, i32
  }
  func.func @transform_6(%arg0: i32) -> (i32, i32) {
    %c0_i32 = arith.constant 0 : i32
    %c0_i32_0 = arith.constant 0 : i32
    %c0_i32_1 = arith.constant 0 : i32
    return %c0_i32, %c0_i32_0 : i32, i32
  }
  func.func @transform_7(%arg0: i32) -> (i32, i32) {
    %c0_i32 = arith.constant 0 : i32
    %c0_i32_0 = arith.constant 0 : i32
    %c0_i32_1 = arith.constant 0 : i32
    return %c0_i32, %c0_i32_0 : i32, i32
  }
  func.func @transform_8(%arg0: i32) -> (i32, i32) {
    %c0_i32 = arith.constant 0 : i32
    %c0_i32_0 = arith.constant 0 : i32
    %c0_i32_1 = arith.constant 0 : i32
    return %c0_i32, %c0_i32_0 : i32, i32
  }
  func.func @transform_9(%arg0: i32) -> (i32, i32, i32) {
    %c0_i32 = arith.constant 0 : i32
    %c0_i32_0 = arith.constant 0 : i32
    %c0_i32_1 = arith.constant 0 : i32
    %c0_i32_2 = arith.constant 0 : i32
    return %c0_i32, %c0_i32_0, %c0_i32_1 : i32, i32, i32
  }
  func.func @transform_10(%arg0: i32) -> (i32, i32) {
    %c0_i32 = arith.constant 0 : i32
    %c0_i32_0 = arith.constant 0 : i32
    %c0_i32_1 = arith.constant 0 : i32
    return %c0_i32, %c0_i32_0 : i32, i32
  }
  func.func @transform_11(%arg0: i32) -> (i32, i32, i32) {
    %c0_i32 = arith.constant 0 : i32
    %c0_i32_0 = arith.constant 0 : i32
    %c0_i32_1 = arith.constant 0 : i32
    %c0_i32_2 = arith.constant 0 : i32
    return %c0_i32, %c0_i32_0, %c0_i32_1 : i32, i32, i32
  }
  func.func @transform_12(%arg0: i32) -> (i32, i32) {
    %c0_i32 = arith.constant 0 : i32
    %c0_i32_0 = arith.constant 0 : i32
    %c0_i32_1 = arith.constant 0 : i32
    return %c0_i32, %c0_i32_0 : i32, i32
  }
  func.func @transform_13(%arg0: i32) -> (i32, i32, i32) {
    %c0_i32 = arith.constant 0 : i32
    %c0_i32_0 = arith.constant 0 : i32
    %c0_i32_1 = arith.constant 0 : i32
    %c0_i32_2 = arith.constant 0 : i32
    return %c0_i32, %c0_i32_0, %c0_i32_1 : i32, i32, i32
  }
  func.func @transform_14(%arg0: i32) -> (i32, i32) {
    %c0_i32 = arith.constant 0 : i32
    %c0_i32_0 = arith.constant 0 : i32
    %c0_i32_1 = arith.constant 0 : i32
    return %c0_i32, %c0_i32_0 : i32, i32
  }
  func.func @transform_15(%arg0: i32) -> (i32, i32) {
    %c0_i32 = arith.constant 0 : i32
    %c0_i32_0 = arith.constant 0 : i32
    %c0_i32_1 = arith.constant 0 : i32
    return %c0_i32, %c0_i32_0 : i32, i32
  }
  func.func @transform_16(%arg0: i32) -> (i32, i32) {
    %c0_i32 = arith.constant 0 : i32
    %c0_i32_0 = arith.constant 0 : i32
    %c0_i32_1 = arith.constant 0 : i32
    return %c0_i32, %c0_i32_0 : i32, i32
  }
  func.func @transform_17(%arg0: i32) -> (i32, i32) {
    %c0_i32 = arith.constant 0 : i32
    %c0_i32_0 = arith.constant 0 : i32
    %c0_i32_1 = arith.constant 0 : i32
    return %c0_i32, %c0_i32_0 : i32, i32
  }
  func.func @transform_18(%arg0: i32) -> (i32, i32) {
    %c0_i32 = arith.constant 0 : i32
    %c0_i32_0 = arith.constant 0 : i32
    %c0_i32_1 = arith.constant 0 : i32
    return %c0_i32, %c0_i32_0 : i32, i32
  }
  func.func @transform_19(%arg0: i32) -> (i32, i32) {
    %c0_i32 = arith.constant 0 : i32
    %c0_i32_0 = arith.constant 0 : i32
    %c0_i32_1 = arith.constant 0 : i32
    return %c0_i32, %c0_i32_0 : i32, i32
  }
  func.func @transform_20(%arg0: i32) -> (i32, i32) {
    %c0_i32 = arith.constant 0 : i32
    %c0_i32_0 = arith.constant 0 : i32
    %c0_i32_1 = arith.constant 0 : i32
    return %c0_i32, %c0_i32_0 : i32, i32
  }
  func.func @transform_21(%arg0: i32) -> (i32, i32) {
    %c0_i32 = arith.constant 0 : i32
    %c0_i32_0 = arith.constant 0 : i32
    %c0_i32_1 = arith.constant 0 : i32
    return %c0_i32, %c0_i32_0 : i32, i32
  }
  func.func @transform_22(%arg0: i32) -> (i32, i32) {
    %c0_i32 = arith.constant 0 : i32
    %c0_i32_0 = arith.constant 0 : i32
    %c0_i32_1 = arith.constant 0 : i32
    return %c0_i32, %c0_i32_0 : i32, i32
  }
  func.func @transform_23(%arg0: i32) -> (i32, i32) {
    %c0_i32 = arith.constant 0 : i32
    %c0_i32_0 = arith.constant 0 : i32
    %c0_i32_1 = arith.constant 0 : i32
    return %c0_i32, %c0_i32_0 : i32, i32
  }
  func.func @transform_24(%arg0: i32) -> (i32, i32) {
    %c0_i32 = arith.constant 0 : i32
    %c0_i32_0 = arith.constant 0 : i32
    return %arg0, %c0_i32 : i32, i32
  }
}

</mosaic_0001>

<llo_original>
// kernel: tpu_custom_call.1
$region0: #{tpu_custom_call.1}
  #allocation0 [shape = 'u32[]', space=smem, size = 0x4, offset = 0x4, fixed_abs, tag = 'smem constant byte address 0x4 - core index']
  #allocation1 [shape = 'u32[144,128]{1,0:T(1,128)}', space=vmem, size = 0x12000, scoped, tag = 'internal scratch']
  %s0 = inlined_call_operand.vmem [shape: f32[8,8,16], index: 0, kind: input, shape index: {}]
  %s1 = inlined_call_operand.vmem [shape: bf16[16,32], index: 1, kind: input, shape index: {}]
  %s2 = inlined_call_operand.vmem [shape: f32[1,32], index: 2, kind: input, shape index: {}]
  %s3 = inlined_call_operand.vmem [shape: bf16[2,32,32], index: 3, kind: input, shape index: {}]
  %s4 = inlined_call_operand.vmem [shape: bf16[2,32,32], index: 4, kind: input, shape index: {}]
  %s5 = inlined_call_operand.vmem [shape: bf16[2,32,32], index: 5, kind: input, shape index: {}]
  %s6 = inlined_call_operand.vmem [shape: f32[2,32], index: 6, kind: input, shape index: {}]
  %s7 = inlined_call_operand.vmem [shape: f32[2,32], index: 7, kind: input, shape index: {}]
  %s8 = inlined_call_operand.vmem [shape: f32[2,32], index: 8, kind: input, shape index: {}]
  %s9 = inlined_call_operand.vmem [shape: bf16[2,32,32], index: 9, kind: input, shape index: {}]
  %s10 = inlined_call_operand.vmem [shape: f32[2,32], index: 10, kind: input, shape index: {}]
  %s11 = inlined_call_operand.vmem [shape: bf16[2,32,2048], index: 11, kind: input, shape index: {}]
  %s12 = inlined_call_operand.vmem [shape: f32[2,2048], index: 12, kind: input, shape index: {}]
  %s13 = inlined_call_operand.vmem [shape: bf16[2,2048,32], index: 13, kind: input, shape index: {}]
  %s14 = inlined_call_operand.vmem [shape: f32[2,32], index: 14, kind: input, shape index: {}]
  %s15 = inlined_call_operand.vmem [shape: f32[2,32], index: 15, kind: input, shape index: {}]
  %s16 = inlined_call_operand.vmem [shape: f32[2,32], index: 16, kind: input, shape index: {}]
  %s17 = inlined_call_operand.vmem [shape: f32[2,32], index: 17, kind: input, shape index: {}]
  %s18 = inlined_call_operand.vmem [shape: f32[2,32], index: 18, kind: input, shape index: {}]
  %s19 = inlined_call_operand.vmem [shape: bf16[32,128], index: 19, kind: input, shape index: {}]
  %s20 = inlined_call_operand.vmem [shape: f32[1,128], index: 20, kind: input, shape index: {}]
  %s21 = inlined_call_operand.vmem [shape: bf16[32,32], index: 21, kind: input, shape index: {}]
  %s22 = inlined_call_operand.vmem [shape: bf16[256,256], index: 22, kind: input, shape index: {}]
  %s23 = inlined_call_operand.vmem [shape: f32[64,256], index: 23, kind: input, shape index: {}]
  %s24 = inlined_call_operand.hbm [shape: f32[8,128], index: 24, kind: output, shape index: {}]
  %s25 = sld [smem:[#allocation0]]
  $region106: #{tpu_custom_call.1} parent=0
    _
  %s27 = ssub.s32 1, %s25
  %s28 = scalar_select 0, %s27, %s25
  $region1: #{tpu_custom_call.1} parent=0
    #allocation2 [shape = 'u8[4096]{0}', space=vmem, size = 0x1000, scoped, tag = 'output window, operand 0, single buffered']
    #allocation3 [shape = 's32[1]{0}', space=sflag, size = 0x4, scoped, tag = 'scoped memory for tpu_custom_call.1']
    %29 = vsyncpa [#allocation3], 0
    // Predicated region
    $region2: #{tpu_custom_call.1} parent=1 // pred_check
      _
    $region3: #{tpu_custom_call.1} parent=1 // pred_check_branch
      %31 = sbr.rel (0) target = $region5
    $region4: #{tpu_custom_call.1} parent=1 // pred_region
      _
    $region5: #{tpu_custom_call.1} parent=1 // pred_fallthru
      _
    // Predicated region
    $region6: #{tpu_custom_call.1} parent=1 // pred_check
      _
    $region7: #{tpu_custom_call.1} parent=1 // pred_check_branch
      %33 = sbr.rel (0) target = $region9
    $region8: #{tpu_custom_call.1} parent=1 // pred_region
      _
    $region9: #{tpu_custom_call.1} parent=1 // pred_fallthru
      _
    // Predicated region
    $region10: #{tpu_custom_call.1} parent=1 // pred_check
      _
    $region11: #{tpu_custom_call.1} parent=1 // pred_check_branch
      %35 = sbr.rel (0) target = $region13
    $region12: #{tpu_custom_call.1} parent=1 // pred_region
      _
    $region13: #{tpu_custom_call.1} parent=1 // pred_fallthru
      _
    // Predicated region
    $region14: #{tpu_custom_call.1} parent=1 // pred_check
      _
    $region15: #{tpu_custom_call.1} parent=1 // pred_check_branch
      %37 = sbr.rel (0) target = $region17
    $region16: #{tpu_custom_call.1} parent=1 // pred_region
      _
    $region17: #{tpu_custom_call.1} parent=1 // pred_fallthru
      _
    // Predicated region
    $region18: #{tpu_custom_call.1} parent=1 // pred_check
      _
    $region19: #{tpu_custom_call.1} parent=1 // pred_check_branch
      %39 = sbr.rel (0) target = $region21
    $region20: #{tpu_custom_call.1} parent=1 // pred_region
      _
    $region21: #{tpu_custom_call.1} parent=1 // pred_fallthru
      _
    // Predicated region
    $region22: #{tpu_custom_call.1} parent=1 // pred_check
      _
    $region23: #{tpu_custom_call.1} parent=1 // pred_check_branch
      %41 = sbr.rel (0) target = $region25
    $region24: #{tpu_custom_call.1} parent=1 // pred_region
      _
    $region25: #{tpu_custom_call.1} parent=1 // pred_fallthru
      _
    // Predicated region
    $region26: #{tpu_custom_call.1} parent=1 // pred_check
      _
    $region27: #{tpu_custom_call.1} parent=1 // pred_check_branch
      %43 = sbr.rel (0) target = $region29
    $region28: #{tpu_custom_call.1} parent=1 // pred_region
      _
    $region29: #{tpu_custom_call.1} parent=1 // pred_fallthru
      _
    // Predicated region
    $region30: #{tpu_custom_call.1} parent=1 // pred_check
      _
    $region31: #{tpu_custom_call.1} parent=1 // pred_check_branch
      %45 = sbr.rel (0) target = $region33
    $region32: #{tpu_custom_call.1} parent=1 // pred_region
      _
    $region33: #{tpu_custom_call.1} parent=1 // pred_fallthru
      _
    // Predicated region
    $region34: #{tpu_custom_call.1} parent=1 // pred_check
      _
    $region35: #{tpu_custom_call.1} parent=1 // pred_check_branch
      %47 = sbr.rel (0) target = $region37
    $region36: #{tpu_custom_call.1} parent=1 // pred_region
      _
    $region37: #{tpu_custom_call.1} parent=1 // pred_fallthru
      _
    // Predicated region
    $region38: #{tpu_custom_call.1} parent=1 // pred_check
      _
    $region39: #{tpu_custom_call.1} parent=1 // pred_check_branch
      %49 = sbr.rel (0) target = $region41
    $region40: #{tpu_custom_call.1} parent=1 // pred_region
      _
    $region41: #{tpu_custom_call.1} parent=1 // pred_fallthru
      _
    // Predicated region
    $region42: #{tpu_custom_call.1} parent=1 // pred_check
      _
    $region43: #{tpu_custom_call.1} parent=1 // pred_check_branch
      %51 = sbr.rel (0) target = $region45
    $region44: #{tpu_custom_call.1} parent=1 // pred_region
      _
    $region45: #{tpu_custom_call.1} parent=1 // pred_fallthru
      _
    // Predicated region
    $region46: #{tpu_custom_call.1} parent=1 // pred_check
      _
    $region47: #{tpu_custom_call.1} parent=1 // pred_check_branch
      %53 = sbr.rel (0) target = $region49
    $region48: #{tpu_custom_call.1} parent=1 // pred_region
      _
    $region49: #{tpu_custom_call.1} parent=1 // pred_fallthru
      _
    // Predicated region
    $region50: #{tpu_custom_call.1} parent=1 // pred_check
      _
    $region51: #{tpu_custom_call.1} parent=1 // pred_check_branch
      %55 = sbr.rel (0) target = $region53
    $region52: #{tpu_custom_call.1} parent=1 // pred_region
      _
    $region53: #{tpu_custom_call.1} parent=1 // pred_fallthru
      _
    // Predicated region
    $region54: #{tpu_custom_call.1} parent=1 // pred_check
      _
    $region55: #{tpu_custom_call.1} parent=1 // pred_check_branch
      %57 = sbr.rel (0) target = $region57
    $region56: #{tpu_custom_call.1} parent=1 // pred_region
      _
    $region57: #{tpu_custom_call.1} parent=1 // pred_fallthru
      _
    // Predicated region
    $region58: #{tpu_custom_call.1} parent=1 // pred_check
      _
    $region59: #{tpu_custom_call.1} parent=1 // pred_check_branch
      %59 = sbr.rel (0) target = $region61
    $region60: #{tpu_custom_call.1} parent=1 // pred_region
      _
    $region61: #{tpu_custom_call.1} parent=1 // pred_fallthru
      _
    // Predicated region
    $region62: #{tpu_custom_call.1} parent=1 // pred_check
      _
    $region63: #{tpu_custom_call.1} parent=1 // pred_check_branch
      %61 = sbr.rel (0) target = $region65
    $region64: #{tpu_custom_call.1} parent=1 // pred_region
      _
    $region65: #{tpu_custom_call.1} parent=1 // pred_fallthru
      _
    // Predicated region
    $region66: #{tpu_custom_call.1} parent=1 // pred_check
      _
    $region67: #{tpu_custom_call.1} parent=1 // pred_check_branch
      %63 = sbr.rel (0) target = $region69
    $region68: #{tpu_custom_call.1} parent=1 // pred_region
      _
    $region69: #{tpu_custom_call.1} parent=1 // pred_fallthru
      _
    // Predicated region
    $region70: #{tpu_custom_call.1} parent=1 // pred_check
      _
    $region71: #{tpu_custom_call.1} parent=1 // pred_check_branch
      %65 = sbr.rel (0) target = $region73
    $region72: #{tpu_custom_call.1} parent=1 // pred_region
      _
    $region73: #{tpu_custom_call.1} parent=1 // pred_fallthru
      _
    // Predicated region
    $region74: #{tpu_custom_call.1} parent=1 // pred_check
      _
    $region75: #{tpu_custom_call.1} parent=1 // pred_check_branch
      %67 = sbr.rel (0) target = $region77
    $region76: #{tpu_custom_call.1} parent=1 // pred_region
      _
    $region77: #{tpu_custom_call.1} parent=1 // pred_fallthru
      _
    // Predicated region
    $region78: #{tpu_custom_call.1} parent=1 // pred_check
      _
    $region79: #{tpu_custom_call.1} parent=1 // pred_check_branch
      %69 = sbr.rel (0) target = $region81
    $region80: #{tpu_custom_call.1} parent=1 // pred_region
      _
    $region81: #{tpu_custom_call.1} parent=1 // pred_fallthru
      _
    // Predicated region
    $region82: #{tpu_custom_call.1} parent=1 // pred_check
      _
    $region83: #{tpu_custom_call.1} parent=1 // pred_check_branch
      %71 = sbr.rel (0) target = $region85
    $region84: #{tpu_custom_call.1} parent=1 // pred_region
      _
    $region85: #{tpu_custom_call.1} parent=1 // pred_fallthru
      _
    // Predicated region
    $region86: #{tpu_custom_call.1} parent=1 // pred_check
      _
    $region87: #{tpu_custom_call.1} parent=1 // pred_check_branch
      %73 = sbr.rel (0) target = $region89
    $region88: #{tpu_custom_call.1} parent=1 // pred_region
      _
    $region89: #{tpu_custom_call.1} parent=1 // pred_fallthru
      _
    // Predicated region
    $region90: #{tpu_custom_call.1} parent=1 // pred_check
      _
    $region91: #{tpu_custom_call.1} parent=1 // pred_check_branch
      %75 = sbr.rel (0) target = $region93
    $region92: #{tpu_custom_call.1} parent=1 // pred_region
      _
    $region93: #{tpu_custom_call.1} parent=1 // pred_fallthru
      _
    // Predicated region
    $region94: #{tpu_custom_call.1} parent=1 // pred_check
      _
    $region95: #{tpu_custom_call.1} parent=1 // pred_check_branch
      %77 = sbr.rel (0) target = $region97
    $region96: #{tpu_custom_call.1} parent=1 // pred_region
      _
    $region97: #{tpu_custom_call.1} parent=1 // pred_fallthru
      _
    %v79 = vld [vmem:[%s21] sm:$0xf]
    %v80 = vld [vmem:[%s21 + $0x4] sm:$0xf]
    %v81 = vld [vmem:[%s21 + $0x8] sm:$0xf]
    %v82 = vld [vmem:[%s21 + $0xc] sm:$0xf]
    %v83 = vld [vmem:[%s22] sm:$0xff]
    %v84 = vld [vmem:[%s22 + $0x8] sm:$0xff]
    %v85 = vld [vmem:[%s22 + $0x10] sm:$0xff]
    %v86 = vld [vmem:[%s22 + $0x18] sm:$0xff]
    %v87 = vld [vmem:[%s22 + $0x20] sm:$0xff]
    %v88 = vld [vmem:[%s22 + $0x28] sm:$0xff]
    %v89 = vld [vmem:[%s22 + $0x30] sm:$0xff]
    %v90 = vld [vmem:[%s22 + $0x38] sm:$0xff]
    %v91 = vld [vmem:[%s22 + $0x40] sm:$0xff]
    %v92 = vld [vmem:[%s22 + $0x48] sm:$0xff]
    %v93 = vld [vmem:[%s22 + $0x50] sm:$0xff]
    %v94 = vld [vmem:[%s22 + $0x58] sm:$0xff]
    %v95 = vld [vmem:[%s22 + $0x60] sm:$0xff]
    %v96 = vld [vmem:[%s22 + $0x68] sm:$0xff]
    %v97 = vld [vmem:[%s22 + $0x70] sm:$0xff]
    %v98 = vld [vmem:[%s22 + $0x78] sm:$0xff]
    %v99 = vld [vmem:[%s22 + $0x80] sm:$0xff]
    %v100 = vld [vmem:[%s22 + $0x88] sm:$0xff]
    %v101 = vld [vmem:[%s22 + $0x90] sm:$0xff]
    %v102 = vld [vmem:[%s22 + $0x98] sm:$0xff]
    %v103 = vld [vmem:[%s22 + $0xa0] sm:$0xff]
    %v104 = vld [vmem:[%s22 + $0xa8] sm:$0xff]
    %v105 = vld [vmem:[%s22 + $0xb0] sm:$0xff]
    %v106 = vld [vmem:[%s22 + $0xb8] sm:$0xff]
    %v107 = vld [vmem:[%s22 + $0xc0] sm:$0xff]
    %v108 = vld [vmem:[%s22 + $0xc8] sm:$0xff]
    %v109 = vld [vmem:[%s22 + $0xd0] sm:$0xff]
    %v110 = vld [vmem:[%s22 + $0xd8] sm:$0xff]
    %v111 = vld [vmem:[%s22 + $0xe0] sm:$0xff]
    %v112 = vld [vmem:[%s22 + $0xe8] sm:$0xff]
    %v113 = vld [vmem:[%s22 + $0xf0] sm:$0xff]
    %v114 = vld [vmem:[%s22 + $0xf8] sm:$0xff]
    %v115 = vld [vmem:[%s23] sm:$0xff]
    %v116 = vld [vmem:[%s23 + $0x8] sm:$0xff]
    %v117 = vld [vmem:[%s23 + $0x10] sm:$0xff]
    %v118 = vld [vmem:[%s23 + $0x18] sm:$0xff]
    %v119 = vld [vmem:[%s23 + $0x20] sm:$0xff]
    %v120 = vld [vmem:[%s23 + $0x28] sm:$0xff]
    %v121 = vld [vmem:[%s23 + $0x30] sm:$0xff]
    %v122 = vld [vmem:[%s23 + $0x38] sm:$0xff]
    %v123 = vld [vmem:[%s23 + $0x40] sm:$0xff]
    %v124 = vld [vmem:[%s23 + $0x48] sm:$0xff]
    %v125 = vld [vmem:[%s23 + $0x50] sm:$0xff]
    %v126 = vld [vmem:[%s23 + $0x58] sm:$0xff]
    %v127 = vld [vmem:[%s23 + $0x60] sm:$0xff]
    %v128 = vld [vmem:[%s23 + $0x68] sm:$0xff]
    %v129 = vld [vmem:[%s23 + $0x70] sm:$0xff]
    %v130 = vld [vmem:[%s23 + $0x78] sm:$0xff]
    %v131 = vld [vmem:[%s0] sm:$0xff]
    %v132 = vld [vmem:[%s0 + $0x8] sm:$0xff]
    %v133 = vld [vmem:[%s0 + $0x10] sm:$0xff]
    %v134 = vld [vmem:[%s0 + $0x18] sm:$0xff]
    %v135 = vld [vmem:[%s0 + $0x20] sm:$0xff]
    %v136 = vld [vmem:[%s0 + $0x28] sm:$0xff]
    %v137 = vld [vmem:[%s0 + $0x30] sm:$0xff]
    %v138 = vld [vmem:[%s0 + $0x38] sm:$0xff]
    %v139 = vpack.c.bf16 %v132, %v131
    %v140 = vpack.c.bf16 %v134, %v133
    %v141 = vpack.c.bf16 %v136, %v135
    %v142 = vpack.c.bf16 %v138, %v137
    %v143 = vld [vmem:[%s1] sm:$0xf]
    %v144 = vld [vmem:[%s1 + $0x4] sm:$0xf]
    %v145 = vld [vmem:[%s2] sm:$0x1]
    %v147 = vlaneseq
    %v148 = vshrl.u32 %v147, 7
    %v149 = vsub.s32 0, %v148
    %v150 = vrot.slane %v145, %v149
    %v154 = vunpack.c.l.b16 %v143
    %v155 = vunpack.c.l.b16 %v144
    %v156 = vpack.c.b16 %v155, %v154
    %vm158 = vcmask 130048
    %v160 = vsel %vm158, %v139, 0
    %v163 = vsel %vm158, %v140, 0
    %v166 = vsel %vm158, %v141, 0
    %v169 = vsel %vm158, %v142, 0
    %171 = vmatprep.subr.bf16.mxu0 0
    %172 = vmatpush1.bf16.msra.mxu0 %v156
    %173 = vmatprep.subr.bf16.mxu0 0
    %174 = vmatpush1.bf16.msra.mxu0 0
    %175 = vmatprep.subr.bf16.mxu0 0
    %176 = vmatpush1.bf16.msra.mxu0 0
    %177 = vmatprep.subr.bf16.mxu0 0
    %178 = vmatpush1.bf16.msra.mxu0 0
    %179 = vmatprep.subr.bf16.mxu0 0
    %180 = vmatpush1.bf16.msra.mxu0 0
    %181 = vmatprep.subr.bf16.mxu0 0
    %182 = vmatpush1.bf16.msra.mxu0 0
    %183 = vmatprep.subr.bf16.mxu0 0
    %184 = vmatpush1.bf16.msra.mxu0 0
    %185 = vmatprep.subr.bf16.mxu0 0
    %186 = vmatpush1.bf16.msra.mxu0 0
    %187 = vmatprep.subr.bf16.mxu0 0
    %188 = vmatpush1.bf16.msra.mxu0 0
    %189 = vmatprep.subr.bf16.mxu0 0
    %190 = vmatpush1.bf16.msra.mxu0 0
    %191 = vmatprep.subr.bf16.mxu0 0
    %192 = vmatpush1.bf16.msra.mxu0 0
    %193 = vmatprep.subr.bf16.mxu0 0
    %194 = vmatpush1.bf16.msra.mxu0 0
    %195 = vmatprep.subr.bf16.mxu0 0
    %196 = vmatpush1.bf16.msra.mxu0 0
    %197 = vmatprep.subr.bf16.mxu0 0
    %198 = vmatpush1.bf16.msra.mxu0 0
    %199 = vmatprep.subr.bf16.mxu0 0
    %200 = vmatpush1.bf16.msra.mxu0 0
    %201 = vmatprep.subr.bf16.mxu0 0
    %202 = vmatpush1.bf16.msra.mxu0 0
    %203 = vmatprep.mubr.bf16.mxu0 0
    %204 = vmatmul.mubr.bf16.gmra.mrb[0].mxu0 %v160
    %v205 = vpop.f32.mrb[0].mxu0
    %v206 = vadd.f32 %v150, %v205
    %v207 = vpop.f32.mrb[0].mxu0
    %v208 = vpop.f32.mrb[0].mxu0
    %v209 = vadd.f32 %v150, %v208
    %v210 = vpop.f32.mrb[0].mxu0
    %211 = vmatprep.mubr.bf16.mxu0 0
    %212 = vmatmul.mubr.bf16.gmra.mrb[0].mxu0 %v163
    %v213 = vpop.f32.mrb[0].mxu0
    %v214 = vadd.f32 %v150, %v213
    %v215 = vpop.f32.mrb[0].mxu0
    %v216 = vpop.f32.mrb[0].mxu0
    %v217 = vadd.f32 %v150, %v216
    %v218 = vpop.f32.mrb[0].mxu0
    %219 = vmatprep.mubr.bf16.mxu0 0
    %220 = vmatmul.mubr.bf16.gmra.mrb[0].mxu0 %v166
    %v221 = vpop.f32.mrb[0].mxu0
    %v222 = vadd.f32 %v150, %v221
    %v223 = vpop.f32.mrb[0].mxu0
    %v224 = vpop.f32.mrb[0].mxu0
    %v225 = vadd.f32 %v150, %v224
    %v226 = vpop.f32.mrb[0].mxu0
    %227 = vmatprep.mubr.bf16.mxu0 0
    %228 = vmatmul.mubr.bf16.gmra.mrb[0].mxu0 %v169
    %v229 = vpop.f32.mrb[0].mxu0
    %v230 = vadd.f32 %v150, %v229
    %v231 = vpop.f32.mrb[0].mxu0
    %v232 = vpop.f32.mrb[0].mxu0
    %v233 = vadd.f32 %v150, %v232
    %v234 = vpop.f32.mrb[0].mxu0
    %235 = vdwg.mxu0
    %v236 = vpack.c.bf16 %v209, %v206
    %v237 = vpack.c.bf16 %v217, %v214
    %v238 = vpack.c.bf16 %v225, %v222
    %v239 = vpack.c.bf16 %v233, %v230
    %v240 = vld [vmem:[%s3] sm:$0xf]
    %v241 = vld [vmem:[%s3 + $0x4] sm:$0xf]
    %v242 = vld [vmem:[%s3 + $0x8] sm:$0xf]
    %v243 = vld [vmem:[%s3 + $0xc] sm:$0xf]
    %v244 = vld [vmem:[%s6] sm:$0x1]
    %v245 = vlaneseq
    %v246 = vshrl.u32 %v245, 7
    %v247 = vsub.s32 0, %v246
    %v248 = vrot.slane %v244, %v247
    %v253 = vunpack.c.l.b16 %v240
    %v254 = vunpack.c.l.b16 %v241
    %v255 = vunpack.c.l.b16 %v242
    %v256 = vunpack.c.l.b16 %v243
    %v257 = vpack.c.b16 %v254, %v253
    %v258 = vpack.c.b16 %v256, %v255
    %vm261 = vcmask 261120
    %v263 = vsel %vm261, %v236, 0
    %v266 = vsel %vm261, %v237, 0
    %v269 = vsel %vm261, %v238, 0
    %v272 = vsel %vm261, %v239, 0
    %274 = vmatprep.subr.bf16.mxu0 0
    %275 = vmatpush1.bf16.msra.mxu0 %v257
    %276 = vmatprep.subr.bf16.mxu0 0
    %277 = vmatpush1.bf16.msra.mxu0 %v258
    %278 = vmatprep.subr.bf16.mxu0 0
    %279 = vmatpush1.bf16.msra.mxu0 0
    %280 = vmatprep.subr.bf16.mxu0 0
    %281 = vmatpush1.bf16.msra.mxu0 0
    %282 = vmatprep.subr.bf16.mxu0 0
    %283 = vmatpush1.bf16.msra.mxu0 0
    %284 = vmatprep.subr.bf16.mxu0 0
    %285 = vmatpush1.bf16.msra.mxu0 0
    %286 = vmatprep.subr.bf16.mxu0 0
    %287 = vmatpush1.bf16.msra.mxu0 0
    %288 = vmatprep.subr.bf16.mxu0 0
    %289 = vmatpush1.bf16.msra.mxu0 0
    %290 = vmatprep.subr.bf16.mxu0 0
    %291 = vmatpush1.bf16.msra.mxu0 0
    %292 = vmatprep.subr.bf16.mxu0 0
    %293 = vmatpush1.bf16.msra.mxu0 0
    %294 = vmatprep.subr.bf16.mxu0 0
    %295 = vmatpush1.bf16.msra.mxu0 0
    %296 = vmatprep.subr.bf16.mxu0 0
    %297 = vmatpush1.bf16.msra.mxu0 0
    %298 = vmatprep.subr.bf16.mxu0 0
    %299 = vmatpush1.bf16.msra.mxu0 0
    %300 = vmatprep.subr.bf16.mxu0 0
    %301 = vmatpush1.bf16.msra.mxu0 0
    %302 = vmatprep.subr.bf16.mxu0 0
    %303 = vmatpush1.bf16.msra.mxu0 0
    %304 = vmatprep.subr.bf16.mxu0 0
    %305 = vmatpush1.bf16.msra.mxu0 0
    %306 = vmatprep.mubr.bf16.mxu0 0
    %307 = vmatmul.mubr.bf16.gmra.mrb[0].mxu0 %v263
    %v308 = vpop.f32.mrb[0].mxu0
    %v309 = vadd.f32 %v248, %v308
    %v310 = vpop.f32.mrb[0].mxu0
    %v311 = vpop.f32.mrb[0].mxu0
    %v312 = vadd.f32 %v248, %v311
    %v313 = vpop.f32.mrb[0].mxu0
    %314 = vmatprep.mubr.bf16.mxu0 0
    %315 = vmatmul.mubr.bf16.gmra.mrb[0].mxu0 %v266
    %v316 = vpop.f32.mrb[0].mxu0
    %v317 = vadd.f32 %v248, %v316
    %v318 = vpop.f32.mrb[0].mxu0
    %v319 = vpop.f32.mrb[0].mxu0
    %v320 = vadd.f32 %v248, %v319
    %v321 = vpop.f32.mrb[0].mxu0
    %322 = vmatprep.mubr.bf16.mxu0 0
    %323 = vmatmul.mubr.bf16.gmra.mrb[0].mxu0 %v269
    %v324 = vpop.f32.mrb[0].mxu0
    %v325 = vadd.f32 %v248, %v324
    %v326 = vpop.f32.mrb[0].mxu0
    %v327 = vpop.f32.mrb[0].mxu0
    %v328 = vadd.f32 %v248, %v327
    %v329 = vpop.f32.mrb[0].mxu0
    %330 = vmatprep.mubr.bf16.mxu0 0
    %331 = vmatmul.mubr.bf16.gmra.mrb[0].mxu0 %v272
    %v332 = vpop.f32.mrb[0].mxu0
    %v333 = vadd.f32 %v248, %v332
    %v334 = vpop.f32.mrb[0].mxu0
    %v335 = vpop.f32.mrb[0].mxu0
    %v336 = vadd.f32 %v248, %v335
    %v337 = vpop.f32.mrb[0].mxu0
    %338 = vdwg.mxu0
    %v339 = vld [vmem:[%s4] sm:$0xf]
    %v340 = vld [vmem:[%s4 + $0x4] sm:$0xf]
    %v341 = vld [vmem:[%s4 + $0x8] sm:$0xf]
    %v342 = vld [vmem:[%s4 + $0xc] sm:$0xf]
    %v343 = vld [vmem:[%s7] sm:$0x1]
    %v344 = vlaneseq
    %v345 = vshrl.u32 %v344, 7
    %v346 = vsub.s32 0, %v345
    %v347 = vrot.slane %v343, %v346
    %v352 = vunpack.c.l.b16 %v339
    %v353 = vunpack.c.l.b16 %v340
    %v354 = vunpack.c.l.b16 %v341
    %v355 = vunpack.c.l.b16 %v342
    %v356 = vpack.c.b16 %v353, %v352
    %v357 = vpack.c.b16 %v355, %v354
    %360 = vmatprep.subr.bf16.mxu0 0
    %361 = vmatpush1.bf16.msra.mxu0 %v356
    %362 = vmatprep.subr.bf16.mxu0 0
    %363 = vmatpush1.bf16.msra.mxu0 %v357
    %364 = vmatprep.subr.bf16.mxu0 0
    %365 = vmatpush1.bf16.msra.mxu0 0
    %366 = vmatprep.subr.bf16.mxu0 0
    %367 = vmatpush1.bf16.msra.mxu0 0
    %368 = vmatprep.subr.bf16.mxu0 0
    %369 = vmatpush1.bf16.msra.mxu0 0
    %370 = vmatprep.subr.bf16.mxu0 0
    %371 = vmatpush1.bf16.msra.mxu0 0
    %372 = vmatprep.subr.bf16.mxu0 0
    %373 = vmatpush1.bf16.msra.mxu0 0
    %374 = vmatprep.subr.bf16.mxu0 0
    %375 = vmatpush1.bf16.msra.mxu0 0
    %376 = vmatprep.subr.bf16.mxu0 0
    %377 = vmatpush1.bf16.msra.mxu0 0
    %378 = vmatprep.subr.bf16.mxu0 0
    %379 = vmatpush1.bf16.msra.mxu0 0
    %380 = vmatprep.subr.bf16.mxu0 0
    %381 = vmatpush1.bf16.msra.mxu0 0
    %382 = vmatprep.subr.bf16.mxu0 0
    %383 = vmatpush1.bf16.msra.mxu0 0
    %384 = vmatprep.subr.bf16.mxu0 0
    %385 = vmatpush1.bf16.msra.mxu0 0
    %386 = vmatprep.subr.bf16.mxu0 0
    %387 = vmatpush1.bf16.msra.mxu0 0
    %388 = vmatprep.subr.bf16.mxu0 0
    %389 = vmatpush1.bf16.msra.mxu0 0
    %390 = vmatprep.subr.bf16.mxu0 0
    %391 = vmatpush1.bf16.msra.mxu0 0
    %392 = vmatprep.mubr.bf16.mxu0 0
    %393 = vmatmul.mubr.bf16.gmra.mrb[0].mxu0 %v263
    %v394 = vpop.f32.mrb[0].mxu0
    %v395 = vadd.f32 %v347, %v394
    %v396 = vpop.f32.mrb[0].mxu0
    %v397 = vpop.f32.mrb[0].mxu0
    %v398 = vadd.f32 %v347, %v397
    %v399 = vpop.f32.mrb[0].mxu0
    %400 = vmatprep.mubr.bf16.mxu0 0
    %401 = vmatmul.mubr.bf16.gmra.mrb[0].mxu0 %v266
    %v402 = vpop.f32.mrb[0].mxu0
    %v403 = vadd.f32 %v347, %v402
    %v404 = vpop.f32.mrb[0].mxu0
    %v405 = vpop.f32.mrb[0].mxu0
    %v406 = vadd.f32 %v347, %v405
    %v407 = vpop.f32.mrb[0].mxu0
    %408 = vmatprep.mubr.bf16.mxu0 0
    %409 = vmatmul.mubr.bf16.gmra.mrb[0].mxu0 %v269
    %v410 = vpop.f32.mrb[0].mxu0
    %v411 = vadd.f32 %v347, %v410
    %v412 = vpop.f32.mrb[0].mxu0
    %v413 = vpop.f32.mrb[0].mxu0
    %v414 = vadd.f32 %v347, %v413
    %v415 = vpop.f32.mrb[0].mxu0
    %416 = vmatprep.mubr.bf16.mxu0 0
    %417 = vmatmul.mubr.bf16.gmra.mrb[0].mxu0 %v272
    %v418 = vpop.f32.mrb[0].mxu0
    %v419 = vadd.f32 %v347, %v418
    %v420 = vpop.f32.mrb[0].mxu0
    %v421 = vpop.f32.mrb[0].mxu0
    %v422 = vadd.f32 %v347, %v421
    %v423 = vpop.f32.mrb[0].mxu0
    %424 = vdwg.mxu0
    %v425 = vld [vmem:[%s5] sm:$0xf]
    %v426 = vld [vmem:[%s5 + $0x4] sm:$0xf]
    %v427 = vld [vmem:[%s5 + $0x8] sm:$0xf]
    %v428 = vld [vmem:[%s5 + $0xc] sm:$0xf]
    %v429 = vld [vmem:[%s8] sm:$0x1]
    %v430 = vlaneseq
    %v431 = vshrl.u32 %v430, 7
    %v432 = vsub.s32 0, %v431
    %v433 = vrot.slane %v429, %v432
    %v438 = vunpack.c.l.b16 %v425
    %v439 = vunpack.c.l.b16 %v426
    %v440 = vunpack.c.l.b16 %v427
    %v441 = vunpack.c.l.b16 %v428
    %v442 = vpack.c.b16 %v439, %v438
    %v443 = vpack.c.b16 %v441, %v440
    %446 = vmatprep.subr.bf16.mxu0 0
    %447 = vmatpush1.bf16.msra.mxu0 %v442
    %448 = vmatprep.subr.bf16.mxu0 0
    %449 = vmatpush1.bf16.msra.mxu0 %v443
    %450 = vmatprep.subr.bf16.mxu0 0
    %451 = vmatpush1.bf16.msra.mxu0 0
    %452 = vmatprep.subr.bf16.mxu0 0
    %453 = vmatpush1.bf16.msra.mxu0 0
    %454 = vmatprep.subr.bf16.mxu0 0
    %455 = vmatpush1.bf16.msra.mxu0 0
    %456 = vmatprep.subr.bf16.mxu0 0
    %457 = vmatpush1.bf16.msra.mxu0 0
    %458 = vmatprep.subr.bf16.mxu0 0
    %459 = vmatpush1.bf16.msra.mxu0 0
    %460 = vmatprep.subr.bf16.mxu0 0
    %461 = vmatpush1.bf16.msra.mxu0 0
    %462 = vmatprep.subr.bf16.mxu0 0
    %463 = vmatpush1.bf16.msra.mxu0 0
    %464 = vmatprep.subr.bf16.mxu0 0
    %465 = vmatpush1.bf16.msra.mxu0 0
    %466 = vmatprep.subr.bf16.mxu0 0
    %467 = vmatpush1.bf16.msra.mxu0 0
    %468 = vmatprep.subr.bf16.mxu0 0
    %469 = vmatpush1.bf16.msra.mxu0 0
    %470 = vmatprep.subr.bf16.mxu0 0
    %471 = vmatpush1.bf16.msra.mxu0 0
    %472 = vmatprep.subr.bf16.mxu0 0
    %473 = vmatpush1.bf16.msra.mxu0 0
    %474 = vmatprep.subr.bf16.mxu0 0
    %475 = vmatpush1.bf16.msra.mxu0 0
    %476 = vmatprep.subr.bf16.mxu0 0
    %477 = vmatpush1.bf16.msra.mxu0 0
    %478 = vmatprep.mubr.bf16.mxu0 0
    %479 = vmatmul.mubr.bf16.gmra.mrb[0].mxu0 %v263
    %v480 = vpop.f32.mrb[0].mxu0
    %v481 = vadd.f32 %v433, %v480
    %v482 = vpop.f32.mrb[0].mxu0
    %v483 = vpop.f32.mrb[0].mxu0
    %v484 = vadd.f32 %v433, %v483
    %v485 = vpop.f32.mrb[0].mxu0
    %486 = vmatprep.mubr.bf16.mxu0 0
    %487 = vmatmul.mubr.bf16.gmra.mrb[0].mxu0 %v266
    %v488 = vpop.f32.mrb[0].mxu0
    %v489 = vadd.f32 %v433, %v488
    %v490 = vpop.f32.mrb[0].mxu0
    %v491 = vpop.f32.mrb[0].mxu0
    %v492 = vadd.f32 %v433, %v491
    %v493 = vpop.f32.mrb[0].mxu0
    %494 = vmatprep.mubr.bf16.mxu0 0
    %495 = vmatmul.mubr.bf16.gmra.mrb[0].mxu0 %v269
    %v496 = vpop.f32.mrb[0].mxu0
    %v497 = vadd.f32 %v433, %v496
    %v498 = vpop.f32.mrb[0].mxu0
    %v499 = vpop.f32.mrb[0].mxu0
    %v500 = vadd.f32 %v433, %v499
    %v501 = vpop.f32.mrb[0].mxu0
    %502 = vmatprep.mubr.bf16.mxu0 0
    %503 = vmatmul.mubr.bf16.gmra.mrb[0].mxu0 %v272
    %v504 = vpop.f32.mrb[0].mxu0
    %v505 = vadd.f32 %v433, %v504
    %v506 = vpop.f32.mrb[0].mxu0
    %v507 = vpop.f32.mrb[0].mxu0
    %v508 = vadd.f32 %v433, %v507
    %v509 = vpop.f32.mrb[0].mxu0
    %510 = vdwg.mxu0
    %v511 = vpack.c.bf16 %v398, %v395
    %v512 = vpack.c.bf16 %v406, %v403
    %v513 = vpack.c.bf16 %v414, %v411
    %v514 = vpack.c.bf16 %v422, %v419
    %v519 = vunpack.c.l.b16 %v511
    %v520 = vunpack.c.h.b16 %v511
    %v521 = vunpack.c.l.b16 %v512
    %v522 = vunpack.c.h.b16 %v512
    %v523 = vunpack.c.l.b16 %v513
    %v524 = vunpack.c.h.b16 %v513
    %v525 = vunpack.c.l.b16 %v514
    %v526 = vunpack.c.h.b16 %v514
    %v527 = vpack.c.b16 %v519, %v519
    %v528 = vpack.c.b16 %v520, %v520
    %v529 = vpack.c.b16 %v521, %v521
    %v530 = vpack.c.b16 %v522, %v522
    %v531 = vpack.c.b16 %v523, %v523
    %v532 = vpack.c.b16 %v524, %v524
    %v533 = vpack.c.b16 %v525, %v525
    %v534 = vpack.c.b16 %v526, %v526
    %v543 = vpack.c.bf16 %v484, %v481
    %v544 = vpack.c.bf16 %v492, %v489
    %v545 = vpack.c.bf16 %v500, %v497
    %v546 = vpack.c.bf16 %v508, %v505
    %v551 = vunpack.c.l.b16 %v543
    %v552 = vunpack.c.h.b16 %v543
    %v553 = vunpack.c.l.b16 %v544
    %v554 = vunpack.c.h.b16 %v544
    %v555 = vunpack.c.l.b16 %v545
    %v556 = vunpack.c.h.b16 %v545
    %v557 = vunpack.c.l.b16 %v546
    %v558 = vunpack.c.h.b16 %v546
    %v559 = vpack.c.b16 %v551, %v551
    %v560 = vpack.c.b16 %v552, %v552
    %v561 = vpack.c.b16 %v553, %v553
    %v562 = vpack.c.b16 %v554, %v554
    %v563 = vpack.c.b16 %v555, %v555
    %v564 = vpack.c.b16 %v556, %v556
    %v565 = vpack.c.b16 %v557, %v557
    %v566 = vpack.c.b16 %v558, %v558
    %v575 = vmul.bf16 %v527, %v79
    %v576 = vmul.bf16 %v527, %v80
    %v577 = vmul.bf16 %v527, %v81
    %v578 = vmul.bf16 %v527, %v82
    %v579 = vmul.bf16 %v528, %v79
    %v580 = vmul.bf16 %v528, %v80
    %v581 = vmul.bf16 %v528, %v81
    %v582 = vmul.bf16 %v528, %v82
    %v583 = vmul.bf16 %v529, %v79
    %v584 = vmul.bf16 %v529, %v80
    %v585 = vmul.bf16 %v529, %v81
    %v586 = vmul.bf16 %v529, %v82
    %v587 = vmul.bf16 %v530, %v79
    %v588 = vmul.bf16 %v530, %v80
    %v589 = vmul.bf16 %v530, %v81
    %v590 = vmul.bf16 %v530, %v82
    %v591 = vmul.bf16 %v531, %v79
    %v592 = vmul.bf16 %v531, %v80
    %v593 = vmul.bf16 %v531, %v81
    %v594 = vmul.bf16 %v531, %v82
    %v595 = vmul.bf16 %v532, %v79
    %v596 = vmul.bf16 %v532, %v80
    %v597 = vmul.bf16 %v532, %v81
    %v598 = vmul.bf16 %v532, %v82
    %v599 = vmul.bf16 %v533, %v79
    %v600 = vmul.bf16 %v533, %v80
    %v601 = vmul.bf16 %v533, %v81
    %v602 = vmul.bf16 %v533, %v82
    %v603 = vmul.bf16 %v534, %v79
    %v604 = vmul.bf16 %v534, %v80
    %v605 = vmul.bf16 %v534, %v81
    %v606 = vmul.bf16 %v534, %v82
    %v607 = vmul.bf16 %v559, %v79
    %v608 = vmul.bf16 %v559, %v80
    %v609 = vmul.bf16 %v559, %v81
    %v610 = vmul.bf16 %v559, %v82
    %v611 = vmul.bf16 %v560, %v79
    %v612 = vmul.bf16 %v560, %v80
    %v613 = vmul.bf16 %v560, %v81
    %v614 = vmul.bf16 %v560, %v82
    %v615 = vmul.bf16 %v561, %v79
    %v616 = vmul.bf16 %v561, %v80
    %v617 = vmul.bf16 %v561, %v81
    %v618 = vmul.bf16 %v561, %v82
    %v619 = vmul.bf16 %v562, %v79
    %v620 = vmul.bf16 %v562, %v80
    %v621 = vmul.bf16 %v562, %v81
    %v622 = vmul.bf16 %v562, %v82
    %v623 = vmul.bf16 %v563, %v79
    %v624 = vmul.bf16 %v563, %v80
    %v625 = vmul.bf16 %v563, %v81
    %v626 = vmul.bf16 %v563, %v82
    %v627 = vmul.bf16 %v564, %v79
    %v628 = vmul.bf16 %v564, %v80
    %v629 = vmul.bf16 %v564, %v81
    %v630 = vmul.bf16 %v564, %v82
    %v631 = vmul.bf16 %v565, %v79
    %v632 = vmul.bf16 %v565, %v80
    %v633 = vmul.bf16 %v565, %v81
    %v634 = vmul.bf16 %v565, %v82
    %v635 = vmul.bf16 %v566, %v79
    %v636 = vmul.bf16 %v566, %v80
    %v637 = vmul.bf16 %v566, %v81
    %v638 = vmul.bf16 %v566, %v82
    %v639 = vpack.c.bf16 %v312, %v309
    %v640 = vpack.c.bf16 %v320, %v317
    %v641 = vpack.c.bf16 %v328, %v325
    %v642 = vpack.c.bf16 %v336, %v333
    %v675 = vunpack.c.l.b16 %v575
    %v676 = vunpack.c.l.b16 %v576
    %v677 = vunpack.c.l.b16 %v577
    %v678 = vunpack.c.l.b16 %v578
    %v679 = vunpack.c.l.b16 %v579
    %v680 = vunpack.c.l.b16 %v580
    %v681 = vunpack.c.l.b16 %v581
    %v682 = vunpack.c.l.b16 %v582
    %v683 = vunpack.c.l.b16 %v583
    %v684 = vunpack.c.l.b16 %v584
    %v685 = vunpack.c.l.b16 %v585
    %v686 = vunpack.c.l.b16 %v586
    %v687 = vunpack.c.l.b16 %v587
    %v688 = vunpack.c.l.b16 %v588
    %v689 = vunpack.c.l.b16 %v589
    %v690 = vunpack.c.l.b16 %v590
    %v691 = vunpack.c.l.b16 %v591
    %v692 = vunpack.c.l.b16 %v592
    %v693 = vunpack.c.l.b16 %v593
    %v694 = vunpack.c.l.b16 %v594
    %v695 = vunpack.c.l.b16 %v595
    %v696 = vunpack.c.l.b16 %v596
    %v697 = vunpack.c.l.b16 %v597
    %v698 = vunpack.c.l.b16 %v598
    %v699 = vunpack.c.l.b16 %v599
    %v700 = vunpack.c.l.b16 %v600
    %v701 = vunpack.c.l.b16 %v601
    %v702 = vunpack.c.l.b16 %v602
    %v703 = vunpack.c.l.b16 %v603
    %v704 = vunpack.c.l.b16 %v604
    %v705 = vunpack.c.l.b16 %v605
    %v706 = vunpack.c.l.b16 %v606
    %v707 = vpack.c.b16 %v676, %v675
    %v708 = vpack.c.b16 %v678, %v677
    %v709 = vpack.c.b16 %v680, %v679
    %v710 = vpack.c.b16 %v682, %v681
    %v711 = vpack.c.b16 %v684, %v683
    %v712 = vpack.c.b16 %v686, %v685
    %v713 = vpack.c.b16 %v688, %v687
    %v714 = vpack.c.b16 %v690, %v689
    %v715 = vpack.c.b16 %v692, %v691
    %v716 = vpack.c.b16 %v694, %v693
    %v717 = vpack.c.b16 %v696, %v695
    %v718 = vpack.c.b16 %v698, %v697
    %v719 = vpack.c.b16 %v700, %v699
    %v720 = vpack.c.b16 %v702, %v701
    %v721 = vpack.c.b16 %v704, %v703
    %v722 = vpack.c.b16 %v706, %v705
    %v724 = vsel %vm261, %v639, 0
    %v727 = vsel %vm261, %v640, 0
    %v730 = vsel %vm261, %v641, 0
    %v733 = vsel %vm261, %v642, 0
    %v736 = vsel %vm261, %v707, 0
    %v739 = vsel %vm261, %v708, 0
    %v742 = vsel %vm261, %v709, 0
    %v745 = vsel %vm261, %v710, 0
    %v748 = vsel %vm261, %v711, 0
    %v751 = vsel %vm261, %v712, 0
    %v754 = vsel %vm261, %v713, 0
    %v757 = vsel %vm261, %v714, 0
    %v760 = vsel %vm261, %v715, 0
    %v763 = vsel %vm261, %v716, 0
    %v766 = vsel %vm261, %v717, 0
    %v769 = vsel %vm261, %v718, 0
    %v772 = vsel %vm261, %v719, 0
    %v775 = vsel %vm261, %v720, 0
    %v778 = vsel %vm261, %v721, 0
    %v781 = vsel %vm261, %v722, 0
    %783 = vmatprep.subr.bf16.mxu0 0
    %784 = vmatpush1.bf16.xpose.msra.mxu0 %v736
    %785 = vmatprep.subr.bf16.mxu0 0
    %786 = vmatpush1.bf16.xpose.msra.mxu0 %v739
    %787 = vmatprep.subr.bf16.mxu0 0
    %788 = vmatpush1.bf16.xpose.msra.mxu0 %v742
    %789 = vmatprep.subr.bf16.mxu0 0
    %790 = vmatpush1.bf16.xpose.msra.mxu0 %v745
    %791 = vmatprep.subr.bf16.mxu0 0
    %792 = vmatpush1.bf16.xpose.msra.mxu0 %v748
    %793 = vmatprep.subr.bf16.mxu0 0
    %794 = vmatpush1.bf16.xpose.msra.mxu0 %v751
    %795 = vmatprep.subr.bf16.mxu0 0
    %796 = vmatpush1.bf16.xpose.msra.mxu0 %v754
    %797 = vmatprep.subr.bf16.mxu0 0
    %798 = vmatpush1.bf16.xpose.msra.mxu0 %v757
    %799 = vmatprep.subr.bf16.mxu0 0
    %800 = vmatpush1.bf16.xpose.msra.mxu0 %v760
    %801 = vmatprep.subr.bf16.mxu0 0
    %802 = vmatpush1.bf16.xpose.msra.mxu0 %v763
    %803 = vmatprep.subr.bf16.mxu0 0
    %804 = vmatpush1.bf16.xpose.msra.mxu0 %v766
    %805 = vmatprep.subr.bf16.mxu0 0
    %806 = vmatpush1.bf16.xpose.msra.mxu0 %v769
    %807 = vmatprep.subr.bf16.mxu0 0
    %808 = vmatpush1.bf16.xpose.msra.mxu0 %v772
    %809 = vmatprep.subr.bf16.mxu0 0
    %810 = vmatpush1.bf16.xpose.msra.mxu0 %v775
    %811 = vmatprep.subr.bf16.mxu0 0
    %812 = vmatpush1.bf16.xpose.msra.mxu0 %v778
    %813 = vmatprep.subr.bf16.mxu0 0
    %814 = vmatpush1.bf16.xpose.msra.mxu0 %v781
    %815 = vmatprep.mubr.bf16.mxu0 0
    %816 = vmatmul.mubr.bf16.gmra.mrb[0].mxu0 %v724
    %v817 = vpop.f32.mrb[0].mxu0
    %v818 = vadd.f32 %v115, %v817
    %v819 = vpop.f32.mrb[0].mxu0
    %v820 = vadd.f32 %v116, %v819
    %v821 = vpop.f32.mrb[0].mxu0
    %v822 = vadd.f32 %v117, %v821
    %v823 = vpop.f32.mrb[0].mxu0
    %v824 = vadd.f32 %v118, %v823
    %825 = vmatprep.mubr.bf16.mxu0 0
    %826 = vmatmul.mubr.bf16.gmra.mrb[0].mxu0 %v727
    %v827 = vpop.f32.mrb[0].mxu0
    %v828 = vadd.f32 %v119, %v827
    %v829 = vpop.f32.mrb[0].mxu0
    %v830 = vadd.f32 %v120, %v829
    %v831 = vpop.f32.mrb[0].mxu0
    %v832 = vadd.f32 %v121, %v831
    %v833 = vpop.f32.mrb[0].mxu0
    %v834 = vadd.f32 %v122, %v833
    %835 = vmatprep.mubr.bf16.mxu0 0
    %836 = vmatmul.mubr.bf16.gmra.mrb[0].mxu0 %v730
    %v837 = vpop.f32.mrb[0].mxu0
    %v838 = vadd.f32 %v123, %v837
    %v839 = vpop.f32.mrb[0].mxu0
    %v840 = vadd.f32 %v124, %v839
    %v841 = vpop.f32.mrb[0].mxu0
    %v842 = vadd.f32 %v125, %v841
    %v843 = vpop.f32.mrb[0].mxu0
    %v844 = vadd.f32 %v126, %v843
    %845 = vmatprep.mubr.bf16.mxu0 0
    %846 = vmatmul.mubr.bf16.gmra.mrb[0].mxu0 %v733
    %v847 = vpop.f32.mrb[0].mxu0
    %v848 = vadd.f32 %v127, %v847
    %v849 = vpop.f32.mrb[0].mxu0
    %v850 = vadd.f32 %v128, %v849
    %v851 = vpop.f32.mrb[0].mxu0
    %v852 = vadd.f32 %v129, %v851
    %v853 = vpop.f32.mrb[0].mxu0
    %v854 = vadd.f32 %v130, %v853
    %855 = vdwg.mxu0
    %v856 = vmax.f32 %v818, %v820
    %857 = vmax.xlane.f32.xlu0 %v856
    %v858 = vpop.xlane.xlu0 %857
    %v859 = vmax.f32 %v822, %v824
    %860 = vmax.xlane.f32.xlu0 %v859
    %v861 = vpop.xlane.xlu0 %860
    %v862 = vmax.f32 %v828, %v830
    %863 = vmax.xlane.f32.xlu0 %v862
    %v864 = vpop.xlane.xlu0 %863
    %v865 = vmax.f32 %v832, %v834
    %866 = vmax.xlane.f32.xlu0 %v865
    %v867 = vpop.xlane.xlu0 %866
    %v868 = vmax.f32 %v838, %v840
    %869 = vmax.xlane.f32.xlu0 %v868
    %v870 = vpop.xlane.xlu0 %869
    %v871 = vmax.f32 %v842, %v844
    %872 = vmax.xlane.f32.xlu0 %v871
    %v873 = vpop.xlane.xlu0 %872
    %v874 = vmax.f32 %v848, %v850
    %875 = vmax.xlane.f32.xlu0 %v874
    %v876 = vpop.xlane.xlu0 %875
    %v877 = vmax.f32 %v852, %v854
    %878 = vmax.xlane.f32.xlu0 %v877
    %v879 = vpop.xlane.xlu0 %878
    %v880 = vsub.f32 %v818, %v858
    %v881 = vsub.f32 %v820, %v858
    %v882 = vsub.f32 %v822, %v861
    %v883 = vsub.f32 %v824, %v861
    %v884 = vsub.f32 %v828, %v864
    %v885 = vsub.f32 %v830, %v864
    %v886 = vsub.f32 %v832, %v867
    %v887 = vsub.f32 %v834, %v867
    %v888 = vsub.f32 %v838, %v870
    %v889 = vsub.f32 %v840, %v870
    %v890 = vsub.f32 %v842, %v873
    %v891 = vsub.f32 %v844, %v873
    %v892 = vsub.f32 %v848, %v876
    %v893 = vsub.f32 %v850, %v876
    %v894 = vsub.f32 %v852, %v879
    %v895 = vsub.f32 %v854, %v879
    %v896 = vmul.f32 %v880, 1.442695
    %v897 = vpow.pop %v896
    %v898 = vmul.f32 %v881, 1.442695
    %v899 = vpow.pop %v898
    %v900 = vmul.f32 %v882, 1.442695
    %v901 = vpow.pop %v900
    %v902 = vmul.f32 %v883, 1.442695
    %v903 = vpow.pop %v902
    %v904 = vmul.f32 %v884, 1.442695
    %v905 = vpow.pop %v904
    %v906 = vmul.f32 %v885, 1.442695
    %v907 = vpow.pop %v906
    %v908 = vmul.f32 %v886, 1.442695
    %v909 = vpow.pop %v908
    %v910 = vmul.f32 %v887, 1.442695
    %v911 = vpow.pop %v910
    %v912 = vmul.f32 %v888, 1.442695
    %v913 = vpow.pop %v912
    %v914 = vmul.f32 %v889, 1.442695
    %v915 = vpow.pop %v914
    %v916 = vmul.f32 %v890, 1.442695
    %v917 = vpow.pop %v916
    %v918 = vmul.f32 %v891, 1.442695
    %v919 = vpow.pop %v918
    %v920 = vmul.f32 %v892, 1.442695
    %v921 = vpow.pop %v920
    %v922 = vmul.f32 %v893, 1.442695
    %v923 = vpow.pop %v922
    %v924 = vmul.f32 %v894, 1.442695
    %v925 = vpow.pop %v924
    %v926 = vmul.f32 %v895, 1.442695
    %v927 = vpow.pop %v926
    %v928 = vpack.c.bf16 %v901, %v897
    %v929 = vpack.c.bf16 %v903, %v899
    %v930 = vpack.c.bf16 %v909, %v905
    %v931 = vpack.c.bf16 %v911, %v907
    %v932 = vpack.c.bf16 %v917, %v913
    %v933 = vpack.c.bf16 %v919, %v915
    %v934 = vpack.c.bf16 %v925, %v921
    %v935 = vpack.c.bf16 %v927, %v923
    %v968 = vunpack.c.l.b16 %v83
    %v969 = vunpack.c.h.b16 %v83
    %v970 = vunpack.c.l.b16 %v84
    %v971 = vunpack.c.h.b16 %v84
    %v972 = vunpack.c.l.b16 %v85
    %v973 = vunpack.c.h.b16 %v85
    %v974 = vunpack.c.l.b16 %v86
    %v975 = vunpack.c.h.b16 %v86
    %v976 = vunpack.c.l.b16 %v87
    %v977 = vunpack.c.h.b16 %v87
    %v978 = vunpack.c.l.b16 %v88
    %v979 = vunpack.c.h.b16 %v88
    %v980 = vunpack.c.l.b16 %v89
    %v981 = vunpack.c.h.b16 %v89
    %v982 = vunpack.c.l.b16 %v90
    %v983 = vunpack.c.h.b16 %v90
    %v984 = vunpack.c.l.b16 %v91
    %v985 = vunpack.c.h.b16 %v91
    %v986 = vunpack.c.l.b16 %v92
    %v987 = vunpack.c.h.b16 %v92
    %v988 = vunpack.c.l.b16 %v93
    %v989 = vunpack.c.h.b16 %v93
    %v990 = vunpack.c.l.b16 %v94
    %v991 = vunpack.c.h.b16 %v94
    %v992 = vunpack.c.l.b16 %v95
    %v993 = vunpack.c.h.b16 %v95
    %v994 = vunpack.c.l.b16 %v96
    %v995 = vunpack.c.h.b16 %v96
    %v996 = vunpack.c.l.b16 %v97
    %v997 = vunpack.c.h.b16 %v97
    %v998 = vunpack.c.l.b16 %v98
    %v999 = vunpack.c.h.b16 %v98
    %v1000 = vunpack.c.l.b16 %v99
    %v1001 = vunpack.c.h.b16 %v99
    %v1002 = vunpack.c.l.b16 %v100
    %v1003 = vunpack.c.h.b16 %v100
    %v1004 = vunpack.c.l.b16 %v101
    %v1005 = vunpack.c.h.b16 %v101
    %v1006 = vunpack.c.l.b16 %v102
    %v1007 = vunpack.c.h.b16 %v102
    %v1008 = vunpack.c.l.b16 %v103
    %v1009 = vunpack.c.h.b16 %v103
    %v1010 = vunpack.c.l.b16 %v104
    %v1011 = vunpack.c.h.b16 %v104
    %v1012 = vunpack.c.l.b16 %v105
    %v1013 = vunpack.c.h.b16 %v105
    %v1014 = vunpack.c.l.b16 %v106
    %v1015 = vunpack.c.h.b16 %v106
    %v1016 = vunpack.c.l.b16 %v107
    %v1017 = vunpack.c.h.b16 %v107
    %v1018 = vunpack.c.l.b16 %v108
    %v1019 = vunpack.c.h.b16 %v108
    %v1020 = vunpack.c.l.b16 %v109
    %v1021 = vunpack.c.h.b16 %v109
    %v1022 = vunpack.c.l.b16 %v110
    %v1023 = vunpack.c.h.b16 %v110
    %v1024 = vunpack.c.l.b16 %v111
    %v1025 = vunpack.c.h.b16 %v111
    %v1026 = vunpack.c.l.b16 %v112
    %v1027 = vunpack.c.h.b16 %v112
    %v1028 = vunpack.c.l.b16 %v113
    %v1029 = vunpack.c.h.b16 %v113
    %v1030 = vunpack.c.l.b16 %v114
    %v1031 = vunpack.c.h.b16 %v114
    %v1032 = vpack.c.b16 %v970, %v968
    %v1033 = vpack.c.b16 %v971, %v969
    %v1034 = vpack.c.b16 %v974, %v972
    %v1035 = vpack.c.b16 %v975, %v973
    %v1036 = vpack.c.b16 %v978, %v976
    %v1037 = vpack.c.b16 %v979, %v977
    %v1038 = vpack.c.b16 %v982, %v980
    %v1039 = vpack.c.b16 %v983, %v981
    %v1040 = vpack.c.b16 %v986, %v984
    %v1041 = vpack.c.b16 %v987, %v985
    %v1042 = vpack.c.b16 %v990, %v988
    %v1043 = vpack.c.b16 %v991, %v989
    %v1044 = vpack.c.b16 %v994, %v992
    %v1045 = vpack.c.b16 %v995, %v993
    %v1046 = vpack.c.b16 %v998, %v996
    %v1047 = vpack.c.b16 %v999, %v997
    %v1048 = vpack.c.b16 %v1002, %v1000
    %v1049 = vpack.c.b16 %v1003, %v1001
    %v1050 = vpack.c.b16 %v1006, %v1004
    %v1051 = vpack.c.b16 %v1007, %v1005
    %v1052 = vpack.c.b16 %v1010, %v1008
    %v1053 = vpack.c.b16 %v1011, %v1009
    %v1054 = vpack.c.b16 %v1014, %v1012
    %v1055 = vpack.c.b16 %v1015, %v1013
    %v1056 = vpack.c.b16 %v1018, %v1016
    %v1057 = vpack.c.b16 %v1019, %v1017
    %v1058 = vpack.c.b16 %v1022, %v1020
    %v1059 = vpack.c.b16 %v1023, %v1021
    %v1060 = vpack.c.b16 %v1026, %v1024
    %v1061 = vpack.c.b16 %v1027, %v1025
    %v1062 = vpack.c.b16 %v1030, %v1028
    %v1063 = vpack.c.b16 %v1031, %v1029
    %1096 = vmatprep.subr.bf16.mxu0 %v1033
    %1097 = vmatpush1.bf16.msra.mxu0 %v1032
    %1098 = vmatprep.subr.bf16.mxu0 %v1035
    %1099 = vmatpush1.bf16.msra.mxu0 %v1034
    %1100 = vmatprep.subr.bf16.mxu0 %v1037
    %1101 = vmatpush1.bf16.msra.mxu0 %v1036
    %1102 = vmatprep.subr.bf16.mxu0 %v1039
    %1103 = vmatpush1.bf16.msra.mxu0 %v1038
    %1104 = vmatprep.subr.bf16.mxu0 %v1041
    %1105 = vmatpush1.bf16.msra.mxu0 %v1040
    %1106 = vmatprep.subr.bf16.mxu0 %v1043
    %1107 = vmatpush1.bf16.msra.mxu0 %v1042
    %1108 = vmatprep.subr.bf16.mxu0 %v1045
    %1109 = vmatpush1.bf16.msra.mxu0 %v1044
    %1110 = vmatprep.subr.bf16.mxu0 %v1047
    %1111 = vmatpush1.bf16.msra.mxu0 %v1046
    %1112 = vmatprep.subr.bf16.mxu0 %v1049
    %1113 = vmatpush1.bf16.msra.mxu0 %v1048
    %1114 = vmatprep.subr.bf16.mxu0 %v1051
    %1115 = vmatpush1.bf16.msra.mxu0 %v1050
    %1116 = vmatprep.subr.bf16.mxu0 %v1053
    %1117 = vmatpush1.bf16.msra.mxu0 %v1052
    %1118 = vmatprep.subr.bf16.mxu0 %v1055
    %1119 = vmatpush1.bf16.msra.mxu0 %v1054
    %1120 = vmatprep.subr.bf16.mxu0 %v1057
    %1121 = vmatpush1.bf16.msra.mxu0 %v1056
    %1122 = vmatprep.subr.bf16.mxu0 %v1059
    %1123 = vmatpush1.bf16.msra.mxu0 %v1058
    %1124 = vmatprep.subr.bf16.mxu0 %v1061
    %1125 = vmatpush1.bf16.msra.mxu0 %v1060
    %1126 = vmatprep.subr.bf16.mxu0 %v1063
    %1127 = vmatpush1.bf16.msra.mxu0 %v1062
    %1128 = vmatprep.mubr.bf16.mxu0 %v929
    %1129 = vmatmul.mubr.bf16.gmra.mrb[0].mxu0 %v928
    %v1130 = vpop.f32.mrb[0].mxu0
    %v1131 = vadd.f32 1e-20, %v1130
    %v1132 = vpop.f32.mrb[0].mxu0
    %v1133 = vadd.f32 1e-20, %v1132
    %v1134 = vpop.f32.mrb[0].mxu0
    %v1135 = vadd.f32 1e-20, %v1134
    %v1136 = vpop.f32.mrb[0].mxu0
    %v1137 = vadd.f32 1e-20, %v1136
    %1138 = vmatprep.mubr.bf16.mxu0 %v931
    %1139 = vmatmul.mubr.bf16.gmra.mrb[0].mxu0 %v930
    %v1140 = vpop.f32.mrb[0].mxu0
    %v1141 = vadd.f32 1e-20, %v1140
    %v1142 = vpop.f32.mrb[0].mxu0
    %v1143 = vadd.f32 1e-20, %v1142
    %v1144 = vpop.f32.mrb[0].mxu0
    %v1145 = vadd.f32 1e-20, %v1144
    %v1146 = vpop.f32.mrb[0].mxu0
    %v1147 = vadd.f32 1e-20, %v1146
    %1148 = vmatprep.mubr.bf16.mxu0 %v933
    %1149 = vmatmul.mubr.bf16.gmra.mrb[0].mxu0 %v932
    %v1150 = vpop.f32.mrb[0].mxu0
    %v1151 = vadd.f32 1e-20, %v1150
    %v1152 = vpop.f32.mrb[0].mxu0
    %v1153 = vadd.f32 1e-20, %v1152
    %v1154 = vpop.f32.mrb[0].mxu0
    %v1155 = vadd.f32 1e-20, %v1154
    %v1156 = vpop.f32.mrb[0].mxu0
    %v1157 = vadd.f32 1e-20, %v1156
    %1158 = vmatprep.mubr.bf16.mxu0 %v935
    %1159 = vmatmul.mubr.bf16.gmra.mrb[0].mxu0 %v934
    %v1160 = vpop.f32.mrb[0].mxu0
    %v1161 = vadd.f32 1e-20, %v1160
    %v1162 = vpop.f32.mrb[0].mxu0
    %v1163 = vadd.f32 1e-20, %v1162
    %v1164 = vpop.f32.mrb[0].mxu0
    %v1165 = vadd.f32 1e-20, %v1164
    %v1166 = vpop.f32.mrb[0].mxu0
    %v1167 = vadd.f32 1e-20, %v1166
    %1168 = vdwg.mxu0
    %v1169 = vrcp.pop %v1131
    %v1170 = vrcp.pop %v1133
    %v1171 = vrcp.pop %v1135
    %v1172 = vrcp.pop %v1137
    %v1173 = vrcp.pop %v1141
    %v1174 = vrcp.pop %v1143
    %v1175 = vrcp.pop %v1145
    %v1176 = vrcp.pop %v1147
    %v1177 = vrcp.pop %v1151
    %v1178 = vrcp.pop %v1153
    %v1179 = vrcp.pop %v1155
    %v1180 = vrcp.pop %v1157
    %v1181 = vrcp.pop %v1161
    %v1182 = vrcp.pop %v1163
    %v1183 = vrcp.pop %v1165
    %v1184 = vrcp.pop %v1167
    %v1185 = vmul.f32 %v897, %v1169
    %v1186 = vmul.f32 %v899, %v1170
    %v1187 = vmul.f32 %v901, %v1171
    %v1188 = vmul.f32 %v903, %v1172
    %v1189 = vmul.f32 %v905, %v1173
    %v1190 = vmul.f32 %v907, %v1174
    %v1191 = vmul.f32 %v909, %v1175
    %v1192 = vmul.f32 %v911, %v1176
    %v1193 = vmul.f32 %v913, %v1177
    %v1194 = vmul.f32 %v915, %v1178
    %v1195 = vmul.f32 %v917, %v1179
    %v1196 = vmul.f32 %v919, %v1180
    %v1197 = vmul.f32 %v921, %v1181
    %v1198 = vmul.f32 %v923, %v1182
    %v1199 = vmul.f32 %v925, %v1183
    %v1200 = vmul.f32 %v927, %v1184
    %v1201 = vpack.c.bf16 %v1187, %v1185
    %v1202 = vpack.c.bf16 %v1188, %v1186
    %v1203 = vpack.c.bf16 %v1191, %v1189
    %v1204 = vpack.c.bf16 %v1192, %v1190
    %v1205 = vpack.c.bf16 %v1195, %v1193
    %v1206 = vpack.c.bf16 %v1196, %v1194
    %v1207 = vpack.c.bf16 %v1199, %v1197
    %v1208 = vpack.c.bf16 %v1200, %v1198
    %v1241 = vunpack.c.l.b16 %v607
    %v1242 = vunpack.c.l.b16 %v608
    %v1243 = vunpack.c.l.b16 %v609
    %v1244 = vunpack.c.l.b16 %v610
    %v1245 = vunpack.c.l.b16 %v611
    %v1246 = vunpack.c.l.b16 %v612
    %v1247 = vunpack.c.l.b16 %v613
    %v1248 = vunpack.c.l.b16 %v614
    %v1249 = vunpack.c.l.b16 %v615
    %v1250 = vunpack.c.l.b16 %v616
    %v1251 = vunpack.c.l.b16 %v617
    %v1252 = vunpack.c.l.b16 %v618
    %v1253 = vunpack.c.l.b16 %v619
    %v1254 = vunpack.c.l.b16 %v620
    %v1255 = vunpack.c.l.b16 %v621
    %v1256 = vunpack.c.l.b16 %v622
    %v1257 = vunpack.c.l.b16 %v623
    %v1258 = vunpack.c.l.b16 %v624
    %v1259 = vunpack.c.l.b16 %v625
    %v1260 = vunpack.c.l.b16 %v626
    %v1261 = vunpack.c.l.b16 %v627
    %v1262 = vunpack.c.l.b16 %v628
    %v1263 = vunpack.c.l.b16 %v629
    %v1264 = vunpack.c.l.b16 %v630
    %v1265 = vunpack.c.l.b16 %v631
    %v1266 = vunpack.c.l.b16 %v632
    %v1267 = vunpack.c.l.b16 %v633
    %v1268 = vunpack.c.l.b16 %v634
    %v1269 = vunpack.c.l.b16 %v635
    %v1270 = vunpack.c.l.b16 %v636
    %v1271 = vunpack.c.l.b16 %v637
    %v1272 = vunpack.c.l.b16 %v638
    %v1273 = vpack.c.b16 %v1242, %v1241
    %v1274 = vpack.c.b16 %v1244, %v1243
    %v1275 = vpack.c.b16 %v1246, %v1245
    %v1276 = vpack.c.b16 %v1248, %v1247
    %v1277 = vpack.c.b16 %v1250, %v1249
    %v1278 = vpack.c.b16 %v1252, %v1251
    %v1279 = vpack.c.b16 %v1254, %v1253
    %v1280 = vpack.c.b16 %v1256, %v1255
    %v1281 = vpack.c.b16 %v1258, %v1257
    %v1282 = vpack.c.b16 %v1260, %v1259
    %v1283 = vpack.c.b16 %v1262, %v1261
    %v1284 = vpack.c.b16 %v1264, %v1263
    %v1285 = vpack.c.b16 %v1266, %v1265
    %v1286 = vpack.c.b16 %v1268, %v1267
    %v1287 = vpack.c.b16 %v1270, %v1269
    %v1288 = vpack.c.b16 %v1272, %v1271
    %1305 = vmatprep.subr.bf16.mxu0 0
    %1306 = vmatpush1.bf16.msra.mxu0 %v1273
    %1307 = vmatprep.subr.bf16.mxu0 0
    %1308 = vmatpush1.bf16.msra.mxu0 %v1274
    %1309 = vmatprep.subr.bf16.mxu0 0
    %1310 = vmatpush1.bf16.msra.mxu0 %v1275
    %1311 = vmatprep.subr.bf16.mxu0 0
    %1312 = vmatpush1.bf16.msra.mxu0 %v1276
    %1313 = vmatprep.subr.bf16.mxu0 0
    %1314 = vmatpush1.bf16.msra.mxu0 %v1277
    %1315 = vmatprep.subr.bf16.mxu0 0
    %1316 = vmatpush1.bf16.msra.mxu0 %v1278
    %1317 = vmatprep.subr.bf16.mxu0 0
    %1318 = vmatpush1.bf16.msra.mxu0 %v1279
    %1319 = vmatprep.subr.bf16.mxu0 0
    %1320 = vmatpush1.bf16.msra.mxu0 %v1280
    %1321 = vmatprep.subr.bf16.mxu0 0
    %1322 = vmatpush1.bf16.msra.mxu0 %v1281
    %1323 = vmatprep.subr.bf16.mxu0 0
    %1324 = vmatpush1.bf16.msra.mxu0 %v1282
    %1325 = vmatprep.subr.bf16.mxu0 0
    %1326 = vmatpush1.bf16.msra.mxu0 %v1283
    %1327 = vmatprep.subr.bf16.mxu0 0
    %1328 = vmatpush1.bf16.msra.mxu0 %v1284
    %1329 = vmatprep.subr.bf16.mxu0 0
    %1330 = vmatpush1.bf16.msra.mxu0 %v1285
    %1331 = vmatprep.subr.bf16.mxu0 0
    %1332 = vmatpush1.bf16.msra.mxu0 %v1286
    %1333 = vmatprep.subr.bf16.mxu0 0
    %1334 = vmatpush1.bf16.msra.mxu0 %v1287
    %1335 = vmatprep.subr.bf16.mxu0 0
    %1336 = vmatpush1.bf16.msra.mxu0 %v1288
    %1337 = vmatprep.mubr.bf16.mxu0 %v1202
    %1338 = vmatmul.mubr.bf16.gmra.mrb[0].mxu0 %v1201
    %v1339 = vpop.f32.mrb[0].mxu0
    %v1340 = vadd.f32 0.0, %v1339
    %v1341 = vpop.f32.mrb[0].mxu0
    %v1342 = vpop.f32.mrb[0].mxu0
    %v1343 = vadd.f32 0.0, %v1342
    %v1344 = vpop.f32.mrb[0].mxu0
    %1345 = vmatprep.mubr.bf16.mxu0 %v1204
    %1346 = vmatmul.mubr.bf16.gmra.mrb[0].mxu0 %v1203
    %v1347 = vpop.f32.mrb[0].mxu0
    %v1348 = vadd.f32 0.0, %v1347
    %v1349 = vpop.f32.mrb[0].mxu0
    %v1350 = vpop.f32.mrb[0].mxu0
    %v1351 = vadd.f32 0.0, %v1350
    %v1352 = vpop.f32.mrb[0].mxu0
    %1353 = vmatprep.mubr.bf16.mxu0 %v1206
    %1354 = vmatmul.mubr.bf16.gmra.mrb[0].mxu0 %v1205
    %v1355 = vpop.f32.mrb[0].mxu0
    %v1356 = vadd.f32 0.0, %v1355
    %v1357 = vpop.f32.mrb[0].mxu0
    %v1358 = vpop.f32.mrb[0].mxu0
    %v1359 = vadd.f32 0.0, %v1358
    %v1360 = vpop.f32.mrb[0].mxu0
    %1361 = vmatprep.mubr.bf16.mxu0 %v1208
    %1362 = vmatmul.mubr.bf16.gmra.mrb[0].mxu0 %v1207
    %v1363 = vpop.f32.mrb[0].mxu0
    %v1364 = vadd.f32 0.0, %v1363
    %v1365 = vpop.f32.mrb[0].mxu0
    %v1366 = vpop.f32.mrb[0].mxu0
    %v1367 = vadd.f32 0.0, %v1366
    %v1368 = vpop.f32.mrb[0].mxu0
    %1369 = vdwg.mxu0
    %v1370 = vpack.c.bf16 %v1343, %v1340
    %v1371 = vpack.c.bf16 %v1351, %v1348
    %v1372 = vpack.c.bf16 %v1359, %v1356
    %v1373 = vpack.c.bf16 %v1367, %v1364
    %v1374 = vld [vmem:[%s9] sm:$0xf]
    %v1375 = vld [vmem:[%s9 + $0x4] sm:$0xf]
    %v1376 = vld [vmem:[%s9 + $0x8] sm:$0xf]
    %v1377 = vld [vmem:[%s9 + $0xc] sm:$0xf]
    %v1378 = vld [vmem:[%s10] sm:$0x1]
    %v1379 = vlaneseq
    %v1380 = vshrl.u32 %v1379, 7
    %v1381 = vsub.s32 0, %v1380
    %v1382 = vrot.slane %v1378, %v1381
    %v1387 = vunpack.c.l.b16 %v1374
    %v1388 = vunpack.c.l.b16 %v1375
    %v1389 = vunpack.c.l.b16 %v1376
    %v1390 = vunpack.c.l.b16 %v1377
    %v1391 = vpack.c.b16 %v1388, %v1387
    %v1392 = vpack.c.b16 %v1390, %v1389
    %v1396 = vsel %vm261, %v1370, 0
    %v1399 = vsel %vm261, %v1371, 0
    %v1402 = vsel %vm261, %v1372, 0
    %v1405 = vsel %vm261, %v1373, 0
    %1407 = vmatprep.subr.bf16.mxu0 0
    %1408 = vmatpush1.bf16.msra.mxu0 %v1391
    %1409 = vmatprep.subr.bf16.mxu0 0
    %1410 = vmatpush1.bf16.msra.mxu0 %v1392
    %1411 = vmatprep.subr.bf16.mxu0 0
    %1412 = vmatpush1.bf16.msra.mxu0 0
    %1413 = vmatprep.subr.bf16.mxu0 0
    %1414 = vmatpush1.bf16.msra.mxu0 0
    %1415 = vmatprep.subr.bf16.mxu0 0
    %1416 = vmatpush1.bf16.msra.mxu0 0
    %1417 = vmatprep.subr.bf16.mxu0 0
    %1418 = vmatpush1.bf16.msra.mxu0 0
    %1419 = vmatprep.subr.bf16.mxu0 0
    %1420 = vmatpush1.bf16.msra.mxu0 0
    %1421 = vmatprep.subr.bf16.mxu0 0
    %1422 = vmatpush1.bf16.msra.mxu0 0
    %1423 = vmatprep.subr.bf16.mxu0 0
    %1424 = vmatpush1.bf16.msra.mxu0 0
    %1425 = vmatprep.subr.bf16.mxu0 0
    %1426 = vmatpush1.bf16.msra.mxu0 0
    %1427 = vmatprep.subr.bf16.mxu0 0
    %1428 = vmatpush1.bf16.msra.mxu0 0
    %1429 = vmatprep.subr.bf16.mxu0 0
    %1430 = vmatpush1.bf16.msra.mxu0 0
    %1431 = vmatprep.subr.bf16.mxu0 0
    %1432 = vmatpush1.bf16.msra.mxu0 0
    %1433 = vmatprep.subr.bf16.mxu0 0
    %1434 = vmatpush1.bf16.msra.mxu0 0
    %1435 = vmatprep.subr.bf16.mxu0 0
    %1436 = vmatpush1.bf16.msra.mxu0 0
    %1437 = vmatprep.subr.bf16.mxu0 0
    %1438 = vmatpush1.bf16.msra.mxu0 0
    %1439 = vmatprep.mubr.bf16.mxu0 0
    %1440 = vmatmul.mubr.bf16.gmra.mrb[0].mxu0 %v1396
    %v1441 = vpop.f32.mrb[0].mxu0
    %v1442 = vadd.f32 %v1382, %v1441
    %v1443 = vpop.f32.mrb[0].mxu0
    %v1444 = vpop.f32.mrb[0].mxu0
    %v1445 = vadd.f32 %v1382, %v1444
    %v1446 = vpop.f32.mrb[0].mxu0
    %1447 = vmatprep.mubr.bf16.mxu0 0
    %1448 = vmatmul.mubr.bf16.gmra.mrb[0].mxu0 %v1399
    %v1449 = vpop.f32.mrb[0].mxu0
    %v1450 = vadd.f32 %v1382, %v1449
    %v1451 = vpop.f32.mrb[0].mxu0
    %v1452 = vpop.f32.mrb[0].mxu0
    %v1453 = vadd.f32 %v1382, %v1452
    %v1454 = vpop.f32.mrb[0].mxu0
    %1455 = vmatprep.mubr.bf16.mxu0 0
    %1456 = vmatmul.mubr.bf16.gmra.mrb[0].mxu0 %v1402
    %v1457 = vpop.f32.mrb[0].mxu0
    %v1458 = vadd.f32 %v1382, %v1457
    %v1459 = vpop.f32.mrb[0].mxu0
    %v1460 = vpop.f32.mrb[0].mxu0
    %v1461 = vadd.f32 %v1382, %v1460
    %v1462 = vpop.f32.mrb[0].mxu0
    %1463 = vmatprep.mubr.bf16.mxu0 0
    %1464 = vmatmul.mubr.bf16.gmra.mrb[0].mxu0 %v1405
    %v1465 = vpop.f32.mrb[0].mxu0
    %v1466 = vadd.f32 %v1382, %v1465
    %v1467 = vpop.f32.mrb[0].mxu0
    %v1468 = vpop.f32.mrb[0].mxu0
    %v1469 = vadd.f32 %v1382, %v1468
    %v1470 = vpop.f32.mrb[0].mxu0
    %1471 = vdwg.mxu0
    %v1472 = vadd.f32 %v206, %v1442
    %v1473 = vadd.f32 %v209, %v1445
    %v1474 = vadd.f32 %v214, %v1450
    %v1475 = vadd.f32 %v217, %v1453
    %v1476 = vadd.f32 %v222, %v1458
    %v1477 = vadd.f32 %v225, %v1461
    %v1478 = vadd.f32 %v230, %v1466
    %v1479 = vadd.f32 %v233, %v1469
    %v1480 = vld [vmem:[%s15] sm:$0x1]
    %v1481 = vld [vmem:[%s16] sm:$0x1]
    %v1482 = vsel %vm261, %v1472, 0.0
    %1483 = vadd.xlane.f32.xlu0 %v1482
    %v1484 = vpop.xlane.xlu0 %1483
    %v1485 = vsel %vm261, %v1473, 0.0
    %1486 = vadd.xlane.f32.xlu0 %v1485
    %v1487 = vpop.xlane.xlu0 %1486
    %v1488 = vsel %vm261, %v1474, 0.0
    %1489 = vadd.xlane.f32.xlu0 %v1488
    %v1490 = vpop.xlane.xlu0 %1489
    %v1491 = vsel %vm261, %v1475, 0.0
    %1492 = vadd.xlane.f32.xlu0 %v1491
    %v1493 = vpop.xlane.xlu0 %1492
    %v1494 = vsel %vm261, %v1476, 0.0
    %1495 = vadd.xlane.f32.xlu0 %v1494
    %v1496 = vpop.xlane.xlu0 %1495
    %v1497 = vsel %vm261, %v1477, 0.0
    %1498 = vadd.xlane.f32.xlu0 %v1497
    %v1499 = vpop.xlane.xlu0 %1498
    %v1500 = vsel %vm261, %v1478, 0.0
    %1501 = vadd.xlane.f32.xlu0 %v1500
    %v1502 = vpop.xlane.xlu0 %1501
    %v1503 = vsel %vm261, %v1479, 0.0
    %1504 = vadd.xlane.f32.xlu0 %v1503
    %v1505 = vpop.xlane.xlu0 %1504
    %v1506 = vrcp.pop 32.0
    %v1507 = vmul.f32 %v1484, %v1506
    %v1508 = vmul.f32 %v1487, %v1506
    %v1509 = vmul.f32 %v1490, %v1506
    %v1510 = vmul.f32 %v1493, %v1506
    %v1511 = vmul.f32 %v1496, %v1506
    %v1512 = vmul.f32 %v1499, %v1506
    %v1513 = vmul.f32 %v1502, %v1506
    %v1514 = vmul.f32 %v1505, %v1506
    %v1515 = vsub.f32 %v1472, %v1507
    %v1516 = vsub.f32 %v1473, %v1508
    %v1517 = vsub.f32 %v1474, %v1509
    %v1518 = vsub.f32 %v1475, %v1510
    %v1519 = vsub.f32 %v1476, %v1511
    %v1520 = vsub.f32 %v1477, %v1512
    %v1521 = vsub.f32 %v1478, %v1513
    %v1522 = vsub.f32 %v1479, %v1514
    %v1523 = vmul.f32 %v1515, %v1515
    %v1524 = vmul.f32 %v1516, %v1516
    %v1525 = vmul.f32 %v1517, %v1517
    %v1526 = vmul.f32 %v1518, %v1518
    %v1527 = vmul.f32 %v1519, %v1519
    %v1528 = vmul.f32 %v1520, %v1520
    %v1529 = vmul.f32 %v1521, %v1521
    %v1530 = vmul.f32 %v1522, %v1522
    %v1531 = vsel %vm261, %v1523, 0.0
    %1532 = vadd.xlane.f32.xlu0 %v1531
    %v1533 = vpop.xlane.xlu0 %1532
    %v1534 = vsel %vm261, %v1524, 0.0
    %1535 = vadd.xlane.f32.xlu0 %v1534
    %v1536 = vpop.xlane.xlu0 %1535
    %v1537 = vsel %vm261, %v1525, 0.0
    %1538 = vadd.xlane.f32.xlu0 %v1537
    %v1539 = vpop.xlane.xlu0 %1538
    %v1540 = vsel %vm261, %v1526, 0.0
    %1541 = vadd.xlane.f32.xlu0 %v1540
    %v1542 = vpop.xlane.xlu0 %1541
    %v1543 = vsel %vm261, %v1527, 0.0
    %1544 = vadd.xlane.f32.xlu0 %v1543
    %v1545 = vpop.xlane.xlu0 %1544
    %v1546 = vsel %vm261, %v1528, 0.0
    %1547 = vadd.xlane.f32.xlu0 %v1546
    %v1548 = vpop.xlane.xlu0 %1547
    %v1549 = vsel %vm261, %v1529, 0.0
    %1550 = vadd.xlane.f32.xlu0 %v1549
    %v1551 = vpop.xlane.xlu0 %1550
    %v1552 = vsel %vm261, %v1530, 0.0
    %1553 = vadd.xlane.f32.xlu0 %v1552
    %v1554 = vpop.xlane.xlu0 %1553
    %v1555 = vmul.f32 %v1533, %v1506
    %v1556 = vmul.f32 %v1536, %v1506
    %v1557 = vmul.f32 %v1539, %v1506
    %v1558 = vmul.f32 %v1542, %v1506
    %v1559 = vmul.f32 %v1545, %v1506
    %v1560 = vmul.f32 %v1548, %v1506
    %v1561 = vmul.f32 %v1551, %v1506
    %v1562 = vmul.f32 %v1554, %v1506
    %v1563 = vadd.f32 %v1555, 1e-05
    %v1564 = vadd.f32 %v1556, 1e-05
    %v1565 = vadd.f32 %v1557, 1e-05
    %v1566 = vadd.f32 %v1558, 1e-05
    %v1567 = vadd.f32 %v1559, 1e-05
    %v1568 = vadd.f32 %v1560, 1e-05
    %v1569 = vadd.f32 %v1561, 1e-05
    %v1570 = vadd.f32 %v1562, 1e-05
    %v1571 = vrsqrt.pop %v1563
    %v1572 = vrsqrt.pop %v1564
    %v1573 = vrsqrt.pop %v1565
    %v1574 = vrsqrt.pop %v1566
    %v1575 = vrsqrt.pop %v1567
    %v1576 = vrsqrt.pop %v1568
    %v1577 = vrsqrt.pop %v1569
    %v1578 = vrsqrt.pop %v1570
    %v1579 = vmul.f32 %v1515, %v1571
    %v1580 = vmul.f32 %v1516, %v1572
    %v1581 = vmul.f32 %v1517, %v1573
    %v1582 = vmul.f32 %v1518, %v1574
    %v1583 = vmul.f32 %v1519, %v1575
    %v1584 = vmul.f32 %v1520, %v1576
    %v1585 = vmul.f32 %v1521, %v1577
    %v1586 = vmul.f32 %v1522, %v1578
    %v1587 = vlaneseq
    %v1588 = vshrl.u32 %v1587, 7
    %v1589 = vsub.s32 0, %v1588
    %v1590 = vrot.slane %v1480, %v1589
    %v1591 = vmul.f32 %v1579, %v1590
    %v1592 = vmul.f32 %v1580, %v1590
    %v1593 = vmul.f32 %v1581, %v1590
    %v1594 = vmul.f32 %v1582, %v1590
    %v1595 = vmul.f32 %v1583, %v1590
    %v1596 = vmul.f32 %v1584, %v1590
    %v1597 = vmul.f32 %v1585, %v1590
    %v1598 = vmul.f32 %v1586, %v1590
    %v1599 = vlaneseq
    %v1600 = vshrl.u32 %v1599, 7
    %v1601 = vsub.s32 0, %v1600
    %v1602 = vrot.slane %v1481, %v1601
    %v1603 = vadd.f32 %v1591, %v1602
    %v1604 = vadd.f32 %v1592, %v1602
    %v1605 = vadd.f32 %v1593, %v1602
    %v1606 = vadd.f32 %v1594, %v1602
    %v1607 = vadd.f32 %v1595, %v1602
    %v1608 = vadd.f32 %v1596, %v1602
    %v1609 = vadd.f32 %v1597, %v1602
    %v1610 = vadd.f32 %v1598, %v1602
    %v1611 = vpack.c.bf16 %v1604, %v1603
    %v1612 = vpack.c.bf16 %v1606, %v1605
    %v1613 = vpack.c.bf16 %v1608, %v1607
    %v1614 = vpack.c.bf16 %v1610, %v1609
    %v1615 = vld [vmem:[%s11] sm:$0xff]
    %v1616 = vld [vmem:[%s11 + $0x8] sm:$0xff]
    %v1617 = vld [vmem:[%s11 + $0x10] sm:$0xff]
    %v1618 = vld [vmem:[%s11 + $0x18] sm:$0xff]
    %v1619 = vld [vmem:[%s11 + $0x20] sm:$0xff]
    %v1620 = vld [vmem:[%s11 + $0x28] sm:$0xff]
    %v1621 = vld [vmem:[%s11 + $0x30] sm:$0xff]
    %v1622 = vld [vmem:[%s11 + $0x38] sm:$0xff]
    %v1623 = vld [vmem:[%s11 + $0x40] sm:$0xff]
    %v1624 = vld [vmem:[%s11 + $0x48] sm:$0xff]
    %v1625 = vld [vmem:[%s11 + $0x50] sm:$0xff]
    %v1626 = vld [vmem:[%s11 + $0x58] sm:$0xff]
    %v1627 = vld [vmem:[%s11 + $0x60] sm:$0xff]
    %v1628 = vld [vmem:[%s11 + $0x68] sm:$0xff]
    %v1629 = vld [vmem:[%s11 + $0x70] sm:$0xff]
    %v1630 = vld [vmem:[%s11 + $0x78] sm:$0xff]
    %v1631 = vld [vmem:[%s11 + $0x80] sm:$0xff]
    %v1632 = vld [vmem:[%s11 + $0x88] sm:$0xff]
    %v1633 = vld [vmem:[%s11 + $0x90] sm:$0xff]
    %v1634 = vld [vmem:[%s11 + $0x98] sm:$0xff]
    %v1635 = vld [vmem:[%s11 + $0xa0] sm:$0xff]
    %v1636 = vld [vmem:[%s11 + $0xa8] sm:$0xff]
    %v1637 = vld [vmem:[%s11 + $0xb0] sm:$0xff]
    %v1638 = vld [vmem:[%s11 + $0xb8] sm:$0xff]
    %v1639 = vld [vmem:[%s11 + $0xc0] sm:$0xff]
    %v1640 = vld [vmem:[%s11 + $0xc8] sm:$0xff]
    %v1641 = vld [vmem:[%s11 + $0xd0] sm:$0xff]
    %v1642 = vld [vmem:[%s11 + $0xd8] sm:$0xff]
    %v1643 = vld [vmem:[%s11 + $0xe0] sm:$0xff]
    %v1644 = vld [vmem:[%s11 + $0xe8] sm:$0xff]
    %v1645 = vld [vmem:[%s11 + $0xf0] sm:$0xff]
    %v1646 = vld [vmem:[%s11 + $0xf8] sm:$0xff]
    %v1647 = vld [vmem:[%s12] ss:$2 sm:$0xff]
    %s1648 = scalar_lea.vmem %s12, 16
    %v1649 = vld [vmem:[%s1648] ss:$2 sm:$0xff]
    %v1652 = vlaneseq
    %v1653 = vshrl.u32 %v1652, 7
    %v1654 = vsub.s32 0, %v1653
    %v1655 = vrot.slane %v1647, %v1654
    %v1656 = vlaneseq
    %v1657 = vshrl.u32 %v1656, 7
    %v1658 = vsub.s32 1, %v1657
    %v1659 = vrot.slane %v1647, %v1658
    %v1660 = vlaneseq
    %v1661 = vshrl.u32 %v1660, 7
    %v1662 = vsub.s32 2, %v1661
    %v1663 = vrot.slane %v1647, %v1662
    %v1664 = vlaneseq
    %v1665 = vshrl.u32 %v1664, 7
    %v1666 = vsub.s32 3, %v1665
    %v1667 = vrot.slane %v1647, %v1666
    %v1668 = vlaneseq
    %v1669 = vshrl.u32 %v1668, 7
    %v1670 = vsub.s32 4, %v1669
    %v1671 = vrot.slane %v1647, %v1670
    %v1672 = vlaneseq
    %v1673 = vshrl.u32 %v1672, 7
    %v1674 = vsub.s32 5, %v1673
    %v1675 = vrot.slane %v1647, %v1674
    %v1676 = vlaneseq
    %v1677 = vshrl.u32 %v1676, 7
    %v1678 = vsub.s32 6, %v1677
    %v1679 = vrot.slane %v1647, %v1678
    %v1680 = vlaneseq
    %v1681 = vshrl.u32 %v1680, 7
    %v1682 = vsub.s32 7, %v1681
    %v1683 = vrot.slane %v1647, %v1682
    %v1684 = vlaneseq
    %v1685 = vshrl.u32 %v1684, 7
    %v1686 = vsub.s32 0, %v1685
    %v1687 = vrot.slane %v1649, %v1686
    %v1688 = vlaneseq
    %v1689 = vshrl.u32 %v1688, 7
    %v1690 = vsub.s32 1, %v1689
    %v1691 = vrot.slane %v1649, %v1690
    %v1692 = vlaneseq
    %v1693 = vshrl.u32 %v1692, 7
    %v1694 = vsub.s32 2, %v1693
    %v1695 = vrot.slane %v1649, %v1694
    %v1696 = vlaneseq
    %v1697 = vshrl.u32 %v1696, 7
    %v1698 = vsub.s32 3, %v1697
    %v1699 = vrot.slane %v1649, %v1698
    %v1700 = vlaneseq
    %v1701 = vshrl.u32 %v1700, 7
    %v1702 = vsub.s32 4, %v1701
    %v1703 = vrot.slane %v1649, %v1702
    %v1704 = vlaneseq
    %v1705 = vshrl.u32 %v1704, 7
    %v1706 = vsub.s32 5, %v1705
    %v1707 = vrot.slane %v1649, %v1706
    %v1708 = vlaneseq
    %v1709 = vshrl.u32 %v1708, 7
    %v1710 = vsub.s32 6, %v1709
    %v1711 = vrot.slane %v1649, %v1710
    %v1712 = vlaneseq
    %v1713 = vshrl.u32 %v1712, 7
    %v1714 = vsub.s32 7, %v1713
    %v1715 = vrot.slane %v1649, %v1714
    %v1764 = vunpack.c.l.b16 %v1615
    %v1765 = vunpack.c.h.b16 %v1615
    %v1766 = vunpack.c.l.b16 %v1616
    %v1767 = vunpack.c.h.b16 %v1616
    %v1768 = vunpack.c.l.b16 %v1617
    %v1769 = vunpack.c.h.b16 %v1617
    %v1770 = vunpack.c.l.b16 %v1618
    %v1771 = vunpack.c.h.b16 %v1618
    %v1772 = vunpack.c.l.b16 %v1619
    %v1773 = vunpack.c.h.b16 %v1619
    %v1774 = vunpack.c.l.b16 %v1620
    %v1775 = vunpack.c.h.b16 %v1620
    %v1776 = vunpack.c.l.b16 %v1621
    %v1777 = vunpack.c.h.b16 %v1621
    %v1778 = vunpack.c.l.b16 %v1622
    %v1779 = vunpack.c.h.b16 %v1622
    %v1780 = vunpack.c.l.b16 %v1623
    %v1781 = vunpack.c.h.b16 %v1623
    %v1782 = vunpack.c.l.b16 %v1624
    %v1783 = vunpack.c.h.b16 %v1624
    %v1784 = vunpack.c.l.b16 %v1625
    %v1785 = vunpack.c.h.b16 %v1625
    %v1786 = vunpack.c.l.b16 %v1626
    %v1787 = vunpack.c.h.b16 %v1626
    %v1788 = vunpack.c.l.b16 %v1627
    %v1789 = vunpack.c.h.b16 %v1627
    %v1790 = vunpack.c.l.b16 %v1628
    %v1791 = vunpack.c.h.b16 %v1628
    %v1792 = vunpack.c.l.b16 %v1629
    %v1793 = vunpack.c.h.b16 %v1629
    %v1794 = vunpack.c.l.b16 %v1630
    %v1795 = vunpack.c.h.b16 %v1630
    %v1796 = vunpack.c.l.b16 %v1631
    %v1797 = vunpack.c.h.b16 %v1631
    %v1798 = vunpack.c.l.b16 %v1632
    %v1799 = vunpack.c.h.b16 %v1632
    %v1800 = vunpack.c.l.b16 %v1633
    %v1801 = vunpack.c.h.b16 %v1633
    %v1802 = vunpack.c.l.b16 %v1634
    %v1803 = vunpack.c.h.b16 %v1634
    %v1804 = vunpack.c.l.b16 %v1635
    %v1805 = vunpack.c.h.b16 %v1635
    %v1806 = vunpack.c.l.b16 %v1636
    %v1807 = vunpack.c.h.b16 %v1636
    %v1808 = vunpack.c.l.b16 %v1637
    %v1809 = vunpack.c.h.b16 %v1637
    %v1810 = vunpack.c.l.b16 %v1638
    %v1811 = vunpack.c.h.b16 %v1638
    %v1812 = vunpack.c.l.b16 %v1639
    %v1813 = vunpack.c.h.b16 %v1639
    %v1814 = vunpack.c.l.b16 %v1640
    %v1815 = vunpack.c.h.b16 %v1640
    %v1816 = vunpack.c.l.b16 %v1641
    %v1817 = vunpack.c.h.b16 %v1641
    %v1818 = vunpack.c.l.b16 %v1642
    %v1819 = vunpack.c.h.b16 %v1642
    %v1820 = vunpack.c.l.b16 %v1643
    %v1821 = vunpack.c.h.b16 %v1643
    %v1822 = vunpack.c.l.b16 %v1644
    %v1823 = vunpack.c.h.b16 %v1644
    %v1824 = vunpack.c.l.b16 %v1645
    %v1825 = vunpack.c.h.b16 %v1645
    %v1826 = vunpack.c.l.b16 %v1646
    %v1827 = vunpack.c.h.b16 %v1646
    %v1828 = vpack.c.b16 %v1780, %v1764
    %v1829 = vpack.c.b16 %v1781, %v1765
    %v1830 = vpack.c.b16 %v1782, %v1766
    %v1831 = vpack.c.b16 %v1783, %v1767
    %v1832 = vpack.c.b16 %v1784, %v1768
    %v1833 = vpack.c.b16 %v1785, %v1769
    %v1834 = vpack.c.b16 %v1786, %v1770
    %v1835 = vpack.c.b16 %v1787, %v1771
    %v1836 = vpack.c.b16 %v1788, %v1772
    %v1837 = vpack.c.b16 %v1789, %v1773
    %v1838 = vpack.c.b16 %v1790, %v1774
    %v1839 = vpack.c.b16 %v1791, %v1775
    %v1840 = vpack.c.b16 %v1792, %v1776
    %v1841 = vpack.c.b16 %v1793, %v1777
    %v1842 = vpack.c.b16 %v1794, %v1778
    %v1843 = vpack.c.b16 %v1795, %v1779
    %v1844 = vpack.c.b16 %v1812, %v1796
    %v1845 = vpack.c.b16 %v1813, %v1797
    %v1846 = vpack.c.b16 %v1814, %v1798
    %v1847 = vpack.c.b16 %v1815, %v1799
    %v1848 = vpack.c.b16 %v1816, %v1800
    %v1849 = vpack.c.b16 %v1817, %v1801
    %v1850 = vpack.c.b16 %v1818, %v1802
    %v1851 = vpack.c.b16 %v1819, %v1803
    %v1852 = vpack.c.b16 %v1820, %v1804
    %v1853 = vpack.c.b16 %v1821, %v1805
    %v1854 = vpack.c.b16 %v1822, %v1806
    %v1855 = vpack.c.b16 %v1823, %v1807
    %v1856 = vpack.c.b16 %v1824, %v1808
    %v1857 = vpack.c.b16 %v1825, %v1809
    %v1858 = vpack.c.b16 %v1826, %v1810
    %v1859 = vpack.c.b16 %v1827, %v1811
    %v1893 = vsel %vm261, %v1611, 0
    %v1896 = vsel %vm261, %v1612, 0
    %v1899 = vsel %vm261, %v1613, 0
    %v1902 = vsel %vm261, %v1614, 0
    %1904 = vmatprep.subr.bf16.mxu0 %v1829
    %1905 = vmatpush1.bf16.msra.mxu0 %v1828
    %1906 = vmatprep.subr.bf16.mxu0 %v1845
    %1907 = vmatpush1.bf16.msra.mxu0 %v1844
    %1908 = vmatprep.subr.bf16.mxu0 0
    %1909 = vmatpush1.bf16.msra.mxu0 0
    %1910 = vmatprep.subr.bf16.mxu0 0
    %1911 = vmatpush1.bf16.msra.mxu0 0
    %1912 = vmatprep.subr.bf16.mxu0 0
    %1913 = vmatpush1.bf16.msra.mxu0 0
    %1914 = vmatprep.subr.bf16.mxu0 0
    %1915 = vmatpush1.bf16.msra.mxu0 0
    %1916 = vmatprep.subr.bf16.mxu0 0
    %1917 = vmatpush1.bf16.msra.mxu0 0
    %1918 = vmatprep.subr.bf16.mxu0 0
    %1919 = vmatpush1.bf16.msra.mxu0 0
    %1920 = vmatprep.subr.bf16.mxu0 0
    %1921 = vmatpush1.bf16.msra.mxu0 0
    %1922 = vmatprep.subr.bf16.mxu0 0
    %1923 = vmatpush1.bf16.msra.mxu0 0
    %1924 = vmatprep.subr.bf16.mxu0 0
    %1925 = vmatpush1.bf16.msra.mxu0 0
    %1926 = vmatprep.subr.bf16.mxu0 0
    %1927 = vmatpush1.bf16.msra.mxu0 0
    %1928 = vmatprep.subr.bf16.mxu0 0
    %1929 = vmatpush1.bf16.msra.mxu0 0
    %1930 = vmatprep.subr.bf16.mxu0 0
    %1931 = vmatpush1.bf16.msra.mxu0 0
    %1932 = vmatprep.subr.bf16.mxu0 0
    %1933 = vmatpush1.bf16.msra.mxu0 0
    %1934 = vmatprep.subr.bf16.mxu0 0
    %1935 = vmatpush1.bf16.msra.mxu0 0
    %1936 = vmatprep.mubr.bf16.mxu0 0
    %1937 = vmatmul.mubr.bf16.gmra.mrb[0].mxu0 %v1893
    %v1938 = vpop.f32.mrb[0].mxu0
    %v1939 = vadd.f32 %v1655, %v1938
    %v1940 = vpop.f32.mrb[0].mxu0
    %v1941 = vadd.f32 %v1659, %v1940
    %v1942 = vpop.f32.mrb[0].mxu0
    %v1943 = vadd.f32 %v1655, %v1942
    %v1944 = vpop.f32.mrb[0].mxu0
    %v1945 = vadd.f32 %v1659, %v1944
    %1946 = vmatprep.mubr.bf16.mxu0 0
    %1947 = vmatmul.mubr.bf16.gmra.mrb[0].mxu0 %v1896
    %v1948 = vpop.f32.mrb[0].mxu0
    %v1949 = vadd.f32 %v1655, %v1948
    %v1950 = vpop.f32.mrb[0].mxu0
    %v1951 = vadd.f32 %v1659, %v1950
    %v1952 = vpop.f32.mrb[0].mxu0
    %v1953 = vadd.f32 %v1655, %v1952
    %v1954 = vpop.f32.mrb[0].mxu0
    %v1955 = vadd.f32 %v1659, %v1954
    %1956 = vmatprep.mubr.bf16.mxu0 0
    %1957 = vmatmul.mubr.bf16.gmra.mrb[0].mxu0 %v1899
    %v1958 = vpop.f32.mrb[0].mxu0
    %v1959 = vadd.f32 %v1655, %v1958
    %v1960 = vpop.f32.mrb[0].mxu0
    %v1961 = vadd.f32 %v1659, %v1960
    %v1962 = vpop.f32.mrb[0].mxu0
    %v1963 = vadd.f32 %v1655, %v1962
    %v1964 = vpop.f32.mrb[0].mxu0
    %v1965 = vadd.f32 %v1659, %v1964
    %1966 = vmatprep.mubr.bf16.mxu0 0
    %1967 = vmatmul.mubr.bf16.gmra.mrb[0].mxu0 %v1902
    %v1968 = vpop.f32.mrb[0].mxu0
    %v1969 = vadd.f32 %v1655, %v1968
    %v1970 = vpop.f32.mrb[0].mxu0
    %v1971 = vadd.f32 %v1659, %v1970
    %v1972 = vpop.f32.mrb[0].mxu0
    %v1973 = vadd.f32 %v1655, %v1972
    %v1974 = vpop.f32.mrb[0].mxu0
    %v1975 = vadd.f32 %v1659, %v1974
    %1976 = vdwg.mxu0
    %1977 = vmatprep.subr.bf16.mxu0 %v1831
    %1978 = vmatpush1.bf16.msra.mxu0 %v1830
    %1979 = vmatprep.subr.bf16.mxu0 %v1847
    %1980 = vmatpush1.bf16.msra.mxu0 %v1846
    %1981 = vmatprep.subr.bf16.mxu0 0
    %1982 = vmatpush1.bf16.msra.mxu0 0
    %1983 = vmatprep.subr.bf16.mxu0 0
    %1984 = vmatpush1.bf16.msra.mxu0 0
    %1985 = vmatprep.subr.bf16.mxu0 0
    %1986 = vmatpush1.bf16.msra.mxu0 0
    %1987 = vmatprep.subr.bf16.mxu0 0
    %1988 = vmatpush1.bf16.msra.mxu0 0
    %1989 = vmatprep.subr.bf16.mxu0 0
    %1990 = vmatpush1.bf16.msra.mxu0 0
    %1991 = vmatprep.subr.bf16.mxu0 0
    %1992 = vmatpush1.bf16.msra.mxu0 0
    %1993 = vmatprep.subr.bf16.mxu0 0
    %1994 = vmatpush1.bf16.msra.mxu0 0
    %1995 = vmatprep.subr.bf16.mxu0 0
    %1996 = vmatpush1.bf16.msra.mxu0 0
    %1997 = vmatprep.subr.bf16.mxu0 0
    %1998 = vmatpush1.bf16.msra.mxu0 0
    %1999 = vmatprep.subr.bf16.mxu0 0
    %2000 = vmatpush1.bf16.msra.mxu0 0
    %2001 = vmatprep.subr.bf16.mxu0 0
    %2002 = vmatpush1.bf16.msra.mxu0 0
    %2003 = vmatprep.subr.bf16.mxu0 0
    %2004 = vmatpush1.bf16.msra.mxu0 0
    %2005 = vmatprep.subr.bf16.mxu0 0
    %2006 = vmatpush1.bf16.msra.mxu0 0
    %2007 = vmatprep.subr.bf16.mxu0 0
    %2008 = vmatpush1.bf16.msra.mxu0 0
    %2009 = vmatprep.mubr.bf16.mxu0 0
    %2010 = vmatmul.mubr.bf16.gmra.mrb[0].mxu0 %v1893
    %v2011 = vpop.f32.mrb[0].mxu0
    %v2012 = vadd.f32 %v1663, %v2011
    %v2013 = vpop.f32.mrb[0].mxu0
    %v2014 = vadd.f32 %v1667, %v2013
    %v2015 = vpop.f32.mrb[0].mxu0
    %v2016 = vadd.f32 %v1663, %v2015
    %v2017 = vpop.f32.mrb[0].mxu0
    %v2018 = vadd.f32 %v1667, %v2017
    %2019 = vmatprep.mubr.bf16.mxu0 0
    %2020 = vmatmul.mubr.bf16.gmra.mrb[0].mxu0 %v1896
    %v2021 = vpop.f32.mrb[0].mxu0
    %v2022 = vadd.f32 %v1663, %v2021
    %v2023 = vpop.f32.mrb[0].mxu0
    %v2024 = vadd.f32 %v1667, %v2023
    %v2025 = vpop.f32.mrb[0].mxu0
    %v2026 = vadd.f32 %v1663, %v2025
    %v2027 = vpop.f32.mrb[0].mxu0
    %v2028 = vadd.f32 %v1667, %v2027
    %2029 = vmatprep.mubr.bf16.mxu0 0
    %2030 = vmatmul.mubr.bf16.gmra.mrb[0].mxu0 %v1899
    %v2031 = vpop.f32.mrb[0].mxu0
    %v2032 = vadd.f32 %v1663, %v2031
    %v2033 = vpop.f32.mrb[0].mxu0
    %v2034 = vadd.f32 %v1667, %v2033
    %v2035 = vpop.f32.mrb[0].mxu0
    %v2036 = vadd.f32 %v1663, %v2035
    %v2037 = vpop.f32.mrb[0].mxu0
    %v2038 = vadd.f32 %v1667, %v2037
    %2039 = vmatprep.mubr.bf16.mxu0 0
    %2040 = vmatmul.mubr.bf16.gmra.mrb[0].mxu0 %v1902
    %v2041 = vpop.f32.mrb[0].mxu0
    %v2042 = vadd.f32 %v1663, %v2041
    %v2043 = vpop.f32.mrb[0].mxu0
    %v2044 = vadd.f32 %v1667, %v2043
    %v2045 = vpop.f32.mrb[0].mxu0
    %v2046 = vadd.f32 %v1663, %v2045
    %v2047 = vpop.f32.mrb[0].mxu0
    %v2048 = vadd.f32 %v1667, %v2047
    %2049 = vdwg.mxu0
    %2050 = vmatprep.subr.bf16.mxu0 %v1833
    %2051 = vmatpush1.bf16.msra.mxu0 %v1832
    %2052 = vmatprep.subr.bf16.mxu0 %v1849
    %2053 = vmatpush1.bf16.msra.mxu0 %v1848
    %2054 = vmatprep.subr.bf16.mxu0 0
    %2055 = vmatpush1.bf16.msra.mxu0 0
    %2056 = vmatprep.subr.bf16.mxu0 0
    %2057 = vmatpush1.bf16.msra.mxu0 0
    %2058 = vmatprep.subr.bf16.mxu0 0
    %2059 = vmatpush1.bf16.msra.mxu0 0
    %2060 = vmatprep.subr.bf16.mxu0 0
    %2061 = vmatpush1.bf16.msra.mxu0 0
    %2062 = vmatprep.subr.bf16.mxu0 0
    %2063 = vmatpush1.bf16.msra.mxu0 0
    %2064 = vmatprep.subr.bf16.mxu0 0
    %2065 = vmatpush1.bf16.msra.mxu0 0
    %2066 = vmatprep.subr.bf16.mxu0 0
    %2067 = vmatpush1.bf16.msra.mxu0 0
    %2068 = vmatprep.subr.bf16.mxu0 0
    %2069 = vmatpush1.bf16.msra.mxu0 0
    %2070 = vmatprep.subr.bf16.mxu0 0
    %2071 = vmatpush1.bf16.msra.mxu0 0
    %2072 = vmatprep.subr.bf16.mxu0 0
    %2073 = vmatpush1.bf16.msra.mxu0 0
    %2074 = vmatprep.subr.bf16.mxu0 0
    %2075 = vmatpush1.bf16.msra.mxu0 0
    %2076 = vmatprep.subr.bf16.mxu0 0
    %2077 = vmatpush1.bf16.msra.mxu0 0
    %2078 = vmatprep.subr.bf16.mxu0 0
    %2079 = vmatpush1.bf16.msra.mxu0 0
    %2080 = vmatprep.subr.bf16.mxu0 0
    %2081 = vmatpush1.bf16.msra.mxu0 0
    %2082 = vmatprep.mubr.bf16.mxu0 0
    %2083 = vmatmul.mubr.bf16.gmra.mrb[0].mxu0 %v1893
    %v2084 = vpop.f32.mrb[0].mxu0
    %v2085 = vadd.f32 %v1671, %v2084
    %v2086 = vpop.f32.mrb[0].mxu0
    %v2087 = vadd.f32 %v1675, %v2086
    %v2088 = vpop.f32.mrb[0].mxu0
    %v2089 = vadd.f32 %v1671, %v2088
    %v2090 = vpop.f32.mrb[0].mxu0
    %v2091 = vadd.f32 %v1675, %v2090
    %2092 = vmatprep.mubr.bf16.mxu0 0
    %2093 = vmatmul.mubr.bf16.gmra.mrb[0].mxu0 %v1896
    %v2094 = vpop.f32.mrb[0].mxu0
    %v2095 = vadd.f32 %v1671, %v2094
    %v2096 = vpop.f32.mrb[0].mxu0
    %v2097 = vadd.f32 %v1675, %v2096
    %v2098 = vpop.f32.mrb[0].mxu0
    %v2099 = vadd.f32 %v1671, %v2098
    %v2100 = vpop.f32.mrb[0].mxu0
    %v2101 = vadd.f32 %v1675, %v2100
    %2102 = vmatprep.mubr.bf16.mxu0 0
    %2103 = vmatmul.mubr.bf16.gmra.mrb[0].mxu0 %v1899
    %v2104 = vpop.f32.mrb[0].mxu0
    %v2105 = vadd.f32 %v1671, %v2104
    %v2106 = vpop.f32.mrb[0].mxu0
    %v2107 = vadd.f32 %v1675, %v2106
    %v2108 = vpop.f32.mrb[0].mxu0
    %v2109 = vadd.f32 %v1671, %v2108
    %v2110 = vpop.f32.mrb[0].mxu0
    %v2111 = vadd.f32 %v1675, %v2110
    %2112 = vmatprep.mubr.bf16.mxu0 0
    %2113 = vmatmul.mubr.bf16.gmra.mrb[0].mxu0 %v1902
    %v2114 = vpop.f32.mrb[0].mxu0
    %v2115 = vadd.f32 %v1671, %v2114
    %v2116 = vpop.f32.mrb[0].mxu0
    %v2117 = vadd.f32 %v1675, %v2116
    %v2118 = vpop.f32.mrb[0].mxu0
    %v2119 = vadd.f32 %v1671, %v2118
    %v2120 = vpop.f32.mrb[0].mxu0
    %v2121 = vadd.f32 %v1675, %v2120
    %2122 = vdwg.mxu0
    %2123 = vmatprep.subr.bf16.mxu0 %v1835
    %2124 = vmatpush1.bf16.msra.mxu0 %v1834
    %2125 = vmatprep.subr.bf16.mxu0 %v1851
    %2126 = vmatpush1.bf16.msra.mxu0 %v1850
    %2127 = vmatprep.subr.bf16.mxu0 0
    %2128 = vmatpush1.bf16.msra.mxu0 0
    %2129 = vmatprep.subr.bf16.mxu0 0
    %2130 = vmatpush1.bf16.msra.mxu0 0
    %2131 = vmatprep.subr.bf16.mxu0 0
    %2132 = vmatpush1.bf16.msra.mxu0 0
    %2133 = vmatprep.subr.bf16.mxu0 0
    %2134 = vmatpush1.bf16.msra.mxu0 0
    %2135 = vmatprep.subr.bf16.mxu0 0
    %2136 = vmatpush1.bf16.msra.mxu0 0
    %2137 = vmatprep.subr.bf16.mxu0 0
    %2138 = vmatpush1.bf16.msra.mxu0 0
    %2139 = vmatprep.subr.bf16.mxu0 0
    %2140 = vmatpush1.bf16.msra.mxu0 0
    %2141 = vmatprep.subr.bf16.mxu0 0
    %2142 = vmatpush1.bf16.msra.mxu0 0
    %2143 = vmatprep.subr.bf16.mxu0 0
    %2144 = vmatpush1.bf16.msra.mxu0 0
    %2145 = vmatprep.subr.bf16.mxu0 0
    %2146 = vmatpush1.bf16.msra.mxu0 0
    %2147 = vmatprep.subr.bf16.mxu0 0
    %2148 = vmatpush1.bf16.msra.mxu0 0
    %2149 = vmatprep.subr.bf16.mxu0 0
    %2150 = vmatpush1.bf16.msra.mxu0 0
    %2151 = vmatprep.subr.bf16.mxu0 0
    %2152 = vmatpush1.bf16.msra.mxu0 0
    %2153 = vmatprep.subr.bf16.mxu0 0
    %2154 = vmatpush1.bf16.msra.mxu0 0
    %2155 = vmatprep.mubr.bf16.mxu0 0
    %2156 = vmatmul.mubr.bf16.gmra.mrb[0].mxu0 %v1893
    %v2157 = vpop.f32.mrb[0].mxu0
    %v2158 = vadd.f32 %v1679, %v2157
    %v2159 = vpop.f32.mrb[0].mxu0
    %v2160 = vadd.f32 %v1683, %v2159
    %v2161 = vpop.f32.mrb[0].mxu0
    %v2162 = vadd.f32 %v1679, %v2161
    %v2163 = vpop.f32.mrb[0].mxu0
    %v2164 = vadd.f32 %v1683, %v2163
    %2165 = vmatprep.mubr.bf16.mxu0 0
    %2166 = vmatmul.mubr.bf16.gmra.mrb[0].mxu0 %v1896
    %v2167 = vpop.f32.mrb[0].mxu0
    %v2168 = vadd.f32 %v1679, %v2167
    %v2169 = vpop.f32.mrb[0].mxu0
    %v2170 = vadd.f32 %v1683, %v2169
    %v2171 = vpop.f32.mrb[0].mxu0
    %v2172 = vadd.f32 %v1679, %v2171
    %v2173 = vpop.f32.mrb[0].mxu0
    %v2174 = vadd.f32 %v1683, %v2173
    %2175 = vmatprep.mubr.bf16.mxu0 0
    %2176 = vmatmul.mubr.bf16.gmra.mrb[0].mxu0 %v1899
    %v2177 = vpop.f32.mrb[0].mxu0
    %v2178 = vadd.f32 %v1679, %v2177
    %v2179 = vpop.f32.mrb[0].mxu0
    %v2180 = vadd.f32 %v1683, %v2179
    %v2181 = vpop.f32.mrb[0].mxu0
    %v2182 = vadd.f32 %v1679, %v2181
    %v2183 = vpop.f32.mrb[0].mxu0
    %v2184 = vadd.f32 %v1683, %v2183
    %2185 = vmatprep.mubr.bf16.mxu0 0
    %2186 = vmatmul.mubr.bf16.gmra.mrb[0].mxu0 %v1902
    %v2187 = vpop.f32.mrb[0].mxu0
    %v2188 = vadd.f32 %v1679, %v2187
    %v2189 = vpop.f32.mrb[0].mxu0
    %v2190 = vadd.f32 %v1683, %v2189
    %v2191 = vpop.f32.mrb[0].mxu0
    %v2192 = vadd.f32 %v1679, %v2191
    %v2193 = vpop.f32.mrb[0].mxu0
    %v2194 = vadd.f32 %v1683, %v2193
    %2195 = vdwg.mxu0
    %2196 = vmatprep.subr.bf16.mxu0 %v1837
    %2197 = vmatpush1.bf16.msra.mxu0 %v1836
    %2198 = vmatprep.subr.bf16.mxu0 %v1853
    %2199 = vmatpush1.bf16.msra.mxu0 %v1852
    %2200 = vmatprep.subr.bf16.mxu0 0
    %2201 = vmatpush1.bf16.msra.mxu0 0
    %2202 = vmatprep.subr.bf16.mxu0 0
    %2203 = vmatpush1.bf16.msra.mxu0 0
    %2204 = vmatprep.subr.bf16.mxu0 0
    %2205 = vmatpush1.bf16.msra.mxu0 0
    %2206 = vmatprep.subr.bf16.mxu0 0
    %2207 = vmatpush1.bf16.msra.mxu0 0
    %2208 = vmatprep.subr.bf16.mxu0 0
    %2209 = vmatpush1.bf16.msra.mxu0 0
    %2210 = vmatprep.subr.bf16.mxu0 0
    %2211 = vmatpush1.bf16.msra.mxu0 0
    %2212 = vmatprep.subr.bf16.mxu0 0
    %2213 = vmatpush1.bf16.msra.mxu0 0
    %2214 = vmatprep.subr.bf16.mxu0 0
    %2215 = vmatpush1.bf16.msra.mxu0 0
    %2216 = vmatprep.subr.bf16.mxu0 0
    %2217 = vmatpush1.bf16.msra.mxu0 0
    %2218 = vmatprep.subr.bf16.mxu0 0
    %2219 = vmatpush1.bf16.msra.mxu0 0
    %2220 = vmatprep.subr.bf16.mxu0 0
    %2221 = vmatpush1.bf16.msra.mxu0 0
    %2222 = vmatprep.subr.bf16.mxu0 0
    %2223 = vmatpush1.bf16.msra.mxu0 0
    %2224 = vmatprep.subr.bf16.mxu0 0
    %2225 = vmatpush1.bf16.msra.mxu0 0
    %2226 = vmatprep.subr.bf16.mxu0 0
    %2227 = vmatpush1.bf16.msra.mxu0 0
    %2228 = vmatprep.mubr.bf16.mxu0 0
    %2229 = vmatmul.mubr.bf16.gmra.mrb[0].mxu0 %v1893
    %v2230 = vpop.f32.mrb[0].mxu0
    %v2231 = vadd.f32 %v1687, %v2230
    %v2232 = vpop.f32.mrb[0].mxu0
    %v2233 = vadd.f32 %v1691, %v2232
    %v2234 = vpop.f32.mrb[0].mxu0
    %v2235 = vadd.f32 %v1687, %v2234
    %v2236 = vpop.f32.mrb[0].mxu0
    %v2237 = vadd.f32 %v1691, %v2236
    %2238 = vmatprep.mubr.bf16.mxu0 0
    %2239 = vmatmul.mubr.bf16.gmra.mrb[0].mxu0 %v1896
    %v2240 = vpop.f32.mrb[0].mxu0
    %v2241 = vadd.f32 %v1687, %v2240
    %v2242 = vpop.f32.mrb[0].mxu0
    %v2243 = vadd.f32 %v1691, %v2242
    %v2244 = vpop.f32.mrb[0].mxu0
    %v2245 = vadd.f32 %v1687, %v2244
    %v2246 = vpop.f32.mrb[0].mxu0
    %v2247 = vadd.f32 %v1691, %v2246
    %2248 = vmatprep.mubr.bf16.mxu0 0
    %2249 = vmatmul.mubr.bf16.gmra.mrb[0].mxu0 %v1899
    %v2250 = vpop.f32.mrb[0].mxu0
    %v2251 = vadd.f32 %v1687, %v2250
    %v2252 = vpop.f32.mrb[0].mxu0
    %v2253 = vadd.f32 %v1691, %v2252
    %v2254 = vpop.f32.mrb[0].mxu0
    %v2255 = vadd.f32 %v1687, %v2254
    %v2256 = vpop.f32.mrb[0].mxu0
    %v2257 = vadd.f32 %v1691, %v2256
    %2258 = vmatprep.mubr.bf16.mxu0 0
    %2259 = vmatmul.mubr.bf16.gmra.mrb[0].mxu0 %v1902
    %v2260 = vpop.f32.mrb[0].mxu0
    %v2261 = vadd.f32 %v1687, %v2260
    %v2262 = vpop.f32.mrb[0].mxu0
    %v2263 = vadd.f32 %v1691, %v2262
    %v2264 = vpop.f32.mrb[0].mxu0
    %v2265 = vadd.f32 %v1687, %v2264
    %v2266 = vpop.f32.mrb[0].mxu0
    %v2267 = vadd.f32 %v1691, %v2266
    %2268 = vdwg.mxu0
    %2269 = vmatprep.subr.bf16.mxu0 %v1839
    %2270 = vmatpush1.bf16.msra.mxu0 %v1838
    %2271 = vmatprep.subr.bf16.mxu0 %v1855
    %2272 = vmatpush1.bf16.msra.mxu0 %v1854
    %2273 = vmatprep.subr.bf16.mxu0 0
    %2274 = vmatpush1.bf16.msra.mxu0 0
    %2275 = vmatprep.subr.bf16.mxu0 0
    %2276 = vmatpush1.bf16.msra.mxu0 0
    %2277 = vmatprep.subr.bf16.mxu0 0
    %2278 = vmatpush1.bf16.msra.mxu0 0
    %2279 = vmatprep.subr.bf16.mxu0 0
    %2280 = vmatpush1.bf16.msra.mxu0 0
    %2281 = vmatprep.subr.bf16.mxu0 0
    %2282 = vmatpush1.bf16.msra.mxu0 0
    %2283 = vmatprep.subr.bf16.mxu0 0
    %2284 = vmatpush1.bf16.msra.mxu0 0
    %2285 = vmatprep.subr.bf16.mxu0 0
    %2286 = vmatpush1.bf16.msra.mxu0 0
    %2287 = vmatprep.subr.bf16.mxu0 0
    %2288 = vmatpush1.bf16.msra.mxu0 0
    %2289 = vmatprep.subr.bf16.mxu0 0
    %2290 = vmatpush1.bf16.msra.mxu0 0
    %2291 = vmatprep.subr.bf16.mxu0 0
    %2292 = vmatpush1.bf16.msra.mxu0 0
    %2293 = vmatprep.subr.bf16.mxu0 0
    %2294 = vmatpush1.bf16.msra.mxu0 0
    %2295 = vmatprep.subr.bf16.mxu0 0
    %2296 = vmatpush1.bf16.msra.mxu0 0
    %2297 = vmatprep.subr.bf16.mxu0 0
    %2298 = vmatpush1.bf16.msra.mxu0 0
    %2299 = vmatprep.subr.bf16.mxu0 0
    %2300 = vmatpush1.bf16.msra.mxu0 0
    %2301 = vmatprep.mubr.bf16.mxu0 0
    %2302 = vmatmul.mubr.bf16.gmra.mrb[0].mxu0 %v1893
    %v2303 = vpop.f32.mrb[0].mxu0
    %v2304 = vadd.f32 %v1695, %v2303
    %v2305 = vpop.f32.mrb[0].mxu0
    %v2306 = vadd.f32 %v1699, %v2305
    %v2307 = vpop.f32.mrb[0].mxu0
    %v2308 = vadd.f32 %v1695, %v2307
    %v2309 = vpop.f32.mrb[0].mxu0
    %v2310 = vadd.f32 %v1699, %v2309
    %2311 = vmatprep.mubr.bf16.mxu0 0
    %2312 = vmatmul.mubr.bf16.gmra.mrb[0].mxu0 %v1896
    %v2313 = vpop.f32.mrb[0].mxu0
    %v2314 = vadd.f32 %v1695, %v2313
    %v2315 = vpop.f32.mrb[0].mxu0
    %v2316 = vadd.f32 %v1699, %v2315
    %v2317 = vpop.f32.mrb[0].mxu0
    %v2318 = vadd.f32 %v1695, %v2317
    %v2319 = vpop.f32.mrb[0].mxu0
    %v2320 = vadd.f32 %v1699, %v2319
    %2321 = vmatprep.mubr.bf16.mxu0 0
    %2322 = vmatmul.mubr.bf16.gmra.mrb[0].mxu0 %v1899
    %v2323 = vpop.f32.mrb[0].mxu0
    %v2324 = vadd.f32 %v1695, %v2323
    %v2325 = vpop.f32.mrb[0].mxu0
    %v2326 = vadd.f32 %v1699, %v2325
    %v2327 = vpop.f32.mrb[0].mxu0
    %v2328 = vadd.f32 %v1695, %v2327
    %v2329 = vpop.f32.mrb[0].mxu0
    %v2330 = vadd.f32 %v1699, %v2329
    %2331 = vmatprep.mubr.bf16.mxu0 0
    %2332 = vmatmul.mubr.bf16.gmra.mrb[0].mxu0 %v1902
    %v2333 = vpop.f32.mrb[0].mxu0
    %v2334 = vadd.f32 %v1695, %v2333
    %v2335 = vpop.f32.mrb[0].mxu0
    %v2336 = vadd.f32 %v1699, %v2335
    %v2337 = vpop.f32.mrb[0].mxu0
    %v2338 = vadd.f32 %v1695, %v2337
    %v2339 = vpop.f32.mrb[0].mxu0
    %v2340 = vadd.f32 %v1699, %v2339
    %2341 = vdwg.mxu0
    %2342 = vmatprep.subr.bf16.mxu0 %v1841
    %2343 = vmatpush1.bf16.msra.mxu0 %v1840
    %2344 = vmatprep.subr.bf16.mxu0 %v1857
    %2345 = vmatpush1.bf16.msra.mxu0 %v1856
    %2346 = vmatprep.subr.bf16.mxu0 0
    %2347 = vmatpush1.bf16.msra.mxu0 0
    %2348 = vmatprep.subr.bf16.mxu0 0
    %2349 = vmatpush1.bf16.msra.mxu0 0
    %2350 = vmatprep.subr.bf16.mxu0 0
    %2351 = vmatpush1.bf16.msra.mxu0 0
    %2352 = vmatprep.subr.bf16.mxu0 0
    %2353 = vmatpush1.bf16.msra.mxu0 0
    %2354 = vmatprep.subr.bf16.mxu0 0
    %2355 = vmatpush1.bf16.msra.mxu0 0
    %2356 = vmatprep.subr.bf16.mxu0 0
    %2357 = vmatpush1.bf16.msra.mxu0 0
    %2358 = vmatprep.subr.bf16.mxu0 0
    %2359 = vmatpush1.bf16.msra.mxu0 0
    %2360 = vmatprep.subr.bf16.mxu0 0
    %2361 = vmatpush1.bf16.msra.mxu0 0
    %2362 = vmatprep.subr.bf16.mxu0 0
    %2363 = vmatpush1.bf16.msra.mxu0 0
    %2364 = vmatprep.subr.bf16.mxu0 0
    %2365 = vmatpush1.bf16.msra.mxu0 0
    %2366 = vmatprep.subr.bf16.mxu0 0
    %2367 = vmatpush1.bf16.msra.mxu0 0
    %2368 = vmatprep.subr.bf16.mxu0 0
    %2369 = vmatpush1.bf16.msra.mxu0 0
    %2370 = vmatprep.subr.bf16.mxu0 0
    %2371 = vmatpush1.bf16.msra.mxu0 0
    %2372 = vmatprep.subr.bf16.mxu0 0
    %2373 = vmatpush1.bf16.msra.mxu0 0
    %2374 = vmatprep.mubr.bf16.mxu0 0
    %2375 = vmatmul.mubr.bf16.gmra.mrb[0].mxu0 %v1893
    %v2376 = vpop.f32.mrb[0].mxu0
    %v2377 = vadd.f32 %v1703, %v2376
    %v2378 = vpop.f32.mrb[0].mxu0
    %v2379 = vadd.f32 %v1707, %v2378
    %v2380 = vpop.f32.mrb[0].mxu0
    %v2381 = vadd.f32 %v1703, %v2380
    %v2382 = vpop.f32.mrb[0].mxu0
    %v2383 = vadd.f32 %v1707, %v2382
    %2384 = vmatprep.mubr.bf16.mxu0 0
    %2385 = vmatmul.mubr.bf16.gmra.mrb[0].mxu0 %v1896
    %v2386 = vpop.f32.mrb[0].mxu0
    %v2387 = vadd.f32 %v1703, %v2386
    %v2388 = vpop.f32.mrb[0].mxu0
    %v2389 = vadd.f32 %v1707, %v2388
    %v2390 = vpop.f32.mrb[0].mxu0
    %v2391 = vadd.f32 %v1703, %v2390
    %v2392 = vpop.f32.mrb[0].mxu0
    %v2393 = vadd.f32 %v1707, %v2392
    %2394 = vmatprep.mubr.bf16.mxu0 0
    %2395 = vmatmul.mubr.bf16.gmra.mrb[0].mxu0 %v1899
    %v2396 = vpop.f32.mrb[0].mxu0
    %v2397 = vadd.f32 %v1703, %v2396
    %v2398 = vpop.f32.mrb[0].mxu0
    %v2399 = vadd.f32 %v1707, %v2398
    %v2400 = vpop.f32.mrb[0].mxu0
    %v2401 = vadd.f32 %v1703, %v2400
    %v2402 = vpop.f32.mrb[0].mxu0
    %v2403 = vadd.f32 %v1707, %v2402
    %2404 = vmatprep.mubr.bf16.mxu0 0
    %2405 = vmatmul.mubr.bf16.gmra.mrb[0].mxu0 %v1902
    %v2406 = vpop.f32.mrb[0].mxu0
    %v2407 = vadd.f32 %v1703, %v2406
    %v2408 = vpop.f32.mrb[0].mxu0
    %v2409 = vadd.f32 %v1707, %v2408
    %v2410 = vpop.f32.mrb[0].mxu0
    %v2411 = vadd.f32 %v1703, %v2410
    %v2412 = vpop.f32.mrb[0].mxu0
    %v2413 = vadd.f32 %v1707, %v2412
    %2414 = vdwg.mxu0
    %2415 = vmatprep.subr.bf16.mxu0 %v1843
    %2416 = vmatpush1.bf16.msra.mxu0 %v1842
    %2417 = vmatprep.subr.bf16.mxu0 %v1859
    %2418 = vmatpush1.bf16.msra.mxu0 %v1858
    %2419 = vmatprep.subr.bf16.mxu0 0
    %2420 = vmatpush1.bf16.msra.mxu0 0
    %2421 = vmatprep.subr.bf16.mxu0 0
    %2422 = vmatpush1.bf16.msra.mxu0 0
    %2423 = vmatprep.subr.bf16.mxu0 0
    %2424 = vmatpush1.bf16.msra.mxu0 0
    %2425 = vmatprep.subr.bf16.mxu0 0
    %2426 = vmatpush1.bf16.msra.mxu0 0
    %2427 = vmatprep.subr.bf16.mxu0 0
    %2428 = vmatpush1.bf16.msra.mxu0 0
    %2429 = vmatprep.subr.bf16.mxu0 0
    %2430 = vmatpush1.bf16.msra.mxu0 0
    %2431 = vmatprep.subr.bf16.mxu0 0
    %2432 = vmatpush1.bf16.msra.mxu0 0
    %2433 = vmatprep.subr.bf16.mxu0 0
    %2434 = vmatpush1.bf16.msra.mxu0 0
    %2435 = vmatprep.subr.bf16.mxu0 0
    %2436 = vmatpush1.bf16.msra.mxu0 0
    %2437 = vmatprep.subr.bf16.mxu0 0
    %2438 = vmatpush1.bf16.msra.mxu0 0
    %2439 = vmatprep.subr.bf16.mxu0 0
    %2440 = vmatpush1.bf16.msra.mxu0 0
    %2441 = vmatprep.subr.bf16.mxu0 0
    %2442 = vmatpush1.bf16.msra.mxu0 0
    %2443 = vmatprep.subr.bf16.mxu0 0
    %2444 = vmatpush1.bf16.msra.mxu0 0
    %2445 = vmatprep.subr.bf16.mxu0 0
    %2446 = vmatpush1.bf16.msra.mxu0 0
    %2447 = vmatprep.mubr.bf16.mxu0 0
    %2448 = vmatmul.mubr.bf16.gmra.mrb[0].mxu0 %v1893
    %v2449 = vpop.f32.mrb[0].mxu0
    %v2450 = vadd.f32 %v1711, %v2449
    %v2451 = vpop.f32.mrb[0].mxu0
    %v2452 = vadd.f32 %v1715, %v2451
    %v2453 = vpop.f32.mrb[0].mxu0
    %v2454 = vadd.f32 %v1711, %v2453
    %v2455 = vpop.f32.mrb[0].mxu0
    %v2456 = vadd.f32 %v1715, %v2455
    %2457 = vmatprep.mubr.bf16.mxu0 0
    %2458 = vmatmul.mubr.bf16.gmra.mrb[0].mxu0 %v1896
    %v2459 = vpop.f32.mrb[0].mxu0
    %v2460 = vadd.f32 %v1711, %v2459
    %v2461 = vpop.f32.mrb[0].mxu0
    %v2462 = vadd.f32 %v1715, %v2461
    %v2463 = vpop.f32.mrb[0].mxu0
    %v2464 = vadd.f32 %v1711, %v2463
    %v2465 = vpop.f32.mrb[0].mxu0
    %v2466 = vadd.f32 %v1715, %v2465
    %2467 = vmatprep.mubr.bf16.mxu0 0
    %2468 = vmatmul.mubr.bf16.gmra.mrb[0].mxu0 %v1899
    %v2469 = vpop.f32.mrb[0].mxu0
    %v2470 = vadd.f32 %v1711, %v2469
    %v2471 = vpop.f32.mrb[0].mxu0
    %v2472 = vadd.f32 %v1715, %v2471
    %v2473 = vpop.f32.mrb[0].mxu0
    %v2474 = vadd.f32 %v1711, %v2473
    %v2475 = vpop.f32.mrb[0].mxu0
    %v2476 = vadd.f32 %v1715, %v2475
    %2477 = vmatprep.mubr.bf16.mxu0 0
    %2478 = vmatmul.mubr.bf16.gmra.mrb[0].mxu0 %v1902
    %v2479 = vpop.f32.mrb[0].mxu0
    %v2480 = vadd.f32 %v1711, %v2479
    %v2481 = vpop.f32.mrb[0].mxu0
    %v2482 = vadd.f32 %v1715, %v2481
    %v2483 = vpop.f32.mrb[0].mxu0
    %v2484 = vadd.f32 %v1711, %v2483
    %v2485 = vpop.f32.mrb[0].mxu0
    %v2486 = vadd.f32 %v1715, %v2485
    %2487 = vdwg.mxu0
    %v2488 = vmax.f32 %v1939, 0.0
    %v2489 = vmax.f32 %v1941, 0.0
    %v2490 = vmax.f32 %v2012, 0.0
    %v2491 = vmax.f32 %v2014, 0.0
    %v2492 = vmax.f32 %v2085, 0.0
    %v2493 = vmax.f32 %v2087, 0.0
    %v2494 = vmax.f32 %v2158, 0.0
    %v2495 = vmax.f32 %v2160, 0.0
    %v2496 = vmax.f32 %v2231, 0.0
    %v2497 = vmax.f32 %v2233, 0.0
    %v2498 = vmax.f32 %v2304, 0.0
    %v2499 = vmax.f32 %v2306, 0.0
    %v2500 = vmax.f32 %v2377, 0.0
    %v2501 = vmax.f32 %v2379, 0.0
    %v2502 = vmax.f32 %v2450, 0.0
    %v2503 = vmax.f32 %v2452, 0.0
    %v2504 = vmax.f32 %v1943, 0.0
    %v2505 = vmax.f32 %v1945, 0.0
    %v2506 = vmax.f32 %v2016, 0.0
    %v2507 = vmax.f32 %v2018, 0.0
    %v2508 = vmax.f32 %v2089, 0.0
    %v2509 = vmax.f32 %v2091, 0.0
    %v2510 = vmax.f32 %v2162, 0.0
    %v2511 = vmax.f32 %v2164, 0.0
    %v2512 = vmax.f32 %v2235, 0.0
    %v2513 = vmax.f32 %v2237, 0.0
    %v2514 = vmax.f32 %v2308, 0.0
    %v2515 = vmax.f32 %v2310, 0.0
    %v2516 = vmax.f32 %v2381, 0.0
    %v2517 = vmax.f32 %v2383, 0.0
    %v2518 = vmax.f32 %v2454, 0.0
    %v2519 = vmax.f32 %v2456, 0.0
    %v2520 = vmax.f32 %v1949, 0.0
    %v2521 = vmax.f32 %v1951, 0.0
    %v2522 = vmax.f32 %v2022, 0.0
    %v2523 = vmax.f32 %v2024, 0.0
    %v2524 = vmax.f32 %v2095, 0.0
    %v2525 = vmax.f32 %v2097, 0.0
    %v2526 = vmax.f32 %v2168, 0.0
    %v2527 = vmax.f32 %v2170, 0.0
    %v2528 = vmax.f32 %v2241, 0.0
    %v2529 = vmax.f32 %v2243, 0.0
    %v2530 = vmax.f32 %v2314, 0.0
    %v2531 = vmax.f32 %v2316, 0.0
    %v2532 = vmax.f32 %v2387, 0.0
    %v2533 = vmax.f32 %v2389, 0.0
    %v2534 = vmax.f32 %v2460, 0.0
    %v2535 = vmax.f32 %v2462, 0.0
    %v2536 = vmax.f32 %v1953, 0.0
    %v2537 = vmax.f32 %v1955, 0.0
    %v2538 = vmax.f32 %v2026, 0.0
    %v2539 = vmax.f32 %v2028, 0.0
    %v2540 = vmax.f32 %v2099, 0.0
    %v2541 = vmax.f32 %v2101, 0.0
    %v2542 = vmax.f32 %v2172, 0.0
    %v2543 = vmax.f32 %v2174, 0.0
    %v2544 = vmax.f32 %v2245, 0.0
    %v2545 = vmax.f32 %v2247, 0.0
    %v2546 = vmax.f32 %v2318, 0.0
    %v2547 = vmax.f32 %v2320, 0.0
    %v2548 = vmax.f32 %v2391, 0.0
    %v2549 = vmax.f32 %v2393, 0.0
    %v2550 = vmax.f32 %v2464, 0.0
    %v2551 = vmax.f32 %v2466, 0.0
    %v2552 = vmax.f32 %v1959, 0.0
    %v2553 = vmax.f32 %v1961, 0.0
    %v2554 = vmax.f32 %v2032, 0.0
    %v2555 = vmax.f32 %v2034, 0.0
    %v2556 = vmax.f32 %v2105, 0.0
    %v2557 = vmax.f32 %v2107, 0.0
    %v2558 = vmax.f32 %v2178, 0.0
    %v2559 = vmax.f32 %v2180, 0.0
    %v2560 = vmax.f32 %v2251, 0.0
    %v2561 = vmax.f32 %v2253, 0.0
    %v2562 = vmax.f32 %v2324, 0.0
    %v2563 = vmax.f32 %v2326, 0.0
    %v2564 = vmax.f32 %v2397, 0.0
    %v2565 = vmax.f32 %v2399, 0.0
    %v2566 = vmax.f32 %v2470, 0.0
    %v2567 = vmax.f32 %v2472, 0.0
    %v2568 = vmax.f32 %v1963, 0.0
    %v2569 = vmax.f32 %v1965, 0.0
    %v2570 = vmax.f32 %v2036, 0.0
    %v2571 = vmax.f32 %v2038, 0.0
    %v2572 = vmax.f32 %v2109, 0.0
    %v2573 = vmax.f32 %v2111, 0.0
    %v2574 = vmax.f32 %v2182, 0.0
    %v2575 = vmax.f32 %v2184, 0.0
    %v2576 = vmax.f32 %v2255, 0.0
    %v2577 = vmax.f32 %v2257, 0.0
    %v2578 = vmax.f32 %v2328, 0.0
    %v2579 = vmax.f32 %v2330, 0.0
    %v2580 = vmax.f32 %v2401, 0.0
    %v2581 = vmax.f32 %v2403, 0.0
    %v2582 = vmax.f32 %v2474, 0.0
    %v2583 = vmax.f32 %v2476, 0.0
    %v2584 = vmax.f32 %v1969, 0.0
    %v2585 = vmax.f32 %v1971, 0.0
    %v2586 = vmax.f32 %v2042, 0.0
    %v2587 = vmax.f32 %v2044, 0.0
    %v2588 = vmax.f32 %v2115, 0.0
    %v2589 = vmax.f32 %v2117, 0.0
    %v2590 = vmax.f32 %v2188, 0.0
    %v2591 = vmax.f32 %v2190, 0.0
    %v2592 = vmax.f32 %v2261, 0.0
    %v2593 = vmax.f32 %v2263, 0.0
    %v2594 = vmax.f32 %v2334, 0.0
    %v2595 = vmax.f32 %v2336, 0.0
    %v2596 = vmax.f32 %v2407, 0.0
    %v2597 = vmax.f32 %v2409, 0.0
    %v2598 = vmax.f32 %v2480, 0.0
    %v2599 = vmax.f32 %v2482, 0.0
    %v2600 = vmax.f32 %v1973, 0.0
    %v2601 = vmax.f32 %v1975, 0.0
    %v2602 = vmax.f32 %v2046, 0.0
    %v2603 = vmax.f32 %v2048, 0.0
    %v2604 = vmax.f32 %v2119, 0.0
    %v2605 = vmax.f32 %v2121, 0.0
    %v2606 = vmax.f32 %v2192, 0.0
    %v2607 = vmax.f32 %v2194, 0.0
    %v2608 = vmax.f32 %v2265, 0.0
    %v2609 = vmax.f32 %v2267, 0.0
    %v2610 = vmax.f32 %v2338, 0.0
    %v2611 = vmax.f32 %v2340, 0.0
    %v2612 = vmax.f32 %v2411, 0.0
    %v2613 = vmax.f32 %v2413, 0.0
    %v2614 = vmax.f32 %v2484, 0.0
    %v2615 = vmax.f32 %v2486, 0.0
    %v2616 = vpack.c.bf16 %v2504, %v2488
    %v2617 = vpack.c.bf16 %v2505, %v2489
    %v2618 = vpack.c.bf16 %v2506, %v2490
    %v2619 = vpack.c.bf16 %v2507, %v2491
    %v2620 = vpack.c.bf16 %v2508, %v2492
    %v2621 = vpack.c.bf16 %v2509, %v2493
    %v2622 = vpack.c.bf16 %v2510, %v2494
    %v2623 = vpack.c.bf16 %v2511, %v2495
    %v2624 = vpack.c.bf16 %v2512, %v2496
    %v2625 = vpack.c.bf16 %v2513, %v2497
    %v2626 = vpack.c.bf16 %v2514, %v2498
    %v2627 = vpack.c.bf16 %v2515, %v2499
    %v2628 = vpack.c.bf16 %v2516, %v2500
    %v2629 = vpack.c.bf16 %v2517, %v2501
    %v2630 = vpack.c.bf16 %v2518, %v2502
    %v2631 = vpack.c.bf16 %v2519, %v2503
    %v2632 = vpack.c.bf16 %v2536, %v2520
    %v2633 = vpack.c.bf16 %v2537, %v2521
    %v2634 = vpack.c.bf16 %v2538, %v2522
    %v2635 = vpack.c.bf16 %v2539, %v2523
    %v2636 = vpack.c.bf16 %v2540, %v2524
    %v2637 = vpack.c.bf16 %v2541, %v2525
    %v2638 = vpack.c.bf16 %v2542, %v2526
    %v2639 = vpack.c.bf16 %v2543, %v2527
    %v2640 = vpack.c.bf16 %v2544, %v2528
    %v2641 = vpack.c.bf16 %v2545, %v2529
    %v2642 = vpack.c.bf16 %v2546, %v2530
    %v2643 = vpack.c.bf16 %v2547, %v2531
    %v2644 = vpack.c.bf16 %v2548, %v2532
    %v2645 = vpack.c.bf16 %v2549, %v2533
    %v2646 = vpack.c.bf16 %v2550, %v2534
    %v2647 = vpack.c.bf16 %v2551, %v2535
    %v2648 = vpack.c.bf16 %v2568, %v2552
    %v2649 = vpack.c.bf16 %v2569, %v2553
    %v2650 = vpack.c.bf16 %v2570, %v2554
    %v2651 = vpack.c.bf16 %v2571, %v2555
    %v2652 = vpack.c.bf16 %v2572, %v2556
    %v2653 = vpack.c.bf16 %v2573, %v2557
    %v2654 = vpack.c.bf16 %v2574, %v2558
    %v2655 = vpack.c.bf16 %v2575, %v2559
    %v2656 = vpack.c.bf16 %v2576, %v2560
    %v2657 = vpack.c.bf16 %v2577, %v2561
    %v2658 = vpack.c.bf16 %v2578, %v2562
    %v2659 = vpack.c.bf16 %v2579, %v2563
    %v2660 = vpack.c.bf16 %v2580, %v2564
    %v2661 = vpack.c.bf16 %v2581, %v2565
    %v2662 = vpack.c.bf16 %v2582, %v2566
    %v2663 = vpack.c.bf16 %v2583, %v2567
    %v2664 = vpack.c.bf16 %v2600, %v2584
    %v2665 = vpack.c.bf16 %v2601, %v2585
    %v2666 = vpack.c.bf16 %v2602, %v2586
    %v2667 = vpack.c.bf16 %v2603, %v2587
    %v2668 = vpack.c.bf16 %v2604, %v2588
    %v2669 = vpack.c.bf16 %v2605, %v2589
    %v2670 = vpack.c.bf16 %v2606, %v2590
    %v2671 = vpack.c.bf16 %v2607, %v2591
    %v2672 = vpack.c.bf16 %v2608, %v2592
    %v2673 = vpack.c.bf16 %v2609, %v2593
    %v2674 = vpack.c.bf16 %v2610, %v2594
    %v2675 = vpack.c.bf16 %v2611, %v2595
    %v2676 = vpack.c.bf16 %v2612, %v2596
    %v2677 = vpack.c.bf16 %v2613, %v2597
    %v2678 = vpack.c.bf16 %v2614, %v2598
    %v2679 = vpack.c.bf16 %v2615, %v2599
    %v2680 = vld [vmem:[%s13] sm:$0xf]
    %v2681 = vld [vmem:[%s13 + $0x4] sm:$0xf]
    %v2682 = vld [vmem:[%s13 + $0x8] sm:$0xf]
    %v2683 = vld [vmem:[%s13 + $0xc] sm:$0xf]
    %v2684 = vld [vmem:[%s13 + $0x10] sm:$0xf]
    %v2685 = vld [vmem:[%s13 + $0x14] sm:$0xf]
    %v2686 = vld [vmem:[%s13 + $0x18] sm:$0xf]
    %v2687 = vld [vmem:[%s13 + $0x1c] sm:$0xf]
    %v2688 = vld [vmem:[%s13 + $0x20] sm:$0xf]
    %v2689 = vld [vmem:[%s13 + $0x24] sm:$0xf]
    %v2690 = vld [vmem:[%s13 + $0x28] sm:$0xf]
    %v2691 = vld [vmem:[%s13 + $0x2c] sm:$0xf]
    %v2692 = vld [vmem:[%s13 + $0x30] sm:$0xf]
    %v2693 = vld [vmem:[%s13 + $0x34] sm:$0xf]
    %v2694 = vld [vmem:[%s13 + $0x38] sm:$0xf]
    %v2695 = vld [vmem:[%s13 + $0x3c] sm:$0xf]
    %v2696 = vld [vmem:[%s13 + $0x40] sm:$0xf]
    %v2697 = vld [vmem:[%s13 + $0x44] sm:$0xf]
    %v2698 = vld [vmem:[%s13 + $0x48] sm:$0xf]
    %v2699 = vld [vmem:[%s13 + $0x4c] sm:$0xf]
    %v2700 = vld [vmem:[%s13 + $0x50] sm:$0xf]
    %v2701 = vld [vmem:[%s13 + $0x54] sm:$0xf]
    %v2702 = vld [vmem:[%s13 + $0x58] sm:$0xf]
    %v2703 = vld [vmem:[%s13 + $0x5c] sm:$0xf]
    %v2704 = vld [vmem:[%s13 + $0x60] sm:$0xf]
    %v2705 = vld [vmem:[%s13 + $0x64] sm:$0xf]
    %v2706 = vld [vmem:[%s13 + $0x68] sm:$0xf]
    %v2707 = vld [vmem:[%s13 + $0x6c] sm:$0xf]
    %v2708 = vld [vmem:[%s13 + $0x70] sm:$0xf]
    %v2709 = vld [vmem:[%s13 + $0x74] sm:$0xf]
    %v2710 = vld [vmem:[%s13 + $0x78] sm:$0xf]
    %v2711 = vld [vmem:[%s13 + $0x7c] sm:$0xf]
    %v2712 = vld [vmem:[%s13 + $0x80] sm:$0xf]
    %v2713 = vld [vmem:[%s13 + $0x84] sm:$0xf]
    %v2714 = vld [vmem:[%s13 + $0x88] sm:$0xf]
    %v2715 = vld [vmem:[%s13 + $0x8c] sm:$0xf]
    %v2716 = vld [vmem:[%s13 + $0x90] sm:$0xf]
    %v2717 = vld [vmem:[%s13 + $0x94] sm:$0xf]
    %v2718 = vld [vmem:[%s13 + $0x98] sm:$0xf]
    %v2719 = vld [vmem:[%s13 + $0x9c] sm:$0xf]
    %v2720 = vld [vmem:[%s13 + $0xa0] sm:$0xf]
    %v2721 = vld [vmem:[%s13 + $0xa4] sm:$0xf]
    %v2722 = vld [vmem:[%s13 + $0xa8] sm:$0xf]
    %v2723 = vld [vmem:[%s13 + $0xac] sm:$0xf]
    %v2724 = vld [vmem:[%s13 + $0xb0] sm:$0xf]
    %v2725 = vld [vmem:[%s13 + $0xb4] sm:$0xf]
    %v2726 = vld [vmem:[%s13 + $0xb8] sm:$0xf]
    %v2727 = vld [vmem:[%s13 + $0xbc] sm:$0xf]
    %v2728 = vld [vmem:[%s13 + $0xc0] sm:$0xf]
    %v2729 = vld [vmem:[%s13 + $0xc4] sm:$0xf]
    %v2730 = vld [vmem:[%s13 + $0xc8] sm:$0xf]
    %v2731 = vld [vmem:[%s13 + $0xcc] sm:$0xf]
    %v2732 = vld [vmem:[%s13 + $0xd0] sm:$0xf]
    %v2733 = vld [vmem:[%s13 + $0xd4] sm:$0xf]
    %v2734 = vld [vmem:[%s13 + $0xd8] sm:$0xf]
    %v2735 = vld [vmem:[%s13 + $0xdc] sm:$0xf]
    %v2736 = vld [vmem:[%s13 + $0xe0] sm:$0xf]
    %v2737 = vld [vmem:[%s13 + $0xe4] sm:$0xf]
    %v2738 = vld [vmem:[%s13 + $0xe8] sm:$0xf]
    %v2739 = vld [vmem:[%s13 + $0xec] sm:$0xf]
    %v2740 = vld [vmem:[%s13 + $0xf0] sm:$0xf]
    %v2741 = vld [vmem:[%s13 + $0xf4] sm:$0xf]
    %v2742 = vld [vmem:[%s13 + $0xf8] sm:$0xf]
    %v2743 = vld [vmem:[%s13 + $0xfc] sm:$0xf]
    %v2744 = vld [vmem:[%s13 + $0x100] sm:$0xf]
    %v2745 = vld [vmem:[%s13 + $0x104] sm:$0xf]
    %v2746 = vld [vmem:[%s13 + $0x108] sm:$0xf]
    %v2747 = vld [vmem:[%s13 + $0x10c] sm:$0xf]
    %v2748 = vld [vmem:[%s13 + $0x110] sm:$0xf]
    %v2749 = vld [vmem:[%s13 + $0x114] sm:$0xf]
    %v2750 = vld [vmem:[%s13 + $0x118] sm:$0xf]
    %v2751 = vld [vmem:[%s13 + $0x11c] sm:$0xf]
    %v2752 = vld [vmem:[%s13 + $0x120] sm:$0xf]
    %v2753 = vld [vmem:[%s13 + $0x124] sm:$0xf]
    %v2754 = vld [vmem:[%s13 + $0x128] sm:$0xf]
    %v2755 = vld [vmem:[%s13 + $0x12c] sm:$0xf]
    %v2756 = vld [vmem:[%s13 + $0x130] sm:$0xf]
    %v2757 = vld [vmem:[%s13 + $0x134] sm:$0xf]
    %v2758 = vld [vmem:[%s13 + $0x138] sm:$0xf]
    %v2759 = vld [vmem:[%s13 + $0x13c] sm:$0xf]
    %v2760 = vld [vmem:[%s13 + $0x140] sm:$0xf]
    %v2761 = vld [vmem:[%s13 + $0x144] sm:$0xf]
    %v2762 = vld [vmem:[%s13 + $0x148] sm:$0xf]
    %v2763 = vld [vmem:[%s13 + $0x14c] sm:$0xf]
    %v2764 = vld [vmem:[%s13 + $0x150] sm:$0xf]
    %v2765 = vld [vmem:[%s13 + $0x154] sm:$0xf]
    %v2766 = vld [vmem:[%s13 + $0x158] sm:$0xf]
    %v2767 = vld [vmem:[%s13 + $0x15c] sm:$0xf]
    %v2768 = vld [vmem:[%s13 + $0x160] sm:$0xf]
    %v2769 = vld [vmem:[%s13 + $0x164] sm:$0xf]
    %v2770 = vld [vmem:[%s13 + $0x168] sm:$0xf]
    %v2771 = vld [vmem:[%s13 + $0x16c] sm:$0xf]
    %v2772 = vld [vmem:[%s13 + $0x170] sm:$0xf]
    %v2773 = vld [vmem:[%s13 + $0x174] sm:$0xf]
    %v2774 = vld [vmem:[%s13 + $0x178] sm:$0xf]
    %v2775 = vld [vmem:[%s13 + $0x17c] sm:$0xf]
    %v2776 = vld [vmem:[%s13 + $0x180] sm:$0xf]
    %v2777 = vld [vmem:[%s13 + $0x184] sm:$0xf]
    %v2778 = vld [vmem:[%s13 + $0x188] sm:$0xf]
    %v2779 = vld [vmem:[%s13 + $0x18c] sm:$0xf]
    %v2780 = vld [vmem:[%s13 + $0x190] sm:$0xf]
    %v2781 = vld [vmem:[%s13 + $0x194] sm:$0xf]
    %v2782 = vld [vmem:[%s13 + $0x198] sm:$0xf]
    %v2783 = vld [vmem:[%s13 + $0x19c] sm:$0xf]
    %v2784 = vld [vmem:[%s13 + $0x1a0] sm:$0xf]
    %v2785 = vld [vmem:[%s13 + $0x1a4] sm:$0xf]
    %v2786 = vld [vmem:[%s13 + $0x1a8] sm:$0xf]
    %v2787 = vld [vmem:[%s13 + $0x1ac] sm:$0xf]
    %v2788 = vld [vmem:[%s13 + $0x1b0] sm:$0xf]
    %v2789 = vld [vmem:[%s13 + $0x1b4] sm:$0xf]
    %v2790 = vld [vmem:[%s13 + $0x1b8] sm:$0xf]
    %v2791 = vld [vmem:[%s13 + $0x1bc] sm:$0xf]
    %v2792 = vld [vmem:[%s13 + $0x1c0] sm:$0xf]
    %v2793 = vld [vmem:[%s13 + $0x1c4] sm:$0xf]
    %v2794 = vld [vmem:[%s13 + $0x1c8] sm:$0xf]
    %v2795 = vld [vmem:[%s13 + $0x1cc] sm:$0xf]
    %v2796 = vld [vmem:[%s13 + $0x1d0] sm:$0xf]
    %v2797 = vld [vmem:[%s13 + $0x1d4] sm:$0xf]
    %v2798 = vld [vmem:[%s13 + $0x1d8] sm:$0xf]
    %v2799 = vld [vmem:[%s13 + $0x1dc] sm:$0xf]
    %v2800 = vld [vmem:[%s13 + $0x1e0] sm:$0xf]
    %v2801 = vld [vmem:[%s13 + $0x1e4] sm:$0xf]
    %v2802 = vld [vmem:[%s13 + $0x1e8] sm:$0xf]
    %v2803 = vld [vmem:[%s13 + $0x1ec] sm:$0xf]
    %v2804 = vld [vmem:[%s13 + $0x1f0] sm:$0xf]
    %v2805 = vld [vmem:[%s13 + $0x1f4] sm:$0xf]
    %v2806 = vld [vmem:[%s13 + $0x1f8] sm:$0xf]
    %v2807 = vld [vmem:[%s13 + $0x1fc] sm:$0xf]
    %v2808 = vld [vmem:[%s13 + $0x200] sm:$0xf]
    %v2809 = vld [vmem:[%s13 + $0x204] sm:$0xf]
    %v2810 = vld [vmem:[%s13 + $0x208] sm:$0xf]
    %v2811 = vld [vmem:[%s13 + $0x20c] sm:$0xf]
    %v2812 = vld [vmem:[%s13 + $0x210] sm:$0xf]
    %v2813 = vld [vmem:[%s13 + $0x214] sm:$0xf]
    %v2814 = vld [vmem:[%s13 + $0x218] sm:$0xf]
    %v2815 = vld [vmem:[%s13 + $0x21c] sm:$0xf]
    %v2816 = vld [vmem:[%s13 + $0x220] sm:$0xf]
    %v2817 = vld [vmem:[%s13 + $0x224] sm:$0xf]
    %v2818 = vld [vmem:[%s13 + $0x228] sm:$0xf]
    %v2819 = vld [vmem:[%s13 + $0x22c] sm:$0xf]
    %v2820 = vld [vmem:[%s13 + $0x230] sm:$0xf]
    %v2821 = vld [vmem:[%s13 + $0x234] sm:$0xf]
    %v2822 = vld [vmem:[%s13 + $0x238] sm:$0xf]
    %v2823 = vld [vmem:[%s13 + $0x23c] sm:$0xf]
    %v2824 = vld [vmem:[%s13 + $0x240] sm:$0xf]
    %v2825 = vld [vmem:[%s13 + $0x244] sm:$0xf]
    %v2826 = vld [vmem:[%s13 + $0x248] sm:$0xf]
    %v2827 = vld [vmem:[%s13 + $0x24c] sm:$0xf]
    %v2828 = vld [vmem:[%s13 + $0x250] sm:$0xf]
    %v2829 = vld [vmem:[%s13 + $0x254] sm:$0xf]
    %v2830 = vld [vmem:[%s13 + $0x258] sm:$0xf]
    %v2831 = vld [vmem:[%s13 + $0x25c] sm:$0xf]
    %v2832 = vld [vmem:[%s13 + $0x260] sm:$0xf]
    %v2833 = vld [vmem:[%s13 + $0x264] sm:$0xf]
    %v2834 = vld [vmem:[%s13 + $0x268] sm:$0xf]
    %v2835 = vld [vmem:[%s13 + $0x26c] sm:$0xf]
    %v2836 = vld [vmem:[%s13 + $0x270] sm:$0xf]
    %v2837 = vld [vmem:[%s13 + $0x274] sm:$0xf]
    %v2838 = vld [vmem:[%s13 + $0x278] sm:$0xf]
    %v2839 = vld [vmem:[%s13 + $0x27c] sm:$0xf]
    %v2840 = vld [vmem:[%s13 + $0x280] sm:$0xf]
    %v2841 = vld [vmem:[%s13 + $0x284] sm:$0xf]
    %v2842 = vld [vmem:[%s13 + $0x288] sm:$0xf]
    %v2843 = vld [vmem:[%s13 + $0x28c] sm:$0xf]
    %v2844 = vld [vmem:[%s13 + $0x290] sm:$0xf]
    %v2845 = vld [vmem:[%s13 + $0x294] sm:$0xf]
    %v2846 = vld [vmem:[%s13 + $0x298] sm:$0xf]
    %v2847 = vld [vmem:[%s13 + $0x29c] sm:$0xf]
    %v2848 = vld [vmem:[%s13 + $0x2a0] sm:$0xf]
    %v2849 = vld [vmem:[%s13 + $0x2a4] sm:$0xf]
    %v2850 = vld [vmem:[%s13 + $0x2a8] sm:$0xf]
    %v2851 = vld [vmem:[%s13 + $0x2ac] sm:$0xf]
    %v2852 = vld [vmem:[%s13 + $0x2b0] sm:$0xf]
    %v2853 = vld [vmem:[%s13 + $0x2b4] sm:$0xf]
    %v2854 = vld [vmem:[%s13 + $0x2b8] sm:$0xf]
    %v2855 = vld [vmem:[%s13 + $0x2bc] sm:$0xf]
    %v2856 = vld [vmem:[%s13 + $0x2c0] sm:$0xf]
    %v2857 = vld [vmem:[%s13 + $0x2c4] sm:$0xf]
    %v2858 = vld [vmem:[%s13 + $0x2c8] sm:$0xf]
    %v2859 = vld [vmem:[%s13 + $0x2cc] sm:$0xf]
    %v2860 = vld [vmem:[%s13 + $0x2d0] sm:$0xf]
    %v2861 = vld [vmem:[%s13 + $0x2d4] sm:$0xf]
    %v2862 = vld [vmem:[%s13 + $0x2d8] sm:$0xf]
    %v2863 = vld [vmem:[%s13 + $0x2dc] sm:$0xf]
    %v2864 = vld [vmem:[%s13 + $0x2e0] sm:$0xf]
    %v2865 = vld [vmem:[%s13 + $0x2e4] sm:$0xf]
    %v2866 = vld [vmem:[%s13 + $0x2e8] sm:$0xf]
    %v2867 = vld [vmem:[%s13 + $0x2ec] sm:$0xf]
    %v2868 = vld [vmem:[%s13 + $0x2f0] sm:$0xf]
    %v2869 = vld [vmem:[%s13 + $0x2f4] sm:$0xf]
    %v2870 = vld [vmem:[%s13 + $0x2f8] sm:$0xf]
    %v2871 = vld [vmem:[%s13 + $0x2fc] sm:$0xf]
    %v2872 = vld [vmem:[%s13 + $0x300] sm:$0xf]
    %v2873 = vld [vmem:[%s13 + $0x304] sm:$0xf]
    %v2874 = vld [vmem:[%s13 + $0x308] sm:$0xf]
    %v2875 = vld [vmem:[%s13 + $0x30c] sm:$0xf]
    %v2876 = vld [vmem:[%s13 + $0x310] sm:$0xf]
    %v2877 = vld [vmem:[%s13 + $0x314] sm:$0xf]
    %v2878 = vld [vmem:[%s13 + $0x318] sm:$0xf]
    %v2879 = vld [vmem:[%s13 + $0x31c] sm:$0xf]
    %v2880 = vld [vmem:[%s13 + $0x320] sm:$0xf]
    %v2881 = vld [vmem:[%s13 + $0x324] sm:$0xf]
    %v2882 = vld [vmem:[%s13 + $0x328] sm:$0xf]
    %v2883 = vld [vmem:[%s13 + $0x32c] sm:$0xf]
    %v2884 = vld [vmem:[%s13 + $0x330] sm:$0xf]
    %v2885 = vld [vmem:[%s13 + $0x334] sm:$0xf]
    %v2886 = vld [vmem:[%s13 + $0x338] sm:$0xf]
    %v2887 = vld [vmem:[%s13 + $0x33c] sm:$0xf]
    %v2888 = vld [vmem:[%s13 + $0x340] sm:$0xf]
    %v2889 = vld [vmem:[%s13 + $0x344] sm:$0xf]
    %v2890 = vld [vmem:[%s13 + $0x348] sm:$0xf]
    %v2891 = vld [vmem:[%s13 + $0x34c] sm:$0xf]
    %v2892 = vld [vmem:[%s13 + $0x350] sm:$0xf]
    %v2893 = vld [vmem:[%s13 + $0x354] sm:$0xf]
    %v2894 = vld [vmem:[%s13 + $0x358] sm:$0xf]
    %v2895 = vld [vmem:[%s13 + $0x35c] sm:$0xf]
    %v2896 = vld [vmem:[%s13 + $0x360] sm:$0xf]
    %v2897 = vld [vmem:[%s13 + $0x364] sm:$0xf]
    %v2898 = vld [vmem:[%s13 + $0x368] sm:$0xf]
    %v2899 = vld [vmem:[%s13 + $0x36c] sm:$0xf]
    %v2900 = vld [vmem:[%s13 + $0x370] sm:$0xf]
    %v2901 = vld [vmem:[%s13 + $0x374] sm:$0xf]
    %v2902 = vld [vmem:[%s13 + $0x378] sm:$0xf]
    %v2903 = vld [vmem:[%s13 + $0x37c] sm:$0xf]
    %v2904 = vld [vmem:[%s13 + $0x380] sm:$0xf]
    %v2905 = vld [vmem:[%s13 + $0x384] sm:$0xf]
    %v2906 = vld [vmem:[%s13 + $0x388] sm:$0xf]
    %v2907 = vld [vmem:[%s13 + $0x38c] sm:$0xf]
    %v2908 = vld [vmem:[%s13 + $0x390] sm:$0xf]
    %v2909 = vld [vmem:[%s13 + $0x394] sm:$0xf]
    %v2910 = vld [vmem:[%s13 + $0x398] sm:$0xf]
    %v2911 = vld [vmem:[%s13 + $0x39c] sm:$0xf]
    %v2912 = vld [vmem:[%s13 + $0x3a0] sm:$0xf]
    %v2913 = vld [vmem:[%s13 + $0x3a4] sm:$0xf]
    %v2914 = vld [vmem:[%s13 + $0x3a8] sm:$0xf]
    %v2915 = vld [vmem:[%s13 + $0x3ac] sm:$0xf]
    %v2916 = vld [vmem:[%s13 + $0x3b0] sm:$0xf]
    %v2917 = vld [vmem:[%s13 + $0x3b4] sm:$0xf]
    %v2918 = vld [vmem:[%s13 + $0x3b8] sm:$0xf]
    %v2919 = vld [vmem:[%s13 + $0x3bc] sm:$0xf]
    %v2920 = vld [vmem:[%s13 + $0x3c0] sm:$0xf]
    %v2921 = vld [vmem:[%s13 + $0x3c4] sm:$0xf]
    %v2922 = vld [vmem:[%s13 + $0x3c8] sm:$0xf]
    %v2923 = vld [vmem:[%s13 + $0x3cc] sm:$0xf]
    %v2924 = vld [vmem:[%s13 + $0x3d0] sm:$0xf]
    %v2925 = vld [vmem:[%s13 + $0x3d4] sm:$0xf]
    %v2926 = vld [vmem:[%s13 + $0x3d8] sm:$0xf]
    %v2927 = vld [vmem:[%s13 + $0x3dc] sm:$0xf]
    %v2928 = vld [vmem:[%s13 + $0x3e0] sm:$0xf]
    %v2929 = vld [vmem:[%s13 + $0x3e4] sm:$0xf]
    %v2930 = vld [vmem:[%s13 + $0x3e8] sm:$0xf]
    %v2931 = vld [vmem:[%s13 + $0x3ec] sm:$0xf]
    %v2932 = vld [vmem:[%s13 + $0x3f0] sm:$0xf]
    %v2933 = vld [vmem:[%s13 + $0x3f4] sm:$0xf]
    %v2934 = vld [vmem:[%s13 + $0x3f8] sm:$0xf]
    %v2935 = vld [vmem:[%s13 + $0x3fc] sm:$0xf]
    %v2936 = vld [vmem:[%s14] sm:$0x1]
    %v2937 = vlaneseq
    %v2938 = vshrl.u32 %v2937, 7
    %v2939 = vsub.s32 0, %v2938
    %v2940 = vrot.slane %v2936, %v2939
    %v3197 = vunpack.c.l.b16 %v2680
    %v3198 = vunpack.c.l.b16 %v2681
    %v3199 = vunpack.c.l.b16 %v2682
    %v3200 = vunpack.c.l.b16 %v2683
    %v3201 = vunpack.c.l.b16 %v2684
    %v3202 = vunpack.c.l.b16 %v2685
    %v3203 = vunpack.c.l.b16 %v2686
    %v3204 = vunpack.c.l.b16 %v2687
    %v3205 = vunpack.c.l.b16 %v2688
    %v3206 = vunpack.c.l.b16 %v2689
    %v3207 = vunpack.c.l.b16 %v2690
    %v3208 = vunpack.c.l.b16 %v2691
    %v3209 = vunpack.c.l.b16 %v2692
    %v3210 = vunpack.c.l.b16 %v2693
    %v3211 = vunpack.c.l.b16 %v2694
    %v3212 = vunpack.c.l.b16 %v2695
    %v3213 = vunpack.c.l.b16 %v2696
    %v3214 = vunpack.c.l.b16 %v2697
    %v3215 = vunpack.c.l.b16 %v2698
    %v3216 = vunpack.c.l.b16 %v2699
    %v3217 = vunpack.c.l.b16 %v2700
    %v3218 = vunpack.c.l.b16 %v2701
    %v3219 = vunpack.c.l.b16 %v2702
    %v3220 = vunpack.c.l.b16 %v2703
    %v3221 = vunpack.c.l.b16 %v2704
    %v3222 = vunpack.c.l.b16 %v2705
    %v3223 = vunpack.c.l.b16 %v2706
    %v3224 = vunpack.c.l.b16 %v2707
    %v3225 = vunpack.c.l.b16 %v2708
    %v3226 = vunpack.c.l.b16 %v2709
    %v3227 = vunpack.c.l.b16 %v2710
    %v3228 = vunpack.c.l.b16 %v2711
    %v3229 = vunpack.c.l.b16 %v2712
    %v3230 = vunpack.c.l.b16 %v2713
    %v3231 = vunpack.c.l.b16 %v2714
    %v3232 = vunpack.c.l.b16 %v2715
    %v3233 = vunpack.c.l.b16 %v2716
    %v3234 = vunpack.c.l.b16 %v2717
    %v3235 = vunpack.c.l.b16 %v2718
    %v3236 = vunpack.c.l.b16 %v2719
    %v3237 = vunpack.c.l.b16 %v2720
    %v3238 = vunpack.c.l.b16 %v2721
    %v3239 = vunpack.c.l.b16 %v2722
    %v3240 = vunpack.c.l.b16 %v2723
    %v3241 = vunpack.c.l.b16 %v2724
    %v3242 = vunpack.c.l.b16 %v2725
    %v3243 = vunpack.c.l.b16 %v2726
    %v3244 = vunpack.c.l.b16 %v2727
    %v3245 = vunpack.c.l.b16 %v2728
    %v3246 = vunpack.c.l.b16 %v2729
    %v3247 = vunpack.c.l.b16 %v2730
    %v3248 = vunpack.c.l.b16 %v2731
    %v3249 = vunpack.c.l.b16 %v2732
    %v3250 = vunpack.c.l.b16 %v2733
    %v3251 = vunpack.c.l.b16 %v2734
    %v3252 = vunpack.c.l.b16 %v2735
    %v3253 = vunpack.c.l.b16 %v2736
    %v3254 = vunpack.c.l.b16 %v2737
    %v3255 = vunpack.c.l.b16 %v2738
    %v3256 = vunpack.c.l.b16 %v2739
    %v3257 = vunpack.c.l.b16 %v2740
    %v3258 = vunpack.c.l.b16 %v2741
    %v3259 = vunpack.c.l.b16 %v2742
    %v3260 = vunpack.c.l.b16 %v2743
    %v3261 = vunpack.c.l.b16 %v2744
    %v3262 = vunpack.c.l.b16 %v2745
    %v3263 = vunpack.c.l.b16 %v2746
    %v3264 = vunpack.c.l.b16 %v2747
    %v3265 = vunpack.c.l.b16 %v2748
    %v3266 = vunpack.c.l.b16 %v2749
    %v3267 = vunpack.c.l.b16 %v2750
    %v3268 = vunpack.c.l.b16 %v2751
    %v3269 = vunpack.c.l.b16 %v2752
    %v3270 = vunpack.c.l.b16 %v2753
    %v3271 = vunpack.c.l.b16 %v2754
    %v3272 = vunpack.c.l.b16 %v2755
    %v3273 = vunpack.c.l.b16 %v2756
    %v3274 = vunpack.c.l.b16 %v2757
    %v3275 = vunpack.c.l.b16 %v2758
    %v3276 = vunpack.c.l.b16 %v2759
    %v3277 = vunpack.c.l.b16 %v2760
    %v3278 = vunpack.c.l.b16 %v2761
    %v3279 = vunpack.c.l.b16 %v2762
    %v3280 = vunpack.c.l.b16 %v2763
    %v3281 = vunpack.c.l.b16 %v2764
    %v3282 = vunpack.c.l.b16 %v2765
    %v3283 = vunpack.c.l.b16 %v2766
    %v3284 = vunpack.c.l.b16 %v2767
    %v3285 = vunpack.c.l.b16 %v2768
    %v3286 = vunpack.c.l.b16 %v2769
    %v3287 = vunpack.c.l.b16 %v2770
    %v3288 = vunpack.c.l.b16 %v2771
    %v3289 = vunpack.c.l.b16 %v2772
    %v3290 = vunpack.c.l.b16 %v2773
    %v3291 = vunpack.c.l.b16 %v2774
    %v3292 = vunpack.c.l.b16 %v2775
    %v3293 = vunpack.c.l.b16 %v2776
    %v3294 = vunpack.c.l.b16 %v2777
    %v3295 = vunpack.c.l.b16 %v2778
    %v3296 = vunpack.c.l.b16 %v2779
    %v3297 = vunpack.c.l.b16 %v2780
    %v3298 = vunpack.c.l.b16 %v2781
    %v3299 = vunpack.c.l.b16 %v2782
    %v3300 = vunpack.c.l.b16 %v2783
    %v3301 = vunpack.c.l.b16 %v2784
    %v3302 = vunpack.c.l.b16 %v2785
    %v3303 = vunpack.c.l.b16 %v2786
    %v3304 = vunpack.c.l.b16 %v2787
    %v3305 = vunpack.c.l.b16 %v2788
    %v3306 = vunpack.c.l.b16 %v2789
    %v3307 = vunpack.c.l.b16 %v2790
    %v3308 = vunpack.c.l.b16 %v2791
    %v3309 = vunpack.c.l.b16 %v2792
    %v3310 = vunpack.c.l.b16 %v2793
    %v3311 = vunpack.c.l.b16 %v2794
    %v3312 = vunpack.c.l.b16 %v2795
    %v3313 = vunpack.c.l.b16 %v2796
    %v3314 = vunpack.c.l.b16 %v2797
    %v3315 = vunpack.c.l.b16 %v2798
    %v3316 = vunpack.c.l.b16 %v2799
    %v3317 = vunpack.c.l.b16 %v2800
    %v3318 = vunpack.c.l.b16 %v2801
    %v3319 = vunpack.c.l.b16 %v2802
    %v3320 = vunpack.c.l.b16 %v2803
    %v3321 = vunpack.c.l.b16 %v2804
    %v3322 = vunpack.c.l.b16 %v2805
    %v3323 = vunpack.c.l.b16 %v2806
    %v3324 = vunpack.c.l.b16 %v2807
    %v3325 = vunpack.c.l.b16 %v2808
    %v3326 = vunpack.c.l.b16 %v2809
    %v3327 = vunpack.c.l.b16 %v2810
    %v3328 = vunpack.c.l.b16 %v2811
    %v3329 = vunpack.c.l.b16 %v2812
    %v3330 = vunpack.c.l.b16 %v2813
    %v3331 = vunpack.c.l.b16 %v2814
    %v3332 = vunpack.c.l.b16 %v2815
    %v3333 = vunpack.c.l.b16 %v2816
    %v3334 = vunpack.c.l.b16 %v2817
    %v3335 = vunpack.c.l.b16 %v2818
    %v3336 = vunpack.c.l.b16 %v2819
    %v3337 = vunpack.c.l.b16 %v2820
    %v3338 = vunpack.c.l.b16 %v2821
    %v3339 = vunpack.c.l.b16 %v2822
    %v3340 = vunpack.c.l.b16 %v2823
    %v3341 = vunpack.c.l.b16 %v2824
    %v3342 = vunpack.c.l.b16 %v2825
    %v3343 = vunpack.c.l.b16 %v2826
    %v3344 = vunpack.c.l.b16 %v2827
    %v3345 = vunpack.c.l.b16 %v2828
    %v3346 = vunpack.c.l.b16 %v2829
    %v3347 = vunpack.c.l.b16 %v2830
    %v3348 = vunpack.c.l.b16 %v2831
    %v3349 = vunpack.c.l.b16 %v2832
    %v3350 = vunpack.c.l.b16 %v2833
    %v3351 = vunpack.c.l.b16 %v2834
    %v3352 = vunpack.c.l.b16 %v2835
    %v3353 = vunpack.c.l.b16 %v2836
    %v3354 = vunpack.c.l.b16 %v2837
    %v3355 = vunpack.c.l.b16 %v2838
    %v3356 = vunpack.c.l.b16 %v2839
    %v3357 = vunpack.c.l.b16 %v2840
    %v3358 = vunpack.c.l.b16 %v2841
    %v3359 = vunpack.c.l.b16 %v2842
    %v3360 = vunpack.c.l.b16 %v2843
    %v3361 = vunpack.c.l.b16 %v2844
    %v3362 = vunpack.c.l.b16 %v2845
    %v3363 = vunpack.c.l.b16 %v2846
    %v3364 = vunpack.c.l.b16 %v2847
    %v3365 = vunpack.c.l.b16 %v2848
    %v3366 = vunpack.c.l.b16 %v2849
    %v3367 = vunpack.c.l.b16 %v2850
    %v3368 = vunpack.c.l.b16 %v2851
    %v3369 = vunpack.c.l.b16 %v2852
    %v3370 = vunpack.c.l.b16 %v2853
    %v3371 = vunpack.c.l.b16 %v2854
    %v3372 = vunpack.c.l.b16 %v2855
    %v3373 = vunpack.c.l.b16 %v2856
    %v3374 = vunpack.c.l.b16 %v2857
    %v3375 = vunpack.c.l.b16 %v2858
    %v3376 = vunpack.c.l.b16 %v2859
    %v3377 = vunpack.c.l.b16 %v2860
    %v3378 = vunpack.c.l.b16 %v2861
    %v3379 = vunpack.c.l.b16 %v2862
    %v3380 = vunpack.c.l.b16 %v2863
    %v3381 = vunpack.c.l.b16 %v2864
    %v3382 = vunpack.c.l.b16 %v2865
    %v3383 = vunpack.c.l.b16 %v2866
    %v3384 = vunpack.c.l.b16 %v2867
    %v3385 = vunpack.c.l.b16 %v2868
    %v3386 = vunpack.c.l.b16 %v2869
    %v3387 = vunpack.c.l.b16 %v2870
    %v3388 = vunpack.c.l.b16 %v2871
    %v3389 = vunpack.c.l.b16 %v2872
    %v3390 = vunpack.c.l.b16 %v2873
    %v3391 = vunpack.c.l.b16 %v2874
    %v3392 = vunpack.c.l.b16 %v2875
    %v3393 = vunpack.c.l.b16 %v2876
    %v3394 = vunpack.c.l.b16 %v2877
    %v3395 = vunpack.c.l.b16 %v2878
    %v3396 = vunpack.c.l.b16 %v2879
    %v3397 = vunpack.c.l.b16 %v2880
    %v3398 = vunpack.c.l.b16 %v2881
    %v3399 = vunpack.c.l.b16 %v2882
    %v3400 = vunpack.c.l.b16 %v2883
    %v3401 = vunpack.c.l.b16 %v2884
    %v3402 = vunpack.c.l.b16 %v2885
    %v3403 = vunpack.c.l.b16 %v2886
    %v3404 = vunpack.c.l.b16 %v2887
    %v3405 = vunpack.c.l.b16 %v2888
    %v3406 = vunpack.c.l.b16 %v2889
    %v3407 = vunpack.c.l.b16 %v2890
    %v3408 = vunpack.c.l.b16 %v2891
    %v3409 = vunpack.c.l.b16 %v2892
    %v3410 = vunpack.c.l.b16 %v2893
    %v3411 = vunpack.c.l.b16 %v2894
    %v3412 = vunpack.c.l.b16 %v2895
    %v3413 = vunpack.c.l.b16 %v2896
    %v3414 = vunpack.c.l.b16 %v2897
    %v3415 = vunpack.c.l.b16 %v2898
    %v3416 = vunpack.c.l.b16 %v2899
    %v3417 = vunpack.c.l.b16 %v2900
    %v3418 = vunpack.c.l.b16 %v2901
    %v3419 = vunpack.c.l.b16 %v2902
    %v3420 = vunpack.c.l.b16 %v2903
    %v3421 = vunpack.c.l.b16 %v2904
    %v3422 = vunpack.c.l.b16 %v2905
    %v3423 = vunpack.c.l.b16 %v2906
    %v3424 = vunpack.c.l.b16 %v2907
    %v3425 = vunpack.c.l.b16 %v2908
    %v3426 = vunpack.c.l.b16 %v2909
    %v3427 = vunpack.c.l.b16 %v2910
    %v3428 = vunpack.c.l.b16 %v2911
    %v3429 = vunpack.c.l.b16 %v2912
    %v3430 = vunpack.c.l.b16 %v2913
    %v3431 = vunpack.c.l.b16 %v2914
    %v3432 = vunpack.c.l.b16 %v2915
    %v3433 = vunpack.c.l.b16 %v2916
    %v3434 = vunpack.c.l.b16 %v2917
    %v3435 = vunpack.c.l.b16 %v2918
    %v3436 = vunpack.c.l.b16 %v2919
    %v3437 = vunpack.c.l.b16 %v2920
    %v3438 = vunpack.c.l.b16 %v2921
    %v3439 = vunpack.c.l.b16 %v2922
    %v3440 = vunpack.c.l.b16 %v2923
    %v3441 = vunpack.c.l.b16 %v2924
    %v3442 = vunpack.c.l.b16 %v2925
    %v3443 = vunpack.c.l.b16 %v2926
    %v3444 = vunpack.c.l.b16 %v2927
    %v3445 = vunpack.c.l.b16 %v2928
    %v3446 = vunpack.c.l.b16 %v2929
    %v3447 = vunpack.c.l.b16 %v2930
    %v3448 = vunpack.c.l.b16 %v2931
    %v3449 = vunpack.c.l.b16 %v2932
    %v3450 = vunpack.c.l.b16 %v2933
    %v3451 = vunpack.c.l.b16 %v2934
    %v3452 = vunpack.c.l.b16 %v2935
    %v3453 = vpack.c.b16 %v3198, %v3197
    %v3454 = vpack.c.b16 %v3200, %v3199
    %v3455 = vpack.c.b16 %v3202, %v3201
    %v3456 = vpack.c.b16 %v3204, %v3203
    %v3457 = vpack.c.b16 %v3206, %v3205
    %v3458 = vpack.c.b16 %v3208, %v3207
    %v3459 = vpack.c.b16 %v3210, %v3209
    %v3460 = vpack.c.b16 %v3212, %v3211
    %v3461 = vpack.c.b16 %v3214, %v3213
    %v3462 = vpack.c.b16 %v3216, %v3215
    %v3463 = vpack.c.b16 %v3218, %v3217
    %v3464 = vpack.c.b16 %v3220, %v3219
    %v3465 = vpack.c.b16 %v3222, %v3221
    %v3466 = vpack.c.b16 %v3224, %v3223
    %v3467 = vpack.c.b16 %v3226, %v3225
    %v3468 = vpack.c.b16 %v3228, %v3227
    %v3469 = vpack.c.b16 %v3230, %v3229
    %v3470 = vpack.c.b16 %v3232, %v3231
    %v3471 = vpack.c.b16 %v3234, %v3233
    %v3472 = vpack.c.b16 %v3236, %v3235
    %v3473 = vpack.c.b16 %v3238, %v3237
    %v3474 = vpack.c.b16 %v3240, %v3239
    %v3475 = vpack.c.b16 %v3242, %v3241
    %v3476 = vpack.c.b16 %v3244, %v3243
    %v3477 = vpack.c.b16 %v3246, %v3245
    %v3478 = vpack.c.b16 %v3248, %v3247
    %v3479 = vpack.c.b16 %v3250, %v3249
    %v3480 = vpack.c.b16 %v3252, %v3251
    %v3481 = vpack.c.b16 %v3254, %v3253
    %v3482 = vpack.c.b16 %v3256, %v3255
    %v3483 = vpack.c.b16 %v3258, %v3257
    %v3484 = vpack.c.b16 %v3260, %v3259
    %v3485 = vpack.c.b16 %v3262, %v3261
    %v3486 = vpack.c.b16 %v3264, %v3263
    %v3487 = vpack.c.b16 %v3266, %v3265
    %v3488 = vpack.c.b16 %v3268, %v3267
    %v3489 = vpack.c.b16 %v3270, %v3269
    %v3490 = vpack.c.b16 %v3272, %v3271
    %v3491 = vpack.c.b16 %v3274, %v3273
    %v3492 = vpack.c.b16 %v3276, %v3275
    %v3493 = vpack.c.b16 %v3278, %v3277
    %v3494 = vpack.c.b16 %v3280, %v3279
    %v3495 = vpack.c.b16 %v3282, %v3281
    %v3496 = vpack.c.b16 %v3284, %v3283
    %v3497 = vpack.c.b16 %v3286, %v3285
    %v3498 = vpack.c.b16 %v3288, %v3287
    %v3499 = vpack.c.b16 %v3290, %v3289
    %v3500 = vpack.c.b16 %v3292, %v3291
    %v3501 = vpack.c.b16 %v3294, %v3293
    %v3502 = vpack.c.b16 %v3296, %v3295
    %v3503 = vpack.c.b16 %v3298, %v3297
    %v3504 = vpack.c.b16 %v3300, %v3299
    %v3505 = vpack.c.b16 %v3302, %v3301
    %v3506 = vpack.c.b16 %v3304, %v3303
    %v3507 = vpack.c.b16 %v3306, %v3305
    %v3508 = vpack.c.b16 %v3308, %v3307
    %v3509 = vpack.c.b16 %v3310, %v3309
    %v3510 = vpack.c.b16 %v3312, %v3311
    %v3511 = vpack.c.b16 %v3314, %v3313
    %v3512 = vpack.c.b16 %v3316, %v3315
    %v3513 = vpack.c.b16 %v3318, %v3317
    %v3514 = vpack.c.b16 %v3320, %v3319
    %v3515 = vpack.c.b16 %v3322, %v3321
    %v3516 = vpack.c.b16 %v3324, %v3323
    %v3517 = vpack.c.b16 %v3326, %v3325
    %v3518 = vpack.c.b16 %v3328, %v3327
    %v3519 = vpack.c.b16 %v3330, %v3329
    %v3520 = vpack.c.b16 %v3332, %v3331
    %v3521 = vpack.c.b16 %v3334, %v3333
    %v3522 = vpack.c.b16 %v3336, %v3335
    %v3523 = vpack.c.b16 %v3338, %v3337
    %v3524 = vpack.c.b16 %v3340, %v3339
    %v3525 = vpack.c.b16 %v3342, %v3341
    %v3526 = vpack.c.b16 %v3344, %v3343
    %v3527 = vpack.c.b16 %v3346, %v3345
    %v3528 = vpack.c.b16 %v3348, %v3347
    %v3529 = vpack.c.b16 %v3350, %v3349
    %v3530 = vpack.c.b16 %v3352, %v3351
    %v3531 = vpack.c.b16 %v3354, %v3353
    %v3532 = vpack.c.b16 %v3356, %v3355
    %v3533 = vpack.c.b16 %v3358, %v3357
    %v3534 = vpack.c.b16 %v3360, %v3359
    %v3535 = vpack.c.b16 %v3362, %v3361
    %v3536 = vpack.c.b16 %v3364, %v3363
    %v3537 = vpack.c.b16 %v3366, %v3365
    %v3538 = vpack.c.b16 %v3368, %v3367
    %v3539 = vpack.c.b16 %v3370, %v3369
    %v3540 = vpack.c.b16 %v3372, %v3371
    %v3541 = vpack.c.b16 %v3374, %v3373
    %v3542 = vpack.c.b16 %v3376, %v3375
    %v3543 = vpack.c.b16 %v3378, %v3377
    %v3544 = vpack.c.b16 %v3380, %v3379
    %v3545 = vpack.c.b16 %v3382, %v3381
    %v3546 = vpack.c.b16 %v3384, %v3383
    %v3547 = vpack.c.b16 %v3386, %v3385
    %v3548 = vpack.c.b16 %v3388, %v3387
    %v3549 = vpack.c.b16 %v3390, %v3389
    %v3550 = vpack.c.b16 %v3392, %v3391
    %v3551 = vpack.c.b16 %v3394, %v3393
    %v3552 = vpack.c.b16 %v3396, %v3395
    %v3553 = vpack.c.b16 %v3398, %v3397
    %v3554 = vpack.c.b16 %v3400, %v3399
    %v3555 = vpack.c.b16 %v3402, %v3401
    %v3556 = vpack.c.b16 %v3404, %v3403
    %v3557 = vpack.c.b16 %v3406, %v3405
    %v3558 = vpack.c.b16 %v3408, %v3407
    %v3559 = vpack.c.b16 %v3410, %v3409
    %v3560 = vpack.c.b16 %v3412, %v3411
    %v3561 = vpack.c.b16 %v3414, %v3413
    %v3562 = vpack.c.b16 %v3416, %v3415
    %v3563 = vpack.c.b16 %v3418, %v3417
    %v3564 = vpack.c.b16 %v3420, %v3419
    %v3565 = vpack.c.b16 %v3422, %v3421
    %v3566 = vpack.c.b16 %v3424, %v3423
    %v3567 = vpack.c.b16 %v3426, %v3425
    %v3568 = vpack.c.b16 %v3428, %v3427
    %v3569 = vpack.c.b16 %v3430, %v3429
    %v3570 = vpack.c.b16 %v3432, %v3431
    %v3571 = vpack.c.b16 %v3434, %v3433
    %v3572 = vpack.c.b16 %v3436, %v3435
    %v3573 = vpack.c.b16 %v3438, %v3437
    %v3574 = vpack.c.b16 %v3440, %v3439
    %v3575 = vpack.c.b16 %v3442, %v3441
    %v3576 = vpack.c.b16 %v3444, %v3443
    %v3577 = vpack.c.b16 %v3446, %v3445
    %v3578 = vpack.c.b16 %v3448, %v3447
    %v3579 = vpack.c.b16 %v3450, %v3449
    %v3580 = vpack.c.b16 %v3452, %v3451
    %3709 = vmatprep.subr.bf16.mxu0 0
    %3710 = vmatpush1.bf16.msra.mxu0 %v3453
    %3711 = vmatprep.subr.bf16.mxu0 0
    %3712 = vmatpush1.bf16.msra.mxu0 %v3454
    %3713 = vmatprep.subr.bf16.mxu0 0
    %3714 = vmatpush1.bf16.msra.mxu0 %v3455
    %3715 = vmatprep.subr.bf16.mxu0 0
    %3716 = vmatpush1.bf16.msra.mxu0 %v3456
    %3717 = vmatprep.subr.bf16.mxu0 0
    %3718 = vmatpush1.bf16.msra.mxu0 %v3457
    %3719 = vmatprep.subr.bf16.mxu0 0
    %3720 = vmatpush1.bf16.msra.mxu0 %v3458
    %3721 = vmatprep.subr.bf16.mxu0 0
    %3722 = vmatpush1.bf16.msra.mxu0 %v3459
    %3723 = vmatprep.subr.bf16.mxu0 0
    %3724 = vmatpush1.bf16.msra.mxu0 %v3460
    %3725 = vmatprep.subr.bf16.mxu0 0
    %3726 = vmatpush1.bf16.msra.mxu0 %v3461
    %3727 = vmatprep.subr.bf16.mxu0 0
    %3728 = vmatpush1.bf16.msra.mxu0 %v3462
    %3729 = vmatprep.subr.bf16.mxu0 0
    %3730 = vmatpush1.bf16.msra.mxu0 %v3463
    %3731 = vmatprep.subr.bf16.mxu0 0
    %3732 = vmatpush1.bf16.msra.mxu0 %v3464
    %3733 = vmatprep.subr.bf16.mxu0 0
    %3734 = vmatpush1.bf16.msra.mxu0 %v3465
    %3735 = vmatprep.subr.bf16.mxu0 0
    %3736 = vmatpush1.bf16.msra.mxu0 %v3466
    %3737 = vmatprep.subr.bf16.mxu0 0
    %3738 = vmatpush1.bf16.msra.mxu0 %v3467
    %3739 = vmatprep.subr.bf16.mxu0 0
    %3740 = vmatpush1.bf16.msra.mxu0 %v3468
    %3741 = vmatprep.mubr.bf16.mxu0 %v2617
    %3742 = vmatmul.mubr.bf16.gmra.mrb[0].mxu0 %v2616
    %v3743 = vpop.f32.mrb[0].mxu0
    %v3744 = vadd.f32 %v2940, %v3743
    %v3745 = vpop.f32.mrb[0].mxu0
    %v3746 = vpop.f32.mrb[0].mxu0
    %v3747 = vadd.f32 %v2940, %v3746
    %v3748 = vpop.f32.mrb[0].mxu0
    %3749 = vmatprep.mubr.bf16.mxu0 %v2633
    %3750 = vmatmul.mubr.bf16.gmra.mrb[0].mxu0 %v2632
    %v3751 = vpop.f32.mrb[0].mxu0
    %v3752 = vadd.f32 %v2940, %v3751
    %v3753 = vpop.f32.mrb[0].mxu0
    %v3754 = vpop.f32.mrb[0].mxu0
    %v3755 = vadd.f32 %v2940, %v3754
    %v3756 = vpop.f32.mrb[0].mxu0
    %3757 = vmatprep.mubr.bf16.mxu0 %v2649
    %3758 = vmatmul.mubr.bf16.gmra.mrb[0].mxu0 %v2648
    %v3759 = vpop.f32.mrb[0].mxu0
    %v3760 = vadd.f32 %v2940, %v3759
    %v3761 = vpop.f32.mrb[0].mxu0
    %v3762 = vpop.f32.mrb[0].mxu0
    %v3763 = vadd.f32 %v2940, %v3762
    %v3764 = vpop.f32.mrb[0].mxu0
    %3765 = vmatprep.mubr.bf16.mxu0 %v2665
    %3766 = vmatmul.mubr.bf16.gmra.mrb[0].mxu0 %v2664
    %v3767 = vpop.f32.mrb[0].mxu0
    %v3768 = vadd.f32 %v2940, %v3767
    %v3769 = vpop.f32.mrb[0].mxu0
    %v3770 = vpop.f32.mrb[0].mxu0
    %v3771 = vadd.f32 %v2940, %v3770
    %v3772 = vpop.f32.mrb[0].mxu0
    %3773 = vdwg.mxu0
    %3774 = vmatprep.subr.bf16.mxu0 0
    %3775 = vmatpush1.bf16.msra.mxu0 %v3469
    %3776 = vmatprep.subr.bf16.mxu0 0
    %3777 = vmatpush1.bf16.msra.mxu0 %v3470
    %3778 = vmatprep.subr.bf16.mxu0 0
    %3779 = vmatpush1.bf16.msra.mxu0 %v3471
    %3780 = vmatprep.subr.bf16.mxu0 0
    %3781 = vmatpush1.bf16.msra.mxu0 %v3472
    %3782 = vmatprep.subr.bf16.mxu0 0
    %3783 = vmatpush1.bf16.msra.mxu0 %v3473
    %3784 = vmatprep.subr.bf16.mxu0 0
    %3785 = vmatpush1.bf16.msra.mxu0 %v3474
    %3786 = vmatprep.subr.bf16.mxu0 0
    %3787 = vmatpush1.bf16.msra.mxu0 %v3475
    %3788 = vmatprep.subr.bf16.mxu0 0
    %3789 = vmatpush1.bf16.msra.mxu0 %v3476
    %3790 = vmatprep.subr.bf16.mxu0 0
    %3791 = vmatpush1.bf16.msra.mxu0 %v3477
    %3792 = vmatprep.subr.bf16.mxu0 0
    %3793 = vmatpush1.bf16.msra.mxu0 %v3478
    %3794 = vmatprep.subr.bf16.mxu0 0
    %3795 = vmatpush1.bf16.msra.mxu0 %v3479
    %3796 = vmatprep.subr.bf16.mxu0 0
    %3797 = vmatpush1.bf16.msra.mxu0 %v3480
    %3798 = vmatprep.subr.bf16.mxu0 0
    %3799 = vmatpush1.bf16.msra.mxu0 %v3481
    %3800 = vmatprep.subr.bf16.mxu0 0
    %3801 = vmatpush1.bf16.msra.mxu0 %v3482
    %3802 = vmatprep.subr.bf16.mxu0 0
    %3803 = vmatpush1.bf16.msra.mxu0 %v3483
    %3804 = vmatprep.subr.bf16.mxu0 0
    %3805 = vmatpush1.bf16.msra.mxu0 %v3484
    %3806 = vmatprep.mubr.bf16.mxu0 %v2619
    %3807 = vmatmul.mubr.bf16.gmra.mrb[0].mxu0 %v2618
    %v3808 = vpop.f32.mrb[0].mxu0
    %v3809 = vadd.f32 %v3744, %v3808
    %v3810 = vpop.f32.mrb[0].mxu0
    %v3811 = vpop.f32.mrb[0].mxu0
    %v3812 = vadd.f32 %v3747, %v3811
    %v3813 = vpop.f32.mrb[0].mxu0
    %3814 = vmatprep.mubr.bf16.mxu0 %v2635
    %3815 = vmatmul.mubr.bf16.gmra.mrb[0].mxu0 %v2634
    %v3816 = vpop.f32.mrb[0].mxu0
    %v3817 = vadd.f32 %v3752, %v3816
    %v3818 = vpop.f32.mrb[0].mxu0
    %v3819 = vpop.f32.mrb[0].mxu0
    %v3820 = vadd.f32 %v3755, %v3819
    %v3821 = vpop.f32.mrb[0].mxu0
    %3822 = vmatprep.mubr.bf16.mxu0 %v2651
    %3823 = vmatmul.mubr.bf16.gmra.mrb[0].mxu0 %v2650
    %v3824 = vpop.f32.mrb[0].mxu0
    %v3825 = vadd.f32 %v3760, %v3824
    %v3826 = vpop.f32.mrb[0].mxu0
    %v3827 = vpop.f32.mrb[0].mxu0
    %v3828 = vadd.f32 %v3763, %v3827
    %v3829 = vpop.f32.mrb[0].mxu0
    %3830 = vmatprep.mubr.bf16.mxu0 %v2667
    %3831 = vmatmul.mubr.bf16.gmra.mrb[0].mxu0 %v2666
    %v3832 = vpop.f32.mrb[0].mxu0
    %v3833 = vadd.f32 %v3768, %v3832
    %v3834 = vpop.f32.mrb[0].mxu0
    %v3835 = vpop.f32.mrb[0].mxu0
    %v3836 = vadd.f32 %v3771, %v3835
    %v3837 = vpop.f32.mrb[0].mxu0
    %3838 = vdwg.mxu0
    %3839 = vmatprep.subr.bf16.mxu0 0
    %3840 = vmatpush1.bf16.msra.mxu0 %v3485
    %3841 = vmatprep.subr.bf16.mxu0 0
    %3842 = vmatpush1.bf16.msra.mxu0 %v3486
    %3843 = vmatprep.subr.bf16.mxu0 0
    %3844 = vmatpush1.bf16.msra.mxu0 %v3487
    %3845 = vmatprep.subr.bf16.mxu0 0
    %3846 = vmatpush1.bf16.msra.mxu0 %v3488
    %3847 = vmatprep.subr.bf16.mxu0 0
    %3848 = vmatpush1.bf16.msra.mxu0 %v3489
    %3849 = vmatprep.subr.bf16.mxu0 0
    %3850 = vmatpush1.bf16.msra.mxu0 %v3490
    %3851 = vmatprep.subr.bf16.mxu0 0
    %3852 = vmatpush1.bf16.msra.mxu0 %v3491
    %3853 = vmatprep.subr.bf16.mxu0 0
    %3854 = vmatpush1.bf16.msra.mxu0 %v3492
    %3855 = vmatprep.subr.bf16.mxu0 0
    %3856 = vmatpush1.bf16.msra.mxu0 %v3493
    %3857 = vmatprep.subr.bf16.mxu0 0
    %3858 = vmatpush1.bf16.msra.mxu0 %v3494
    %3859 = vmatprep.subr.bf16.mxu0 0
    %3860 = vmatpush1.bf16.msra.mxu0 %v3495
    %3861 = vmatprep.subr.bf16.mxu0 0
    %3862 = vmatpush1.bf16.msra.mxu0 %v3496
    %3863 = vmatprep.subr.bf16.mxu0 0
    %3864 = vmatpush1.bf16.msra.mxu0 %v3497
    %3865 = vmatprep.subr.bf16.mxu0 0
    %3866 = vmatpush1.bf16.msra.mxu0 %v3498
    %3867 = vmatprep.subr.bf16.mxu0 0
    %3868 = vmatpush1.bf16.msra.mxu0 %v3499
    %3869 = vmatprep.subr.bf16.mxu0 0
    %3870 = vmatpush1.bf16.msra.mxu0 %v3500
    %3871 = vmatprep.mubr.bf16.mxu0 %v2621
    %3872 = vmatmul.mubr.bf16.gmra.mrb[0].mxu0 %v2620
    %v3873 = vpop.f32.mrb[0].mxu0
    %v3874 = vadd.f32 %v3809, %v3873
    %v3875 = vpop.f32.mrb[0].mxu0
    %v3876 = vpop.f32.mrb[0].mxu0
    %v3877 = vadd.f32 %v3812, %v3876
    %v3878 = vpop.f32.mrb[0].mxu0
    %3879 = vmatprep.mubr.bf16.mxu0 %v2637
    %3880 = vmatmul.mubr.bf16.gmra.mrb[0].mxu0 %v2636
    %v3881 = vpop.f32.mrb[0].mxu0
    %v3882 = vadd.f32 %v3817, %v3881
    %v3883 = vpop.f32.mrb[0].mxu0
    %v3884 = vpop.f32.mrb[0].mxu0
    %v3885 = vadd.f32 %v3820, %v3884
    %v3886 = vpop.f32.mrb[0].mxu0
    %3887 = vmatprep.mubr.bf16.mxu0 %v2653
    %3888 = vmatmul.mubr.bf16.gmra.mrb[0].mxu0 %v2652
    %v3889 = vpop.f32.mrb[0].mxu0
    %v3890 = vadd.f32 %v3825, %v3889
    %v3891 = vpop.f32.mrb[0].mxu0
    %v3892 = vpop.f32.mrb[0].mxu0
    %v3893 = vadd.f32 %v3828, %v3892
    %v3894 = vpop.f32.mrb[0].mxu0
    %3895 = vmatprep.mubr.bf16.mxu0 %v2669
    %3896 = vmatmul.mubr.bf16.gmra.mrb[0].mxu0 %v2668
    %v3897 = vpop.f32.mrb[0].mxu0
    %v3898 = vadd.f32 %v3833, %v3897
    %v3899 = vpop.f32.mrb[0].mxu0
    %v3900 = vpop.f32.mrb[0].mxu0
    %v3901 = vadd.f32 %v3836, %v3900
    %v3902 = vpop.f32.mrb[0].mxu0
    %3903 = vdwg.mxu0
    %3904 = vmatprep.subr.bf16.mxu0 0
    %3905 = vmatpush1.bf16.msra.mxu0 %v3501
    %3906 = vmatprep.subr.bf16.mxu0 0
    %3907 = vmatpush1.bf16.msra.mxu0 %v3502
    %3908 = vmatprep.subr.bf16.mxu0 0
    %3909 = vmatpush1.bf16.msra.mxu0 %v3503
    %3910 = vmatprep.subr.bf16.mxu0 0
    %3911 = vmatpush1.bf16.msra.mxu0 %v3504
    %3912 = vmatprep.subr.bf16.mxu0 0
    %3913 = vmatpush1.bf16.msra.mxu0 %v3505
    %3914 = vmatprep.subr.bf16.mxu0 0
    %3915 = vmatpush1.bf16.msra.mxu0 %v3506
    %3916 = vmatprep.subr.bf16.mxu0 0
    %3917 = vmatpush1.bf16.msra.mxu0 %v3507
    %3918 = vmatprep.subr.bf16.mxu0 0
    %3919 = vmatpush1.bf16.msra.mxu0 %v3508
    %3920 = vmatprep.subr.bf16.mxu0 0
    %3921 = vmatpush1.bf16.msra.mxu0 %v3509
    %3922 = vmatprep.subr.bf16.mxu0 0
    %3923 = vmatpush1.bf16.msra.mxu0 %v3510
    %3924 = vmatprep.subr.bf16.mxu0 0
    %3925 = vmatpush1.bf16.msra.mxu0 %v3511
    %3926 = vmatprep.subr.bf16.mxu0 0
    %3927 = vmatpush1.bf16.msra.mxu0 %v3512
    %3928 = vmatprep.subr.bf16.mxu0 0
    %3929 = vmatpush1.bf16.msra.mxu0 %v3513
    %3930 = vmatprep.subr.bf16.mxu0 0
    %3931 = vmatpush1.bf16.msra.mxu0 %v3514
    %3932 = vmatprep.subr.bf16.mxu0 0
    %3933 = vmatpush1.bf16.msra.mxu0 %v3515
    %3934 = vmatprep.subr.bf16.mxu0 0
    %3935 = vmatpush1.bf16.msra.mxu0 %v3516
    %3936 = vmatprep.mubr.bf16.mxu0 %v2623
    %3937 = vmatmul.mubr.bf16.gmra.mrb[0].mxu0 %v2622
    %v3938 = vpop.f32.mrb[0].mxu0
    %v3939 = vadd.f32 %v3874, %v3938
    %v3940 = vpop.f32.mrb[0].mxu0
    %v3941 = vpop.f32.mrb[0].mxu0
    %v3942 = vadd.f32 %v3877, %v3941
    %v3943 = vpop.f32.mrb[0].mxu0
    %3944 = vmatprep.mubr.bf16.mxu0 %v2639
    %3945 = vmatmul.mubr.bf16.gmra.mrb[0].mxu0 %v2638
    %v3946 = vpop.f32.mrb[0].mxu0
    %v3947 = vadd.f32 %v3882, %v3946
    %v3948 = vpop.f32.mrb[0].mxu0
    %v3949 = vpop.f32.mrb[0].mxu0
    %v3950 = vadd.f32 %v3885, %v3949
    %v3951 = vpop.f32.mrb[0].mxu0
    %3952 = vmatprep.mubr.bf16.mxu0 %v2655
    %3953 = vmatmul.mubr.bf16.gmra.mrb[0].mxu0 %v2654
    %v3954 = vpop.f32.mrb[0].mxu0
    %v3955 = vadd.f32 %v3890, %v3954
    %v3956 = vpop.f32.mrb[0].mxu0
    %v3957 = vpop.f32.mrb[0].mxu0
    %v3958 = vadd.f32 %v3893, %v3957
    %v3959 = vpop.f32.mrb[0].mxu0
    %3960 = vmatprep.mubr.bf16.mxu0 %v2671
    %3961 = vmatmul.mubr.bf16.gmra.mrb[0].mxu0 %v2670
    %v3962 = vpop.f32.mrb[0].mxu0
    %v3963 = vadd.f32 %v3898, %v3962
    %v3964 = vpop.f32.mrb[0].mxu0
    %v3965 = vpop.f32.mrb[0].mxu0
    %v3966 = vadd.f32 %v3901, %v3965
    %v3967 = vpop.f32.mrb[0].mxu0
    %3968 = vdwg.mxu0
    %3969 = vmatprep.subr.bf16.mxu0 0
    %3970 = vmatpush1.bf16.msra.mxu0 %v3517
    %3971 = vmatprep.subr.bf16.mxu0 0
    %3972 = vmatpush1.bf16.msra.mxu0 %v3518
    %3973 = vmatprep.subr.bf16.mxu0 0
    %3974 = vmatpush1.bf16.msra.mxu0 %v3519
    %3975 = vmatprep.subr.bf16.mxu0 0
    %3976 = vmatpush1.bf16.msra.mxu0 %v3520
    %3977 = vmatprep.subr.bf16.mxu0 0
    %3978 = vmatpush1.bf16.msra.mxu0 %v3521
    %3979 = vmatprep.subr.bf16.mxu0 0
    %3980 = vmatpush1.bf16.msra.mxu0 %v3522
    %3981 = vmatprep.subr.bf16.mxu0 0
    %3982 = vmatpush1.bf16.msra.mxu0 %v3523
    %3983 = vmatprep.subr.bf16.mxu0 0
    %3984 = vmatpush1.bf16.msra.mxu0 %v3524
    %3985 = vmatprep.subr.bf16.mxu0 0
    %3986 = vmatpush1.bf16.msra.mxu0 %v3525
    %3987 = vmatprep.subr.bf16.mxu0 0
    %3988 = vmatpush1.bf16.msra.mxu0 %v3526
    %3989 = vmatprep.subr.bf16.mxu0 0
    %3990 = vmatpush1.bf16.msra.mxu0 %v3527
    %3991 = vmatprep.subr.bf16.mxu0 0
    %3992 = vmatpush1.bf16.msra.mxu0 %v3528
    %3993 = vmatprep.subr.bf16.mxu0 0
    %3994 = vmatpush1.bf16.msra.mxu0 %v3529
    %3995 = vmatprep.subr.bf16.mxu0 0
    %3996 = vmatpush1.bf16.msra.mxu0 %v3530
    %3997 = vmatprep.subr.bf16.mxu0 0
    %3998 = vmatpush1.bf16.msra.mxu0 %v3531
    %3999 = vmatprep.subr.bf16.mxu0 0
    %4000 = vmatpush1.bf16.msra.mxu0 %v3532
    %4001 = vmatprep.mubr.bf16.mxu0 %v2625
    %4002 = vmatmul.mubr.bf16.gmra.mrb[0].mxu0 %v2624
    %v4003 = vpop.f32.mrb[0].mxu0
    %v4004 = vadd.f32 %v3939, %v4003
    %v4005 = vpop.f32.mrb[0].mxu0
    %v4006 = vpop.f32.mrb[0].mxu0
    %v4007 = vadd.f32 %v3942, %v4006
    %v4008 = vpop.f32.mrb[0].mxu0
    %4009 = vmatprep.mubr.bf16.mxu0 %v2641
    %4010 = vmatmul.mubr.bf16.gmra.mrb[0].mxu0 %v2640
    %v4011 = vpop.f32.mrb[0].mxu0
    %v4012 = vadd.f32 %v3947, %v4011
    %v4013 = vpop.f32.mrb[0].mxu0
    %v4014 = vpop.f32.mrb[0].mxu0
    %v4015 = vadd.f32 %v3950, %v4014
    %v4016 = vpop.f32.mrb[0].mxu0
    %4017 = vmatprep.mubr.bf16.mxu0 %v2657
    %4018 = vmatmul.mubr.bf16.gmra.mrb[0].mxu0 %v2656
    %v4019 = vpop.f32.mrb[0].mxu0
    %v4020 = vadd.f32 %v3955, %v4019
    %v4021 = vpop.f32.mrb[0].mxu0
    %v4022 = vpop.f32.mrb[0].mxu0
    %v4023 = vadd.f32 %v3958, %v4022
    %v4024 = vpop.f32.mrb[0].mxu0
    %4025 = vmatprep.mubr.bf16.mxu0 %v2673
    %4026 = vmatmul.mubr.bf16.gmra.mrb[0].mxu0 %v2672
    %v4027 = vpop.f32.mrb[0].mxu0
    %v4028 = vadd.f32 %v3963, %v4027
    %v4029 = vpop.f32.mrb[0].mxu0
    %v4030 = vpop.f32.mrb[0].mxu0
    %v4031 = vadd.f32 %v3966, %v4030
    %v4032 = vpop.f32.mrb[0].mxu0
    %4033 = vdwg.mxu0
    %4034 = vmatprep.subr.bf16.mxu0 0
    %4035 = vmatpush1.bf16.msra.mxu0 %v3533
    %4036 = vmatprep.subr.bf16.mxu0 0
    %4037 = vmatpush1.bf16.msra.mxu0 %v3534
    %4038 = vmatprep.subr.bf16.mxu0 0
    %4039 = vmatpush1.bf16.msra.mxu0 %v3535
    %4040 = vmatprep.subr.bf16.mxu0 0
    %4041 = vmatpush1.bf16.msra.mxu0 %v3536
    %4042 = vmatprep.subr.bf16.mxu0 0
    %4043 = vmatpush1.bf16.msra.mxu0 %v3537
    %4044 = vmatprep.subr.bf16.mxu0 0
    %4045 = vmatpush1.bf16.msra.mxu0 %v3538
    %4046 = vmatprep.subr.bf16.mxu0 0
    %4047 = vmatpush1.bf16.msra.mxu0 %v3539
    %4048 = vmatprep.subr.bf16.mxu0 0
    %4049 = vmatpush1.bf16.msra.mxu0 %v3540
    %4050 = vmatprep.subr.bf16.mxu0 0
    %4051 = vmatpush1.bf16.msra.mxu0 %v3541
    %4052 = vmatprep.subr.bf16.mxu0 0
    %4053 = vmatpush1.bf16.msra.mxu0 %v3542
    %4054 = vmatprep.subr.bf16.mxu0 0
    %4055 = vmatpush1.bf16.msra.mxu0 %v3543
    %4056 = vmatprep.subr.bf16.mxu0 0
    %4057 = vmatpush1.bf16.msra.mxu0 %v3544
    %4058 = vmatprep.subr.bf16.mxu0 0
    %4059 = vmatpush1.bf16.msra.mxu0 %v3545
    %4060 = vmatprep.subr.bf16.mxu0 0
    %4061 = vmatpush1.bf16.msra.mxu0 %v3546
    %4062 = vmatprep.subr.bf16.mxu0 0
    %4063 = vmatpush1.bf16.msra.mxu0 %v3547
    %4064 = vmatprep.subr.bf16.mxu0 0
    %4065 = vmatpush1.bf16.msra.mxu0 %v3548
    %4066 = vmatprep.mubr.bf16.mxu0 %v2627
    %4067 = vmatmul.mubr.bf16.gmra.mrb[0].mxu0 %v2626
    %v4068 = vpop.f32.mrb[0].mxu0
    %v4069 = vadd.f32 %v4004, %v4068
    %v4070 = vpop.f32.mrb[0].mxu0
    %v4071 = vpop.f32.mrb[0].mxu0
    %v4072 = vadd.f32 %v4007, %v4071
    %v4073 = vpop.f32.mrb[0].mxu0
    %4074 = vmatprep.mubr.bf16.mxu0 %v2643
    %4075 = vmatmul.mubr.bf16.gmra.mrb[0].mxu0 %v2642
    %v4076 = vpop.f32.mrb[0].mxu0
    %v4077 = vadd.f32 %v4012, %v4076
    %v4078 = vpop.f32.mrb[0].mxu0
    %v4079 = vpop.f32.mrb[0].mxu0
    %v4080 = vadd.f32 %v4015, %v4079
    %v4081 = vpop.f32.mrb[0].mxu0
    %4082 = vmatprep.mubr.bf16.mxu0 %v2659
    %4083 = vmatmul.mubr.bf16.gmra.mrb[0].mxu0 %v2658
    %v4084 = vpop.f32.mrb[0].mxu0
    %v4085 = vadd.f32 %v4020, %v4084
    %v4086 = vpop.f32.mrb[0].mxu0
    %v4087 = vpop.f32.mrb[0].mxu0
    %v4088 = vadd.f32 %v4023, %v4087
    %v4089 = vpop.f32.mrb[0].mxu0
    %4090 = vmatprep.mubr.bf16.mxu0 %v2675
    %4091 = vmatmul.mubr.bf16.gmra.mrb[0].mxu0 %v2674
    %v4092 = vpop.f32.mrb[0].mxu0
    %v4093 = vadd.f32 %v4028, %v4092
    %v4094 = vpop.f32.mrb[0].mxu0
    %v4095 = vpop.f32.mrb[0].mxu0
    %v4096 = vadd.f32 %v4031, %v4095
    %v4097 = vpop.f32.mrb[0].mxu0
    %4098 = vdwg.mxu0
    %4099 = vmatprep.subr.bf16.mxu0 0
    %4100 = vmatpush1.bf16.msra.mxu0 %v3549
    %4101 = vmatprep.subr.bf16.mxu0 0
    %4102 = vmatpush1.bf16.msra.mxu0 %v3550
    %4103 = vmatprep.subr.bf16.mxu0 0
    %4104 = vmatpush1.bf16.msra.mxu0 %v3551
    %4105 = vmatprep.subr.bf16.mxu0 0
    %4106 = vmatpush1.bf16.msra.mxu0 %v3552
    %4107 = vmatprep.subr.bf16.mxu0 0
    %4108 = vmatpush1.bf16.msra.mxu0 %v3553
    %4109 = vmatprep.subr.bf16.mxu0 0
    %4110 = vmatpush1.bf16.msra.mxu0 %v3554
    %4111 = vmatprep.subr.bf16.mxu0 0
    %4112 = vmatpush1.bf16.msra.mxu0 %v3555
    %4113 = vmatprep.subr.bf16.mxu0 0
    %4114 = vmatpush1.bf16.msra.mxu0 %v3556
    %4115 = vmatprep.subr.bf16.mxu0 0
    %4116 = vmatpush1.bf16.msra.mxu0 %v3557
    %4117 = vmatprep.subr.bf16.mxu0 0
    %4118 = vmatpush1.bf16.msra.mxu0 %v3558
    %4119 = vmatprep.subr.bf16.mxu0 0
    %4120 = vmatpush1.bf16.msra.mxu0 %v3559
    %4121 = vmatprep.subr.bf16.mxu0 0
    %4122 = vmatpush1.bf16.msra.mxu0 %v3560
    %4123 = vmatprep.subr.bf16.mxu0 0
    %4124 = vmatpush1.bf16.msra.mxu0 %v3561
    %4125 = vmatprep.subr.bf16.mxu0 0
    %4126 = vmatpush1.bf16.msra.mxu0 %v3562
    %4127 = vmatprep.subr.bf16.mxu0 0
    %4128 = vmatpush1.bf16.msra.mxu0 %v3563
    %4129 = vmatprep.subr.bf16.mxu0 0
    %4130 = vmatpush1.bf16.msra.mxu0 %v3564
    %4131 = vmatprep.mubr.bf16.mxu0 %v2629
    %4132 = vmatmul.mubr.bf16.gmra.mrb[0].mxu0 %v2628
    %v4133 = vpop.f32.mrb[0].mxu0
    %v4134 = vadd.f32 %v4069, %v4133
    %v4135 = vpop.f32.mrb[0].mxu0
    %v4136 = vpop.f32.mrb[0].mxu0
    %v4137 = vadd.f32 %v4072, %v4136
    %v4138 = vpop.f32.mrb[0].mxu0
    %4139 = vmatprep.mubr.bf16.mxu0 %v2645
    %4140 = vmatmul.mubr.bf16.gmra.mrb[0].mxu0 %v2644
    %v4141 = vpop.f32.mrb[0].mxu0
    %v4142 = vadd.f32 %v4077, %v4141
    %v4143 = vpop.f32.mrb[0].mxu0
    %v4144 = vpop.f32.mrb[0].mxu0
    %v4145 = vadd.f32 %v4080, %v4144
    %v4146 = vpop.f32.mrb[0].mxu0
    %4147 = vmatprep.mubr.bf16.mxu0 %v2661
    %4148 = vmatmul.mubr.bf16.gmra.mrb[0].mxu0 %v2660
    %v4149 = vpop.f32.mrb[0].mxu0
    %v4150 = vadd.f32 %v4085, %v4149
    %v4151 = vpop.f32.mrb[0].mxu0
    %v4152 = vpop.f32.mrb[0].mxu0
    %v4153 = vadd.f32 %v4088, %v4152
    %v4154 = vpop.f32.mrb[0].mxu0
    %4155 = vmatprep.mubr.bf16.mxu0 %v2677
    %4156 = vmatmul.mubr.bf16.gmra.mrb[0].mxu0 %v2676
    %v4157 = vpop.f32.mrb[0].mxu0
    %v4158 = vadd.f32 %v4093, %v4157
    %v4159 = vpop.f32.mrb[0].mxu0
    %v4160 = vpop.f32.mrb[0].mxu0
    %v4161 = vadd.f32 %v4096, %v4160
    %v4162 = vpop.f32.mrb[0].mxu0
    %4163 = vdwg.mxu0
    %4164 = vmatprep.subr.bf16.mxu0 0
    %4165 = vmatpush1.bf16.msra.mxu0 %v3565
    %4166 = vmatprep.subr.bf16.mxu0 0
    %4167 = vmatpush1.bf16.msra.mxu0 %v3566
    %4168 = vmatprep.subr.bf16.mxu0 0
    %4169 = vmatpush1.bf16.msra.mxu0 %v3567
    %4170 = vmatprep.subr.bf16.mxu0 0
    %4171 = vmatpush1.bf16.msra.mxu0 %v3568
    %4172 = vmatprep.subr.bf16.mxu0 0
    %4173 = vmatpush1.bf16.msra.mxu0 %v3569
    %4174 = vmatprep.subr.bf16.mxu0 0
    %4175 = vmatpush1.bf16.msra.mxu0 %v3570
    %4176 = vmatprep.subr.bf16.mxu0 0
    %4177 = vmatpush1.bf16.msra.mxu0 %v3571
    %4178 = vmatprep.subr.bf16.mxu0 0
    %4179 = vmatpush1.bf16.msra.mxu0 %v3572
    %4180 = vmatprep.subr.bf16.mxu0 0
    %4181 = vmatpush1.bf16.msra.mxu0 %v3573
    %4182 = vmatprep.subr.bf16.mxu0 0
    %4183 = vmatpush1.bf16.msra.mxu0 %v3574
    %4184 = vmatprep.subr.bf16.mxu0 0
    %4185 = vmatpush1.bf16.msra.mxu0 %v3575
    %4186 = vmatprep.subr.bf16.mxu0 0
    %4187 = vmatpush1.bf16.msra.mxu0 %v3576
    %4188 = vmatprep.subr.bf16.mxu0 0
    %4189 = vmatpush1.bf16.msra.mxu0 %v3577
    %4190 = vmatprep.subr.bf16.mxu0 0
    %4191 = vmatpush1.bf16.msra.mxu0 %v3578
    %4192 = vmatprep.subr.bf16.mxu0 0
    %4193 = vmatpush1.bf16.msra.mxu0 %v3579
    %4194 = vmatprep.subr.bf16.mxu0 0
    %4195 = vmatpush1.bf16.msra.mxu0 %v3580
    %4196 = vmatprep.mubr.bf16.mxu0 %v2631
    %4197 = vmatmul.mubr.bf16.gmra.mrb[0].mxu0 %v2630
    %v4198 = vpop.f32.mrb[0].mxu0
    %v4199 = vadd.f32 %v4134, %v4198
    %v4200 = vpop.f32.mrb[0].mxu0
    %v4201 = vpop.f32.mrb[0].mxu0
    %v4202 = vadd.f32 %v4137, %v4201
    %v4203 = vpop.f32.mrb[0].mxu0
    %4204 = vmatprep.mubr.bf16.mxu0 %v2647
    %4205 = vmatmul.mubr.bf16.gmra.mrb[0].mxu0 %v2646
    %v4206 = vpop.f32.mrb[0].mxu0
    %v4207 = vadd.f32 %v4142, %v4206
    %v4208 = vpop.f32.mrb[0].mxu0
    %v4209 = vpop.f32.mrb[0].mxu0
    %v4210 = vadd.f32 %v4145, %v4209
    %v4211 = vpop.f32.mrb[0].mxu0
    %4212 = vmatprep.mubr.bf16.mxu0 %v2663
    %4213 = vmatmul.mubr.bf16.gmra.mrb[0].mxu0 %v2662
    %v4214 = vpop.f32.mrb[0].mxu0
    %v4215 = vadd.f32 %v4150, %v4214
    %v4216 = vpop.f32.mrb[0].mxu0
    %v4217 = vpop.f32.mrb[0].mxu0
    %v4218 = vadd.f32 %v4153, %v4217
    %v4219 = vpop.f32.mrb[0].mxu0
    %4220 = vmatprep.mubr.bf16.mxu0 %v2679
    %4221 = vmatmul.mubr.bf16.gmra.mrb[0].mxu0 %v2678
    %v4222 = vpop.f32.mrb[0].mxu0
    %v4223 = vadd.f32 %v4158, %v4222
    %v4224 = vpop.f32.mrb[0].mxu0
    %v4225 = vpop.f32.mrb[0].mxu0
    %v4226 = vadd.f32 %v4161, %v4225
    %v4227 = vpop.f32.mrb[0].mxu0
    %4228 = vdwg.mxu0
    %v4229 = vadd.f32 %v1603, %v4199
    %v4230 = vadd.f32 %v1604, %v4202
    %v4231 = vadd.f32 %v1605, %v4207
    %v4232 = vadd.f32 %v1606, %v4210
    %v4233 = vadd.f32 %v1607, %v4215
    %v4234 = vadd.f32 %v1608, %v4218
    %v4235 = vadd.f32 %v1609, %v4223
    %v4236 = vadd.f32 %v1610, %v4226
    %v4237 = vld [vmem:[%s17] sm:$0x1]
    %v4238 = vld [vmem:[%s18] sm:$0x1]
    %v4239 = vsel %vm261, %v4229, 0.0
    %4240 = vadd.xlane.f32.xlu0 %v4239
    %v4241 = vpop.xlane.xlu0 %4240
    %v4242 = vsel %vm261, %v4230, 0.0
    %4243 = vadd.xlane.f32.xlu0 %v4242
    %v4244 = vpop.xlane.xlu0 %4243
    %v4245 = vsel %vm261, %v4231, 0.0
    %4246 = vadd.xlane.f32.xlu0 %v4245
    %v4247 = vpop.xlane.xlu0 %4246
    %v4248 = vsel %vm261, %v4232, 0.0
    %4249 = vadd.xlane.f32.xlu0 %v4248
    %v4250 = vpop.xlane.xlu0 %4249
    %v4251 = vsel %vm261, %v4233, 0.0
    %4252 = vadd.xlane.f32.xlu0 %v4251
    %v4253 = vpop.xlane.xlu0 %4252
    %v4254 = vsel %vm261, %v4234, 0.0
    %4255 = vadd.xlane.f32.xlu0 %v4254
    %v4256 = vpop.xlane.xlu0 %4255
    %v4257 = vsel %vm261, %v4235, 0.0
    %4258 = vadd.xlane.f32.xlu0 %v4257
    %v4259 = vpop.xlane.xlu0 %4258
    %v4260 = vsel %vm261, %v4236, 0.0
    %4261 = vadd.xlane.f32.xlu0 %v4260
    %v4262 = vpop.xlane.xlu0 %4261
    %v4263 = vmul.f32 %v4241, %v1506
    %v4264 = vmul.f32 %v4244, %v1506
    %v4265 = vmul.f32 %v4247, %v1506
    %v4266 = vmul.f32 %v4250, %v1506
    %v4267 = vmul.f32 %v4253, %v1506
    %v4268 = vmul.f32 %v4256, %v1506
    %v4269 = vmul.f32 %v4259, %v1506
    %v4270 = vmul.f32 %v4262, %v1506
    %v4271 = vsub.f32 %v4229, %v4263
    %v4272 = vsub.f32 %v4230, %v4264
    %v4273 = vsub.f32 %v4231, %v4265
    %v4274 = vsub.f32 %v4232, %v4266
    %v4275 = vsub.f32 %v4233, %v4267
    %v4276 = vsub.f32 %v4234, %v4268
    %v4277 = vsub.f32 %v4235, %v4269
    %v4278 = vsub.f32 %v4236, %v4270
    %v4279 = vmul.f32 %v4271, %v4271
    %v4280 = vmul.f32 %v4272, %v4272
    %v4281 = vmul.f32 %v4273, %v4273
    %v4282 = vmul.f32 %v4274, %v4274
    %v4283 = vmul.f32 %v4275, %v4275
    %v4284 = vmul.f32 %v4276, %v4276
    %v4285 = vmul.f32 %v4277, %v4277
    %v4286 = vmul.f32 %v4278, %v4278
    %v4287 = vsel %vm261, %v4279, 0.0
    %4288 = vadd.xlane.f32.xlu0 %v4287
    %v4289 = vpop.xlane.xlu0 %4288
    %v4290 = vsel %vm261, %v4280, 0.0
    %4291 = vadd.xlane.f32.xlu0 %v4290
    %v4292 = vpop.xlane.xlu0 %4291
    %v4293 = vsel %vm261, %v4281, 0.0
    %4294 = vadd.xlane.f32.xlu0 %v4293
    %v4295 = vpop.xlane.xlu0 %4294
    %v4296 = vsel %vm261, %v4282, 0.0
    %4297 = vadd.xlane.f32.xlu0 %v4296
    %v4298 = vpop.xlane.xlu0 %4297
    %v4299 = vsel %vm261, %v4283, 0.0
    %4300 = vadd.xlane.f32.xlu0 %v4299
    %v4301 = vpop.xlane.xlu0 %4300
    %v4302 = vsel %vm261, %v4284, 0.0
    %4303 = vadd.xlane.f32.xlu0 %v4302
    %v4304 = vpop.xlane.xlu0 %4303
    %v4305 = vsel %vm261, %v4285, 0.0
    %4306 = vadd.xlane.f32.xlu0 %v4305
    %v4307 = vpop.xlane.xlu0 %4306
    %v4308 = vsel %vm261, %v4286, 0.0
    %4309 = vadd.xlane.f32.xlu0 %v4308
    %v4310 = vpop.xlane.xlu0 %4309
    %v4311 = vmul.f32 %v4289, %v1506
    %v4312 = vmul.f32 %v4292, %v1506
    %v4313 = vmul.f32 %v4295, %v1506
    %v4314 = vmul.f32 %v4298, %v1506
    %v4315 = vmul.f32 %v4301, %v1506
    %v4316 = vmul.f32 %v4304, %v1506
    %v4317 = vmul.f32 %v4307, %v1506
    %v4318 = vmul.f32 %v4310, %v1506
    %v4319 = vadd.f32 %v4311, 1e-05
    %v4320 = vadd.f32 %v4312, 1e-05
    %v4321 = vadd.f32 %v4313, 1e-05
    %v4322 = vadd.f32 %v4314, 1e-05
    %v4323 = vadd.f32 %v4315, 1e-05
    %v4324 = vadd.f32 %v4316, 1e-05
    %v4325 = vadd.f32 %v4317, 1e-05
    %v4326 = vadd.f32 %v4318, 1e-05
    %v4327 = vrsqrt.pop %v4319
    %v4328 = vrsqrt.pop %v4320
    %v4329 = vrsqrt.pop %v4321
    %v4330 = vrsqrt.pop %v4322
    %v4331 = vrsqrt.pop %v4323
    %v4332 = vrsqrt.pop %v4324
    %v4333 = vrsqrt.pop %v4325
    %v4334 = vrsqrt.pop %v4326
    %v4335 = vmul.f32 %v4271, %v4327
    %v4336 = vmul.f32 %v4272, %v4328
    %v4337 = vmul.f32 %v4273, %v4329
    %v4338 = vmul.f32 %v4274, %v4330
    %v4339 = vmul.f32 %v4275, %v4331
    %v4340 = vmul.f32 %v4276, %v4332
    %v4341 = vmul.f32 %v4277, %v4333
    %v4342 = vmul.f32 %v4278, %v4334
    %v4343 = vlaneseq
    %v4344 = vshrl.u32 %v4343, 7
    %v4345 = vsub.s32 0, %v4344
    %v4346 = vrot.slane %v4237, %v4345
    %v4347 = vmul.f32 %v4335, %v4346
    %v4348 = vmul.f32 %v4336, %v4346
    %v4349 = vmul.f32 %v4337, %v4346
    %v4350 = vmul.f32 %v4338, %v4346
    %v4351 = vmul.f32 %v4339, %v4346
    %v4352 = vmul.f32 %v4340, %v4346
    %v4353 = vmul.f32 %v4341, %v4346
    %v4354 = vmul.f32 %v4342, %v4346
    %v4355 = vlaneseq
    %v4356 = vshrl.u32 %v4355, 7
    %v4357 = vsub.s32 0, %v4356
    %v4358 = vrot.slane %v4238, %v4357
    %v4359 = vadd.f32 %v4347, %v4358
    %v4360 = vadd.f32 %v4348, %v4358
    %v4361 = vadd.f32 %v4349, %v4358
    %v4362 = vadd.f32 %v4350, %v4358
    %v4363 = vadd.f32 %v4351, %v4358
    %v4364 = vadd.f32 %v4352, %v4358
    %v4365 = vadd.f32 %v4353, %v4358
    %v4366 = vadd.f32 %v4354, %v4358
    %v4367 = vpack.c.bf16 %v4360, %v4359
    %v4368 = vpack.c.bf16 %v4362, %v4361
    %v4369 = vpack.c.bf16 %v4364, %v4363
    %v4370 = vpack.c.bf16 %v4366, %v4365
    %s4371 = scalar_lea.vmem %s3, 16
    %v4372 = vld [vmem:[%s4371] sm:$0xf]
    %v4373 = vld [vmem:[%s4371 + $0x4] sm:$0xf]
    %v4374 = vld [vmem:[%s4371 + $0x8] sm:$0xf]
    %v4375 = vld [vmem:[%s4371 + $0xc] sm:$0xf]
    %v4376 = vld [vmem:[%s6 + $0x1] sm:$0x1]
    %v4377 = vlaneseq
    %v4378 = vshrl.u32 %v4377, 7
    %v4379 = vsub.s32 0, %v4378
    %v4380 = vrot.slane %v4376, %v4379
    %v4385 = vunpack.c.l.b16 %v4372
    %v4386 = vunpack.c.l.b16 %v4373
    %v4387 = vunpack.c.l.b16 %v4374
    %v4388 = vunpack.c.l.b16 %v4375
    %v4389 = vpack.c.b16 %v4386, %v4385
    %v4390 = vpack.c.b16 %v4388, %v4387
    %v4394 = vsel %vm261, %v4367, 0
    %v4397 = vsel %vm261, %v4368, 0
    %v4400 = vsel %vm261, %v4369, 0
    %v4403 = vsel %vm261, %v4370, 0
    %4405 = vmatprep.subr.bf16.mxu0 0
    %4406 = vmatpush1.bf16.msra.mxu0 %v4389
    %4407 = vmatprep.subr.bf16.mxu0 0
    %4408 = vmatpush1.bf16.msra.mxu0 %v4390
    %4409 = vmatprep.subr.bf16.mxu0 0
    %4410 = vmatpush1.bf16.msra.mxu0 0
    %4411 = vmatprep.subr.bf16.mxu0 0
    %4412 = vmatpush1.bf16.msra.mxu0 0
    %4413 = vmatprep.subr.bf16.mxu0 0
    %4414 = vmatpush1.bf16.msra.mxu0 0
    %4415 = vmatprep.subr.bf16.mxu0 0
    %4416 = vmatpush1.bf16.msra.mxu0 0
    %4417 = vmatprep.subr.bf16.mxu0 0
    %4418 = vmatpush1.bf16.msra.mxu0 0
    %4419 = vmatprep.subr.bf16.mxu0 0
    %4420 = vmatpush1.bf16.msra.mxu0 0
    %4421 = vmatprep.subr.bf16.mxu0 0
    %4422 = vmatpush1.bf16.msra.mxu0 0
    %4423 = vmatprep.subr.bf16.mxu0 0
    %4424 = vmatpush1.bf16.msra.mxu0 0
    %4425 = vmatprep.subr.bf16.mxu0 0
    %4426 = vmatpush1.bf16.msra.mxu0 0
    %4427 = vmatprep.subr.bf16.mxu0 0
    %4428 = vmatpush1.bf16.msra.mxu0 0
    %4429 = vmatprep.subr.bf16.mxu0 0
    %4430 = vmatpush1.bf16.msra.mxu0 0
    %4431 = vmatprep.subr.bf16.mxu0 0
    %4432 = vmatpush1.bf16.msra.mxu0 0
    %4433 = vmatprep.subr.bf16.mxu0 0
    %4434 = vmatpush1.bf16.msra.mxu0 0
    %4435 = vmatprep.subr.bf16.mxu0 0
    %4436 = vmatpush1.bf16.msra.mxu0 0
    %4437 = vmatprep.mubr.bf16.mxu0 0
    %4438 = vmatmul.mubr.bf16.gmra.mrb[0].mxu0 %v4394
    %v4439 = vpop.f32.mrb[0].mxu0
    %v4440 = vadd.f32 %v4380, %v4439
    %v4441 = vpop.f32.mrb[0].mxu0
    %v4442 = vpop.f32.mrb[0].mxu0
    %v4443 = vadd.f32 %v4380, %v4442
    %v4444 = vpop.f32.mrb[0].mxu0
    %4445 = vmatprep.mubr.bf16.mxu0 0
    %4446 = vmatmul.mubr.bf16.gmra.mrb[0].mxu0 %v4397
    %v4447 = vpop.f32.mrb[0].mxu0
    %v4448 = vadd.f32 %v4380, %v4447
    %v4449 = vpop.f32.mrb[0].mxu0
    %v4450 = vpop.f32.mrb[0].mxu0
    %v4451 = vadd.f32 %v4380, %v4450
    %v4452 = vpop.f32.mrb[0].mxu0
    %4453 = vmatprep.mubr.bf16.mxu0 0
    %4454 = vmatmul.mubr.bf16.gmra.mrb[0].mxu0 %v4400
    %v4455 = vpop.f32.mrb[0].mxu0
    %v4456 = vadd.f32 %v4380, %v4455
    %v4457 = vpop.f32.mrb[0].mxu0
    %v4458 = vpop.f32.mrb[0].mxu0
    %v4459 = vadd.f32 %v4380, %v4458
    %v4460 = vpop.f32.mrb[0].mxu0
    %4461 = vmatprep.mubr.bf16.mxu0 0
    %4462 = vmatmul.mubr.bf16.gmra.mrb[0].mxu0 %v4403
    %v4463 = vpop.f32.mrb[0].mxu0
    %v4464 = vadd.f32 %v4380, %v4463
    %v4465 = vpop.f32.mrb[0].mxu0
    %v4466 = vpop.f32.mrb[0].mxu0
    %v4467 = vadd.f32 %v4380, %v4466
    %v4468 = vpop.f32.mrb[0].mxu0
    %4469 = vdwg.mxu0
    %s4470 = scalar_lea.vmem %s4, 16
    %v4471 = vld [vmem:[%s4470] sm:$0xf]
    %v4472 = vld [vmem:[%s4470 + $0x4] sm:$0xf]
    %v4473 = vld [vmem:[%s4470 + $0x8] sm:$0xf]
    %v4474 = vld [vmem:[%s4470 + $0xc] sm:$0xf]
    %v4475 = vld [vmem:[%s7 + $0x1] sm:$0x1]
    %v4476 = vlaneseq
    %v4477 = vshrl.u32 %v4476, 7
    %v4478 = vsub.s32 0, %v4477
    %v4479 = vrot.slane %v4475, %v4478
    %v4484 = vunpack.c.l.b16 %v4471
    %v4485 = vunpack.c.l.b16 %v4472
    %v4486 = vunpack.c.l.b16 %v4473
    %v4487 = vunpack.c.l.b16 %v4474
    %v4488 = vpack.c.b16 %v4485, %v4484
    %v4489 = vpack.c.b16 %v4487, %v4486
    %4492 = vmatprep.subr.bf16.mxu0 0
    %4493 = vmatpush1.bf16.msra.mxu0 %v4488
    %4494 = vmatprep.subr.bf16.mxu0 0
    %4495 = vmatpush1.bf16.msra.mxu0 %v4489
    %4496 = vmatprep.subr.bf16.mxu0 0
    %4497 = vmatpush1.bf16.msra.mxu0 0
    %4498 = vmatprep.subr.bf16.mxu0 0
    %4499 = vmatpush1.bf16.msra.mxu0 0
    %4500 = vmatprep.subr.bf16.mxu0 0
    %4501 = vmatpush1.bf16.msra.mxu0 0
    %4502 = vmatprep.subr.bf16.mxu0 0
    %4503 = vmatpush1.bf16.msra.mxu0 0
    %4504 = vmatprep.subr.bf16.mxu0 0
    %4505 = vmatpush1.bf16.msra.mxu0 0
    %4506 = vmatprep.subr.bf16.mxu0 0
    %4507 = vmatpush1.bf16.msra.mxu0 0
    %4508 = vmatprep.subr.bf16.mxu0 0
    %4509 = vmatpush1.bf16.msra.mxu0 0
    %4510 = vmatprep.subr.bf16.mxu0 0
    %4511 = vmatpush1.bf16.msra.mxu0 0
    %4512 = vmatprep.subr.bf16.mxu0 0
    %4513 = vmatpush1.bf16.msra.mxu0 0
    %4514 = vmatprep.subr.bf16.mxu0 0
    %4515 = vmatpush1.bf16.msra.mxu0 0
    %4516 = vmatprep.subr.bf16.mxu0 0
    %4517 = vmatpush1.bf16.msra.mxu0 0
    %4518 = vmatprep.subr.bf16.mxu0 0
    %4519 = vmatpush1.bf16.msra.mxu0 0
    %4520 = vmatprep.subr.bf16.mxu0 0
    %4521 = vmatpush1.bf16.msra.mxu0 0
    %4522 = vmatprep.subr.bf16.mxu0 0
    %4523 = vmatpush1.bf16.msra.mxu0 0
    %4524 = vmatprep.mubr.bf16.mxu0 0
    %4525 = vmatmul.mubr.bf16.gmra.mrb[0].mxu0 %v4394
    %v4526 = vpop.f32.mrb[0].mxu0
    %v4527 = vadd.f32 %v4479, %v4526
    %v4528 = vpop.f32.mrb[0].mxu0
    %v4529 = vpop.f32.mrb[0].mxu0
    %v4530 = vadd.f32 %v4479, %v4529
    %v4531 = vpop.f32.mrb[0].mxu0
    %4532 = vmatprep.mubr.bf16.mxu0 0
    %4533 = vmatmul.mubr.bf16.gmra.mrb[0].mxu0 %v4397
    %v4534 = vpop.f32.mrb[0].mxu0
    %v4535 = vadd.f32 %v4479, %v4534
    %v4536 = vpop.f32.mrb[0].mxu0
    %v4537 = vpop.f32.mrb[0].mxu0
    %v4538 = vadd.f32 %v4479, %v4537
    %v4539 = vpop.f32.mrb[0].mxu0
    %4540 = vmatprep.mubr.bf16.mxu0 0
    %4541 = vmatmul.mubr.bf16.gmra.mrb[0].mxu0 %v4400
    %v4542 = vpop.f32.mrb[0].mxu0
    %v4543 = vadd.f32 %v4479, %v4542
    %v4544 = vpop.f32.mrb[0].mxu0
    %v4545 = vpop.f32.mrb[0].mxu0
    %v4546 = vadd.f32 %v4479, %v4545
    %v4547 = vpop.f32.mrb[0].mxu0
    %4548 = vmatprep.mubr.bf16.mxu0 0
    %4549 = vmatmul.mubr.bf16.gmra.mrb[0].mxu0 %v4403
    %v4550 = vpop.f32.mrb[0].mxu0
    %v4551 = vadd.f32 %v4479, %v4550
    %v4552 = vpop.f32.mrb[0].mxu0
    %v4553 = vpop.f32.mrb[0].mxu0
    %v4554 = vadd.f32 %v4479, %v4553
    %v4555 = vpop.f32.mrb[0].mxu0
    %4556 = vdwg.mxu0
    %s4557 = scalar_lea.vmem %s5, 16
    %v4558 = vld [vmem:[%s4557] sm:$0xf]
    %v4559 = vld [vmem:[%s4557 + $0x4] sm:$0xf]
    %v4560 = vld [vmem:[%s4557 + $0x8] sm:$0xf]
    %v4561 = vld [vmem:[%s4557 + $0xc] sm:$0xf]
    %v4562 = vld [vmem:[%s8 + $0x1] sm:$0x1]
    %v4563 = vlaneseq
    %v4564 = vshrl.u32 %v4563, 7
    %v4565 = vsub.s32 0, %v4564
    %v4566 = vrot.slane %v4562, %v4565
    %v4571 = vunpack.c.l.b16 %v4558
    %v4572 = vunpack.c.l.b16 %v4559
    %v4573 = vunpack.c.l.b16 %v4560
    %v4574 = vunpack.c.l.b16 %v4561
    %v4575 = vpack.c.b16 %v4572, %v4571
    %v4576 = vpack.c.b16 %v4574, %v4573
    %4579 = vmatprep.subr.bf16.mxu0 0
    %4580 = vmatpush1.bf16.msra.mxu0 %v4575
    %4581 = vmatprep.subr.bf16.mxu0 0
    %4582 = vmatpush1.bf16.msra.mxu0 %v4576
    %4583 = vmatprep.subr.bf16.mxu0 0
    %4584 = vmatpush1.bf16.msra.mxu0 0
    %4585 = vmatprep.subr.bf16.mxu0 0
    %4586 = vmatpush1.bf16.msra.mxu0 0
    %4587 = vmatprep.subr.bf16.mxu0 0
    %4588 = vmatpush1.bf16.msra.mxu0 0
    %4589 = vmatprep.subr.bf16.mxu0 0
    %4590 = vmatpush1.bf16.msra.mxu0 0
    %4591 = vmatprep.subr.bf16.mxu0 0
    %4592 = vmatpush1.bf16.msra.mxu0 0
    %4593 = vmatprep.subr.bf16.mxu0 0
    %4594 = vmatpush1.bf16.msra.mxu0 0
    %4595 = vmatprep.subr.bf16.mxu0 0
    %4596 = vmatpush1.bf16.msra.mxu0 0
    %4597 = vmatprep.subr.bf16.mxu0 0
    %4598 = vmatpush1.bf16.msra.mxu0 0
    %4599 = vmatprep.subr.bf16.mxu0 0
    %4600 = vmatpush1.bf16.msra.mxu0 0
    %4601 = vmatprep.subr.bf16.mxu0 0
    %4602 = vmatpush1.bf16.msra.mxu0 0
    %4603 = vmatprep.subr.bf16.mxu0 0
    %4604 = vmatpush1.bf16.msra.mxu0 0
    %4605 = vmatprep.subr.bf16.mxu0 0
    %4606 = vmatpush1.bf16.msra.mxu0 0
    %4607 = vmatprep.subr.bf16.mxu0 0
    %4608 = vmatpush1.bf16.msra.mxu0 0
    %4609 = vmatprep.subr.bf16.mxu0 0
    %4610 = vmatpush1.bf16.msra.mxu0 0
    %4611 = vmatprep.mubr.bf16.mxu0 0
    %4612 = vmatmul.mubr.bf16.gmra.mrb[0].mxu0 %v4394
    %v4613 = vpop.f32.mrb[0].mxu0
    %v4614 = vadd.f32 %v4566, %v4613
    %v4615 = vpop.f32.mrb[0].mxu0
    %v4616 = vpop.f32.mrb[0].mxu0
    %v4617 = vadd.f32 %v4566, %v4616
    %v4618 = vpop.f32.mrb[0].mxu0
    %4619 = vmatprep.mubr.bf16.mxu0 0
    %4620 = vmatmul.mubr.bf16.gmra.mrb[0].mxu0 %v4397
    %v4621 = vpop.f32.mrb[0].mxu0
    %v4622 = vadd.f32 %v4566, %v4621
    %v4623 = vpop.f32.mrb[0].mxu0
    %v4624 = vpop.f32.mrb[0].mxu0
    %v4625 = vadd.f32 %v4566, %v4624
    %v4626 = vpop.f32.mrb[0].mxu0
    %4627 = vmatprep.mubr.bf16.mxu0 0
    %4628 = vmatmul.mubr.bf16.gmra.mrb[0].mxu0 %v4400
    %v4629 = vpop.f32.mrb[0].mxu0
    %v4630 = vadd.f32 %v4566, %v4629
    %v4631 = vpop.f32.mrb[0].mxu0
    %v4632 = vpop.f32.mrb[0].mxu0
    %v4633 = vadd.f32 %v4566, %v4632
    %v4634 = vpop.f32.mrb[0].mxu0
    %4635 = vmatprep.mubr.bf16.mxu0 0
    %4636 = vmatmul.mubr.bf16.gmra.mrb[0].mxu0 %v4403
    %v4637 = vpop.f32.mrb[0].mxu0
    %v4638 = vadd.f32 %v4566, %v4637
    %v4639 = vpop.f32.mrb[0].mxu0
    %v4640 = vpop.f32.mrb[0].mxu0
    %v4641 = vadd.f32 %v4566, %v4640
    %v4642 = vpop.f32.mrb[0].mxu0
    %4643 = vdwg.mxu0
    %v4644 = vpack.c.bf16 %v4530, %v4527
    %v4645 = vpack.c.bf16 %v4538, %v4535
    %v4646 = vpack.c.bf16 %v4546, %v4543
    %v4647 = vpack.c.bf16 %v4554, %v4551
    %v4652 = vunpack.c.l.b16 %v4644
    %v4653 = vunpack.c.h.b16 %v4644
    %v4654 = vunpack.c.l.b16 %v4645
    %v4655 = vunpack.c.h.b16 %v4645
    %v4656 = vunpack.c.l.b16 %v4646
    %v4657 = vunpack.c.h.b16 %v4646
    %v4658 = vunpack.c.l.b16 %v4647
    %v4659 = vunpack.c.h.b16 %v4647
    %v4660 = vpack.c.b16 %v4652, %v4652
    %v4661 = vpack.c.b16 %v4653, %v4653
    %v4662 = vpack.c.b16 %v4654, %v4654
    %v4663 = vpack.c.b16 %v4655, %v4655
    %v4664 = vpack.c.b16 %v4656, %v4656
    %v4665 = vpack.c.b16 %v4657, %v4657
    %v4666 = vpack.c.b16 %v4658, %v4658
    %v4667 = vpack.c.b16 %v4659, %v4659
    %v4676 = vpack.c.bf16 %v4617, %v4614
    %v4677 = vpack.c.bf16 %v4625, %v4622
    %v4678 = vpack.c.bf16 %v4633, %v4630
    %v4679 = vpack.c.bf16 %v4641, %v4638
    %v4684 = vunpack.c.l.b16 %v4676
    %v4685 = vunpack.c.h.b16 %v4676
    %v4686 = vunpack.c.l.b16 %v4677
    %v4687 = vunpack.c.h.b16 %v4677
    %v4688 = vunpack.c.l.b16 %v4678
    %v4689 = vunpack.c.h.b16 %v4678
    %v4690 = vunpack.c.l.b16 %v4679
    %v4691 = vunpack.c.h.b16 %v4679
    %v4692 = vpack.c.b16 %v4684, %v4684
    %v4693 = vpack.c.b16 %v4685, %v4685
    %v4694 = vpack.c.b16 %v4686, %v4686
    %v4695 = vpack.c.b16 %v4687, %v4687
    %v4696 = vpack.c.b16 %v4688, %v4688
    %v4697 = vpack.c.b16 %v4689, %v4689
    %v4698 = vpack.c.b16 %v4690, %v4690
    %v4699 = vpack.c.b16 %v4691, %v4691
    %v4708 = vmul.bf16 %v4660, %v79
    %v4709 = vmul.bf16 %v4660, %v80
    %v4710 = vmul.bf16 %v4660, %v81
    %v4711 = vmul.bf16 %v4660, %v82
    %v4712 = vmul.bf16 %v4661, %v79
    %v4713 = vmul.bf16 %v4661, %v80
    %v4714 = vmul.bf16 %v4661, %v81
    %v4715 = vmul.bf16 %v4661, %v82
    %v4716 = vmul.bf16 %v4662, %v79
    %v4717 = vmul.bf16 %v4662, %v80
    %v4718 = vmul.bf16 %v4662, %v81
    %v4719 = vmul.bf16 %v4662, %v82
    %v4720 = vmul.bf16 %v4663, %v79
    %v4721 = vmul.bf16 %v4663, %v80
    %v4722 = vmul.bf16 %v4663, %v81
    %v4723 = vmul.bf16 %v4663, %v82
    %v4724 = vmul.bf16 %v4664, %v79
    %v4725 = vmul.bf16 %v4664, %v80
    %v4726 = vmul.bf16 %v4664, %v81
    %v4727 = vmul.bf16 %v4664, %v82
    %v4728 = vmul.bf16 %v4665, %v79
    %v4729 = vmul.bf16 %v4665, %v80
    %v4730 = vmul.bf16 %v4665, %v81
    %v4731 = vmul.bf16 %v4665, %v82
    %v4732 = vmul.bf16 %v4666, %v79
    %v4733 = vmul.bf16 %v4666, %v80
    %v4734 = vmul.bf16 %v4666, %v81
    %v4735 = vmul.bf16 %v4666, %v82
    %v4736 = vmul.bf16 %v4667, %v79
    %v4737 = vmul.bf16 %v4667, %v80
    %v4738 = vmul.bf16 %v4667, %v81
    %v4739 = vmul.bf16 %v4667, %v82
    %v4740 = vmul.bf16 %v4692, %v79
    %v4741 = vmul.bf16 %v4692, %v80
    %v4742 = vmul.bf16 %v4692, %v81
    %v4743 = vmul.bf16 %v4692, %v82
    %v4744 = vmul.bf16 %v4693, %v79
    %v4745 = vmul.bf16 %v4693, %v80
    %v4746 = vmul.bf16 %v4693, %v81
    %v4747 = vmul.bf16 %v4693, %v82
    %v4748 = vmul.bf16 %v4694, %v79
    %v4749 = vmul.bf16 %v4694, %v80
    %v4750 = vmul.bf16 %v4694, %v81
    %v4751 = vmul.bf16 %v4694, %v82
    %v4752 = vmul.bf16 %v4695, %v79
    %v4753 = vmul.bf16 %v4695, %v80
    %v4754 = vmul.bf16 %v4695, %v81
    %v4755 = vmul.bf16 %v4695, %v82
    %v4756 = vmul.bf16 %v4696, %v79
    %v4757 = vmul.bf16 %v4696, %v80
    %v4758 = vmul.bf16 %v4696, %v81
    %v4759 = vmul.bf16 %v4696, %v82
    %v4760 = vmul.bf16 %v4697, %v79
    %v4761 = vmul.bf16 %v4697, %v80
    %v4762 = vmul.bf16 %v4697, %v81
    %v4763 = vmul.bf16 %v4697, %v82
    %v4764 = vmul.bf16 %v4698, %v79
    %v4765 = vmul.bf16 %v4698, %v80
    %v4766 = vmul.bf16 %v4698, %v81
    %v4767 = vmul.bf16 %v4698, %v82
    %v4768 = vmul.bf16 %v4699, %v79
    %v4769 = vmul.bf16 %v4699, %v80
    %v4770 = vmul.bf16 %v4699, %v81
    %v4771 = vmul.bf16 %v4699, %v82
    %v4772 = vpack.c.bf16 %v4443, %v4440
    %v4773 = vpack.c.bf16 %v4451, %v4448
    %v4774 = vpack.c.bf16 %v4459, %v4456
    %v4775 = vpack.c.bf16 %v4467, %v4464
    %v4808 = vunpack.c.l.b16 %v4708
    %v4809 = vunpack.c.l.b16 %v4709
    %v4810 = vunpack.c.l.b16 %v4710
    %v4811 = vunpack.c.l.b16 %v4711
    %v4812 = vunpack.c.l.b16 %v4712
    %v4813 = vunpack.c.l.b16 %v4713
    %v4814 = vunpack.c.l.b16 %v4714
    %v4815 = vunpack.c.l.b16 %v4715
    %v4816 = vunpack.c.l.b16 %v4716
    %v4817 = vunpack.c.l.b16 %v4717
    %v4818 = vunpack.c.l.b16 %v4718
    %v4819 = vunpack.c.l.b16 %v4719
    %v4820 = vunpack.c.l.b16 %v4720
    %v4821 = vunpack.c.l.b16 %v4721
    %v4822 = vunpack.c.l.b16 %v4722
    %v4823 = vunpack.c.l.b16 %v4723
    %v4824 = vunpack.c.l.b16 %v4724
    %v4825 = vunpack.c.l.b16 %v4725
    %v4826 = vunpack.c.l.b16 %v4726
    %v4827 = vunpack.c.l.b16 %v4727
    %v4828 = vunpack.c.l.b16 %v4728
    %v4829 = vunpack.c.l.b16 %v4729
    %v4830 = vunpack.c.l.b16 %v4730
    %v4831 = vunpack.c.l.b16 %v4731
    %v4832 = vunpack.c.l.b16 %v4732
    %v4833 = vunpack.c.l.b16 %v4733
    %v4834 = vunpack.c.l.b16 %v4734
    %v4835 = vunpack.c.l.b16 %v4735
    %v4836 = vunpack.c.l.b16 %v4736
    %v4837 = vunpack.c.l.b16 %v4737
    %v4838 = vunpack.c.l.b16 %v4738
    %v4839 = vunpack.c.l.b16 %v4739
    %v4840 = vpack.c.b16 %v4809, %v4808
    %v4841 = vpack.c.b16 %v4811, %v4810
    %v4842 = vpack.c.b16 %v4813, %v4812
    %v4843 = vpack.c.b16 %v4815, %v4814
    %v4844 = vpack.c.b16 %v4817, %v4816
    %v4845 = vpack.c.b16 %v4819, %v4818
    %v4846 = vpack.c.b16 %v4821, %v4820
    %v4847 = vpack.c.b16 %v4823, %v4822
    %v4848 = vpack.c.b16 %v4825, %v4824
    %v4849 = vpack.c.b16 %v4827, %v4826
    %v4850 = vpack.c.b16 %v4829, %v4828
    %v4851 = vpack.c.b16 %v4831, %v4830
    %v4852 = vpack.c.b16 %v4833, %v4832
    %v4853 = vpack.c.b16 %v4835, %v4834
    %v4854 = vpack.c.b16 %v4837, %v4836
    %v4855 = vpack.c.b16 %v4839, %v4838
    %v4857 = vsel %vm261, %v4772, 0
    %v4860 = vsel %vm261, %v4773, 0
    %v4863 = vsel %vm261, %v4774, 0
    %v4866 = vsel %vm261, %v4775, 0
    %v4869 = vsel %vm261, %v4840, 0
    %v4872 = vsel %vm261, %v4841, 0
    %v4875 = vsel %vm261, %v4842, 0
    %v4878 = vsel %vm261, %v4843, 0
    %v4881 = vsel %vm261, %v4844, 0
    %v4884 = vsel %vm261, %v4845, 0
    %v4887 = vsel %vm261, %v4846, 0
    %v4890 = vsel %vm261, %v4847, 0
    %v4893 = vsel %vm261, %v4848, 0
    %v4896 = vsel %vm261, %v4849, 0
    %v4899 = vsel %vm261, %v4850, 0
    %v4902 = vsel %vm261, %v4851, 0
    %v4905 = vsel %vm261, %v4852, 0
    %v4908 = vsel %vm261, %v4853, 0
    %v4911 = vsel %vm261, %v4854, 0
    %v4914 = vsel %vm261, %v4855, 0
    %4916 = vmatprep.subr.bf16.mxu0 0
    %4917 = vmatpush1.bf16.xpose.msra.mxu0 %v4869
    %4918 = vmatprep.subr.bf16.mxu0 0
    %4919 = vmatpush1.bf16.xpose.msra.mxu0 %v4872
    %4920 = vmatprep.subr.bf16.mxu0 0
    %4921 = vmatpush1.bf16.xpose.msra.mxu0 %v4875
    %4922 = vmatprep.subr.bf16.mxu0 0
    %4923 = vmatpush1.bf16.xpose.msra.mxu0 %v4878
    %4924 = vmatprep.subr.bf16.mxu0 0
    %4925 = vmatpush1.bf16.xpose.msra.mxu0 %v4881
    %4926 = vmatprep.subr.bf16.mxu0 0
    %4927 = vmatpush1.bf16.xpose.msra.mxu0 %v4884
    %4928 = vmatprep.subr.bf16.mxu0 0
    %4929 = vmatpush1.bf16.xpose.msra.mxu0 %v4887
    %4930 = vmatprep.subr.bf16.mxu0 0
    %4931 = vmatpush1.bf16.xpose.msra.mxu0 %v4890
    %4932 = vmatprep.subr.bf16.mxu0 0
    %4933 = vmatpush1.bf16.xpose.msra.mxu0 %v4893
    %4934 = vmatprep.subr.bf16.mxu0 0
    %4935 = vmatpush1.bf16.xpose.msra.mxu0 %v4896
    %4936 = vmatprep.subr.bf16.mxu0 0
    %4937 = vmatpush1.bf16.xpose.msra.mxu0 %v4899
    %4938 = vmatprep.subr.bf16.mxu0 0
    %4939 = vmatpush1.bf16.xpose.msra.mxu0 %v4902
    %4940 = vmatprep.subr.bf16.mxu0 0
    %4941 = vmatpush1.bf16.xpose.msra.mxu0 %v4905
    %4942 = vmatprep.subr.bf16.mxu0 0
    %4943 = vmatpush1.bf16.xpose.msra.mxu0 %v4908
    %4944 = vmatprep.subr.bf16.mxu0 0
    %4945 = vmatpush1.bf16.xpose.msra.mxu0 %v4911
    %4946 = vmatprep.subr.bf16.mxu0 0
    %4947 = vmatpush1.bf16.xpose.msra.mxu0 %v4914
    %4948 = vmatprep.mubr.bf16.mxu0 0
    %4949 = vmatmul.mubr.bf16.gmra.mrb[0].mxu0 %v4857
    %v4950 = vpop.f32.mrb[0].mxu0
    %v4951 = vadd.f32 %v115, %v4950
    %v4952 = vpop.f32.mrb[0].mxu0
    %v4953 = vadd.f32 %v116, %v4952
    %v4954 = vpop.f32.mrb[0].mxu0
    %v4955 = vadd.f32 %v117, %v4954
    %v4956 = vpop.f32.mrb[0].mxu0
    %v4957 = vadd.f32 %v118, %v4956
    %4958 = vmatprep.mubr.bf16.mxu0 0
    %4959 = vmatmul.mubr.bf16.gmra.mrb[0].mxu0 %v4860
    %v4960 = vpop.f32.mrb[0].mxu0
    %v4961 = vadd.f32 %v119, %v4960
    %v4962 = vpop.f32.mrb[0].mxu0
    %v4963 = vadd.f32 %v120, %v4962
    %v4964 = vpop.f32.mrb[0].mxu0
    %v4965 = vadd.f32 %v121, %v4964
    %v4966 = vpop.f32.mrb[0].mxu0
    %v4967 = vadd.f32 %v122, %v4966
    %4968 = vmatprep.mubr.bf16.mxu0 0
    %4969 = vmatmul.mubr.bf16.gmra.mrb[0].mxu0 %v4863
    %v4970 = vpop.f32.mrb[0].mxu0
    %v4971 = vadd.f32 %v123, %v4970
    %v4972 = vpop.f32.mrb[0].mxu0
    %v4973 = vadd.f32 %v124, %v4972
    %v4974 = vpop.f32.mrb[0].mxu0
    %v4975 = vadd.f32 %v125, %v4974
    %v4976 = vpop.f32.mrb[0].mxu0
    %v4977 = vadd.f32 %v126, %v4976
    %4978 = vmatprep.mubr.bf16.mxu0 0
    %4979 = vmatmul.mubr.bf16.gmra.mrb[0].mxu0 %v4866
    %v4980 = vpop.f32.mrb[0].mxu0
    %v4981 = vadd.f32 %v127, %v4980
    %v4982 = vpop.f32.mrb[0].mxu0
    %v4983 = vadd.f32 %v128, %v4982
    %v4984 = vpop.f32.mrb[0].mxu0
    %v4985 = vadd.f32 %v129, %v4984
    %v4986 = vpop.f32.mrb[0].mxu0
    %v4987 = vadd.f32 %v130, %v4986
    %4988 = vdwg.mxu0
    %v4989 = vmax.f32 %v4951, %v4953
    %4990 = vmax.xlane.f32.xlu0 %v4989
    %v4991 = vpop.xlane.xlu0 %4990
    %v4992 = vmax.f32 %v4955, %v4957
    %4993 = vmax.xlane.f32.xlu0 %v4992
    %v4994 = vpop.xlane.xlu0 %4993
    %v4995 = vmax.f32 %v4961, %v4963
    %4996 = vmax.xlane.f32.xlu0 %v4995
    %v4997 = vpop.xlane.xlu0 %4996
    %v4998 = vmax.f32 %v4965, %v4967
    %4999 = vmax.xlane.f32.xlu0 %v4998
    %v5000 = vpop.xlane.xlu0 %4999
    %v5001 = vmax.f32 %v4971, %v4973
    %5002 = vmax.xlane.f32.xlu0 %v5001
    %v5003 = vpop.xlane.xlu0 %5002
    %v5004 = vmax.f32 %v4975, %v4977
    %5005 = vmax.xlane.f32.xlu0 %v5004
    %v5006 = vpop.xlane.xlu0 %5005
    %v5007 = vmax.f32 %v4981, %v4983
    %5008 = vmax.xlane.f32.xlu0 %v5007
    %v5009 = vpop.xlane.xlu0 %5008
    %v5010 = vmax.f32 %v4985, %v4987
    %5011 = vmax.xlane.f32.xlu0 %v5010
    %v5012 = vpop.xlane.xlu0 %5011
    %v5013 = vsub.f32 %v4951, %v4991
    %v5014 = vsub.f32 %v4953, %v4991
    %v5015 = vsub.f32 %v4955, %v4994
    %v5016 = vsub.f32 %v4957, %v4994
    %v5017 = vsub.f32 %v4961, %v4997
    %v5018 = vsub.f32 %v4963, %v4997
    %v5019 = vsub.f32 %v4965, %v5000
    %v5020 = vsub.f32 %v4967, %v5000
    %v5021 = vsub.f32 %v4971, %v5003
    %v5022 = vsub.f32 %v4973, %v5003
    %v5023 = vsub.f32 %v4975, %v5006
    %v5024 = vsub.f32 %v4977, %v5006
    %v5025 = vsub.f32 %v4981, %v5009
    %v5026 = vsub.f32 %v4983, %v5009
    %v5027 = vsub.f32 %v4985, %v5012
    %v5028 = vsub.f32 %v4987, %v5012
    %v5029 = vmul.f32 %v5013, 1.442695
    %v5030 = vpow.pop %v5029
    %v5031 = vmul.f32 %v5014, 1.442695
    %v5032 = vpow.pop %v5031
    %v5033 = vmul.f32 %v5015, 1.442695
    %v5034 = vpow.pop %v5033
    %v5035 = vmul.f32 %v5016, 1.442695
    %v5036 = vpow.pop %v5035
    %v5037 = vmul.f32 %v5017, 1.442695
    %v5038 = vpow.pop %v5037
    %v5039 = vmul.f32 %v5018, 1.442695
    %v5040 = vpow.pop %v5039
    %v5041 = vmul.f32 %v5019, 1.442695
    %v5042 = vpow.pop %v5041
    %v5043 = vmul.f32 %v5020, 1.442695
    %v5044 = vpow.pop %v5043
    %v5045 = vmul.f32 %v5021, 1.442695
    %v5046 = vpow.pop %v5045
    %v5047 = vmul.f32 %v5022, 1.442695
    %v5048 = vpow.pop %v5047
    %v5049 = vmul.f32 %v5023, 1.442695
    %v5050 = vpow.pop %v5049
    %v5051 = vmul.f32 %v5024, 1.442695
    %v5052 = vpow.pop %v5051
    %v5053 = vmul.f32 %v5025, 1.442695
    %v5054 = vpow.pop %v5053
    %v5055 = vmul.f32 %v5026, 1.442695
    %v5056 = vpow.pop %v5055
    %v5057 = vmul.f32 %v5027, 1.442695
    %v5058 = vpow.pop %v5057
    %v5059 = vmul.f32 %v5028, 1.442695
    %v5060 = vpow.pop %v5059
    %v5061 = vpack.c.bf16 %v5034, %v5030
    %v5062 = vpack.c.bf16 %v5036, %v5032
    %v5063 = vpack.c.bf16 %v5042, %v5038
    %v5064 = vpack.c.bf16 %v5044, %v5040
    %v5065 = vpack.c.bf16 %v5050, %v5046
    %v5066 = vpack.c.bf16 %v5052, %v5048
    %v5067 = vpack.c.bf16 %v5058, %v5054
    %v5068 = vpack.c.bf16 %v5060, %v5056
    %5069 = vmatprep.subr.bf16.mxu0 %v1033
    %5070 = vmatpush1.bf16.msra.mxu0 %v1032
    %5071 = vmatprep.subr.bf16.mxu0 %v1035
    %5072 = vmatpush1.bf16.msra.mxu0 %v1034
    %5073 = vmatprep.subr.bf16.mxu0 %v1037
    %5074 = vmatpush1.bf16.msra.mxu0 %v1036
    %5075 = vmatprep.subr.bf16.mxu0 %v1039
    %5076 = vmatpush1.bf16.msra.mxu0 %v1038
    %5077 = vmatprep.subr.bf16.mxu0 %v1041
    %5078 = vmatpush1.bf16.msra.mxu0 %v1040
    %5079 = vmatprep.subr.bf16.mxu0 %v1043
    %5080 = vmatpush1.bf16.msra.mxu0 %v1042
    %5081 = vmatprep.subr.bf16.mxu0 %v1045
    %5082 = vmatpush1.bf16.msra.mxu0 %v1044
    %5083 = vmatprep.subr.bf16.mxu0 %v1047
    %5084 = vmatpush1.bf16.msra.mxu0 %v1046
    %5085 = vmatprep.subr.bf16.mxu0 %v1049
    %5086 = vmatpush1.bf16.msra.mxu0 %v1048
    %5087 = vmatprep.subr.bf16.mxu0 %v1051
    %5088 = vmatpush1.bf16.msra.mxu0 %v1050
    %5089 = vmatprep.subr.bf16.mxu0 %v1053
    %5090 = vmatpush1.bf16.msra.mxu0 %v1052
    %5091 = vmatprep.subr.bf16.mxu0 %v1055
    %5092 = vmatpush1.bf16.msra.mxu0 %v1054
    %5093 = vmatprep.subr.bf16.mxu0 %v1057
    %5094 = vmatpush1.bf16.msra.mxu0 %v1056
    %5095 = vmatprep.subr.bf16.mxu0 %v1059
    %5096 = vmatpush1.bf16.msra.mxu0 %v1058
    %5097 = vmatprep.subr.bf16.mxu0 %v1061
    %5098 = vmatpush1.bf16.msra.mxu0 %v1060
    %5099 = vmatprep.subr.bf16.mxu0 %v1063
    %5100 = vmatpush1.bf16.msra.mxu0 %v1062
    %5101 = vmatprep.mubr.bf16.mxu0 %v5062
    %5102 = vmatmul.mubr.bf16.gmra.mrb[0].mxu0 %v5061
    %v5103 = vpop.f32.mrb[0].mxu0
    %v5104 = vadd.f32 1e-20, %v5103
    %v5105 = vpop.f32.mrb[0].mxu0
    %v5106 = vadd.f32 1e-20, %v5105
    %v5107 = vpop.f32.mrb[0].mxu0
    %v5108 = vadd.f32 1e-20, %v5107
    %v5109 = vpop.f32.mrb[0].mxu0
    %v5110 = vadd.f32 1e-20, %v5109
    %5111 = vmatprep.mubr.bf16.mxu0 %v5064
    %5112 = vmatmul.mubr.bf16.gmra.mrb[0].mxu0 %v5063
    %v5113 = vpop.f32.mrb[0].mxu0
    %v5114 = vadd.f32 1e-20, %v5113
    %v5115 = vpop.f32.mrb[0].mxu0
    %v5116 = vadd.f32 1e-20, %v5115
    %v5117 = vpop.f32.mrb[0].mxu0
    %v5118 = vadd.f32 1e-20, %v5117
    %v5119 = vpop.f32.mrb[0].mxu0
    %v5120 = vadd.f32 1e-20, %v5119
    %5121 = vmatprep.mubr.bf16.mxu0 %v5066
    %5122 = vmatmul.mubr.bf16.gmra.mrb[0].mxu0 %v5065
    %v5123 = vpop.f32.mrb[0].mxu0
    %v5124 = vadd.f32 1e-20, %v5123
    %v5125 = vpop.f32.mrb[0].mxu0
    %v5126 = vadd.f32 1e-20, %v5125
    %v5127 = vpop.f32.mrb[0].mxu0
    %v5128 = vadd.f32 1e-20, %v5127
    %v5129 = vpop.f32.mrb[0].mxu0
    %v5130 = vadd.f32 1e-20, %v5129
    %5131 = vmatprep.mubr.bf16.mxu0 %v5068
    %5132 = vmatmul.mubr.bf16.gmra.mrb[0].mxu0 %v5067
    %v5133 = vpop.f32.mrb[0].mxu0
    %v5134 = vadd.f32 1e-20, %v5133
    %v5135 = vpop.f32.mrb[0].mxu0
    %v5136 = vadd.f32 1e-20, %v5135
    %v5137 = vpop.f32.mrb[0].mxu0
    %v5138 = vadd.f32 1e-20, %v5137
    %v5139 = vpop.f32.mrb[0].mxu0
    %v5140 = vadd.f32 1e-20, %v5139
    %5141 = vdwg.mxu0
    %v5142 = vrcp.pop %v5104
    %v5143 = vrcp.pop %v5106
    %v5144 = vrcp.pop %v5108
    %v5145 = vrcp.pop %v5110
    %v5146 = vrcp.pop %v5114
    %v5147 = vrcp.pop %v5116
    %v5148 = vrcp.pop %v5118
    %v5149 = vrcp.pop %v5120
    %v5150 = vrcp.pop %v5124
    %v5151 = vrcp.pop %v5126
    %v5152 = vrcp.pop %v5128
    %v5153 = vrcp.pop %v5130
    %v5154 = vrcp.pop %v5134
    %v5155 = vrcp.pop %v5136
    %v5156 = vrcp.pop %v5138
    %v5157 = vrcp.pop %v5140
    %v5158 = vmul.f32 %v5030, %v5142
    %v5159 = vmul.f32 %v5032, %v5143
    %v5160 = vmul.f32 %v5034, %v5144
    %v5161 = vmul.f32 %v5036, %v5145
    %v5162 = vmul.f32 %v5038, %v5146
    %v5163 = vmul.f32 %v5040, %v5147
    %v5164 = vmul.f32 %v5042, %v5148
    %v5165 = vmul.f32 %v5044, %v5149
    %v5166 = vmul.f32 %v5046, %v5150
    %v5167 = vmul.f32 %v5048, %v5151
    %v5168 = vmul.f32 %v5050, %v5152
    %v5169 = vmul.f32 %v5052, %v5153
    %v5170 = vmul.f32 %v5054, %v5154
    %v5171 = vmul.f32 %v5056, %v5155
    %v5172 = vmul.f32 %v5058, %v5156
    %v5173 = vmul.f32 %v5060, %v5157
    %v5174 = vpack.c.bf16 %v5160, %v5158
    %v5175 = vpack.c.bf16 %v5161, %v5159
    %v5176 = vpack.c.bf16 %v5164, %v5162
    %v5177 = vpack.c.bf16 %v5165, %v5163
    %v5178 = vpack.c.bf16 %v5168, %v5166
    %v5179 = vpack.c.bf16 %v5169, %v5167
    %v5180 = vpack.c.bf16 %v5172, %v5170
    %v5181 = vpack.c.bf16 %v5173, %v5171
    %v5214 = vunpack.c.l.b16 %v4740
    %v5215 = vunpack.c.l.b16 %v4741
    %v5216 = vunpack.c.l.b16 %v4742
    %v5217 = vunpack.c.l.b16 %v4743
    %v5218 = vunpack.c.l.b16 %v4744
    %v5219 = vunpack.c.l.b16 %v4745
    %v5220 = vunpack.c.l.b16 %v4746
    %v5221 = vunpack.c.l.b16 %v4747
    %v5222 = vunpack.c.l.b16 %v4748
    %v5223 = vunpack.c.l.b16 %v4749
    %v5224 = vunpack.c.l.b16 %v4750
    %v5225 = vunpack.c.l.b16 %v4751
    %v5226 = vunpack.c.l.b16 %v4752
    %v5227 = vunpack.c.l.b16 %v4753
    %v5228 = vunpack.c.l.b16 %v4754
    %v5229 = vunpack.c.l.b16 %v4755
    %v5230 = vunpack.c.l.b16 %v4756
    %v5231 = vunpack.c.l.b16 %v4757
    %v5232 = vunpack.c.l.b16 %v4758
    %v5233 = vunpack.c.l.b16 %v4759
    %v5234 = vunpack.c.l.b16 %v4760
    %v5235 = vunpack.c.l.b16 %v4761
    %v5236 = vunpack.c.l.b16 %v4762
    %v5237 = vunpack.c.l.b16 %v4763
    %v5238 = vunpack.c.l.b16 %v4764
    %v5239 = vunpack.c.l.b16 %v4765
    %v5240 = vunpack.c.l.b16 %v4766
    %v5241 = vunpack.c.l.b16 %v4767
    %v5242 = vunpack.c.l.b16 %v4768
    %v5243 = vunpack.c.l.b16 %v4769
    %v5244 = vunpack.c.l.b16 %v4770
    %v5245 = vunpack.c.l.b16 %v4771
    %v5246 = vpack.c.b16 %v5215, %v5214
    %v5247 = vpack.c.b16 %v5217, %v5216
    %v5248 = vpack.c.b16 %v5219, %v5218
    %v5249 = vpack.c.b16 %v5221, %v5220
    %v5250 = vpack.c.b16 %v5223, %v5222
    %v5251 = vpack.c.b16 %v5225, %v5224
    %v5252 = vpack.c.b16 %v5227, %v5226
    %v5253 = vpack.c.b16 %v5229, %v5228
    %v5254 = vpack.c.b16 %v5231, %v5230
    %v5255 = vpack.c.b16 %v5233, %v5232
    %v5256 = vpack.c.b16 %v5235, %v5234
    %v5257 = vpack.c.b16 %v5237, %v5236
    %v5258 = vpack.c.b16 %v5239, %v5238
    %v5259 = vpack.c.b16 %v5241, %v5240
    %v5260 = vpack.c.b16 %v5243, %v5242
    %v5261 = vpack.c.b16 %v5245, %v5244
    %5278 = vmatprep.subr.bf16.mxu0 0
    %5279 = vmatpush1.bf16.msra.mxu0 %v5246
    %5280 = vmatprep.subr.bf16.mxu0 0
    %5281 = vmatpush1.bf16.msra.mxu0 %v5247
    %5282 = vmatprep.subr.bf16.mxu0 0
    %5283 = vmatpush1.bf16.msra.mxu0 %v5248
    %5284 = vmatprep.subr.bf16.mxu0 0
    %5285 = vmatpush1.bf16.msra.mxu0 %v5249
    %5286 = vmatprep.subr.bf16.mxu0 0
    %5287 = vmatpush1.bf16.msra.mxu0 %v5250
    %5288 = vmatprep.subr.bf16.mxu0 0
    %5289 = vmatpush1.bf16.msra.mxu0 %v5251
    %5290 = vmatprep.subr.bf16.mxu0 0
    %5291 = vmatpush1.bf16.msra.mxu0 %v5252
    %5292 = vmatprep.subr.bf16.mxu0 0
    %5293 = vmatpush1.bf16.msra.mxu0 %v5253
    %5294 = vmatprep.subr.bf16.mxu0 0
    %5295 = vmatpush1.bf16.msra.mxu0 %v5254
    %5296 = vmatprep.subr.bf16.mxu0 0
    %5297 = vmatpush1.bf16.msra.mxu0 %v5255
    %5298 = vmatprep.subr.bf16.mxu0 0
    %5299 = vmatpush1.bf16.msra.mxu0 %v5256
    %5300 = vmatprep.subr.bf16.mxu0 0
    %5301 = vmatpush1.bf16.msra.mxu0 %v5257
    %5302 = vmatprep.subr.bf16.mxu0 0
    %5303 = vmatpush1.bf16.msra.mxu0 %v5258
    %5304 = vmatprep.subr.bf16.mxu0 0
    %5305 = vmatpush1.bf16.msra.mxu0 %v5259
    %5306 = vmatprep.subr.bf16.mxu0 0
    %5307 = vmatpush1.bf16.msra.mxu0 %v5260
    %5308 = vmatprep.subr.bf16.mxu0 0
    %5309 = vmatpush1.bf16.msra.mxu0 %v5261
    %5310 = vmatprep.mubr.bf16.mxu0 %v5175
    %5311 = vmatmul.mubr.bf16.gmra.mrb[0].mxu0 %v5174
    %v5312 = vpop.f32.mrb[0].mxu0
    %v5313 = vadd.f32 0.0, %v5312
    %v5314 = vpop.f32.mrb[0].mxu0
    %v5315 = vpop.f32.mrb[0].mxu0
    %v5316 = vadd.f32 0.0, %v5315
    %v5317 = vpop.f32.mrb[0].mxu0
    %5318 = vmatprep.mubr.bf16.mxu0 %v5177
    %5319 = vmatmul.mubr.bf16.gmra.mrb[0].mxu0 %v5176
    %v5320 = vpop.f32.mrb[0].mxu0
    %v5321 = vadd.f32 0.0, %v5320
    %v5322 = vpop.f32.mrb[0].mxu0
    %v5323 = vpop.f32.mrb[0].mxu0
    %v5324 = vadd.f32 0.0, %v5323
    %v5325 = vpop.f32.mrb[0].mxu0
    %5326 = vmatprep.mubr.bf16.mxu0 %v5179
    %5327 = vmatmul.mubr.bf16.gmra.mrb[0].mxu0 %v5178
    %v5328 = vpop.f32.mrb[0].mxu0
    %v5329 = vadd.f32 0.0, %v5328
    %v5330 = vpop.f32.mrb[0].mxu0
    %v5331 = vpop.f32.mrb[0].mxu0
    %v5332 = vadd.f32 0.0, %v5331
    %v5333 = vpop.f32.mrb[0].mxu0
    %5334 = vmatprep.mubr.bf16.mxu0 %v5181
    %5335 = vmatmul.mubr.bf16.gmra.mrb[0].mxu0 %v5180
    %v5336 = vpop.f32.mrb[0].mxu0
    %v5337 = vadd.f32 0.0, %v5336
    %v5338 = vpop.f32.mrb[0].mxu0
    %v5339 = vpop.f32.mrb[0].mxu0
    %v5340 = vadd.f32 0.0, %v5339
    %v5341 = vpop.f32.mrb[0].mxu0
    %5342 = vdwg.mxu0
    %v5343 = vpack.c.bf16 %v5316, %v5313
    %v5344 = vpack.c.bf16 %v5324, %v5321
    %v5345 = vpack.c.bf16 %v5332, %v5329
    %v5346 = vpack.c.bf16 %v5340, %v5337
    %s5347 = scalar_lea.vmem %s9, 16
    %v5348 = vld [vmem:[%s5347] sm:$0xf]
    %v5349 = vld [vmem:[%s5347 + $0x4] sm:$0xf]
    %v5350 = vld [vmem:[%s5347 + $0x8] sm:$0xf]
    %v5351 = vld [vmem:[%s5347 + $0xc] sm:$0xf]
    %v5352 = vld [vmem:[%s10 + $0x1] sm:$0x1]
    %v5353 = vlaneseq
    %v5354 = vshrl.u32 %v5353, 7
    %v5355 = vsub.s32 0, %v5354
    %v5356 = vrot.slane %v5352, %v5355
    %v5361 = vunpack.c.l.b16 %v5348
    %v5362 = vunpack.c.l.b16 %v5349
    %v5363 = vunpack.c.l.b16 %v5350
    %v5364 = vunpack.c.l.b16 %v5351
    %v5365 = vpack.c.b16 %v5362, %v5361
    %v5366 = vpack.c.b16 %v5364, %v5363
    %v5370 = vsel %vm261, %v5343, 0
    %v5373 = vsel %vm261, %v5344, 0
    %v5376 = vsel %vm261, %v5345, 0
    %v5379 = vsel %vm261, %v5346, 0
    %5381 = vmatprep.subr.bf16.mxu0 0
    %5382 = vmatpush1.bf16.msra.mxu0 %v5365
    %5383 = vmatprep.subr.bf16.mxu0 0
    %5384 = vmatpush1.bf16.msra.mxu0 %v5366
    %5385 = vmatprep.subr.bf16.mxu0 0
    %5386 = vmatpush1.bf16.msra.mxu0 0
    %5387 = vmatprep.subr.bf16.mxu0 0
    %5388 = vmatpush1.bf16.msra.mxu0 0
    %5389 = vmatprep.subr.bf16.mxu0 0
    %5390 = vmatpush1.bf16.msra.mxu0 0
    %5391 = vmatprep.subr.bf16.mxu0 0
    %5392 = vmatpush1.bf16.msra.mxu0 0
    %5393 = vmatprep.subr.bf16.mxu0 0
    %5394 = vmatpush1.bf16.msra.mxu0 0
    %5395 = vmatprep.subr.bf16.mxu0 0
    %5396 = vmatpush1.bf16.msra.mxu0 0
    %5397 = vmatprep.subr.bf16.mxu0 0
    %5398 = vmatpush1.bf16.msra.mxu0 0
    %5399 = vmatprep.subr.bf16.mxu0 0
    %5400 = vmatpush1.bf16.msra.mxu0 0
    %5401 = vmatprep.subr.bf16.mxu0 0
    %5402 = vmatpush1.bf16.msra.mxu0 0
    %5403 = vmatprep.subr.bf16.mxu0 0
    %5404 = vmatpush1.bf16.msra.mxu0 0
    %5405 = vmatprep.subr.bf16.mxu0 0
    %5406 = vmatpush1.bf16.msra.mxu0 0
    %5407 = vmatprep.subr.bf16.mxu0 0
    %5408 = vmatpush1.bf16.msra.mxu0 0
    %5409 = vmatprep.subr.bf16.mxu0 0
    %5410 = vmatpush1.bf16.msra.mxu0 0
    %5411 = vmatprep.subr.bf16.mxu0 0
    %5412 = vmatpush1.bf16.msra.mxu0 0
    %5413 = vmatprep.mubr.bf16.mxu0 0
    %5414 = vmatmul.mubr.bf16.gmra.mrb[0].mxu0 %v5370
    %v5415 = vpop.f32.mrb[0].mxu0
    %v5416 = vadd.f32 %v5356, %v5415
    %v5417 = vpop.f32.mrb[0].mxu0
    %v5418 = vpop.f32.mrb[0].mxu0
    %v5419 = vadd.f32 %v5356, %v5418
    %v5420 = vpop.f32.mrb[0].mxu0
    %5421 = vmatprep.mubr.bf16.mxu0 0
    %5422 = vmatmul.mubr.bf16.gmra.mrb[0].mxu0 %v5373
    %v5423 = vpop.f32.mrb[0].mxu0
    %v5424 = vadd.f32 %v5356, %v5423
    %v5425 = vpop.f32.mrb[0].mxu0
    %v5426 = vpop.f32.mrb[0].mxu0
    %v5427 = vadd.f32 %v5356, %v5426
    %v5428 = vpop.f32.mrb[0].mxu0
    %5429 = vmatprep.mubr.bf16.mxu0 0
    %5430 = vmatmul.mubr.bf16.gmra.mrb[0].mxu0 %v5376
    %v5431 = vpop.f32.mrb[0].mxu0
    %v5432 = vadd.f32 %v5356, %v5431
    %v5433 = vpop.f32.mrb[0].mxu0
    %v5434 = vpop.f32.mrb[0].mxu0
    %v5435 = vadd.f32 %v5356, %v5434
    %v5436 = vpop.f32.mrb[0].mxu0
    %5437 = vmatprep.mubr.bf16.mxu0 0
    %5438 = vmatmul.mubr.bf16.gmra.mrb[0].mxu0 %v5379
    %v5439 = vpop.f32.mrb[0].mxu0
    %v5440 = vadd.f32 %v5356, %v5439
    %v5441 = vpop.f32.mrb[0].mxu0
    %v5442 = vpop.f32.mrb[0].mxu0
    %v5443 = vadd.f32 %v5356, %v5442
    %v5444 = vpop.f32.mrb[0].mxu0
    %5445 = vdwg.mxu0
    %v5446 = vadd.f32 %v4359, %v5416
    %v5447 = vadd.f32 %v4360, %v5419
    %v5448 = vadd.f32 %v4361, %v5424
    %v5449 = vadd.f32 %v4362, %v5427
    %v5450 = vadd.f32 %v4363, %v5432
    %v5451 = vadd.f32 %v4364, %v5435
    %v5452 = vadd.f32 %v4365, %v5440
    %v5453 = vadd.f32 %v4366, %v5443
    %v5454 = vld [vmem:[%s15 + $0x1] sm:$0x1]
    %v5455 = vld [vmem:[%s16 + $0x1] sm:$0x1]
    %v5456 = vsel %vm261, %v5446, 0.0
    %5457 = vadd.xlane.f32.xlu0 %v5456
    %v5458 = vpop.xlane.xlu0 %5457
    %v5459 = vsel %vm261, %v5447, 0.0
    %5460 = vadd.xlane.f32.xlu0 %v5459
    %v5461 = vpop.xlane.xlu0 %5460
    %v5462 = vsel %vm261, %v5448, 0.0
    %5463 = vadd.xlane.f32.xlu0 %v5462
    %v5464 = vpop.xlane.xlu0 %5463
    %v5465 = vsel %vm261, %v5449, 0.0
    %5466 = vadd.xlane.f32.xlu0 %v5465
    %v5467 = vpop.xlane.xlu0 %5466
    %v5468 = vsel %vm261, %v5450, 0.0
    %5469 = vadd.xlane.f32.xlu0 %v5468
    %v5470 = vpop.xlane.xlu0 %5469
    %v5471 = vsel %vm261, %v5451, 0.0
    %5472 = vadd.xlane.f32.xlu0 %v5471
    %v5473 = vpop.xlane.xlu0 %5472
    %v5474 = vsel %vm261, %v5452, 0.0
    %5475 = vadd.xlane.f32.xlu0 %v5474
    %v5476 = vpop.xlane.xlu0 %5475
    %v5477 = vsel %vm261, %v5453, 0.0
    %5478 = vadd.xlane.f32.xlu0 %v5477
    %v5479 = vpop.xlane.xlu0 %5478
    %v5480 = vmul.f32 %v5458, %v1506
    %v5481 = vmul.f32 %v5461, %v1506
    %v5482 = vmul.f32 %v5464, %v1506
    %v5483 = vmul.f32 %v5467, %v1506
    %v5484 = vmul.f32 %v5470, %v1506
    %v5485 = vmul.f32 %v5473, %v1506
    %v5486 = vmul.f32 %v5476, %v1506
    %v5487 = vmul.f32 %v5479, %v1506
    %v5488 = vsub.f32 %v5446, %v5480
    %v5489 = vsub.f32 %v5447, %v5481
    %v5490 = vsub.f32 %v5448, %v5482
    %v5491 = vsub.f32 %v5449, %v5483
    %v5492 = vsub.f32 %v5450, %v5484
    %v5493 = vsub.f32 %v5451, %v5485
    %v5494 = vsub.f32 %v5452, %v5486
    %v5495 = vsub.f32 %v5453, %v5487
    %v5496 = vmul.f32 %v5488, %v5488
    %v5497 = vmul.f32 %v5489, %v5489
    %v5498 = vmul.f32 %v5490, %v5490
    %v5499 = vmul.f32 %v5491, %v5491
    %v5500 = vmul.f32 %v5492, %v5492
    %v5501 = vmul.f32 %v5493, %v5493
    %v5502 = vmul.f32 %v5494, %v5494
    %v5503 = vmul.f32 %v5495, %v5495
    %v5504 = vsel %vm261, %v5496, 0.0
    %5505 = vadd.xlane.f32.xlu0 %v5504
    %v5506 = vpop.xlane.xlu0 %5505
    %v5507 = vsel %vm261, %v5497, 0.0
    %5508 = vadd.xlane.f32.xlu0 %v5507
    %v5509 = vpop.xlane.xlu0 %5508
    %v5510 = vsel %vm261, %v5498, 0.0
    %5511 = vadd.xlane.f32.xlu0 %v5510
    %v5512 = vpop.xlane.xlu0 %5511
    %v5513 = vsel %vm261, %v5499, 0.0
    %5514 = vadd.xlane.f32.xlu0 %v5513
    %v5515 = vpop.xlane.xlu0 %5514
    %v5516 = vsel %vm261, %v5500, 0.0
    %5517 = vadd.xlane.f32.xlu0 %v5516
    %v5518 = vpop.xlane.xlu0 %5517
    %v5519 = vsel %vm261, %v5501, 0.0
    %5520 = vadd.xlane.f32.xlu0 %v5519
    %v5521 = vpop.xlane.xlu0 %5520
    %v5522 = vsel %vm261, %v5502, 0.0
    %5523 = vadd.xlane.f32.xlu0 %v5522
    %v5524 = vpop.xlane.xlu0 %5523
    %v5525 = vsel %vm261, %v5503, 0.0
    %5526 = vadd.xlane.f32.xlu0 %v5525
    %v5527 = vpop.xlane.xlu0 %5526
    %v5528 = vmul.f32 %v5506, %v1506
    %v5529 = vmul.f32 %v5509, %v1506
    %v5530 = vmul.f32 %v5512, %v1506
    %v5531 = vmul.f32 %v5515, %v1506
    %v5532 = vmul.f32 %v5518, %v1506
    %v5533 = vmul.f32 %v5521, %v1506
    %v5534 = vmul.f32 %v5524, %v1506
    %v5535 = vmul.f32 %v5527, %v1506
    %v5536 = vadd.f32 %v5528, 1e-05
    %v5537 = vadd.f32 %v5529, 1e-05
    %v5538 = vadd.f32 %v5530, 1e-05
    %v5539 = vadd.f32 %v5531, 1e-05
    %v5540 = vadd.f32 %v5532, 1e-05
    %v5541 = vadd.f32 %v5533, 1e-05
    %v5542 = vadd.f32 %v5534, 1e-05
    %v5543 = vadd.f32 %v5535, 1e-05
    %v5544 = vrsqrt.pop %v5536
    %v5545 = vrsqrt.pop %v5537
    %v5546 = vrsqrt.pop %v5538
    %v5547 = vrsqrt.pop %v5539
    %v5548 = vrsqrt.pop %v5540
    %v5549 = vrsqrt.pop %v5541
    %v5550 = vrsqrt.pop %v5542
    %v5551 = vrsqrt.pop %v5543
    %v5552 = vmul.f32 %v5488, %v5544
    %v5553 = vmul.f32 %v5489, %v5545
    %v5554 = vmul.f32 %v5490, %v5546
    %v5555 = vmul.f32 %v5491, %v5547
    %v5556 = vmul.f32 %v5492, %v5548
    %v5557 = vmul.f32 %v5493, %v5549
    %v5558 = vmul.f32 %v5494, %v5550
    %v5559 = vmul.f32 %v5495, %v5551
    %v5560 = vlaneseq
    %v5561 = vshrl.u32 %v5560, 7
    %v5562 = vsub.s32 0, %v5561
    %v5563 = vrot.slane %v5454, %v5562
    %v5564 = vmul.f32 %v5552, %v5563
    %v5565 = vmul.f32 %v5553, %v5563
    %v5566 = vmul.f32 %v5554, %v5563
    %v5567 = vmul.f32 %v5555, %v5563
    %v5568 = vmul.f32 %v5556, %v5563
    %v5569 = vmul.f32 %v5557, %v5563
    %v5570 = vmul.f32 %v5558, %v5563
    %v5571 = vmul.f32 %v5559, %v5563
    %v5572 = vlaneseq
    %v5573 = vshrl.u32 %v5572, 7
    %v5574 = vsub.s32 0, %v5573
    %v5575 = vrot.slane %v5455, %v5574
    %v5576 = vadd.f32 %v5564, %v5575
    %v5577 = vadd.f32 %v5565, %v5575
    %v5578 = vadd.f32 %v5566, %v5575
    %v5579 = vadd.f32 %v5567, %v5575
    %v5580 = vadd.f32 %v5568, %v5575
    %v5581 = vadd.f32 %v5569, %v5575
    %v5582 = vadd.f32 %v5570, %v5575
    %v5583 = vadd.f32 %v5571, %v5575
    %v5584 = vpack.c.bf16 %v5577, %v5576
    %v5585 = vpack.c.bf16 %v5579, %v5578
    %v5586 = vpack.c.bf16 %v5581, %v5580
    %v5587 = vpack.c.bf16 %v5583, %v5582
    %s5588 = scalar_lea.vmem %s11, 256
    %v5589 = vld [vmem:[%s5588] sm:$0xff]
    %v5590 = vld [vmem:[%s5588 + $0x8] sm:$0xff]
    %v5591 = vld [vmem:[%s5588 + $0x10] sm:$0xff]
    %v5592 = vld [vmem:[%s5588 + $0x18] sm:$0xff]
    %v5593 = vld [vmem:[%s5588 + $0x20] sm:$0xff]
    %v5594 = vld [vmem:[%s5588 + $0x28] sm:$0xff]
    %v5595 = vld [vmem:[%s5588 + $0x30] sm:$0xff]
    %v5596 = vld [vmem:[%s5588 + $0x38] sm:$0xff]
    %v5597 = vld [vmem:[%s5588 + $0x40] sm:$0xff]
    %v5598 = vld [vmem:[%s5588 + $0x48] sm:$0xff]
    %v5599 = vld [vmem:[%s5588 + $0x50] sm:$0xff]
    %v5600 = vld [vmem:[%s5588 + $0x58] sm:$0xff]
    %v5601 = vld [vmem:[%s5588 + $0x60] sm:$0xff]
    %v5602 = vld [vmem:[%s5588 + $0x68] sm:$0xff]
    %v5603 = vld [vmem:[%s5588 + $0x70] sm:$0xff]
    %v5604 = vld [vmem:[%s5588 + $0x78] sm:$0xff]
    %v5605 = vld [vmem:[%s5588 + $0x80] sm:$0xff]
    %v5606 = vld [vmem:[%s5588 + $0x88] sm:$0xff]
    %v5607 = vld [vmem:[%s5588 + $0x90] sm:$0xff]
    %v5608 = vld [vmem:[%s5588 + $0x98] sm:$0xff]
    %v5609 = vld [vmem:[%s5588 + $0xa0] sm:$0xff]
    %v5610 = vld [vmem:[%s5588 + $0xa8] sm:$0xff]
    %v5611 = vld [vmem:[%s5588 + $0xb0] sm:$0xff]
    %v5612 = vld [vmem:[%s5588 + $0xb8] sm:$0xff]
    %v5613 = vld [vmem:[%s5588 + $0xc0] sm:$0xff]
    %v5614 = vld [vmem:[%s5588 + $0xc8] sm:$0xff]
    %v5615 = vld [vmem:[%s5588 + $0xd0] sm:$0xff]
    %v5616 = vld [vmem:[%s5588 + $0xd8] sm:$0xff]
    %v5617 = vld [vmem:[%s5588 + $0xe0] sm:$0xff]
    %v5618 = vld [vmem:[%s5588 + $0xe8] sm:$0xff]
    %v5619 = vld [vmem:[%s5588 + $0xf0] sm:$0xff]
    %v5620 = vld [vmem:[%s5588 + $0xf8] sm:$0xff]
    %s5621 = scalar_lea.vmem %s12, 1
    %v5622 = vld [vmem:[%s5621] ss:$2 sm:$0xff]
    %s5623 = scalar_lea.vmem %s12, 17
    %v5624 = vld [vmem:[%s5623] ss:$2 sm:$0xff]
    %v5627 = vlaneseq
    %v5628 = vshrl.u32 %v5627, 7
    %v5629 = vsub.s32 0, %v5628
    %v5630 = vrot.slane %v5622, %v5629
    %v5631 = vlaneseq
    %v5632 = vshrl.u32 %v5631, 7
    %v5633 = vsub.s32 1, %v5632
    %v5634 = vrot.slane %v5622, %v5633
    %v5635 = vlaneseq
    %v5636 = vshrl.u32 %v5635, 7
    %v5637 = vsub.s32 2, %v5636
    %v5638 = vrot.slane %v5622, %v5637
    %v5639 = vlaneseq
    %v5640 = vshrl.u32 %v5639, 7
    %v5641 = vsub.s32 3, %v5640
    %v5642 = vrot.slane %v5622, %v5641
    %v5643 = vlaneseq
    %v5644 = vshrl.u32 %v5643, 7
    %v5645 = vsub.s32 4, %v5644
    %v5646 = vrot.slane %v5622, %v5645
    %v5647 = vlaneseq
    %v5648 = vshrl.u32 %v5647, 7
    %v5649 = vsub.s32 5, %v5648
    %v5650 = vrot.slane %v5622, %v5649
    %v5651 = vlaneseq
    %v5652 = vshrl.u32 %v5651, 7
    %v5653 = vsub.s32 6, %v5652
    %v5654 = vrot.slane %v5622, %v5653
    %v5655 = vlaneseq
    %v5656 = vshrl.u32 %v5655, 7
    %v5657 = vsub.s32 7, %v5656
    %v5658 = vrot.slane %v5622, %v5657
    %v5659 = vlaneseq
    %v5660 = vshrl.u32 %v5659, 7
    %v5661 = vsub.s32 0, %v5660
    %v5662 = vrot.slane %v5624, %v5661
    %v5663 = vlaneseq
    %v5664 = vshrl.u32 %v5663, 7
    %v5665 = vsub.s32 1, %v5664
    %v5666 = vrot.slane %v5624, %v5665
    %v5667 = vlaneseq
    %v5668 = vshrl.u32 %v5667, 7
    %v5669 = vsub.s32 2, %v5668
    %v5670 = vrot.slane %v5624, %v5669
    %v5671 = vlaneseq
    %v5672 = vshrl.u32 %v5671, 7
    %v5673 = vsub.s32 3, %v5672
    %v5674 = vrot.slane %v5624, %v5673
    %v5675 = vlaneseq
    %v5676 = vshrl.u32 %v5675, 7
    %v5677 = vsub.s32 4, %v5676
    %v5678 = vrot.slane %v5624, %v5677
    %v5679 = vlaneseq
    %v5680 = vshrl.u32 %v5679, 7
    %v5681 = vsub.s32 5, %v5680
    %v5682 = vrot.slane %v5624, %v5681
    %v5683 = vlaneseq
    %v5684 = vshrl.u32 %v5683, 7
    %v5685 = vsub.s32 6, %v5684
    %v5686 = vrot.slane %v5624, %v5685
    %v5687 = vlaneseq
    %v5688 = vshrl.u32 %v5687, 7
    %v5689 = vsub.s32 7, %v5688
    %v5690 = vrot.slane %v5624, %v5689
    %v5739 = vunpack.c.l.b16 %v5589
    %v5740 = vunpack.c.h.b16 %v5589
    %v5741 = vunpack.c.l.b16 %v5590
    %v5742 = vunpack.c.h.b16 %v5590
    %v5743 = vunpack.c.l.b16 %v5591
    %v5744 = vunpack.c.h.b16 %v5591
    %v5745 = vunpack.c.l.b16 %v5592
    %v5746 = vunpack.c.h.b16 %v5592
    %v5747 = vunpack.c.l.b16 %v5593
    %v5748 = vunpack.c.h.b16 %v5593
    %v5749 = vunpack.c.l.b16 %v5594
    %v5750 = vunpack.c.h.b16 %v5594
    %v5751 = vunpack.c.l.b16 %v5595
    %v5752 = vunpack.c.h.b16 %v5595
    %v5753 = vunpack.c.l.b16 %v5596
    %v5754 = vunpack.c.h.b16 %v5596
    %v5755 = vunpack.c.l.b16 %v5597
    %v5756 = vunpack.c.h.b16 %v5597
    %v5757 = vunpack.c.l.b16 %v5598
    %v5758 = vunpack.c.h.b16 %v5598
    %v5759 = vunpack.c.l.b16 %v5599
    %v5760 = vunpack.c.h.b16 %v5599
    %v5761 = vunpack.c.l.b16 %v5600
    %v5762 = vunpack.c.h.b16 %v5600
    %v5763 = vunpack.c.l.b16 %v5601
    %v5764 = vunpack.c.h.b16 %v5601
    %v5765 = vunpack.c.l.b16 %v5602
    %v5766 = vunpack.c.h.b16 %v5602
    %v5767 = vunpack.c.l.b16 %v5603
    %v5768 = vunpack.c.h.b16 %v5603
    %v5769 = vunpack.c.l.b16 %v5604
    %v5770 = vunpack.c.h.b16 %v5604
    %v5771 = vunpack.c.l.b16 %v5605
    %v5772 = vunpack.c.h.b16 %v5605
    %v5773 = vunpack.c.l.b16 %v5606
    %v5774 = vunpack.c.h.b16 %v5606
    %v5775 = vunpack.c.l.b16 %v5607
    %v5776 = vunpack.c.h.b16 %v5607
    %v5777 = vunpack.c.l.b16 %v5608
    %v5778 = vunpack.c.h.b16 %v5608
    %v5779 = vunpack.c.l.b16 %v5609
    %v5780 = vunpack.c.h.b16 %v5609
    %v5781 = vunpack.c.l.b16 %v5610
    %v5782 = vunpack.c.h.b16 %v5610
    %v5783 = vunpack.c.l.b16 %v5611
    %v5784 = vunpack.c.h.b16 %v5611
    %v5785 = vunpack.c.l.b16 %v5612
    %v5786 = vunpack.c.h.b16 %v5612
    %v5787 = vunpack.c.l.b16 %v5613
    %v5788 = vunpack.c.h.b16 %v5613
    %v5789 = vunpack.c.l.b16 %v5614
    %v5790 = vunpack.c.h.b16 %v5614
    %v5791 = vunpack.c.l.b16 %v5615
    %v5792 = vunpack.c.h.b16 %v5615
    %v5793 = vunpack.c.l.b16 %v5616
    %v5794 = vunpack.c.h.b16 %v5616
    %v5795 = vunpack.c.l.b16 %v5617
    %v5796 = vunpack.c.h.b16 %v5617
    %v5797 = vunpack.c.l.b16 %v5618
    %v5798 = vunpack.c.h.b16 %v5618
    %v5799 = vunpack.c.l.b16 %v5619
    %v5800 = vunpack.c.h.b16 %v5619
    %v5801 = vunpack.c.l.b16 %v5620
    %v5802 = vunpack.c.h.b16 %v5620
    %v5803 = vpack.c.b16 %v5755, %v5739
    %v5804 = vpack.c.b16 %v5756, %v5740
    %v5805 = vpack.c.b16 %v5757, %v5741
    %v5806 = vpack.c.b16 %v5758, %v5742
    %v5807 = vpack.c.b16 %v5759, %v5743
    %v5808 = vpack.c.b16 %v5760, %v5744
    %v5809 = vpack.c.b16 %v5761, %v5745
    %v5810 = vpack.c.b16 %v5762, %v5746
    %v5811 = vpack.c.b16 %v5763, %v5747
    %v5812 = vpack.c.b16 %v5764, %v5748
    %v5813 = vpack.c.b16 %v5765, %v5749
    %v5814 = vpack.c.b16 %v5766, %v5750
    %v5815 = vpack.c.b16 %v5767, %v5751
    %v5816 = vpack.c.b16 %v5768, %v5752
    %v5817 = vpack.c.b16 %v5769, %v5753
    %v5818 = vpack.c.b16 %v5770, %v5754
    %v5819 = vpack.c.b16 %v5787, %v5771
    %v5820 = vpack.c.b16 %v5788, %v5772
    %v5821 = vpack.c.b16 %v5789, %v5773
    %v5822 = vpack.c.b16 %v5790, %v5774
    %v5823 = vpack.c.b16 %v5791, %v5775
    %v5824 = vpack.c.b16 %v5792, %v5776
    %v5825 = vpack.c.b16 %v5793, %v5777
    %v5826 = vpack.c.b16 %v5794, %v5778
    %v5827 = vpack.c.b16 %v5795, %v5779
    %v5828 = vpack.c.b16 %v5796, %v5780
    %v5829 = vpack.c.b16 %v5797, %v5781
    %v5830 = vpack.c.b16 %v5798, %v5782
    %v5831 = vpack.c.b16 %v5799, %v5783
    %v5832 = vpack.c.b16 %v5800, %v5784
    %v5833 = vpack.c.b16 %v5801, %v5785
    %v5834 = vpack.c.b16 %v5802, %v5786
    %v5868 = vsel %vm261, %v5584, 0
    %v5871 = vsel %vm261, %v5585, 0
    %v5874 = vsel %vm261, %v5586, 0
    %v5877 = vsel %vm261, %v5587, 0
    %5879 = vmatprep.subr.bf16.mxu0 %v5804
    %5880 = vmatpush1.bf16.msra.mxu0 %v5803
    %5881 = vmatprep.subr.bf16.mxu0 %v5820
    %5882 = vmatpush1.bf16.msra.mxu0 %v5819
    %5883 = vmatprep.subr.bf16.mxu0 0
    %5884 = vmatpush1.bf16.msra.mxu0 0
    %5885 = vmatprep.subr.bf16.mxu0 0
    %5886 = vmatpush1.bf16.msra.mxu0 0
    %5887 = vmatprep.subr.bf16.mxu0 0
    %5888 = vmatpush1.bf16.msra.mxu0 0
    %5889 = vmatprep.subr.bf16.mxu0 0
    %5890 = vmatpush1.bf16.msra.mxu0 0
    %5891 = vmatprep.subr.bf16.mxu0 0
    %5892 = vmatpush1.bf16.msra.mxu0 0
    %5893 = vmatprep.subr.bf16.mxu0 0
    %5894 = vmatpush1.bf16.msra.mxu0 0
    %5895 = vmatprep.subr.bf16.mxu0 0
    %5896 = vmatpush1.bf16.msra.mxu0 0
    %5897 = vmatprep.subr.bf16.mxu0 0
    %5898 = vmatpush1.bf16.msra.mxu0 0
    %5899 = vmatprep.subr.bf16.mxu0 0
    %5900 = vmatpush1.bf16.msra.mxu0 0
    %5901 = vmatprep.subr.bf16.mxu0 0
    %5902 = vmatpush1.bf16.msra.mxu0 0
    %5903 = vmatprep.subr.bf16.mxu0 0
    %5904 = vmatpush1.bf16.msra.mxu0 0
    %5905 = vmatprep.subr.bf16.mxu0 0
    %5906 = vmatpush1.bf16.msra.mxu0 0
    %5907 = vmatprep.subr.bf16.mxu0 0
    %5908 = vmatpush1.bf16.msra.mxu0 0
    %5909 = vmatprep.subr.bf16.mxu0 0
    %5910 = vmatpush1.bf16.msra.mxu0 0
    %5911 = vmatprep.mubr.bf16.mxu0 0
    %5912 = vmatmul.mubr.bf16.gmra.mrb[0].mxu0 %v5868
    %v5913 = vpop.f32.mrb[0].mxu0
    %v5914 = vadd.f32 %v5630, %v5913
    %v5915 = vpop.f32.mrb[0].mxu0
    %v5916 = vadd.f32 %v5634, %v5915
    %v5917 = vpop.f32.mrb[0].mxu0
    %v5918 = vadd.f32 %v5630, %v5917
    %v5919 = vpop.f32.mrb[0].mxu0
    %v5920 = vadd.f32 %v5634, %v5919
    %5921 = vmatprep.mubr.bf16.mxu0 0
    %5922 = vmatmul.mubr.bf16.gmra.mrb[0].mxu0 %v5871
    %v5923 = vpop.f32.mrb[0].mxu0
    %v5924 = vadd.f32 %v5630, %v5923
    %v5925 = vpop.f32.mrb[0].mxu0
    %v5926 = vadd.f32 %v5634, %v5925
    %v5927 = vpop.f32.mrb[0].mxu0
    %v5928 = vadd.f32 %v5630, %v5927
    %v5929 = vpop.f32.mrb[0].mxu0
    %v5930 = vadd.f32 %v5634, %v5929
    %5931 = vmatprep.mubr.bf16.mxu0 0
    %5932 = vmatmul.mubr.bf16.gmra.mrb[0].mxu0 %v5874
    %v5933 = vpop.f32.mrb[0].mxu0
    %v5934 = vadd.f32 %v5630, %v5933
    %v5935 = vpop.f32.mrb[0].mxu0
    %v5936 = vadd.f32 %v5634, %v5935
    %v5937 = vpop.f32.mrb[0].mxu0
    %v5938 = vadd.f32 %v5630, %v5937
    %v5939 = vpop.f32.mrb[0].mxu0
    %v5940 = vadd.f32 %v5634, %v5939
    %5941 = vmatprep.mubr.bf16.mxu0 0
    %5942 = vmatmul.mubr.bf16.gmra.mrb[0].mxu0 %v5877
    %v5943 = vpop.f32.mrb[0].mxu0
    %v5944 = vadd.f32 %v5630, %v5943
    %v5945 = vpop.f32.mrb[0].mxu0
    %v5946 = vadd.f32 %v5634, %v5945
    %v5947 = vpop.f32.mrb[0].mxu0
    %v5948 = vadd.f32 %v5630, %v5947
    %v5949 = vpop.f32.mrb[0].mxu0
    %v5950 = vadd.f32 %v5634, %v5949
    %5951 = vdwg.mxu0
    %5952 = vmatprep.subr.bf16.mxu0 %v5806
    %5953 = vmatpush1.bf16.msra.mxu0 %v5805
    %5954 = vmatprep.subr.bf16.mxu0 %v5822
    %5955 = vmatpush1.bf16.msra.mxu0 %v5821
    %5956 = vmatprep.subr.bf16.mxu0 0
    %5957 = vmatpush1.bf16.msra.mxu0 0
    %5958 = vmatprep.subr.bf16.mxu0 0
    %5959 = vmatpush1.bf16.msra.mxu0 0
    %5960 = vmatprep.subr.bf16.mxu0 0
    %5961 = vmatpush1.bf16.msra.mxu0 0
    %5962 = vmatprep.subr.bf16.mxu0 0
    %5963 = vmatpush1.bf16.msra.mxu0 0
    %5964 = vmatprep.subr.bf16.mxu0 0
    %5965 = vmatpush1.bf16.msra.mxu0 0
    %5966 = vmatprep.subr.bf16.mxu0 0
    %5967 = vmatpush1.bf16.msra.mxu0 0
    %5968 = vmatprep.subr.bf16.mxu0 0
    %5969 = vmatpush1.bf16.msra.mxu0 0
    %5970 = vmatprep.subr.bf16.mxu0 0
    %5971 = vmatpush1.bf16.msra.mxu0 0
    %5972 = vmatprep.subr.bf16.mxu0 0
    %5973 = vmatpush1.bf16.msra.mxu0 0
    %5974 = vmatprep.subr.bf16.mxu0 0
    %5975 = vmatpush1.bf16.msra.mxu0 0
    %5976 = vmatprep.subr.bf16.mxu0 0
    %5977 = vmatpush1.bf16.msra.mxu0 0
    %5978 = vmatprep.subr.bf16.mxu0 0
    %5979 = vmatpush1.bf16.msra.mxu0 0
    %5980 = vmatprep.subr.bf16.mxu0 0
    %5981 = vmatpush1.bf16.msra.mxu0 0
    %5982 = vmatprep.subr.bf16.mxu0 0
    %5983 = vmatpush1.bf16.msra.mxu0 0
    %5984 = vmatprep.mubr.bf16.mxu0 0
    %5985 = vmatmul.mubr.bf16.gmra.mrb[0].mxu0 %v5868
    %v5986 = vpop.f32.mrb[0].mxu0
    %v5987 = vadd.f32 %v5638, %v5986
    %v5988 = vpop.f32.mrb[0].mxu0
    %v5989 = vadd.f32 %v5642, %v5988
    %v5990 = vpop.f32.mrb[0].mxu0
    %v5991 = vadd.f32 %v5638, %v5990
    %v5992 = vpop.f32.mrb[0].mxu0
    %v5993 = vadd.f32 %v5642, %v5992
    %5994 = vmatprep.mubr.bf16.mxu0 0
    %5995 = vmatmul.mubr.bf16.gmra.mrb[0].mxu0 %v5871
    %v5996 = vpop.f32.mrb[0].mxu0
    %v5997 = vadd.f32 %v5638, %v5996
    %v5998 = vpop.f32.mrb[0].mxu0
    %v5999 = vadd.f32 %v5642, %v5998
    %v6000 = vpop.f32.mrb[0].mxu0
    %v6001 = vadd.f32 %v5638, %v6000
    %v6002 = vpop.f32.mrb[0].mxu0
    %v6003 = vadd.f32 %v5642, %v6002
    %6004 = vmatprep.mubr.bf16.mxu0 0
    %6005 = vmatmul.mubr.bf16.gmra.mrb[0].mxu0 %v5874
    %v6006 = vpop.f32.mrb[0].mxu0
    %v6007 = vadd.f32 %v5638, %v6006
    %v6008 = vpop.f32.mrb[0].mxu0
    %v6009 = vadd.f32 %v5642, %v6008
    %v6010 = vpop.f32.mrb[0].mxu0
    %v6011 = vadd.f32 %v5638, %v6010
    %v6012 = vpop.f32.mrb[0].mxu0
    %v6013 = vadd.f32 %v5642, %v6012
    %6014 = vmatprep.mubr.bf16.mxu0 0
    %6015 = vmatmul.mubr.bf16.gmra.mrb[0].mxu0 %v5877
    %v6016 = vpop.f32.mrb[0].mxu0
    %v6017 = vadd.f32 %v5638, %v6016
    %v6018 = vpop.f32.mrb[0].mxu0
    %v6019 = vadd.f32 %v5642, %v6018
    %v6020 = vpop.f32.mrb[0].mxu0
    %v6021 = vadd.f32 %v5638, %v6020
    %v6022 = vpop.f32.mrb[0].mxu0
    %v6023 = vadd.f32 %v5642, %v6022
    %6024 = vdwg.mxu0
    %6025 = vmatprep.subr.bf16.mxu0 %v5808
    %6026 = vmatpush1.bf16.msra.mxu0 %v5807
    %6027 = vmatprep.subr.bf16.mxu0 %v5824
    %6028 = vmatpush1.bf16.msra.mxu0 %v5823
    %6029 = vmatprep.subr.bf16.mxu0 0
    %6030 = vmatpush1.bf16.msra.mxu0 0
    %6031 = vmatprep.subr.bf16.mxu0 0
    %6032 = vmatpush1.bf16.msra.mxu0 0
    %6033 = vmatprep.subr.bf16.mxu0 0
    %6034 = vmatpush1.bf16.msra.mxu0 0
    %6035 = vmatprep.subr.bf16.mxu0 0
    %6036 = vmatpush1.bf16.msra.mxu0 0
    %6037 = vmatprep.subr.bf16.mxu0 0
    %6038 = vmatpush1.bf16.msra.mxu0 0
    %6039 = vmatprep.subr.bf16.mxu0 0
    %6040 = vmatpush1.bf16.msra.mxu0 0
    %6041 = vmatprep.subr.bf16.mxu0 0
    %6042 = vmatpush1.bf16.msra.mxu0 0
    %6043 = vmatprep.subr.bf16.mxu0 0
    %6044 = vmatpush1.bf16.msra.mxu0 0
    %6045 = vmatprep.subr.bf16.mxu0 0
    %6046 = vmatpush1.bf16.msra.mxu0 0
    %6047 = vmatprep.subr.bf16.mxu0 0
    %6048 = vmatpush1.bf16.msra.mxu0 0
    %6049 = vmatprep.subr.bf16.mxu0 0
    %6050 = vmatpush1.bf16.msra.mxu0 0
    %6051 = vmatprep.subr.bf16.mxu0 0
    %6052 = vmatpush1.bf16.msra.mxu0 0
    %6053 = vmatprep.subr.bf16.mxu0 0
    %6054 = vmatpush1.bf16.msra.mxu0 0
    %6055 = vmatprep.subr.bf16.mxu0 0
    %6056 = vmatpush1.bf16.msra.mxu0 0
    %6057 = vmatprep.mubr.bf16.mxu0 0
    %6058 = vmatmul.mubr.bf16.gmra.mrb[0].mxu0 %v5868
    %v6059 = vpop.f32.mrb[0].mxu0
    %v6060 = vadd.f32 %v5646, %v6059
    %v6061 = vpop.f32.mrb[0].mxu0
    %v6062 = vadd.f32 %v5650, %v6061
    %v6063 = vpop.f32.mrb[0].mxu0
    %v6064 = vadd.f32 %v5646, %v6063
    %v6065 = vpop.f32.mrb[0].mxu0
    %v6066 = vadd.f32 %v5650, %v6065
    %6067 = vmatprep.mubr.bf16.mxu0 0
    %6068 = vmatmul.mubr.bf16.gmra.mrb[0].mxu0 %v5871
    %v6069 = vpop.f32.mrb[0].mxu0
    %v6070 = vadd.f32 %v5646, %v6069
    %v6071 = vpop.f32.mrb[0].mxu0
    %v6072 = vadd.f32 %v5650, %v6071
    %v6073 = vpop.f32.mrb[0].mxu0
    %v6074 = vadd.f32 %v5646, %v6073
    %v6075 = vpop.f32.mrb[0].mxu0
    %v6076 = vadd.f32 %v5650, %v6075
    %6077 = vmatprep.mubr.bf16.mxu0 0
    %6078 = vmatmul.mubr.bf16.gmra.mrb[0].mxu0 %v5874
    %v6079 = vpop.f32.mrb[0].mxu0
    %v6080 = vadd.f32 %v5646, %v6079
    %v6081 = vpop.f32.mrb[0].mxu0
    %v6082 = vadd.f32 %v5650, %v6081
    %v6083 = vpop.f32.mrb[0].mxu0
    %v6084 = vadd.f32 %v5646, %v6083
    %v6085 = vpop.f32.mrb[0].mxu0
    %v6086 = vadd.f32 %v5650, %v6085
    %6087 = vmatprep.mubr.bf16.mxu0 0
    %6088 = vmatmul.mubr.bf16.gmra.mrb[0].mxu0 %v5877
    %v6089 = vpop.f32.mrb[0].mxu0
    %v6090 = vadd.f32 %v5646, %v6089
    %v6091 = vpop.f32.mrb[0].mxu0
    %v6092 = vadd.f32 %v5650, %v6091
    %v6093 = vpop.f32.mrb[0].mxu0
    %v6094 = vadd.f32 %v5646, %v6093
    %v6095 = vpop.f32.mrb[0].mxu0
    %v6096 = vadd.f32 %v5650, %v6095
    %6097 = vdwg.mxu0
    %6098 = vmatprep.subr.bf16.mxu0 %v5810
    %6099 = vmatpush1.bf16.msra.mxu0 %v5809
    %6100 = vmatprep.subr.bf16.mxu0 %v5826
    %6101 = vmatpush1.bf16.msra.mxu0 %v5825
    %6102 = vmatprep.subr.bf16.mxu0 0
    %6103 = vmatpush1.bf16.msra.mxu0 0
    %6104 = vmatprep.subr.bf16.mxu0 0
    %6105 = vmatpush1.bf16.msra.mxu0 0
    %6106 = vmatprep.subr.bf16.mxu0 0
    %6107 = vmatpush1.bf16.msra.mxu0 0
    %6108 = vmatprep.subr.bf16.mxu0 0
    %6109 = vmatpush1.bf16.msra.mxu0 0
    %6110 = vmatprep.subr.bf16.mxu0 0
    %6111 = vmatpush1.bf16.msra.mxu0 0
    %6112 = vmatprep.subr.bf16.mxu0 0
    %6113 = vmatpush1.bf16.msra.mxu0 0
    %6114 = vmatprep.subr.bf16.mxu0 0
    %6115 = vmatpush1.bf16.msra.mxu0 0
    %6116 = vmatprep.subr.bf16.mxu0 0
    %6117 = vmatpush1.bf16.msra.mxu0 0
    %6118 = vmatprep.subr.bf16.mxu0 0
    %6119 = vmatpush1.bf16.msra.mxu0 0
    %6120 = vmatprep.subr.bf16.mxu0 0
    %6121 = vmatpush1.bf16.msra.mxu0 0
    %6122 = vmatprep.subr.bf16.mxu0 0
    %6123 = vmatpush1.bf16.msra.mxu0 0
    %6124 = vmatprep.subr.bf16.mxu0 0
    %6125 = vmatpush1.bf16.msra.mxu0 0
    %6126 = vmatprep.subr.bf16.mxu0 0
    %6127 = vmatpush1.bf16.msra.mxu0 0
    %6128 = vmatprep.subr.bf16.mxu0 0
    %6129 = vmatpush1.bf16.msra.mxu0 0
    %6130 = vmatprep.mubr.bf16.mxu0 0
    %6131 = vmatmul.mubr.bf16.gmra.mrb[0].mxu0 %v5868
    %v6132 = vpop.f32.mrb[0].mxu0
    %v6133 = vadd.f32 %v5654, %v6132
    %v6134 = vpop.f32.mrb[0].mxu0
    %v6135 = vadd.f32 %v5658, %v6134
    %v6136 = vpop.f32.mrb[0].mxu0
    %v6137 = vadd.f32 %v5654, %v6136
    %v6138 = vpop.f32.mrb[0].mxu0
    %v6139 = vadd.f32 %v5658, %v6138
    %6140 = vmatprep.mubr.bf16.mxu0 0
    %6141 = vmatmul.mubr.bf16.gmra.mrb[0].mxu0 %v5871
    %v6142 = vpop.f32.mrb[0].mxu0
    %v6143 = vadd.f32 %v5654, %v6142
    %v6144 = vpop.f32.mrb[0].mxu0
    %v6145 = vadd.f32 %v5658, %v6144
    %v6146 = vpop.f32.mrb[0].mxu0
    %v6147 = vadd.f32 %v5654, %v6146
    %v6148 = vpop.f32.mrb[0].mxu0
    %v6149 = vadd.f32 %v5658, %v6148
    %6150 = vmatprep.mubr.bf16.mxu0 0
    %6151 = vmatmul.mubr.bf16.gmra.mrb[0].mxu0 %v5874
    %v6152 = vpop.f32.mrb[0].mxu0
    %v6153 = vadd.f32 %v5654, %v6152
    %v6154 = vpop.f32.mrb[0].mxu0
    %v6155 = vadd.f32 %v5658, %v6154
    %v6156 = vpop.f32.mrb[0].mxu0
    %v6157 = vadd.f32 %v5654, %v6156
    %v6158 = vpop.f32.mrb[0].mxu0
    %v6159 = vadd.f32 %v5658, %v6158
    %6160 = vmatprep.mubr.bf16.mxu0 0
    %6161 = vmatmul.mubr.bf16.gmra.mrb[0].mxu0 %v5877
    %v6162 = vpop.f32.mrb[0].mxu0
    %v6163 = vadd.f32 %v5654, %v6162
    %v6164 = vpop.f32.mrb[0].mxu0
    %v6165 = vadd.f32 %v5658, %v6164
    %v6166 = vpop.f32.mrb[0].mxu0
    %v6167 = vadd.f32 %v5654, %v6166
    %v6168 = vpop.f32.mrb[0].mxu0
    %v6169 = vadd.f32 %v5658, %v6168
    %6170 = vdwg.mxu0
    %6171 = vmatprep.subr.bf16.mxu0 %v5812
    %6172 = vmatpush1.bf16.msra.mxu0 %v5811
    %6173 = vmatprep.subr.bf16.mxu0 %v5828
    %6174 = vmatpush1.bf16.msra.mxu0 %v5827
    %6175 = vmatprep.subr.bf16.mxu0 0
    %6176 = vmatpush1.bf16.msra.mxu0 0
    %6177 = vmatprep.subr.bf16.mxu0 0
    %6178 = vmatpush1.bf16.msra.mxu0 0
    %6179 = vmatprep.subr.bf16.mxu0 0
    %6180 = vmatpush1.bf16.msra.mxu0 0
    %6181 = vmatprep.subr.bf16.mxu0 0
    %6182 = vmatpush1.bf16.msra.mxu0 0
    %6183 = vmatprep.subr.bf16.mxu0 0
    %6184 = vmatpush1.bf16.msra.mxu0 0
    %6185 = vmatprep.subr.bf16.mxu0 0
    %6186 = vmatpush1.bf16.msra.mxu0 0
    %6187 = vmatprep.subr.bf16.mxu0 0
    %6188 = vmatpush1.bf16.msra.mxu0 0
    %6189 = vmatprep.subr.bf16.mxu0 0
    %6190 = vmatpush1.bf16.msra.mxu0 0
    %6191 = vmatprep.subr.bf16.mxu0 0
    %6192 = vmatpush1.bf16.msra.mxu0 0
    %6193 = vmatprep.subr.bf16.mxu0 0
    %6194 = vmatpush1.bf16.msra.mxu0 0
    %6195 = vmatprep.subr.bf16.mxu0 0
    %6196 = vmatpush1.bf16.msra.mxu0 0
    %6197 = vmatprep.subr.bf16.mxu0 0
    %6198 = vmatpush1.bf16.msra.mxu0 0
    %6199 = vmatprep.subr.bf16.mxu0 0
    %6200 = vmatpush1.bf16.msra.mxu0 0
    %6201 = vmatprep.subr.bf16.mxu0 0
    %6202 = vmatpush1.bf16.msra.mxu0 0
    %6203 = vmatprep.mubr.bf16.mxu0 0
    %6204 = vmatmul.mubr.bf16.gmra.mrb[0].mxu0 %v5868
    %v6205 = vpop.f32.mrb[0].mxu0
    %v6206 = vadd.f32 %v5662, %v6205
    %v6207 = vpop.f32.mrb[0].mxu0
    %v6208 = vadd.f32 %v5666, %v6207
    %v6209 = vpop.f32.mrb[0].mxu0
    %v6210 = vadd.f32 %v5662, %v6209
    %v6211 = vpop.f32.mrb[0].mxu0
    %v6212 = vadd.f32 %v5666, %v6211
    %6213 = vmatprep.mubr.bf16.mxu0 0
    %6214 = vmatmul.mubr.bf16.gmra.mrb[0].mxu0 %v5871
    %v6215 = vpop.f32.mrb[0].mxu0
    %v6216 = vadd.f32 %v5662, %v6215
    %v6217 = vpop.f32.mrb[0].mxu0
    %v6218 = vadd.f32 %v5666, %v6217
    %v6219 = vpop.f32.mrb[0].mxu0
    %v6220 = vadd.f32 %v5662, %v6219
    %v6221 = vpop.f32.mrb[0].mxu0
    %v6222 = vadd.f32 %v5666, %v6221
    %6223 = vmatprep.mubr.bf16.mxu0 0
    %6224 = vmatmul.mubr.bf16.gmra.mrb[0].mxu0 %v5874
    %v6225 = vpop.f32.mrb[0].mxu0
    %v6226 = vadd.f32 %v5662, %v6225
    %v6227 = vpop.f32.mrb[0].mxu0
    %v6228 = vadd.f32 %v5666, %v6227
    %v6229 = vpop.f32.mrb[0].mxu0
    %v6230 = vadd.f32 %v5662, %v6229
    %v6231 = vpop.f32.mrb[0].mxu0
    %v6232 = vadd.f32 %v5666, %v6231
    %6233 = vmatprep.mubr.bf16.mxu0 0
    %6234 = vmatmul.mubr.bf16.gmra.mrb[0].mxu0 %v5877
    %v6235 = vpop.f32.mrb[0].mxu0
    %v6236 = vadd.f32 %v5662, %v6235
    %v6237 = vpop.f32.mrb[0].mxu0
    %v6238 = vadd.f32 %v5666, %v6237
    %v6239 = vpop.f32.mrb[0].mxu0
    %v6240 = vadd.f32 %v5662, %v6239
    %v6241 = vpop.f32.mrb[0].mxu0
    %v6242 = vadd.f32 %v5666, %v6241
    %6243 = vdwg.mxu0
    %6244 = vmatprep.subr.bf16.mxu0 %v5814
    %6245 = vmatpush1.bf16.msra.mxu0 %v5813
    %6246 = vmatprep.subr.bf16.mxu0 %v5830
    %6247 = vmatpush1.bf16.msra.mxu0 %v5829
    %6248 = vmatprep.subr.bf16.mxu0 0
    %6249 = vmatpush1.bf16.msra.mxu0 0
    %6250 = vmatprep.subr.bf16.mxu0 0
    %6251 = vmatpush1.bf16.msra.mxu0 0
    %6252 = vmatprep.subr.bf16.mxu0 0
    %6253 = vmatpush1.bf16.msra.mxu0 0
    %6254 = vmatprep.subr.bf16.mxu0 0
    %6255 = vmatpush1.bf16.msra.mxu0 0
    %6256 = vmatprep.subr.bf16.mxu0 0
    %6257 = vmatpush1.bf16.msra.mxu0 0
    %6258 = vmatprep.subr.bf16.mxu0 0
    %6259 = vmatpush1.bf16.msra.mxu0 0
    %6260 = vmatprep.subr.bf16.mxu0 0
    %6261 = vmatpush1.bf16.msra.mxu0 0
    %6262 = vmatprep.subr.bf16.mxu0 0
    %6263 = vmatpush1.bf16.msra.mxu0 0
    %6264 = vmatprep.subr.bf16.mxu0 0
    %6265 = vmatpush1.bf16.msra.mxu0 0
    %6266 = vmatprep.subr.bf16.mxu0 0
    %6267 = vmatpush1.bf16.msra.mxu0 0
    %6268 = vmatprep.subr.bf16.mxu0 0
    %6269 = vmatpush1.bf16.msra.mxu0 0
    %6270 = vmatprep.subr.bf16.mxu0 0
    %6271 = vmatpush1.bf16.msra.mxu0 0
    %6272 = vmatprep.subr.bf16.mxu0 0
    %6273 = vmatpush1.bf16.msra.mxu0 0
    %6274 = vmatprep.subr.bf16.mxu0 0
    %6275 = vmatpush1.bf16.msra.mxu0 0
    %6276 = vmatprep.mubr.bf16.mxu0 0
    %6277 = vmatmul.mubr.bf16.gmra.mrb[0].mxu0 %v5868
    %v6278 = vpop.f32.mrb[0].mxu0
    %v6279 = vadd.f32 %v5670, %v6278
    %v6280 = vpop.f32.mrb[0].mxu0
    %v6281 = vadd.f32 %v5674, %v6280
    %v6282 = vpop.f32.mrb[0].mxu0
    %v6283 = vadd.f32 %v5670, %v6282
    %v6284 = vpop.f32.mrb[0].mxu0
    %v6285 = vadd.f32 %v5674, %v6284
    %6286 = vmatprep.mubr.bf16.mxu0 0
    %6287 = vmatmul.mubr.bf16.gmra.mrb[0].mxu0 %v5871
    %v6288 = vpop.f32.mrb[0].mxu0
    %v6289 = vadd.f32 %v5670, %v6288
    %v6290 = vpop.f32.mrb[0].mxu0
    %v6291 = vadd.f32 %v5674, %v6290
    %v6292 = vpop.f32.mrb[0].mxu0
    %v6293 = vadd.f32 %v5670, %v6292
    %v6294 = vpop.f32.mrb[0].mxu0
    %v6295 = vadd.f32 %v5674, %v6294
    %6296 = vmatprep.mubr.bf16.mxu0 0
    %6297 = vmatmul.mubr.bf16.gmra.mrb[0].mxu0 %v5874
    %v6298 = vpop.f32.mrb[0].mxu0
    %v6299 = vadd.f32 %v5670, %v6298
    %v6300 = vpop.f32.mrb[0].mxu0
    %v6301 = vadd.f32 %v5674, %v6300
    %v6302 = vpop.f32.mrb[0].mxu0
    %v6303 = vadd.f32 %v5670, %v6302
    %v6304 = vpop.f32.mrb[0].mxu0
    %v6305 = vadd.f32 %v5674, %v6304
    %6306 = vmatprep.mubr.bf16.mxu0 0
    %6307 = vmatmul.mubr.bf16.gmra.mrb[0].mxu0 %v5877
    %v6308 = vpop.f32.mrb[0].mxu0
    %v6309 = vadd.f32 %v5670, %v6308
    %v6310 = vpop.f32.mrb[0].mxu0
    %v6311 = vadd.f32 %v5674, %v6310
    %v6312 = vpop.f32.mrb[0].mxu0
    %v6313 = vadd.f32 %v5670, %v6312
    %v6314 = vpop.f32.mrb[0].mxu0
    %v6315 = vadd.f32 %v5674, %v6314
    %6316 = vdwg.mxu0
    %6317 = vmatprep.subr.bf16.mxu0 %v5816
    %6318 = vmatpush1.bf16.msra.mxu0 %v5815
    %6319 = vmatprep.subr.bf16.mxu0 %v5832
    %6320 = vmatpush1.bf16.msra.mxu0 %v5831
    %6321 = vmatprep.subr.bf16.mxu0 0
    %6322 = vmatpush1.bf16.msra.mxu0 0
    %6323 = vmatprep.subr.bf16.mxu0 0
    %6324 = vmatpush1.bf16.msra.mxu0 0
    %6325 = vmatprep.subr.bf16.mxu0 0
    %6326 = vmatpush1.bf16.msra.mxu0 0
    %6327 = vmatprep.subr.bf16.mxu0 0
    %6328 = vmatpush1.bf16.msra.mxu0 0
    %6329 = vmatprep.subr.bf16.mxu0 0
    %6330 = vmatpush1.bf16.msra.mxu0 0
    %6331 = vmatprep.subr.bf16.mxu0 0
    %6332 = vmatpush1.bf16.msra.mxu0 0
    %6333 = vmatprep.subr.bf16.mxu0 0
    %6334 = vmatpush1.bf16.msra.mxu0 0
    %6335 = vmatprep.subr.bf16.mxu0 0
    %6336 = vmatpush1.bf16.msra.mxu0 0
    %6337 = vmatprep.subr.bf16.mxu0 0
    %6338 = vmatpush1.bf16.msra.mxu0 0
    %6339 = vmatprep.subr.bf16.mxu0 0
    %6340 = vmatpush1.bf16.msra.mxu0 0
    %6341 = vmatprep.subr.bf16.mxu0 0
    %6342 = vmatpush1.bf16.msra.mxu0 0
    %6343 = vmatprep.subr.bf16.mxu0 0
    %6344 = vmatpush1.bf16.msra.mxu0 0
    %6345 = vmatprep.subr.bf16.mxu0 0
    %6346 = vmatpush1.bf16.msra.mxu0 0
    %6347 = vmatprep.subr.bf16.mxu0 0
    %6348 = vmatpush1.bf16.msra.mxu0 0
    %6349 = vmatprep.mubr.bf16.mxu0 0
    %6350 = vmatmul.mubr.bf16.gmra.mrb[0].mxu0 %v5868
    %v6351 = vpop.f32.mrb[0].mxu0
    %v6352 = vadd.f32 %v5678, %v6351
    %v6353 = vpop.f32.mrb[0].mxu0
    %v6354 = vadd.f32 %v5682, %v6353
    %v6355 = vpop.f32.mrb[0].mxu0
    %v6356 = vadd.f32 %v5678, %v6355
    %v6357 = vpop.f32.mrb[0].mxu0
    %v6358 = vadd.f32 %v5682, %v6357
    %6359 = vmatprep.mubr.bf16.mxu0 0
    %6360 = vmatmul.mubr.bf16.gmra.mrb[0].mxu0 %v5871
    %v6361 = vpop.f32.mrb[0].mxu0
    %v6362 = vadd.f32 %v5678, %v6361
    %v6363 = vpop.f32.mrb[0].mxu0
    %v6364 = vadd.f32 %v5682, %v6363
    %v6365 = vpop.f32.mrb[0].mxu0
    %v6366 = vadd.f32 %v5678, %v6365
    %v6367 = vpop.f32.mrb[0].mxu0
    %v6368 = vadd.f32 %v5682, %v6367
    %6369 = vmatprep.mubr.bf16.mxu0 0
    %6370 = vmatmul.mubr.bf16.gmra.mrb[0].mxu0 %v5874
    %v6371 = vpop.f32.mrb[0].mxu0
    %v6372 = vadd.f32 %v5678, %v6371
    %v6373 = vpop.f32.mrb[0].mxu0
    %v6374 = vadd.f32 %v5682, %v6373
    %v6375 = vpop.f32.mrb[0].mxu0
    %v6376 = vadd.f32 %v5678, %v6375
    %v6377 = vpop.f32.mrb[0].mxu0
    %v6378 = vadd.f32 %v5682, %v6377
    %6379 = vmatprep.mubr.bf16.mxu0 0
    %6380 = vmatmul.mubr.bf16.gmra.mrb[0].mxu0 %v5877
    %v6381 = vpop.f32.mrb[0].mxu0
    %v6382 = vadd.f32 %v5678, %v6381
    %v6383 = vpop.f32.mrb[0].mxu0
    %v6384 = vadd.f32 %v5682, %v6383
    %v6385 = vpop.f32.mrb[0].mxu0
    %v6386 = vadd.f32 %v5678, %v6385
    %v6387 = vpop.f32.mrb[0].mxu0
    %v6388 = vadd.f32 %v5682, %v6387
    %6389 = vdwg.mxu0
    %6390 = vmatprep.subr.bf16.mxu0 %v5818
    %6391 = vmatpush1.bf16.msra.mxu0 %v5817
    %6392 = vmatprep.subr.bf16.mxu0 %v5834
    %6393 = vmatpush1.bf16.msra.mxu0 %v5833
    %6394 = vmatprep.subr.bf16.mxu0 0
    %6395 = vmatpush1.bf16.msra.mxu0 0
    %6396 = vmatprep.subr.bf16.mxu0 0
    %6397 = vmatpush1.bf16.msra.mxu0 0
    %6398 = vmatprep.subr.bf16.mxu0 0
    %6399 = vmatpush1.bf16.msra.mxu0 0
    %6400 = vmatprep.subr.bf16.mxu0 0
    %6401 = vmatpush1.bf16.msra.mxu0 0
    %6402 = vmatprep.subr.bf16.mxu0 0
    %6403 = vmatpush1.bf16.msra.mxu0 0
    %6404 = vmatprep.subr.bf16.mxu0 0
    %6405 = vmatpush1.bf16.msra.mxu0 0
    %6406 = vmatprep.subr.bf16.mxu0 0
    %6407 = vmatpush1.bf16.msra.mxu0 0
    %6408 = vmatprep.subr.bf16.mxu0 0
    %6409 = vmatpush1.bf16.msra.mxu0 0
    %6410 = vmatprep.subr.bf16.mxu0 0
    %6411 = vmatpush1.bf16.msra.mxu0 0
    %6412 = vmatprep.subr.bf16.mxu0 0
    %6413 = vmatpush1.bf16.msra.mxu0 0
    %6414 = vmatprep.subr.bf16.mxu0 0
    %6415 = vmatpush1.bf16.msra.mxu0 0
    %6416 = vmatprep.subr.bf16.mxu0 0
    %6417 = vmatpush1.bf16.msra.mxu0 0
    %6418 = vmatprep.subr.bf16.mxu0 0
    %6419 = vmatpush1.bf16.msra.mxu0 0
    %6420 = vmatprep.subr.bf16.mxu0 0
    %6421 = vmatpush1.bf16.msra.mxu0 0
    %6422 = vmatprep.mubr.bf16.mxu0 0
    %6423 = vmatmul.mubr.bf16.gmra.mrb[0].mxu0 %v5868
    %v6424 = vpop.f32.mrb[0].mxu0
    %v6425 = vadd.f32 %v5686, %v6424
    %v6426 = vpop.f32.mrb[0].mxu0
    %v6427 = vadd.f32 %v5690, %v6426
    %v6428 = vpop.f32.mrb[0].mxu0
    %v6429 = vadd.f32 %v5686, %v6428
    %v6430 = vpop.f32.mrb[0].mxu0
    %v6431 = vadd.f32 %v5690, %v6430
    %6432 = vmatprep.mubr.bf16.mxu0 0
    %6433 = vmatmul.mubr.bf16.gmra.mrb[0].mxu0 %v5871
    %v6434 = vpop.f32.mrb[0].mxu0
    %v6435 = vadd.f32 %v5686, %v6434
    %v6436 = vpop.f32.mrb[0].mxu0
    %v6437 = vadd.f32 %v5690, %v6436
    %v6438 = vpop.f32.mrb[0].mxu0
    %v6439 = vadd.f32 %v5686, %v6438
    %v6440 = vpop.f32.mrb[0].mxu0
    %v6441 = vadd.f32 %v5690, %v6440
    %6442 = vmatprep.mubr.bf16.mxu0 0
    %6443 = vmatmul.mubr.bf16.gmra.mrb[0].mxu0 %v5874
    %v6444 = vpop.f32.mrb[0].mxu0
    %v6445 = vadd.f32 %v5686, %v6444
    %v6446 = vpop.f32.mrb[0].mxu0
    %v6447 = vadd.f32 %v5690, %v6446
    %v6448 = vpop.f32.mrb[0].mxu0
    %v6449 = vadd.f32 %v5686, %v6448
    %v6450 = vpop.f32.mrb[0].mxu0
    %v6451 = vadd.f32 %v5690, %v6450
    %6452 = vmatprep.mubr.bf16.mxu0 0
    %6453 = vmatmul.mubr.bf16.gmra.mrb[0].mxu0 %v5877
    %v6454 = vpop.f32.mrb[0].mxu0
    %v6455 = vadd.f32 %v5686, %v6454
    %v6456 = vpop.f32.mrb[0].mxu0
    %v6457 = vadd.f32 %v5690, %v6456
    %v6458 = vpop.f32.mrb[0].mxu0
    %v6459 = vadd.f32 %v5686, %v6458
    %v6460 = vpop.f32.mrb[0].mxu0
    %v6461 = vadd.f32 %v5690, %v6460
    %6462 = vdwg.mxu0
    %v6463 = vmax.f32 %v5914, 0.0
    %v6464 = vmax.f32 %v5916, 0.0
    %v6465 = vmax.f32 %v5987, 0.0
    %v6466 = vmax.f32 %v5989, 0.0
    %v6467 = vmax.f32 %v6060, 0.0
    %v6468 = vmax.f32 %v6062, 0.0
    %v6469 = vmax.f32 %v6133, 0.0
    %v6470 = vmax.f32 %v6135, 0.0
    %v6471 = vmax.f32 %v6206, 0.0
    %v6472 = vmax.f32 %v6208, 0.0
    %v6473 = vmax.f32 %v6279, 0.0
    %v6474 = vmax.f32 %v6281, 0.0
    %v6475 = vmax.f32 %v6352, 0.0
    %v6476 = vmax.f32 %v6354, 0.0
    %v6477 = vmax.f32 %v6425, 0.0
    %v6478 = vmax.f32 %v6427, 0.0
    %v6479 = vmax.f32 %v5918, 0.0
    %v6480 = vmax.f32 %v5920, 0.0
    %v6481 = vmax.f32 %v5991, 0.0
    %v6482 = vmax.f32 %v5993, 0.0
    %v6483 = vmax.f32 %v6064, 0.0
    %v6484 = vmax.f32 %v6066, 0.0
    %v6485 = vmax.f32 %v6137, 0.0
    %v6486 = vmax.f32 %v6139, 0.0
    %v6487 = vmax.f32 %v6210, 0.0
    %v6488 = vmax.f32 %v6212, 0.0
    %v6489 = vmax.f32 %v6283, 0.0
    %v6490 = vmax.f32 %v6285, 0.0
    %v6491 = vmax.f32 %v6356, 0.0
    %v6492 = vmax.f32 %v6358, 0.0
    %v6493 = vmax.f32 %v6429, 0.0
    %v6494 = vmax.f32 %v6431, 0.0
    %v6495 = vmax.f32 %v5924, 0.0
    %v6496 = vmax.f32 %v5926, 0.0
    %v6497 = vmax.f32 %v5997, 0.0
    %v6498 = vmax.f32 %v5999, 0.0
    %v6499 = vmax.f32 %v6070, 0.0
    %v6500 = vmax.f32 %v6072, 0.0
    %v6501 = vmax.f32 %v6143, 0.0
    %v6502 = vmax.f32 %v6145, 0.0
    %v6503 = vmax.f32 %v6216, 0.0
    %v6504 = vmax.f32 %v6218, 0.0
    %v6505 = vmax.f32 %v6289, 0.0
    %v6506 = vmax.f32 %v6291, 0.0
    %v6507 = vmax.f32 %v6362, 0.0
    %v6508 = vmax.f32 %v6364, 0.0
    %v6509 = vmax.f32 %v6435, 0.0
    %v6510 = vmax.f32 %v6437, 0.0
    %v6511 = vmax.f32 %v5928, 0.0
    %v6512 = vmax.f32 %v5930, 0.0
    %v6513 = vmax.f32 %v6001, 0.0
    %v6514 = vmax.f32 %v6003, 0.0
    %v6515 = vmax.f32 %v6074, 0.0
    %v6516 = vmax.f32 %v6076, 0.0
    %v6517 = vmax.f32 %v6147, 0.0
    %v6518 = vmax.f32 %v6149, 0.0
    %v6519 = vmax.f32 %v6220, 0.0
    %v6520 = vmax.f32 %v6222, 0.0
    %v6521 = vmax.f32 %v6293, 0.0
    %v6522 = vmax.f32 %v6295, 0.0
    %v6523 = vmax.f32 %v6366, 0.0
    %v6524 = vmax.f32 %v6368, 0.0
    %v6525 = vmax.f32 %v6439, 0.0
    %v6526 = vmax.f32 %v6441, 0.0
    %v6527 = vmax.f32 %v5934, 0.0
    %v6528 = vmax.f32 %v5936, 0.0
    %v6529 = vmax.f32 %v6007, 0.0
    %v6530 = vmax.f32 %v6009, 0.0
    %v6531 = vmax.f32 %v6080, 0.0
    %v6532 = vmax.f32 %v6082, 0.0
    %v6533 = vmax.f32 %v6153, 0.0
    %v6534 = vmax.f32 %v6155, 0.0
    %v6535 = vmax.f32 %v6226, 0.0
    %v6536 = vmax.f32 %v6228, 0.0
    %v6537 = vmax.f32 %v6299, 0.0
    %v6538 = vmax.f32 %v6301, 0.0
    %v6539 = vmax.f32 %v6372, 0.0
    %v6540 = vmax.f32 %v6374, 0.0
    %v6541 = vmax.f32 %v6445, 0.0
    %v6542 = vmax.f32 %v6447, 0.0
    %v6543 = vmax.f32 %v5938, 0.0
    %v6544 = vmax.f32 %v5940, 0.0
    %v6545 = vmax.f32 %v6011, 0.0
    %v6546 = vmax.f32 %v6013, 0.0
    %v6547 = vmax.f32 %v6084, 0.0
    %v6548 = vmax.f32 %v6086, 0.0
    %v6549 = vmax.f32 %v6157, 0.0
    %v6550 = vmax.f32 %v6159, 0.0
    %v6551 = vmax.f32 %v6230, 0.0
    %v6552 = vmax.f32 %v6232, 0.0
    %v6553 = vmax.f32 %v6303, 0.0
    %v6554 = vmax.f32 %v6305, 0.0
    %v6555 = vmax.f32 %v6376, 0.0
    %v6556 = vmax.f32 %v6378, 0.0
    %v6557 = vmax.f32 %v6449, 0.0
    %v6558 = vmax.f32 %v6451, 0.0
    %v6559 = vmax.f32 %v5944, 0.0
    %v6560 = vmax.f32 %v5946, 0.0
    %v6561 = vmax.f32 %v6017, 0.0
    %v6562 = vmax.f32 %v6019, 0.0
    %v6563 = vmax.f32 %v6090, 0.0
    %v6564 = vmax.f32 %v6092, 0.0
    %v6565 = vmax.f32 %v6163, 0.0
    %v6566 = vmax.f32 %v6165, 0.0
    %v6567 = vmax.f32 %v6236, 0.0
    %v6568 = vmax.f32 %v6238, 0.0
    %v6569 = vmax.f32 %v6309, 0.0
    %v6570 = vmax.f32 %v6311, 0.0
    %v6571 = vmax.f32 %v6382, 0.0
    %v6572 = vmax.f32 %v6384, 0.0
    %v6573 = vmax.f32 %v6455, 0.0
    %v6574 = vmax.f32 %v6457, 0.0
    %v6575 = vmax.f32 %v5948, 0.0
    %v6576 = vmax.f32 %v5950, 0.0
    %v6577 = vmax.f32 %v6021, 0.0
    %v6578 = vmax.f32 %v6023, 0.0
    %v6579 = vmax.f32 %v6094, 0.0
    %v6580 = vmax.f32 %v6096, 0.0
    %v6581 = vmax.f32 %v6167, 0.0
    %v6582 = vmax.f32 %v6169, 0.0
    %v6583 = vmax.f32 %v6240, 0.0
    %v6584 = vmax.f32 %v6242, 0.0
    %v6585 = vmax.f32 %v6313, 0.0
    %v6586 = vmax.f32 %v6315, 0.0
    %v6587 = vmax.f32 %v6386, 0.0
    %v6588 = vmax.f32 %v6388, 0.0
    %v6589 = vmax.f32 %v6459, 0.0
    %v6590 = vmax.f32 %v6461, 0.0
    %v6591 = vpack.c.bf16 %v6479, %v6463
    %v6592 = vpack.c.bf16 %v6480, %v6464
    %v6593 = vpack.c.bf16 %v6481, %v6465
    %v6594 = vpack.c.bf16 %v6482, %v6466
    %v6595 = vpack.c.bf16 %v6483, %v6467
    %v6596 = vpack.c.bf16 %v6484, %v6468
    %v6597 = vpack.c.bf16 %v6485, %v6469
    %v6598 = vpack.c.bf16 %v6486, %v6470
    %v6599 = vpack.c.bf16 %v6487, %v6471
    %v6600 = vpack.c.bf16 %v6488, %v6472
    %v6601 = vpack.c.bf16 %v6489, %v6473
    %v6602 = vpack.c.bf16 %v6490, %v6474
    %v6603 = vpack.c.bf16 %v6491, %v6475
    %v6604 = vpack.c.bf16 %v6492, %v6476
    %v6605 = vpack.c.bf16 %v6493, %v6477
    %v6606 = vpack.c.bf16 %v6494, %v6478
    %v6607 = vpack.c.bf16 %v6511, %v6495
    %v6608 = vpack.c.bf16 %v6512, %v6496
    %v6609 = vpack.c.bf16 %v6513, %v6497
    %v6610 = vpack.c.bf16 %v6514, %v6498
    %v6611 = vpack.c.bf16 %v6515, %v6499
    %v6612 = vpack.c.bf16 %v6516, %v6500
    %v6613 = vpack.c.bf16 %v6517, %v6501
    %v6614 = vpack.c.bf16 %v6518, %v6502
    %v6615 = vpack.c.bf16 %v6519, %v6503
    %v6616 = vpack.c.bf16 %v6520, %v6504
    %v6617 = vpack.c.bf16 %v6521, %v6505
    %v6618 = vpack.c.bf16 %v6522, %v6506
    %v6619 = vpack.c.bf16 %v6523, %v6507
    %v6620 = vpack.c.bf16 %v6524, %v6508
    %v6621 = vpack.c.bf16 %v6525, %v6509
    %v6622 = vpack.c.bf16 %v6526, %v6510
    %v6623 = vpack.c.bf16 %v6543, %v6527
    %v6624 = vpack.c.bf16 %v6544, %v6528
    %v6625 = vpack.c.bf16 %v6545, %v6529
    %v6626 = vpack.c.bf16 %v6546, %v6530
    %v6627 = vpack.c.bf16 %v6547, %v6531
    %v6628 = vpack.c.bf16 %v6548, %v6532
    %v6629 = vpack.c.bf16 %v6549, %v6533
    %v6630 = vpack.c.bf16 %v6550, %v6534
    %v6631 = vpack.c.bf16 %v6551, %v6535
    %v6632 = vpack.c.bf16 %v6552, %v6536
    %v6633 = vpack.c.bf16 %v6553, %v6537
    %v6634 = vpack.c.bf16 %v6554, %v6538
    %v6635 = vpack.c.bf16 %v6555, %v6539
    %v6636 = vpack.c.bf16 %v6556, %v6540
    %v6637 = vpack.c.bf16 %v6557, %v6541
    %v6638 = vpack.c.bf16 %v6558, %v6542
    %v6639 = vpack.c.bf16 %v6575, %v6559
    %v6640 = vpack.c.bf16 %v6576, %v6560
    %v6641 = vpack.c.bf16 %v6577, %v6561
    %v6642 = vpack.c.bf16 %v6578, %v6562
    %v6643 = vpack.c.bf16 %v6579, %v6563
    %v6644 = vpack.c.bf16 %v6580, %v6564
    %v6645 = vpack.c.bf16 %v6581, %v6565
    %v6646 = vpack.c.bf16 %v6582, %v6566
    %v6647 = vpack.c.bf16 %v6583, %v6567
    %v6648 = vpack.c.bf16 %v6584, %v6568
    %v6649 = vpack.c.bf16 %v6585, %v6569
    %v6650 = vpack.c.bf16 %v6586, %v6570
    %v6651 = vpack.c.bf16 %v6587, %v6571
    %v6652 = vpack.c.bf16 %v6588, %v6572
    %v6653 = vpack.c.bf16 %v6589, %v6573
    %v6654 = vpack.c.bf16 %v6590, %v6574
    %s6655 = scalar_lea.vmem %s13, 1024
    %v6656 = vld [vmem:[%s6655] sm:$0xf]
    %v6657 = vld [vmem:[%s6655 + $0x4] sm:$0xf]
    %v6658 = vld [vmem:[%s6655 + $0x8] sm:$0xf]
    %v6659 = vld [vmem:[%s6655 + $0xc] sm:$0xf]
    %v6660 = vld [vmem:[%s6655 + $0x10] sm:$0xf]
    %v6661 = vld [vmem:[%s6655 + $0x14] sm:$0xf]
    %v6662 = vld [vmem:[%s6655 + $0x18] sm:$0xf]
    %v6663 = vld [vmem:[%s6655 + $0x1c] sm:$0xf]
    %v6664 = vld [vmem:[%s6655 + $0x20] sm:$0xf]
    %v6665 = vld [vmem:[%s6655 + $0x24] sm:$0xf]
    %v6666 = vld [vmem:[%s6655 + $0x28] sm:$0xf]
    %v6667 = vld [vmem:[%s6655 + $0x2c] sm:$0xf]
    %v6668 = vld [vmem:[%s6655 + $0x30] sm:$0xf]
    %v6669 = vld [vmem:[%s6655 + $0x34] sm:$0xf]
    %v6670 = vld [vmem:[%s6655 + $0x38] sm:$0xf]
    %v6671 = vld [vmem:[%s6655 + $0x3c] sm:$0xf]
    %v6672 = vld [vmem:[%s6655 + $0x40] sm:$0xf]
    %v6673 = vld [vmem:[%s6655 + $0x44] sm:$0xf]
    %v6674 = vld [vmem:[%s6655 + $0x48] sm:$0xf]
    %v6675 = vld [vmem:[%s6655 + $0x4c] sm:$0xf]
    %v6676 = vld [vmem:[%s6655 + $0x50] sm:$0xf]
    %v6677 = vld [vmem:[%s6655 + $0x54] sm:$0xf]
    %v6678 = vld [vmem:[%s6655 + $0x58] sm:$0xf]
    %v6679 = vld [vmem:[%s6655 + $0x5c] sm:$0xf]
    %v6680 = vld [vmem:[%s6655 + $0x60] sm:$0xf]
    %v6681 = vld [vmem:[%s6655 + $0x64] sm:$0xf]
    %v6682 = vld [vmem:[%s6655 + $0x68] sm:$0xf]
    %v6683 = vld [vmem:[%s6655 + $0x6c] sm:$0xf]
    %v6684 = vld [vmem:[%s6655 + $0x70] sm:$0xf]
    %v6685 = vld [vmem:[%s6655 + $0x74] sm:$0xf]
    %v6686 = vld [vmem:[%s6655 + $0x78] sm:$0xf]
    %v6687 = vld [vmem:[%s6655 + $0x7c] sm:$0xf]
    %v6688 = vld [vmem:[%s6655 + $0x80] sm:$0xf]
    %v6689 = vld [vmem:[%s6655 + $0x84] sm:$0xf]
    %v6690 = vld [vmem:[%s6655 + $0x88] sm:$0xf]
    %v6691 = vld [vmem:[%s6655 + $0x8c] sm:$0xf]
    %v6692 = vld [vmem:[%s6655 + $0x90] sm:$0xf]
    %v6693 = vld [vmem:[%s6655 + $0x94] sm:$0xf]
    %v6694 = vld [vmem:[%s6655 + $0x98] sm:$0xf]
    %v6695 = vld [vmem:[%s6655 + $0x9c] sm:$0xf]
    %v6696 = vld [vmem:[%s6655 + $0xa0] sm:$0xf]
    %v6697 = vld [vmem:[%s6655 + $0xa4] sm:$0xf]
    %v6698 = vld [vmem:[%s6655 + $0xa8] sm:$0xf]
    %v6699 = vld [vmem:[%s6655 + $0xac] sm:$0xf]
    %v6700 = vld [vmem:[%s6655 + $0xb0] sm:$0xf]
    %v6701 = vld [vmem:[%s6655 + $0xb4] sm:$0xf]
    %v6702 = vld [vmem:[%s6655 + $0xb8] sm:$0xf]
    %v6703 = vld [vmem:[%s6655 + $0xbc] sm:$0xf]
    %v6704 = vld [vmem:[%s6655 + $0xc0] sm:$0xf]
    %v6705 = vld [vmem:[%s6655 + $0xc4] sm:$0xf]
    %v6706 = vld [vmem:[%s6655 + $0xc8] sm:$0xf]
    %v6707 = vld [vmem:[%s6655 + $0xcc] sm:$0xf]
    %v6708 = vld [vmem:[%s6655 + $0xd0] sm:$0xf]
    %v6709 = vld [vmem:[%s6655 + $0xd4] sm:$0xf]
    %v6710 = vld [vmem:[%s6655 + $0xd8] sm:$0xf]
    %v6711 = vld [vmem:[%s6655 + $0xdc] sm:$0xf]
    %v6712 = vld [vmem:[%s6655 + $0xe0] sm:$0xf]
    %v6713 = vld [vmem:[%s6655 + $0xe4] sm:$0xf]
    %v6714 = vld [vmem:[%s6655 + $0xe8] sm:$0xf]
    %v6715 = vld [vmem:[%s6655 + $0xec] sm:$0xf]
    %v6716 = vld [vmem:[%s6655 + $0xf0] sm:$0xf]
    %v6717 = vld [vmem:[%s6655 + $0xf4] sm:$0xf]
    %v6718 = vld [vmem:[%s6655 + $0xf8] sm:$0xf]
    %v6719 = vld [vmem:[%s6655 + $0xfc] sm:$0xf]
    %v6720 = vld [vmem:[%s6655 + $0x100] sm:$0xf]
    %v6721 = vld [vmem:[%s6655 + $0x104] sm:$0xf]
    %v6722 = vld [vmem:[%s6655 + $0x108] sm:$0xf]
    %v6723 = vld [vmem:[%s6655 + $0x10c] sm:$0xf]
    %v6724 = vld [vmem:[%s6655 + $0x110] sm:$0xf]
    %v6725 = vld [vmem:[%s6655 + $0x114] sm:$0xf]
    %v6726 = vld [vmem:[%s6655 + $0x118] sm:$0xf]
    %v6727 = vld [vmem:[%s6655 + $0x11c] sm:$0xf]
    %v6728 = vld [vmem:[%s6655 + $0x120] sm:$0xf]
    %v6729 = vld [vmem:[%s6655 + $0x124] sm:$0xf]
    %v6730 = vld [vmem:[%s6655 + $0x128] sm:$0xf]
    %v6731 = vld [vmem:[%s6655 + $0x12c] sm:$0xf]
    %v6732 = vld [vmem:[%s6655 + $0x130] sm:$0xf]
    %v6733 = vld [vmem:[%s6655 + $0x134] sm:$0xf]
    %v6734 = vld [vmem:[%s6655 + $0x138] sm:$0xf]
    %v6735 = vld [vmem:[%s6655 + $0x13c] sm:$0xf]
    %v6736 = vld [vmem:[%s6655 + $0x140] sm:$0xf]
    %v6737 = vld [vmem:[%s6655 + $0x144] sm:$0xf]
    %v6738 = vld [vmem:[%s6655 + $0x148] sm:$0xf]
    %v6739 = vld [vmem:[%s6655 + $0x14c] sm:$0xf]
    %v6740 = vld [vmem:[%s6655 + $0x150] sm:$0xf]
    %v6741 = vld [vmem:[%s6655 + $0x154] sm:$0xf]
    %v6742 = vld [vmem:[%s6655 + $0x158] sm:$0xf]
    %v6743 = vld [vmem:[%s6655 + $0x15c] sm:$0xf]
    %v6744 = vld [vmem:[%s6655 + $0x160] sm:$0xf]
    %v6745 = vld [vmem:[%s6655 + $0x164] sm:$0xf]
    %v6746 = vld [vmem:[%s6655 + $0x168] sm:$0xf]
    %v6747 = vld [vmem:[%s6655 + $0x16c] sm:$0xf]
    %v6748 = vld [vmem:[%s6655 + $0x170] sm:$0xf]
    %v6749 = vld [vmem:[%s6655 + $0x174] sm:$0xf]
    %v6750 = vld [vmem:[%s6655 + $0x178] sm:$0xf]
    %v6751 = vld [vmem:[%s6655 + $0x17c] sm:$0xf]
    %v6752 = vld [vmem:[%s6655 + $0x180] sm:$0xf]
    %v6753 = vld [vmem:[%s6655 + $0x184] sm:$0xf]
    %v6754 = vld [vmem:[%s6655 + $0x188] sm:$0xf]
    %v6755 = vld [vmem:[%s6655 + $0x18c] sm:$0xf]
    %v6756 = vld [vmem:[%s6655 + $0x190] sm:$0xf]
    %v6757 = vld [vmem:[%s6655 + $0x194] sm:$0xf]
    %v6758 = vld [vmem:[%s6655 + $0x198] sm:$0xf]
    %v6759 = vld [vmem:[%s6655 + $0x19c] sm:$0xf]
    %v6760 = vld [vmem:[%s6655 + $0x1a0] sm:$0xf]
    %v6761 = vld [vmem:[%s6655 + $0x1a4] sm:$0xf]
    %v6762 = vld [vmem:[%s6655 + $0x1a8] sm:$0xf]
    %v6763 = vld [vmem:[%s6655 + $0x1ac] sm:$0xf]
    %v6764 = vld [vmem:[%s6655 + $0x1b0] sm:$0xf]
    %v6765 = vld [vmem:[%s6655 + $0x1b4] sm:$0xf]
    %v6766 = vld [vmem:[%s6655 + $0x1b8] sm:$0xf]
    %v6767 = vld [vmem:[%s6655 + $0x1bc] sm:$0xf]
    %v6768 = vld [vmem:[%s6655 + $0x1c0] sm:$0xf]
    %v6769 = vld [vmem:[%s6655 + $0x1c4] sm:$0xf]
    %v6770 = vld [vmem:[%s6655 + $0x1c8] sm:$0xf]
    %v6771 = vld [vmem:[%s6655 + $0x1cc] sm:$0xf]
    %v6772 = vld [vmem:[%s6655 + $0x1d0] sm:$0xf]
    %v6773 = vld [vmem:[%s6655 + $0x1d4] sm:$0xf]
    %v6774 = vld [vmem:[%s6655 + $0x1d8] sm:$0xf]
    %v6775 = vld [vmem:[%s6655 + $0x1dc] sm:$0xf]
    %v6776 = vld [vmem:[%s6655 + $0x1e0] sm:$0xf]
    %v6777 = vld [vmem:[%s6655 + $0x1e4] sm:$0xf]
    %v6778 = vld [vmem:[%s6655 + $0x1e8] sm:$0xf]
    %v6779 = vld [vmem:[%s6655 + $0x1ec] sm:$0xf]
    %v6780 = vld [vmem:[%s6655 + $0x1f0] sm:$0xf]
    %v6781 = vld [vmem:[%s6655 + $0x1f4] sm:$0xf]
    %v6782 = vld [vmem:[%s6655 + $0x1f8] sm:$0xf]
    %v6783 = vld [vmem:[%s6655 + $0x1fc] sm:$0xf]
    %v6784 = vld [vmem:[%s6655 + $0x200] sm:$0xf]
    %v6785 = vld [vmem:[%s6655 + $0x204] sm:$0xf]
    %v6786 = vld [vmem:[%s6655 + $0x208] sm:$0xf]
    %v6787 = vld [vmem:[%s6655 + $0x20c] sm:$0xf]
    %v6788 = vld [vmem:[%s6655 + $0x210] sm:$0xf]
    %v6789 = vld [vmem:[%s6655 + $0x214] sm:$0xf]
    %v6790 = vld [vmem:[%s6655 + $0x218] sm:$0xf]
    %v6791 = vld [vmem:[%s6655 + $0x21c] sm:$0xf]
    %v6792 = vld [vmem:[%s6655 + $0x220] sm:$0xf]
    %v6793 = vld [vmem:[%s6655 + $0x224] sm:$0xf]
    %v6794 = vld [vmem:[%s6655 + $0x228] sm:$0xf]
    %v6795 = vld [vmem:[%s6655 + $0x22c] sm:$0xf]
    %v6796 = vld [vmem:[%s6655 + $0x230] sm:$0xf]
    %v6797 = vld [vmem:[%s6655 + $0x234] sm:$0xf]
    %v6798 = vld [vmem:[%s6655 + $0x238] sm:$0xf]
    %v6799 = vld [vmem:[%s6655 + $0x23c] sm:$0xf]
    %v6800 = vld [vmem:[%s6655 + $0x240] sm:$0xf]
    %v6801 = vld [vmem:[%s6655 + $0x244] sm:$0xf]
    %v6802 = vld [vmem:[%s6655 + $0x248] sm:$0xf]
    %v6803 = vld [vmem:[%s6655 + $0x24c] sm:$0xf]
    %v6804 = vld [vmem:[%s6655 + $0x250] sm:$0xf]
    %v6805 = vld [vmem:[%s6655 + $0x254] sm:$0xf]
    %v6806 = vld [vmem:[%s6655 + $0x258] sm:$0xf]
    %v6807 = vld [vmem:[%s6655 + $0x25c] sm:$0xf]
    %v6808 = vld [vmem:[%s6655 + $0x260] sm:$0xf]
    %v6809 = vld [vmem:[%s6655 + $0x264] sm:$0xf]
    %v6810 = vld [vmem:[%s6655 + $0x268] sm:$0xf]
    %v6811 = vld [vmem:[%s6655 + $0x26c] sm:$0xf]
    %v6812 = vld [vmem:[%s6655 + $0x270] sm:$0xf]
    %v6813 = vld [vmem:[%s6655 + $0x274] sm:$0xf]
    %v6814 = vld [vmem:[%s6655 + $0x278] sm:$0xf]
    %v6815 = vld [vmem:[%s6655 + $0x27c] sm:$0xf]
    %v6816 = vld [vmem:[%s6655 + $0x280] sm:$0xf]
    %v6817 = vld [vmem:[%s6655 + $0x284] sm:$0xf]
    %v6818 = vld [vmem:[%s6655 + $0x288] sm:$0xf]
    %v6819 = vld [vmem:[%s6655 + $0x28c] sm:$0xf]
    %v6820 = vld [vmem:[%s6655 + $0x290] sm:$0xf]
    %v6821 = vld [vmem:[%s6655 + $0x294] sm:$0xf]
    %v6822 = vld [vmem:[%s6655 + $0x298] sm:$0xf]
    %v6823 = vld [vmem:[%s6655 + $0x29c] sm:$0xf]
    %v6824 = vld [vmem:[%s6655 + $0x2a0] sm:$0xf]
    %v6825 = vld [vmem:[%s6655 + $0x2a4] sm:$0xf]
    %v6826 = vld [vmem:[%s6655 + $0x2a8] sm:$0xf]
    %v6827 = vld [vmem:[%s6655 + $0x2ac] sm:$0xf]
    %v6828 = vld [vmem:[%s6655 + $0x2b0] sm:$0xf]
    %v6829 = vld [vmem:[%s6655 + $0x2b4] sm:$0xf]
    %v6830 = vld [vmem:[%s6655 + $0x2b8] sm:$0xf]
    %v6831 = vld [vmem:[%s6655 + $0x2bc] sm:$0xf]
    %v6832 = vld [vmem:[%s6655 + $0x2c0] sm:$0xf]
    %v6833 = vld [vmem:[%s6655 + $0x2c4] sm:$0xf]
    %v6834 = vld [vmem:[%s6655 + $0x2c8] sm:$0xf]
    %v6835 = vld [vmem:[%s6655 + $0x2cc] sm:$0xf]
    %v6836 = vld [vmem:[%s6655 + $0x2d0] sm:$0xf]
    %v6837 = vld [vmem:[%s6655 + $0x2d4] sm:$0xf]
    %v6838 = vld [vmem:[%s6655 + $0x2d8] sm:$0xf]
    %v6839 = vld [vmem:[%s6655 + $0x2dc] sm:$0xf]
    %v6840 = vld [vmem:[%s6655 + $0x2e0] sm:$0xf]
    %v6841 = vld [vmem:[%s6655 + $0x2e4] sm:$0xf]
    %v6842 = vld [vmem:[%s6655 + $0x2e8] sm:$0xf]
    %v6843 = vld [vmem:[%s6655 + $0x2ec] sm:$0xf]
    %v6844 = vld [vmem:[%s6655 + $0x2f0] sm:$0xf]
    %v6845 = vld [vmem:[%s6655 + $0x2f4] sm:$0xf]
    %v6846 = vld [vmem:[%s6655 + $0x2f8] sm:$0xf]
    %v6847 = vld [vmem:[%s6655 + $0x2fc] sm:$0xf]
    %v6848 = vld [vmem:[%s6655 + $0x300] sm:$0xf]
    %v6849 = vld [vmem:[%s6655 + $0x304] sm:$0xf]
    %v6850 = vld [vmem:[%s6655 + $0x308] sm:$0xf]
    %v6851 = vld [vmem:[%s6655 + $0x30c] sm:$0xf]
    %v6852 = vld [vmem:[%s6655 + $0x310] sm:$0xf]
    %v6853 = vld [vmem:[%s6655 + $0x314] sm:$0xf]
    %v6854 = vld [vmem:[%s6655 + $0x318] sm:$0xf]
    %v6855 = vld [vmem:[%s6655 + $0x31c] sm:$0xf]
    %v6856 = vld [vmem:[%s6655 + $0x320] sm:$0xf]
    %v6857 = vld [vmem:[%s6655 + $0x324] sm:$0xf]
    %v6858 = vld [vmem:[%s6655 + $0x328] sm:$0xf]
    %v6859 = vld [vmem:[%s6655 + $0x32c] sm:$0xf]
    %v6860 = vld [vmem:[%s6655 + $0x330] sm:$0xf]
    %v6861 = vld [vmem:[%s6655 + $0x334] sm:$0xf]
    %v6862 = vld [vmem:[%s6655 + $0x338] sm:$0xf]
    %v6863 = vld [vmem:[%s6655 + $0x33c] sm:$0xf]
    %v6864 = vld [vmem:[%s6655 + $0x340] sm:$0xf]
    %v6865 = vld [vmem:[%s6655 + $0x344] sm:$0xf]
    %v6866 = vld [vmem:[%s6655 + $0x348] sm:$0xf]
    %v6867 = vld [vmem:[%s6655 + $0x34c] sm:$0xf]
    %v6868 = vld [vmem:[%s6655 + $0x350] sm:$0xf]
    %v6869 = vld [vmem:[%s6655 + $0x354] sm:$0xf]
    %v6870 = vld [vmem:[%s6655 + $0x358] sm:$0xf]
    %v6871 = vld [vmem:[%s6655 + $0x35c] sm:$0xf]
    %v6872 = vld [vmem:[%s6655 + $0x360] sm:$0xf]
    %v6873 = vld [vmem:[%s6655 + $0x364] sm:$0xf]
    %v6874 = vld [vmem:[%s6655 + $0x368] sm:$0xf]
    %v6875 = vld [vmem:[%s6655 + $0x36c] sm:$0xf]
    %v6876 = vld [vmem:[%s6655 + $0x370] sm:$0xf]
    %v6877 = vld [vmem:[%s6655 + $0x374] sm:$0xf]
    %v6878 = vld [vmem:[%s6655 + $0x378] sm:$0xf]
    %v6879 = vld [vmem:[%s6655 + $0x37c] sm:$0xf]
    %v6880 = vld [vmem:[%s6655 + $0x380] sm:$0xf]
    %v6881 = vld [vmem:[%s6655 + $0x384] sm:$0xf]
    %v6882 = vld [vmem:[%s6655 + $0x388] sm:$0xf]
    %v6883 = vld [vmem:[%s6655 + $0x38c] sm:$0xf]
    %v6884 = vld [vmem:[%s6655 + $0x390] sm:$0xf]
    %v6885 = vld [vmem:[%s6655 + $0x394] sm:$0xf]
    %v6886 = vld [vmem:[%s6655 + $0x398] sm:$0xf]
    %v6887 = vld [vmem:[%s6655 + $0x39c] sm:$0xf]
    %v6888 = vld [vmem:[%s6655 + $0x3a0] sm:$0xf]
    %v6889 = vld [vmem:[%s6655 + $0x3a4] sm:$0xf]
    %v6890 = vld [vmem:[%s6655 + $0x3a8] sm:$0xf]
    %v6891 = vld [vmem:[%s6655 + $0x3ac] sm:$0xf]
    %v6892 = vld [vmem:[%s6655 + $0x3b0] sm:$0xf]
    %v6893 = vld [vmem:[%s6655 + $0x3b4] sm:$0xf]
    %v6894 = vld [vmem:[%s6655 + $0x3b8] sm:$0xf]
    %v6895 = vld [vmem:[%s6655 + $0x3bc] sm:$0xf]
    %v6896 = vld [vmem:[%s6655 + $0x3c0] sm:$0xf]
    %v6897 = vld [vmem:[%s6655 + $0x3c4] sm:$0xf]
    %v6898 = vld [vmem:[%s6655 + $0x3c8] sm:$0xf]
    %v6899 = vld [vmem:[%s6655 + $0x3cc] sm:$0xf]
    %v6900 = vld [vmem:[%s6655 + $0x3d0] sm:$0xf]
    %v6901 = vld [vmem:[%s6655 + $0x3d4] sm:$0xf]
    %v6902 = vld [vmem:[%s6655 + $0x3d8] sm:$0xf]
    %v6903 = vld [vmem:[%s6655 + $0x3dc] sm:$0xf]
    %v6904 = vld [vmem:[%s6655 + $0x3e0] sm:$0xf]
    %v6905 = vld [vmem:[%s6655 + $0x3e4] sm:$0xf]
    %v6906 = vld [vmem:[%s6655 + $0x3e8] sm:$0xf]
    %v6907 = vld [vmem:[%s6655 + $0x3ec] sm:$0xf]
    %v6908 = vld [vmem:[%s6655 + $0x3f0] sm:$0xf]
    %v6909 = vld [vmem:[%s6655 + $0x3f4] sm:$0xf]
    %v6910 = vld [vmem:[%s6655 + $0x3f8] sm:$0xf]
    %v6911 = vld [vmem:[%s6655 + $0x3fc] sm:$0xf]
    %v6912 = vld [vmem:[%s14 + $0x1] sm:$0x1]
    %v6913 = vlaneseq
    %v6914 = vshrl.u32 %v6913, 7
    %v6915 = vsub.s32 0, %v6914
    %v6916 = vrot.slane %v6912, %v6915
    %v7173 = vunpack.c.l.b16 %v6656
    %v7174 = vunpack.c.l.b16 %v6657
    %v7175 = vunpack.c.l.b16 %v6658
    %v7176 = vunpack.c.l.b16 %v6659
    %v7177 = vunpack.c.l.b16 %v6660
    %v7178 = vunpack.c.l.b16 %v6661
    %v7179 = vunpack.c.l.b16 %v6662
    %v7180 = vunpack.c.l.b16 %v6663
    %v7181 = vunpack.c.l.b16 %v6664
    %v7182 = vunpack.c.l.b16 %v6665
    %v7183 = vunpack.c.l.b16 %v6666
    %v7184 = vunpack.c.l.b16 %v6667
    %v7185 = vunpack.c.l.b16 %v6668
    %v7186 = vunpack.c.l.b16 %v6669
    %v7187 = vunpack.c.l.b16 %v6670
    %v7188 = vunpack.c.l.b16 %v6671
    %v7189 = vunpack.c.l.b16 %v6672
    %v7190 = vunpack.c.l.b16 %v6673
    %v7191 = vunpack.c.l.b16 %v6674
    %v7192 = vunpack.c.l.b16 %v6675
    %v7193 = vunpack.c.l.b16 %v6676
    %v7194 = vunpack.c.l.b16 %v6677
    %v7195 = vunpack.c.l.b16 %v6678
    %v7196 = vunpack.c.l.b16 %v6679
    %v7197 = vunpack.c.l.b16 %v6680
    %v7198 = vunpack.c.l.b16 %v6681
    %v7199 = vunpack.c.l.b16 %v6682
    %v7200 = vunpack.c.l.b16 %v6683
    %v7201 = vunpack.c.l.b16 %v6684
    %v7202 = vunpack.c.l.b16 %v6685
    %v7203 = vunpack.c.l.b16 %v6686
    %v7204 = vunpack.c.l.b16 %v6687
    %v7205 = vunpack.c.l.b16 %v6688
    %v7206 = vunpack.c.l.b16 %v6689
    %v7207 = vunpack.c.l.b16 %v6690
    %v7208 = vunpack.c.l.b16 %v6691
    %v7209 = vunpack.c.l.b16 %v6692
    %v7210 = vunpack.c.l.b16 %v6693
    %v7211 = vunpack.c.l.b16 %v6694
    %v7212 = vunpack.c.l.b16 %v6695
    %v7213 = vunpack.c.l.b16 %v6696
    %v7214 = vunpack.c.l.b16 %v6697
    %v7215 = vunpack.c.l.b16 %v6698
    %v7216 = vunpack.c.l.b16 %v6699
    %v7217 = vunpack.c.l.b16 %v6700
    %v7218 = vunpack.c.l.b16 %v6701
    %v7219 = vunpack.c.l.b16 %v6702
    %v7220 = vunpack.c.l.b16 %v6703
    %v7221 = vunpack.c.l.b16 %v6704
    %v7222 = vunpack.c.l.b16 %v6705
    %v7223 = vunpack.c.l.b16 %v6706
    %v7224 = vunpack.c.l.b16 %v6707
    %v7225 = vunpack.c.l.b16 %v6708
    %v7226 = vunpack.c.l.b16 %v6709
    %v7227 = vunpack.c.l.b16 %v6710
    %v7228 = vunpack.c.l.b16 %v6711
    %v7229 = vunpack.c.l.b16 %v6712
    %v7230 = vunpack.c.l.b16 %v6713
    %v7231 = vunpack.c.l.b16 %v6714
    %v7232 = vunpack.c.l.b16 %v6715
    %v7233 = vunpack.c.l.b16 %v6716
    %v7234 = vunpack.c.l.b16 %v6717
    %v7235 = vunpack.c.l.b16 %v6718
    %v7236 = vunpack.c.l.b16 %v6719
    %v7237 = vunpack.c.l.b16 %v6720
    %v7238 = vunpack.c.l.b16 %v6721
    %v7239 = vunpack.c.l.b16 %v6722
    %v7240 = vunpack.c.l.b16 %v6723
    %v7241 = vunpack.c.l.b16 %v6724
    %v7242 = vunpack.c.l.b16 %v6725
    %v7243 = vunpack.c.l.b16 %v6726
    %v7244 = vunpack.c.l.b16 %v6727
    %v7245 = vunpack.c.l.b16 %v6728
    %v7246 = vunpack.c.l.b16 %v6729
    %v7247 = vunpack.c.l.b16 %v6730
    %v7248 = vunpack.c.l.b16 %v6731
    %v7249 = vunpack.c.l.b16 %v6732
    %v7250 = vunpack.c.l.b16 %v6733
    %v7251 = vunpack.c.l.b16 %v6734
    %v7252 = vunpack.c.l.b16 %v6735
    %v7253 = vunpack.c.l.b16 %v6736
    %v7254 = vunpack.c.l.b16 %v6737
    %v7255 = vunpack.c.l.b16 %v6738
    %v7256 = vunpack.c.l.b16 %v6739
    %v7257 = vunpack.c.l.b16 %v6740
    %v7258 = vunpack.c.l.b16 %v6741
    %v7259 = vunpack.c.l.b16 %v6742
    %v7260 = vunpack.c.l.b16 %v6743
    %v7261 = vunpack.c.l.b16 %v6744
    %v7262 = vunpack.c.l.b16 %v6745
    %v7263 = vunpack.c.l.b16 %v6746
    %v7264 = vunpack.c.l.b16 %v6747
    %v7265 = vunpack.c.l.b16 %v6748
    %v7266 = vunpack.c.l.b16 %v6749
    %v7267 = vunpack.c.l.b16 %v6750
    %v7268 = vunpack.c.l.b16 %v6751
    %v7269 = vunpack.c.l.b16 %v6752
    %v7270 = vunpack.c.l.b16 %v6753
    %v7271 = vunpack.c.l.b16 %v6754
    %v7272 = vunpack.c.l.b16 %v6755
    %v7273 = vunpack.c.l.b16 %v6756
    %v7274 = vunpack.c.l.b16 %v6757
    %v7275 = vunpack.c.l.b16 %v6758
    %v7276 = vunpack.c.l.b16 %v6759
    %v7277 = vunpack.c.l.b16 %v6760
    %v7278 = vunpack.c.l.b16 %v6761
    %v7279 = vunpack.c.l.b16 %v6762
    %v7280 = vunpack.c.l.b16 %v6763
    %v7281 = vunpack.c.l.b16 %v6764
    %v7282 = vunpack.c.l.b16 %v6765
    %v7283 = vunpack.c.l.b16 %v6766
    %v7284 = vunpack.c.l.b16 %v6767
    %v7285 = vunpack.c.l.b16 %v6768
    %v7286 = vunpack.c.l.b16 %v6769
    %v7287 = vunpack.c.l.b16 %v6770
    %v7288 = vunpack.c.l.b16 %v6771
    %v7289 = vunpack.c.l.b16 %v6772
    %v7290 = vunpack.c.l.b16 %v6773
    %v7291 = vunpack.c.l.b16 %v6774
    %v7292 = vunpack.c.l.b16 %v6775
    %v7293 = vunpack.c.l.b16 %v6776
    %v7294 = vunpack.c.l.b16 %v6777
    %v7295 = vunpack.c.l.b16 %v6778
    %v7296 = vunpack.c.l.b16 %v6779
    %v7297 = vunpack.c.l.b16 %v6780
    %v7298 = vunpack.c.l.b16 %v6781
    %v7299 = vunpack.c.l.b16 %v6782
    %v7300 = vunpack.c.l.b16 %v6783
    %v7301 = vunpack.c.l.b16 %v6784
    %v7302 = vunpack.c.l.b16 %v6785
    %v7303 = vunpack.c.l.b16 %v6786
    %v7304 = vunpack.c.l.b16 %v6787
    %v7305 = vunpack.c.l.b16 %v6788
    %v7306 = vunpack.c.l.b16 %v6789
    %v7307 = vunpack.c.l.b16 %v6790
    %v7308 = vunpack.c.l.b16 %v6791
    %v7309 = vunpack.c.l.b16 %v6792
    %v7310 = vunpack.c.l.b16 %v6793
    %v7311 = vunpack.c.l.b16 %v6794
    %v7312 = vunpack.c.l.b16 %v6795
    %v7313 = vunpack.c.l.b16 %v6796
    %v7314 = vunpack.c.l.b16 %v6797
    %v7315 = vunpack.c.l.b16 %v6798
    %v7316 = vunpack.c.l.b16 %v6799
    %v7317 = vunpack.c.l.b16 %v6800
    %v7318 = vunpack.c.l.b16 %v6801
    %v7319 = vunpack.c.l.b16 %v6802
    %v7320 = vunpack.c.l.b16 %v6803
    %v7321 = vunpack.c.l.b16 %v6804
    %v7322 = vunpack.c.l.b16 %v6805
    %v7323 = vunpack.c.l.b16 %v6806
    %v7324 = vunpack.c.l.b16 %v6807
    %v7325 = vunpack.c.l.b16 %v6808
    %v7326 = vunpack.c.l.b16 %v6809
    %v7327 = vunpack.c.l.b16 %v6810
    %v7328 = vunpack.c.l.b16 %v6811
    %v7329 = vunpack.c.l.b16 %v6812
    %v7330 = vunpack.c.l.b16 %v6813
    %v7331 = vunpack.c.l.b16 %v6814
    %v7332 = vunpack.c.l.b16 %v6815
    %v7333 = vunpack.c.l.b16 %v6816
    %v7334 = vunpack.c.l.b16 %v6817
    %v7335 = vunpack.c.l.b16 %v6818
    %v7336 = vunpack.c.l.b16 %v6819
    %v7337 = vunpack.c.l.b16 %v6820
    %v7338 = vunpack.c.l.b16 %v6821
    %v7339 = vunpack.c.l.b16 %v6822
    %v7340 = vunpack.c.l.b16 %v6823
    %v7341 = vunpack.c.l.b16 %v6824
    %v7342 = vunpack.c.l.b16 %v6825
    %v7343 = vunpack.c.l.b16 %v6826
    %v7344 = vunpack.c.l.b16 %v6827
    %v7345 = vunpack.c.l.b16 %v6828
    %v7346 = vunpack.c.l.b16 %v6829
    %v7347 = vunpack.c.l.b16 %v6830
    %v7348 = vunpack.c.l.b16 %v6831
    %v7349 = vunpack.c.l.b16 %v6832
    %v7350 = vunpack.c.l.b16 %v6833
    %v7351 = vunpack.c.l.b16 %v6834
    %v7352 = vunpack.c.l.b16 %v6835
    %v7353 = vunpack.c.l.b16 %v6836
    %v7354 = vunpack.c.l.b16 %v6837
    %v7355 = vunpack.c.l.b16 %v6838
    %v7356 = vunpack.c.l.b16 %v6839
    %v7357 = vunpack.c.l.b16 %v6840
    %v7358 = vunpack.c.l.b16 %v6841
    %v7359 = vunpack.c.l.b16 %v6842
    %v7360 = vunpack.c.l.b16 %v6843
    %v7361 = vunpack.c.l.b16 %v6844
    %v7362 = vunpack.c.l.b16 %v6845
    %v7363 = vunpack.c.l.b16 %v6846
    %v7364 = vunpack.c.l.b16 %v6847
    %v7365 = vunpack.c.l.b16 %v6848
    %v7366 = vunpack.c.l.b16 %v6849
    %v7367 = vunpack.c.l.b16 %v6850
    %v7368 = vunpack.c.l.b16 %v6851
    %v7369 = vunpack.c.l.b16 %v6852
    %v7370 = vunpack.c.l.b16 %v6853
    %v7371 = vunpack.c.l.b16 %v6854
    %v7372 = vunpack.c.l.b16 %v6855
    %v7373 = vunpack.c.l.b16 %v6856
    %v7374 = vunpack.c.l.b16 %v6857
    %v7375 = vunpack.c.l.b16 %v6858
    %v7376 = vunpack.c.l.b16 %v6859
    %v7377 = vunpack.c.l.b16 %v6860
    %v7378 = vunpack.c.l.b16 %v6861
    %v7379 = vunpack.c.l.b16 %v6862
    %v7380 = vunpack.c.l.b16 %v6863
    %v7381 = vunpack.c.l.b16 %v6864
    %v7382 = vunpack.c.l.b16 %v6865
    %v7383 = vunpack.c.l.b16 %v6866
    %v7384 = vunpack.c.l.b16 %v6867
    %v7385 = vunpack.c.l.b16 %v6868
    %v7386 = vunpack.c.l.b16 %v6869
    %v7387 = vunpack.c.l.b16 %v6870
    %v7388 = vunpack.c.l.b16 %v6871
    %v7389 = vunpack.c.l.b16 %v6872
    %v7390 = vunpack.c.l.b16 %v6873
    %v7391 = vunpack.c.l.b16 %v6874
    %v7392 = vunpack.c.l.b16 %v6875
    %v7393 = vunpack.c.l.b16 %v6876
    %v7394 = vunpack.c.l.b16 %v6877
    %v7395 = vunpack.c.l.b16 %v6878
    %v7396 = vunpack.c.l.b16 %v6879
    %v7397 = vunpack.c.l.b16 %v6880
    %v7398 = vunpack.c.l.b16 %v6881
    %v7399 = vunpack.c.l.b16 %v6882
    %v7400 = vunpack.c.l.b16 %v6883
    %v7401 = vunpack.c.l.b16 %v6884
    %v7402 = vunpack.c.l.b16 %v6885
    %v7403 = vunpack.c.l.b16 %v6886
    %v7404 = vunpack.c.l.b16 %v6887
    %v7405 = vunpack.c.l.b16 %v6888
    %v7406 = vunpack.c.l.b16 %v6889
    %v7407 = vunpack.c.l.b16 %v6890
    %v7408 = vunpack.c.l.b16 %v6891
    %v7409 = vunpack.c.l.b16 %v6892
    %v7410 = vunpack.c.l.b16 %v6893
    %v7411 = vunpack.c.l.b16 %v6894
    %v7412 = vunpack.c.l.b16 %v6895
    %v7413 = vunpack.c.l.b16 %v6896
    %v7414 = vunpack.c.l.b16 %v6897
    %v7415 = vunpack.c.l.b16 %v6898
    %v7416 = vunpack.c.l.b16 %v6899
    %v7417 = vunpack.c.l.b16 %v6900
    %v7418 = vunpack.c.l.b16 %v6901
    %v7419 = vunpack.c.l.b16 %v6902
    %v7420 = vunpack.c.l.b16 %v6903
    %v7421 = vunpack.c.l.b16 %v6904
    %v7422 = vunpack.c.l.b16 %v6905
    %v7423 = vunpack.c.l.b16 %v6906
    %v7424 = vunpack.c.l.b16 %v6907
    %v7425 = vunpack.c.l.b16 %v6908
    %v7426 = vunpack.c.l.b16 %v6909
    %v7427 = vunpack.c.l.b16 %v6910
    %v7428 = vunpack.c.l.b16 %v6911
    %v7429 = vpack.c.b16 %v7174, %v7173
    %v7430 = vpack.c.b16 %v7176, %v7175
    %v7431 = vpack.c.b16 %v7178, %v7177
    %v7432 = vpack.c.b16 %v7180, %v7179
    %v7433 = vpack.c.b16 %v7182, %v7181
    %v7434 = vpack.c.b16 %v7184, %v7183
    %v7435 = vpack.c.b16 %v7186, %v7185
    %v7436 = vpack.c.b16 %v7188, %v7187
    %v7437 = vpack.c.b16 %v7190, %v7189
    %v7438 = vpack.c.b16 %v7192, %v7191
    %v7439 = vpack.c.b16 %v7194, %v7193
    %v7440 = vpack.c.b16 %v7196, %v7195
    %v7441 = vpack.c.b16 %v7198, %v7197
    %v7442 = vpack.c.b16 %v7200, %v7199
    %v7443 = vpack.c.b16 %v7202, %v7201
    %v7444 = vpack.c.b16 %v7204, %v7203
    %v7445 = vpack.c.b16 %v7206, %v7205
    %v7446 = vpack.c.b16 %v7208, %v7207
    %v7447 = vpack.c.b16 %v7210, %v7209
    %v7448 = vpack.c.b16 %v7212, %v7211
    %v7449 = vpack.c.b16 %v7214, %v7213
    %v7450 = vpack.c.b16 %v7216, %v7215
    %v7451 = vpack.c.b16 %v7218, %v7217
    %v7452 = vpack.c.b16 %v7220, %v7219
    %v7453 = vpack.c.b16 %v7222, %v7221
    %v7454 = vpack.c.b16 %v7224, %v7223
    %v7455 = vpack.c.b16 %v7226, %v7225
    %v7456 = vpack.c.b16 %v7228, %v7227
    %v7457 = vpack.c.b16 %v7230, %v7229
    %v7458 = vpack.c.b16 %v7232, %v7231
    %v7459 = vpack.c.b16 %v7234, %v7233
    %v7460 = vpack.c.b16 %v7236, %v7235
    %v7461 = vpack.c.b16 %v7238, %v7237
    %v7462 = vpack.c.b16 %v7240, %v7239
    %v7463 = vpack.c.b16 %v7242, %v7241
    %v7464 = vpack.c.b16 %v7244, %v7243
    %v7465 = vpack.c.b16 %v7246, %v7245
    %v7466 = vpack.c.b16 %v7248, %v7247
    %v7467 = vpack.c.b16 %v7250, %v7249
    %v7468 = vpack.c.b16 %v7252, %v7251
    %v7469 = vpack.c.b16 %v7254, %v7253
    %v7470 = vpack.c.b16 %v7256, %v7255
    %v7471 = vpack.c.b16 %v7258, %v7257
    %v7472 = vpack.c.b16 %v7260, %v7259
    %v7473 = vpack.c.b16 %v7262, %v7261
    %v7474 = vpack.c.b16 %v7264, %v7263
    %v7475 = vpack.c.b16 %v7266, %v7265
    %v7476 = vpack.c.b16 %v7268, %v7267
    %v7477 = vpack.c.b16 %v7270, %v7269
    %v7478 = vpack.c.b16 %v7272, %v7271
    %v7479 = vpack.c.b16 %v7274, %v7273
    %v7480 = vpack.c.b16 %v7276, %v7275
    %v7481 = vpack.c.b16 %v7278, %v7277
    %v7482 = vpack.c.b16 %v7280, %v7279
    %v7483 = vpack.c.b16 %v7282, %v7281
    %v7484 = vpack.c.b16 %v7284, %v7283
    %v7485 = vpack.c.b16 %v7286, %v7285
    %v7486 = vpack.c.b16 %v7288, %v7287
    %v7487 = vpack.c.b16 %v7290, %v7289
    %v7488 = vpack.c.b16 %v7292, %v7291
    %v7489 = vpack.c.b16 %v7294, %v7293
    %v7490 = vpack.c.b16 %v7296, %v7295
    %v7491 = vpack.c.b16 %v7298, %v7297
    %v7492 = vpack.c.b16 %v7300, %v7299
    %v7493 = vpack.c.b16 %v7302, %v7301
    %v7494 = vpack.c.b16 %v7304, %v7303
    %v7495 = vpack.c.b16 %v7306, %v7305
    %v7496 = vpack.c.b16 %v7308, %v7307
    %v7497 = vpack.c.b16 %v7310, %v7309
    %v7498 = vpack.c.b16 %v7312, %v7311
    %v7499 = vpack.c.b16 %v7314, %v7313
    %v7500 = vpack.c.b16 %v7316, %v7315
    %v7501 = vpack.c.b16 %v7318, %v7317
    %v7502 = vpack.c.b16 %v7320, %v7319
    %v7503 = vpack.c.b16 %v7322, %v7321
    %v7504 = vpack.c.b16 %v7324, %v7323
    %v7505 = vpack.c.b16 %v7326, %v7325
    %v7506 = vpack.c.b16 %v7328, %v7327
    %v7507 = vpack.c.b16 %v7330, %v7329
    %v7508 = vpack.c.b16 %v7332, %v7331
    %v7509 = vpack.c.b16 %v7334, %v7333
    %v7510 = vpack.c.b16 %v7336, %v7335
    %v7511 = vpack.c.b16 %v7338, %v7337
    %v7512 = vpack.c.b16 %v7340, %v7339
    %v7513 = vpack.c.b16 %v7342, %v7341
    %v7514 = vpack.c.b16 %v7344, %v7343
    %v7515 = vpack.c.b16 %v7346, %v7345
    %v7516 = vpack.c.b16 %v7348, %v7347
    %v7517 = vpack.c.b16 %v7350, %v7349
    %v7518 = vpack.c.b16 %v7352, %v7351
    %v7519 = vpack.c.b16 %v7354, %v7353
    %v7520 = vpack.c.b16 %v7356, %v7355
    %v7521 = vpack.c.b16 %v7358, %v7357
    %v7522 = vpack.c.b16 %v7360, %v7359
    %v7523 = vpack.c.b16 %v7362, %v7361
    %v7524 = vpack.c.b16 %v7364, %v7363
    %v7525 = vpack.c.b16 %v7366, %v7365
    %v7526 = vpack.c.b16 %v7368, %v7367
    %v7527 = vpack.c.b16 %v7370, %v7369
    %v7528 = vpack.c.b16 %v7372, %v7371
    %v7529 = vpack.c.b16 %v7374, %v7373
    %v7530 = vpack.c.b16 %v7376, %v7375
    %v7531 = vpack.c.b16 %v7378, %v7377
    %v7532 = vpack.c.b16 %v7380, %v7379
    %v7533 = vpack.c.b16 %v7382, %v7381
    %v7534 = vpack.c.b16 %v7384, %v7383
    %v7535 = vpack.c.b16 %v7386, %v7385
    %v7536 = vpack.c.b16 %v7388, %v7387
    %v7537 = vpack.c.b16 %v7390, %v7389
    %v7538 = vpack.c.b16 %v7392, %v7391
    %v7539 = vpack.c.b16 %v7394, %v7393
    %v7540 = vpack.c.b16 %v7396, %v7395
    %v7541 = vpack.c.b16 %v7398, %v7397
    %v7542 = vpack.c.b16 %v7400, %v7399
    %v7543 = vpack.c.b16 %v7402, %v7401
    %v7544 = vpack.c.b16 %v7404, %v7403
    %v7545 = vpack.c.b16 %v7406, %v7405
    %v7546 = vpack.c.b16 %v7408, %v7407
    %v7547 = vpack.c.b16 %v7410, %v7409
    %v7548 = vpack.c.b16 %v7412, %v7411
    %v7549 = vpack.c.b16 %v7414, %v7413
    %v7550 = vpack.c.b16 %v7416, %v7415
    %v7551 = vpack.c.b16 %v7418, %v7417
    %v7552 = vpack.c.b16 %v7420, %v7419
    %v7553 = vpack.c.b16 %v7422, %v7421
    %v7554 = vpack.c.b16 %v7424, %v7423
    %v7555 = vpack.c.b16 %v7426, %v7425
    %v7556 = vpack.c.b16 %v7428, %v7427
    %7685 = vmatprep.subr.bf16.mxu0 0
    %7686 = vmatpush1.bf16.msra.mxu0 %v7429
    %7687 = vmatprep.subr.bf16.mxu0 0
    %7688 = vmatpush1.bf16.msra.mxu0 %v7430
    %7689 = vmatprep.subr.bf16.mxu0 0
    %7690 = vmatpush1.bf16.msra.mxu0 %v7431
    %7691 = vmatprep.subr.bf16.mxu0 0
    %7692 = vmatpush1.bf16.msra.mxu0 %v7432
    %7693 = vmatprep.subr.bf16.mxu0 0
    %7694 = vmatpush1.bf16.msra.mxu0 %v7433
    %7695 = vmatprep.subr.bf16.mxu0 0
    %7696 = vmatpush1.bf16.msra.mxu0 %v7434
    %7697 = vmatprep.subr.bf16.mxu0 0
    %7698 = vmatpush1.bf16.msra.mxu0 %v7435
    %7699 = vmatprep.subr.bf16.mxu0 0
    %7700 = vmatpush1.bf16.msra.mxu0 %v7436
    %7701 = vmatprep.subr.bf16.mxu0 0
    %7702 = vmatpush1.bf16.msra.mxu0 %v7437
    %7703 = vmatprep.subr.bf16.mxu0 0
    %7704 = vmatpush1.bf16.msra.mxu0 %v7438
    %7705 = vmatprep.subr.bf16.mxu0 0
    %7706 = vmatpush1.bf16.msra.mxu0 %v7439
    %7707 = vmatprep.subr.bf16.mxu0 0
    %7708 = vmatpush1.bf16.msra.mxu0 %v7440
    %7709 = vmatprep.subr.bf16.mxu0 0
    %7710 = vmatpush1.bf16.msra.mxu0 %v7441
    %7711 = vmatprep.subr.bf16.mxu0 0
    %7712 = vmatpush1.bf16.msra.mxu0 %v7442
    %7713 = vmatprep.subr.bf16.mxu0 0
    %7714 = vmatpush1.bf16.msra.mxu0 %v7443
    %7715 = vmatprep.subr.bf16.mxu0 0
    %7716 = vmatpush1.bf16.msra.mxu0 %v7444
    %7717 = vmatprep.mubr.bf16.mxu0 %v6592
    %7718 = vmatmul.mubr.bf16.gmra.mrb[0].mxu0 %v6591
    %v7719 = vpop.f32.mrb[0].mxu0
    %v7720 = vadd.f32 %v6916, %v7719
    %v7721 = vpop.f32.mrb[0].mxu0
    %v7722 = vpop.f32.mrb[0].mxu0
    %v7723 = vadd.f32 %v6916, %v7722
    %v7724 = vpop.f32.mrb[0].mxu0
    %7725 = vmatprep.mubr.bf16.mxu0 %v6608
    %7726 = vmatmul.mubr.bf16.gmra.mrb[0].mxu0 %v6607
    %v7727 = vpop.f32.mrb[0].mxu0
    %v7728 = vadd.f32 %v6916, %v7727
    %v7729 = vpop.f32.mrb[0].mxu0
    %v7730 = vpop.f32.mrb[0].mxu0
    %v7731 = vadd.f32 %v6916, %v7730
    %v7732 = vpop.f32.mrb[0].mxu0
    %7733 = vmatprep.mubr.bf16.mxu0 %v6624
    %7734 = vmatmul.mubr.bf16.gmra.mrb[0].mxu0 %v6623
    %v7735 = vpop.f32.mrb[0].mxu0
    %v7736 = vadd.f32 %v6916, %v7735
    %v7737 = vpop.f32.mrb[0].mxu0
    %v7738 = vpop.f32.mrb[0].mxu0
    %v7739 = vadd.f32 %v6916, %v7738
    %v7740 = vpop.f32.mrb[0].mxu0
    %7741 = vmatprep.mubr.bf16.mxu0 %v6640
    %7742 = vmatmul.mubr.bf16.gmra.mrb[0].mxu0 %v6639
    %v7743 = vpop.f32.mrb[0].mxu0
    %v7744 = vadd.f32 %v6916, %v7743
    %v7745 = vpop.f32.mrb[0].mxu0
    %v7746 = vpop.f32.mrb[0].mxu0
    %v7747 = vadd.f32 %v6916, %v7746
    %v7748 = vpop.f32.mrb[0].mxu0
    %7749 = vdwg.mxu0
    %7750 = vmatprep.subr.bf16.mxu0 0
    %7751 = vmatpush1.bf16.msra.mxu0 %v7445
    %7752 = vmatprep.subr.bf16.mxu0 0
    %7753 = vmatpush1.bf16.msra.mxu0 %v7446
    %7754 = vmatprep.subr.bf16.mxu0 0
    %7755 = vmatpush1.bf16.msra.mxu0 %v7447
    %7756 = vmatprep.subr.bf16.mxu0 0
    %7757 = vmatpush1.bf16.msra.mxu0 %v7448
    %7758 = vmatprep.subr.bf16.mxu0 0
    %7759 = vmatpush1.bf16.msra.mxu0 %v7449
    %7760 = vmatprep.subr.bf16.mxu0 0
    %7761 = vmatpush1.bf16.msra.mxu0 %v7450
    %7762 = vmatprep.subr.bf16.mxu0 0
    %7763 = vmatpush1.bf16.msra.mxu0 %v7451
    %7764 = vmatprep.subr.bf16.mxu0 0
    %7765 = vmatpush1.bf16.msra.mxu0 %v7452
    %7766 = vmatprep.subr.bf16.mxu0 0
    %7767 = vmatpush1.bf16.msra.mxu0 %v7453
    %7768 = vmatprep.subr.bf16.mxu0 0
    %7769 = vmatpush1.bf16.msra.mxu0 %v7454
    %7770 = vmatprep.subr.bf16.mxu0 0
    %7771 = vmatpush1.bf16.msra.mxu0 %v7455
    %7772 = vmatprep.subr.bf16.mxu0 0
    %7773 = vmatpush1.bf16.msra.mxu0 %v7456
    %7774 = vmatprep.subr.bf16.mxu0 0
    %7775 = vmatpush1.bf16.msra.mxu0 %v7457
    %7776 = vmatprep.subr.bf16.mxu0 0
    %7777 = vmatpush1.bf16.msra.mxu0 %v7458
    %7778 = vmatprep.subr.bf16.mxu0 0
    %7779 = vmatpush1.bf16.msra.mxu0 %v7459
    %7780 = vmatprep.subr.bf16.mxu0 0
    %7781 = vmatpush1.bf16.msra.mxu0 %v7460
    %7782 = vmatprep.mubr.bf16.mxu0 %v6594
    %7783 = vmatmul.mubr.bf16.gmra.mrb[0].mxu0 %v6593
    %v7784 = vpop.f32.mrb[0].mxu0
    %v7785 = vadd.f32 %v7720, %v7784
    %v7786 = vpop.f32.mrb[0].mxu0
    %v7787 = vpop.f32.mrb[0].mxu0
    %v7788 = vadd.f32 %v7723, %v7787
    %v7789 = vpop.f32.mrb[0].mxu0
    %7790 = vmatprep.mubr.bf16.mxu0 %v6610
    %7791 = vmatmul.mubr.bf16.gmra.mrb[0].mxu0 %v6609
    %v7792 = vpop.f32.mrb[0].mxu0
    %v7793 = vadd.f32 %v7728, %v7792
    %v7794 = vpop.f32.mrb[0].mxu0
    %v7795 = vpop.f32.mrb[0].mxu0
    %v7796 = vadd.f32 %v7731, %v7795
    %v7797 = vpop.f32.mrb[0].mxu0
    %7798 = vmatprep.mubr.bf16.mxu0 %v6626
    %7799 = vmatmul.mubr.bf16.gmra.mrb[0].mxu0 %v6625
    %v7800 = vpop.f32.mrb[0].mxu0
    %v7801 = vadd.f32 %v7736, %v7800
    %v7802 = vpop.f32.mrb[0].mxu0
    %v7803 = vpop.f32.mrb[0].mxu0
    %v7804 = vadd.f32 %v7739, %v7803
    %v7805 = vpop.f32.mrb[0].mxu0
    %7806 = vmatprep.mubr.bf16.mxu0 %v6642
    %7807 = vmatmul.mubr.bf16.gmra.mrb[0].mxu0 %v6641
    %v7808 = vpop.f32.mrb[0].mxu0
    %v7809 = vadd.f32 %v7744, %v7808
    %v7810 = vpop.f32.mrb[0].mxu0
    %v7811 = vpop.f32.mrb[0].mxu0
    %v7812 = vadd.f32 %v7747, %v7811
    %v7813 = vpop.f32.mrb[0].mxu0
    %7814 = vdwg.mxu0
    %7815 = vmatprep.subr.bf16.mxu0 0
    %7816 = vmatpush1.bf16.msra.mxu0 %v7461
    %7817 = vmatprep.subr.bf16.mxu0 0
    %7818 = vmatpush1.bf16.msra.mxu0 %v7462
    %7819 = vmatprep.subr.bf16.mxu0 0
    %7820 = vmatpush1.bf16.msra.mxu0 %v7463
    %7821 = vmatprep.subr.bf16.mxu0 0
    %7822 = vmatpush1.bf16.msra.mxu0 %v7464
    %7823 = vmatprep.subr.bf16.mxu0 0
    %7824 = vmatpush1.bf16.msra.mxu0 %v7465
    %7825 = vmatprep.subr.bf16.mxu0 0
    %7826 = vmatpush1.bf16.msra.mxu0 %v7466
    %7827 = vmatprep.subr.bf16.mxu0 0
    %7828 = vmatpush1.bf16.msra.mxu0 %v7467
    %7829 = vmatprep.subr.bf16.mxu0 0
    %7830 = vmatpush1.bf16.msra.mxu0 %v7468
    %7831 = vmatprep.subr.bf16.mxu0 0
    %7832 = vmatpush1.bf16.msra.mxu0 %v7469
    %7833 = vmatprep.subr.bf16.mxu0 0
    %7834 = vmatpush1.bf16.msra.mxu0 %v7470
    %7835 = vmatprep.subr.bf16.mxu0 0
    %7836 = vmatpush1.bf16.msra.mxu0 %v7471
    %7837 = vmatprep.subr.bf16.mxu0 0
    %7838 = vmatpush1.bf16.msra.mxu0 %v7472
    %7839 = vmatprep.subr.bf16.mxu0 0
    %7840 = vmatpush1.bf16.msra.mxu0 %v7473
    %7841 = vmatprep.subr.bf16.mxu0 0
    %7842 = vmatpush1.bf16.msra.mxu0 %v7474
    %7843 = vmatprep.subr.bf16.mxu0 0
    %7844 = vmatpush1.bf16.msra.mxu0 %v7475
    %7845 = vmatprep.subr.bf16.mxu0 0
    %7846 = vmatpush1.bf16.msra.mxu0 %v7476
    %7847 = vmatprep.mubr.bf16.mxu0 %v6596
    %7848 = vmatmul.mubr.bf16.gmra.mrb[0].mxu0 %v6595
    %v7849 = vpop.f32.mrb[0].mxu0
    %v7850 = vadd.f32 %v7785, %v7849
    %v7851 = vpop.f32.mrb[0].mxu0
    %v7852 = vpop.f32.mrb[0].mxu0
    %v7853 = vadd.f32 %v7788, %v7852
    %v7854 = vpop.f32.mrb[0].mxu0
    %7855 = vmatprep.mubr.bf16.mxu0 %v6612
    %7856 = vmatmul.mubr.bf16.gmra.mrb[0].mxu0 %v6611
    %v7857 = vpop.f32.mrb[0].mxu0
    %v7858 = vadd.f32 %v7793, %v7857
    %v7859 = vpop.f32.mrb[0].mxu0
    %v7860 = vpop.f32.mrb[0].mxu0
    %v7861 = vadd.f32 %v7796, %v7860
    %v7862 = vpop.f32.mrb[0].mxu0
    %7863 = vmatprep.mubr.bf16.mxu0 %v6628
    %7864 = vmatmul.mubr.bf16.gmra.mrb[0].mxu0 %v6627
    %v7865 = vpop.f32.mrb[0].mxu0
    %v7866 = vadd.f32 %v7801, %v7865
    %v7867 = vpop.f32.mrb[0].mxu0
    %v7868 = vpop.f32.mrb[0].mxu0
    %v7869 = vadd.f32 %v7804, %v7868
    %v7870 = vpop.f32.mrb[0].mxu0
    %7871 = vmatprep.mubr.bf16.mxu0 %v6644
    %7872 = vmatmul.mubr.bf16.gmra.mrb[0].mxu0 %v6643
    %v7873 = vpop.f32.mrb[0].mxu0
    %v7874 = vadd.f32 %v7809, %v7873
    %v7875 = vpop.f32.mrb[0].mxu0
    %v7876 = vpop.f32.mrb[0].mxu0
    %v7877 = vadd.f32 %v7812, %v7876
    %v7878 = vpop.f32.mrb[0].mxu0
    %7879 = vdwg.mxu0
    %7880 = vmatprep.subr.bf16.mxu0 0
    %7881 = vmatpush1.bf16.msra.mxu0 %v7477
    %7882 = vmatprep.subr.bf16.mxu0 0
    %7883 = vmatpush1.bf16.msra.mxu0 %v7478
    %7884 = vmatprep.subr.bf16.mxu0 0
    %7885 = vmatpush1.bf16.msra.mxu0 %v7479
    %7886 = vmatprep.subr.bf16.mxu0 0
    %7887 = vmatpush1.bf16.msra.mxu0 %v7480
    %7888 = vmatprep.subr.bf16.mxu0 0
    %7889 = vmatpush1.bf16.msra.mxu0 %v7481
    %7890 = vmatprep.subr.bf16.mxu0 0
    %7891 = vmatpush1.bf16.msra.mxu0 %v7482
    %7892 = vmatprep.subr.bf16.mxu0 0
    %7893 = vmatpush1.bf16.msra.mxu0 %v7483
    %7894 = vmatprep.subr.bf16.mxu0 0
    %7895 = vmatpush1.bf16.msra.mxu0 %v7484
    %7896 = vmatprep.subr.bf16.mxu0 0
    %7897 = vmatpush1.bf16.msra.mxu0 %v7485
    %7898 = vmatprep.subr.bf16.mxu0 0
    %7899 = vmatpush1.bf16.msra.mxu0 %v7486
    %7900 = vmatprep.subr.bf16.mxu0 0
    %7901 = vmatpush1.bf16.msra.mxu0 %v7487
    %7902 = vmatprep.subr.bf16.mxu0 0
    %7903 = vmatpush1.bf16.msra.mxu0 %v7488
    %7904 = vmatprep.subr.bf16.mxu0 0
    %7905 = vmatpush1.bf16.msra.mxu0 %v7489
    %7906 = vmatprep.subr.bf16.mxu0 0
    %7907 = vmatpush1.bf16.msra.mxu0 %v7490
    %7908 = vmatprep.subr.bf16.mxu0 0
    %7909 = vmatpush1.bf16.msra.mxu0 %v7491
    %7910 = vmatprep.subr.bf16.mxu0 0
    %7911 = vmatpush1.bf16.msra.mxu0 %v7492
    %7912 = vmatprep.mubr.bf16.mxu0 %v6598
    %7913 = vmatmul.mubr.bf16.gmra.mrb[0].mxu0 %v6597
    %v7914 = vpop.f32.mrb[0].mxu0
    %v7915 = vadd.f32 %v7850, %v7914
    %v7916 = vpop.f32.mrb[0].mxu0
    %v7917 = vpop.f32.mrb[0].mxu0
    %v7918 = vadd.f32 %v7853, %v7917
    %v7919 = vpop.f32.mrb[0].mxu0
    %7920 = vmatprep.mubr.bf16.mxu0 %v6614
    %7921 = vmatmul.mubr.bf16.gmra.mrb[0].mxu0 %v6613
    %v7922 = vpop.f32.mrb[0].mxu0
    %v7923 = vadd.f32 %v7858, %v7922
    %v7924 = vpop.f32.mrb[0].mxu0
    %v7925 = vpop.f32.mrb[0].mxu0
    %v7926 = vadd.f32 %v7861, %v7925
    %v7927 = vpop.f32.mrb[0].mxu0
    %7928 = vmatprep.mubr.bf16.mxu0 %v6630
    %7929 = vmatmul.mubr.bf16.gmra.mrb[0].mxu0 %v6629
    %v7930 = vpop.f32.mrb[0].mxu0
    %v7931 = vadd.f32 %v7866, %v7930
    %v7932 = vpop.f32.mrb[0].mxu0
    %v7933 = vpop.f32.mrb[0].mxu0
    %v7934 = vadd.f32 %v7869, %v7933
    %v7935 = vpop.f32.mrb[0].mxu0
    %7936 = vmatprep.mubr.bf16.mxu0 %v6646
    %7937 = vmatmul.mubr.bf16.gmra.mrb[0].mxu0 %v6645
    %v7938 = vpop.f32.mrb[0].mxu0
    %v7939 = vadd.f32 %v7874, %v7938
    %v7940 = vpop.f32.mrb[0].mxu0
    %v7941 = vpop.f32.mrb[0].mxu0
    %v7942 = vadd.f32 %v7877, %v7941
    %v7943 = vpop.f32.mrb[0].mxu0
    %7944 = vdwg.mxu0
    %7945 = vmatprep.subr.bf16.mxu0 0
    %7946 = vmatpush1.bf16.msra.mxu0 %v7493
    %7947 = vmatprep.subr.bf16.mxu0 0
    %7948 = vmatpush1.bf16.msra.mxu0 %v7494
    %7949 = vmatprep.subr.bf16.mxu0 0
    %7950 = vmatpush1.bf16.msra.mxu0 %v7495
    %7951 = vmatprep.subr.bf16.mxu0 0
    %7952 = vmatpush1.bf16.msra.mxu0 %v7496
    %7953 = vmatprep.subr.bf16.mxu0 0
    %7954 = vmatpush1.bf16.msra.mxu0 %v7497
    %7955 = vmatprep.subr.bf16.mxu0 0
    %7956 = vmatpush1.bf16.msra.mxu0 %v7498
    %7957 = vmatprep.subr.bf16.mxu0 0
    %7958 = vmatpush1.bf16.msra.mxu0 %v7499
    %7959 = vmatprep.subr.bf16.mxu0 0
    %7960 = vmatpush1.bf16.msra.mxu0 %v7500
    %7961 = vmatprep.subr.bf16.mxu0 0
    %7962 = vmatpush1.bf16.msra.mxu0 %v7501
    %7963 = vmatprep.subr.bf16.mxu0 0
    %7964 = vmatpush1.bf16.msra.mxu0 %v7502
    %7965 = vmatprep.subr.bf16.mxu0 0
    %7966 = vmatpush1.bf16.msra.mxu0 %v7503
    %7967 = vmatprep.subr.bf16.mxu0 0
    %7968 = vmatpush1.bf16.msra.mxu0 %v7504
    %7969 = vmatprep.subr.bf16.mxu0 0
    %7970 = vmatpush1.bf16.msra.mxu0 %v7505
    %7971 = vmatprep.subr.bf16.mxu0 0
    %7972 = vmatpush1.bf16.msra.mxu0 %v7506
    %7973 = vmatprep.subr.bf16.mxu0 0
    %7974 = vmatpush1.bf16.msra.mxu0 %v7507
    %7975 = vmatprep.subr.bf16.mxu0 0
    %7976 = vmatpush1.bf16.msra.mxu0 %v7508
    %7977 = vmatprep.mubr.bf16.mxu0 %v6600
    %7978 = vmatmul.mubr.bf16.gmra.mrb[0].mxu0 %v6599
    %v7979 = vpop.f32.mrb[0].mxu0
    %v7980 = vadd.f32 %v7915, %v7979
    %v7981 = vpop.f32.mrb[0].mxu0
    %v7982 = vpop.f32.mrb[0].mxu0
    %v7983 = vadd.f32 %v7918, %v7982
    %v7984 = vpop.f32.mrb[0].mxu0
    %7985 = vmatprep.mubr.bf16.mxu0 %v6616
    %7986 = vmatmul.mubr.bf16.gmra.mrb[0].mxu0 %v6615
    %v7987 = vpop.f32.mrb[0].mxu0
    %v7988 = vadd.f32 %v7923, %v7987
    %v7989 = vpop.f32.mrb[0].mxu0
    %v7990 = vpop.f32.mrb[0].mxu0
    %v7991 = vadd.f32 %v7926, %v7990
    %v7992 = vpop.f32.mrb[0].mxu0
    %7993 = vmatprep.mubr.bf16.mxu0 %v6632
    %7994 = vmatmul.mubr.bf16.gmra.mrb[0].mxu0 %v6631
    %v7995 = vpop.f32.mrb[0].mxu0
    %v7996 = vadd.f32 %v7931, %v7995
    %v7997 = vpop.f32.mrb[0].mxu0
    %v7998 = vpop.f32.mrb[0].mxu0
    %v7999 = vadd.f32 %v7934, %v7998
    %v8000 = vpop.f32.mrb[0].mxu0
    %8001 = vmatprep.mubr.bf16.mxu0 %v6648
    %8002 = vmatmul.mubr.bf16.gmra.mrb[0].mxu0 %v6647
    %v8003 = vpop.f32.mrb[0].mxu0
    %v8004 = vadd.f32 %v7939, %v8003
    %v8005 = vpop.f32.mrb[0].mxu0
    %v8006 = vpop.f32.mrb[0].mxu0
    %v8007 = vadd.f32 %v7942, %v8006
    %v8008 = vpop.f32.mrb[0].mxu0
    %8009 = vdwg.mxu0
    %8010 = vmatprep.subr.bf16.mxu0 0
    %8011 = vmatpush1.bf16.msra.mxu0 %v7509
    %8012 = vmatprep.subr.bf16.mxu0 0
    %8013 = vmatpush1.bf16.msra.mxu0 %v7510
    %8014 = vmatprep.subr.bf16.mxu0 0
    %8015 = vmatpush1.bf16.msra.mxu0 %v7511
    %8016 = vmatprep.subr.bf16.mxu0 0
    %8017 = vmatpush1.bf16.msra.mxu0 %v7512
    %8018 = vmatprep.subr.bf16.mxu0 0
    %8019 = vmatpush1.bf16.msra.mxu0 %v7513
    %8020 = vmatprep.subr.bf16.mxu0 0
    %8021 = vmatpush1.bf16.msra.mxu0 %v7514
    %8022 = vmatprep.subr.bf16.mxu0 0
    %8023 = vmatpush1.bf16.msra.mxu0 %v7515
    %8024 = vmatprep.subr.bf16.mxu0 0
    %8025 = vmatpush1.bf16.msra.mxu0 %v7516
    %8026 = vmatprep.subr.bf16.mxu0 0
    %8027 = vmatpush1.bf16.msra.mxu0 %v7517
    %8028 = vmatprep.subr.bf16.mxu0 0
    %8029 = vmatpush1.bf16.msra.mxu0 %v7518
    %8030 = vmatprep.subr.bf16.mxu0 0
    %8031 = vmatpush1.bf16.msra.mxu0 %v7519
    %8032 = vmatprep.subr.bf16.mxu0 0
    %8033 = vmatpush1.bf16.msra.mxu0 %v7520
    %8034 = vmatprep.subr.bf16.mxu0 0
    %8035 = vmatpush1.bf16.msra.mxu0 %v7521
    %8036 = vmatprep.subr.bf16.mxu0 0
    %8037 = vmatpush1.bf16.msra.mxu0 %v7522
    %8038 = vmatprep.subr.bf16.mxu0 0
    %8039 = vmatpush1.bf16.msra.mxu0 %v7523
    %8040 = vmatprep.subr.bf16.mxu0 0
    %8041 = vmatpush1.bf16.msra.mxu0 %v7524
    %8042 = vmatprep.mubr.bf16.mxu0 %v6602
    %8043 = vmatmul.mubr.bf16.gmra.mrb[0].mxu0 %v6601
    %v8044 = vpop.f32.mrb[0].mxu0
    %v8045 = vadd.f32 %v7980, %v8044
    %v8046 = vpop.f32.mrb[0].mxu0
    %v8047 = vpop.f32.mrb[0].mxu0
    %v8048 = vadd.f32 %v7983, %v8047
    %v8049 = vpop.f32.mrb[0].mxu0
    %8050 = vmatprep.mubr.bf16.mxu0 %v6618
    %8051 = vmatmul.mubr.bf16.gmra.mrb[0].mxu0 %v6617
    %v8052 = vpop.f32.mrb[0].mxu0
    %v8053 = vadd.f32 %v7988, %v8052
    %v8054 = vpop.f32.mrb[0].mxu0
    %v8055 = vpop.f32.mrb[0].mxu0
    %v8056 = vadd.f32 %v7991, %v8055
    %v8057 = vpop.f32.mrb[0].mxu0
    %8058 = vmatprep.mubr.bf16.mxu0 %v6634
    %8059 = vmatmul.mubr.bf16.gmra.mrb[0].mxu0 %v6633
    %v8060 = vpop.f32.mrb[0].mxu0
    %v8061 = vadd.f32 %v7996, %v8060
    %v8062 = vpop.f32.mrb[0].mxu0
    %v8063 = vpop.f32.mrb[0].mxu0
    %v8064 = vadd.f32 %v7999, %v8063
    %v8065 = vpop.f32.mrb[0].mxu0
    %8066 = vmatprep.mubr.bf16.mxu0 %v6650
    %8067 = vmatmul.mubr.bf16.gmra.mrb[0].mxu0 %v6649
    %v8068 = vpop.f32.mrb[0].mxu0
    %v8069 = vadd.f32 %v8004, %v8068
    %v8070 = vpop.f32.mrb[0].mxu0
    %v8071 = vpop.f32.mrb[0].mxu0
    %v8072 = vadd.f32 %v8007, %v8071
    %v8073 = vpop.f32.mrb[0].mxu0
    %8074 = vdwg.mxu0
    %8075 = vmatprep.subr.bf16.mxu0 0
    %8076 = vmatpush1.bf16.msra.mxu0 %v7525
    %8077 = vmatprep.subr.bf16.mxu0 0
    %8078 = vmatpush1.bf16.msra.mxu0 %v7526
    %8079 = vmatprep.subr.bf16.mxu0 0
    %8080 = vmatpush1.bf16.msra.mxu0 %v7527
    %8081 = vmatprep.subr.bf16.mxu0 0
    %8082 = vmatpush1.bf16.msra.mxu0 %v7528
    %8083 = vmatprep.subr.bf16.mxu0 0
    %8084 = vmatpush1.bf16.msra.mxu0 %v7529
    %8085 = vmatprep.subr.bf16.mxu0 0
    %8086 = vmatpush1.bf16.msra.mxu0 %v7530
    %8087 = vmatprep.subr.bf16.mxu0 0
    %8088 = vmatpush1.bf16.msra.mxu0 %v7531
    %8089 = vmatprep.subr.bf16.mxu0 0
    %8090 = vmatpush1.bf16.msra.mxu0 %v7532
    %8091 = vmatprep.subr.bf16.mxu0 0
    %8092 = vmatpush1.bf16.msra.mxu0 %v7533
    %8093 = vmatprep.subr.bf16.mxu0 0
    %8094 = vmatpush1.bf16.msra.mxu0 %v7534
    %8095 = vmatprep.subr.bf16.mxu0 0
    %8096 = vmatpush1.bf16.msra.mxu0 %v7535
    %8097 = vmatprep.subr.bf16.mxu0 0
    %8098 = vmatpush1.bf16.msra.mxu0 %v7536
    %8099 = vmatprep.subr.bf16.mxu0 0
    %8100 = vmatpush1.bf16.msra.mxu0 %v7537
    %8101 = vmatprep.subr.bf16.mxu0 0
    %8102 = vmatpush1.bf16.msra.mxu0 %v7538
    %8103 = vmatprep.subr.bf16.mxu0 0
    %8104 = vmatpush1.bf16.msra.mxu0 %v7539
    %8105 = vmatprep.subr.bf16.mxu0 0
    %8106 = vmatpush1.bf16.msra.mxu0 %v7540
    %8107 = vmatprep.mubr.bf16.mxu0 %v6604
    %8108 = vmatmul.mubr.bf16.gmra.mrb[0].mxu0 %v6603
    %v8109 = vpop.f32.mrb[0].mxu0
    %v8110 = vadd.f32 %v8045, %v8109
    %v8111 = vpop.f32.mrb[0].mxu0
    %v8112 = vpop.f32.mrb[0].mxu0
    %v8113 = vadd.f32 %v8048, %v8112
    %v8114 = vpop.f32.mrb[0].mxu0
    %8115 = vmatprep.mubr.bf16.mxu0 %v6620
    %8116 = vmatmul.mubr.bf16.gmra.mrb[0].mxu0 %v6619
    %v8117 = vpop.f32.mrb[0].mxu0
    %v8118 = vadd.f32 %v8053, %v8117
    %v8119 = vpop.f32.mrb[0].mxu0
    %v8120 = vpop.f32.mrb[0].mxu0
    %v8121 = vadd.f32 %v8056, %v8120
    %v8122 = vpop.f32.mrb[0].mxu0
    %8123 = vmatprep.mubr.bf16.mxu0 %v6636
    %8124 = vmatmul.mubr.bf16.gmra.mrb[0].mxu0 %v6635
    %v8125 = vpop.f32.mrb[0].mxu0
    %v8126 = vadd.f32 %v8061, %v8125
    %v8127 = vpop.f32.mrb[0].mxu0
    %v8128 = vpop.f32.mrb[0].mxu0
    %v8129 = vadd.f32 %v8064, %v8128
    %v8130 = vpop.f32.mrb[0].mxu0
    %8131 = vmatprep.mubr.bf16.mxu0 %v6652
    %8132 = vmatmul.mubr.bf16.gmra.mrb[0].mxu0 %v6651
    %v8133 = vpop.f32.mrb[0].mxu0
    %v8134 = vadd.f32 %v8069, %v8133
    %v8135 = vpop.f32.mrb[0].mxu0
    %v8136 = vpop.f32.mrb[0].mxu0
    %v8137 = vadd.f32 %v8072, %v8136
    %v8138 = vpop.f32.mrb[0].mxu0
    %8139 = vdwg.mxu0
    %8140 = vmatprep.subr.bf16.mxu0 0
    %8141 = vmatpush1.bf16.msra.mxu0 %v7541
    %8142 = vmatprep.subr.bf16.mxu0 0
    %8143 = vmatpush1.bf16.msra.mxu0 %v7542
    %8144 = vmatprep.subr.bf16.mxu0 0
    %8145 = vmatpush1.bf16.msra.mxu0 %v7543
    %8146 = vmatprep.subr.bf16.mxu0 0
    %8147 = vmatpush1.bf16.msra.mxu0 %v7544
    %8148 = vmatprep.subr.bf16.mxu0 0
    %8149 = vmatpush1.bf16.msra.mxu0 %v7545
    %8150 = vmatprep.subr.bf16.mxu0 0
    %8151 = vmatpush1.bf16.msra.mxu0 %v7546
    %8152 = vmatprep.subr.bf16.mxu0 0
    %8153 = vmatpush1.bf16.msra.mxu0 %v7547
    %8154 = vmatprep.subr.bf16.mxu0 0
    %8155 = vmatpush1.bf16.msra.mxu0 %v7548
    %8156 = vmatprep.subr.bf16.mxu0 0
    %8157 = vmatpush1.bf16.msra.mxu0 %v7549
    %8158 = vmatprep.subr.bf16.mxu0 0
    %8159 = vmatpush1.bf16.msra.mxu0 %v7550
    %8160 = vmatprep.subr.bf16.mxu0 0
    %8161 = vmatpush1.bf16.msra.mxu0 %v7551
    %8162 = vmatprep.subr.bf16.mxu0 0
    %8163 = vmatpush1.bf16.msra.mxu0 %v7552
    %8164 = vmatprep.subr.bf16.mxu0 0
    %8165 = vmatpush1.bf16.msra.mxu0 %v7553
    %8166 = vmatprep.subr.bf16.mxu0 0
    %8167 = vmatpush1.bf16.msra.mxu0 %v7554
    %8168 = vmatprep.subr.bf16.mxu0 0
    %8169 = vmatpush1.bf16.msra.mxu0 %v7555
    %8170 = vmatprep.subr.bf16.mxu0 0
    %8171 = vmatpush1.bf16.msra.mxu0 %v7556
    %8172 = vmatprep.mubr.bf16.mxu0 %v6606
    %8173 = vmatmul.mubr.bf16.gmra.mrb[0].mxu0 %v6605
    %v8174 = vpop.f32.mrb[0].mxu0
    %v8175 = vadd.f32 %v8110, %v8174
    %v8176 = vpop.f32.mrb[0].mxu0
    %v8177 = vpop.f32.mrb[0].mxu0
    %v8178 = vadd.f32 %v8113, %v8177
    %v8179 = vpop.f32.mrb[0].mxu0
    %8180 = vmatprep.mubr.bf16.mxu0 %v6622
    %8181 = vmatmul.mubr.bf16.gmra.mrb[0].mxu0 %v6621
    %v8182 = vpop.f32.mrb[0].mxu0
    %v8183 = vadd.f32 %v8118, %v8182
    %v8184 = vpop.f32.mrb[0].mxu0
    %v8185 = vpop.f32.mrb[0].mxu0
    %v8186 = vadd.f32 %v8121, %v8185
    %v8187 = vpop.f32.mrb[0].mxu0
    %8188 = vmatprep.mubr.bf16.mxu0 %v6638
    %8189 = vmatmul.mubr.bf16.gmra.mrb[0].mxu0 %v6637
    %v8190 = vpop.f32.mrb[0].mxu0
    %v8191 = vadd.f32 %v8126, %v8190
    %v8192 = vpop.f32.mrb[0].mxu0
    %v8193 = vpop.f32.mrb[0].mxu0
    %v8194 = vadd.f32 %v8129, %v8193
    %v8195 = vpop.f32.mrb[0].mxu0
    %8196 = vmatprep.mubr.bf16.mxu0 %v6654
    %8197 = vmatmul.mubr.bf16.gmra.mrb[0].mxu0 %v6653
    %v8198 = vpop.f32.mrb[0].mxu0
    %v8199 = vadd.f32 %v8134, %v8198
    %v8200 = vpop.f32.mrb[0].mxu0
    %v8201 = vpop.f32.mrb[0].mxu0
    %v8202 = vadd.f32 %v8137, %v8201
    %v8203 = vpop.f32.mrb[0].mxu0
    %8204 = vdwg.mxu0
    %v8205 = vadd.f32 %v5576, %v8175
    %v8206 = vadd.f32 %v5577, %v8178
    %v8207 = vadd.f32 %v5578, %v8183
    %v8208 = vadd.f32 %v5579, %v8186
    %v8209 = vadd.f32 %v5580, %v8191
    %v8210 = vadd.f32 %v5581, %v8194
    %v8211 = vadd.f32 %v5582, %v8199
    %v8212 = vadd.f32 %v5583, %v8202
    %v8213 = vld [vmem:[%s17 + $0x1] sm:$0x1]
    %v8214 = vld [vmem:[%s18 + $0x1] sm:$0x1]
    %v8215 = vsel %vm261, %v8205, 0.0
    %8216 = vadd.xlane.f32.xlu0 %v8215
    %v8217 = vpop.xlane.xlu0 %8216
    %v8218 = vsel %vm261, %v8206, 0.0
    %8219 = vadd.xlane.f32.xlu0 %v8218
    %v8220 = vpop.xlane.xlu0 %8219
    %v8221 = vsel %vm261, %v8207, 0.0
    %8222 = vadd.xlane.f32.xlu0 %v8221
    %v8223 = vpop.xlane.xlu0 %8222
    %v8224 = vsel %vm261, %v8208, 0.0
    %8225 = vadd.xlane.f32.xlu0 %v8224
    %v8226 = vpop.xlane.xlu0 %8225
    %v8227 = vsel %vm261, %v8209, 0.0
    %8228 = vadd.xlane.f32.xlu0 %v8227
    %v8229 = vpop.xlane.xlu0 %8228
    %v8230 = vsel %vm261, %v8210, 0.0
    %8231 = vadd.xlane.f32.xlu0 %v8230
    %v8232 = vpop.xlane.xlu0 %8231
    %v8233 = vsel %vm261, %v8211, 0.0
    %8234 = vadd.xlane.f32.xlu0 %v8233
    %v8235 = vpop.xlane.xlu0 %8234
    %v8236 = vsel %vm261, %v8212, 0.0
    %8237 = vadd.xlane.f32.xlu0 %v8236
    %v8238 = vpop.xlane.xlu0 %8237
    %v8239 = vmul.f32 %v8217, %v1506
    %v8240 = vmul.f32 %v8220, %v1506
    %v8241 = vmul.f32 %v8223, %v1506
    %v8242 = vmul.f32 %v8226, %v1506
    %v8243 = vmul.f32 %v8229, %v1506
    %v8244 = vmul.f32 %v8232, %v1506
    %v8245 = vmul.f32 %v8235, %v1506
    %v8246 = vmul.f32 %v8238, %v1506
    %v8247 = vsub.f32 %v8205, %v8239
    %v8248 = vsub.f32 %v8206, %v8240
    %v8249 = vsub.f32 %v8207, %v8241
    %v8250 = vsub.f32 %v8208, %v8242
    %v8251 = vsub.f32 %v8209, %v8243
    %v8252 = vsub.f32 %v8210, %v8244
    %v8253 = vsub.f32 %v8211, %v8245
    %v8254 = vsub.f32 %v8212, %v8246
    %v8255 = vmul.f32 %v8247, %v8247
    %v8256 = vmul.f32 %v8248, %v8248
    %v8257 = vmul.f32 %v8249, %v8249
    %v8258 = vmul.f32 %v8250, %v8250
    %v8259 = vmul.f32 %v8251, %v8251
    %v8260 = vmul.f32 %v8252, %v8252
    %v8261 = vmul.f32 %v8253, %v8253
    %v8262 = vmul.f32 %v8254, %v8254
    %v8263 = vsel %vm261, %v8255, 0.0
    %8264 = vadd.xlane.f32.xlu0 %v8263
    %v8265 = vpop.xlane.xlu0 %8264
    %v8266 = vsel %vm261, %v8256, 0.0
    %8267 = vadd.xlane.f32.xlu0 %v8266
    %v8268 = vpop.xlane.xlu0 %8267
    %v8269 = vsel %vm261, %v8257, 0.0
    %8270 = vadd.xlane.f32.xlu0 %v8269
    %v8271 = vpop.xlane.xlu0 %8270
    %v8272 = vsel %vm261, %v8258, 0.0
    %8273 = vadd.xlane.f32.xlu0 %v8272
    %v8274 = vpop.xlane.xlu0 %8273
    %v8275 = vsel %vm261, %v8259, 0.0
    %8276 = vadd.xlane.f32.xlu0 %v8275
    %v8277 = vpop.xlane.xlu0 %8276
    %v8278 = vsel %vm261, %v8260, 0.0
    %8279 = vadd.xlane.f32.xlu0 %v8278
    %v8280 = vpop.xlane.xlu0 %8279
    %v8281 = vsel %vm261, %v8261, 0.0
    %8282 = vadd.xlane.f32.xlu0 %v8281
    %v8283 = vpop.xlane.xlu0 %8282
    %v8284 = vsel %vm261, %v8262, 0.0
    %8285 = vadd.xlane.f32.xlu0 %v8284
    %v8286 = vpop.xlane.xlu0 %8285
    %v8287 = vmul.f32 %v8265, %v1506
    %v8288 = vmul.f32 %v8268, %v1506
    %v8289 = vmul.f32 %v8271, %v1506
    %v8290 = vmul.f32 %v8274, %v1506
    %v8291 = vmul.f32 %v8277, %v1506
    %v8292 = vmul.f32 %v8280, %v1506
    %v8293 = vmul.f32 %v8283, %v1506
    %v8294 = vmul.f32 %v8286, %v1506
    %v8295 = vadd.f32 %v8287, 1e-05
    %v8296 = vadd.f32 %v8288, 1e-05
    %v8297 = vadd.f32 %v8289, 1e-05
    %v8298 = vadd.f32 %v8290, 1e-05
    %v8299 = vadd.f32 %v8291, 1e-05
    %v8300 = vadd.f32 %v8292, 1e-05
    %v8301 = vadd.f32 %v8293, 1e-05
    %v8302 = vadd.f32 %v8294, 1e-05
    %v8303 = vrsqrt.pop %v8295
    %v8304 = vrsqrt.pop %v8296
    %v8305 = vrsqrt.pop %v8297
    %v8306 = vrsqrt.pop %v8298
    %v8307 = vrsqrt.pop %v8299
    %v8308 = vrsqrt.pop %v8300
    %v8309 = vrsqrt.pop %v8301
    %v8310 = vrsqrt.pop %v8302
    %v8311 = vmul.f32 %v8247, %v8303
    %v8312 = vmul.f32 %v8248, %v8304
    %v8313 = vmul.f32 %v8249, %v8305
    %v8314 = vmul.f32 %v8250, %v8306
    %v8315 = vmul.f32 %v8251, %v8307
    %v8316 = vmul.f32 %v8252, %v8308
    %v8317 = vmul.f32 %v8253, %v8309
    %v8318 = vmul.f32 %v8254, %v8310
    %v8319 = vlaneseq
    %v8320 = vshrl.u32 %v8319, 7
    %v8321 = vsub.s32 0, %v8320
    %v8322 = vrot.slane %v8213, %v8321
    %v8323 = vmul.f32 %v8311, %v8322
    %v8324 = vmul.f32 %v8312, %v8322
    %v8325 = vmul.f32 %v8313, %v8322
    %v8326 = vmul.f32 %v8314, %v8322
    %v8327 = vmul.f32 %v8315, %v8322
    %v8328 = vmul.f32 %v8316, %v8322
    %v8329 = vmul.f32 %v8317, %v8322
    %v8330 = vmul.f32 %v8318, %v8322
    %v8331 = vlaneseq
    %v8332 = vshrl.u32 %v8331, 7
    %v8333 = vsub.s32 0, %v8332
    %v8334 = vrot.slane %v8214, %v8333
    %v8335 = vadd.f32 %v8323, %v8334
    %v8336 = vadd.f32 %v8324, %v8334
    %v8337 = vadd.f32 %v8325, %v8334
    %v8338 = vadd.f32 %v8326, %v8334
    %v8339 = vadd.f32 %v8327, %v8334
    %v8340 = vadd.f32 %v8328, %v8334
    %v8341 = vadd.f32 %v8329, %v8334
    %v8342 = vadd.f32 %v8330, %v8334
    %v8343 = vpack.c.bf16 %v8335, %v8335
    %v8344 = vpack.c.bf16 %v8336, %v8336
    %v8345 = vpack.c.bf16 %v8337, %v8337
    %v8346 = vpack.c.bf16 %v8338, %v8338
    %v8347 = vpack.c.bf16 %v8339, %v8339
    %v8348 = vpack.c.bf16 %v8340, %v8340
    %v8349 = vpack.c.bf16 %v8341, %v8341
    %v8350 = vpack.c.bf16 %v8342, %v8342
    %v8351 = vld [vmem:[%s19] sm:$0xf]
    %v8352 = vld [vmem:[%s19 + $0x4] sm:$0xf]
    %v8353 = vld [vmem:[%s19 + $0x8] sm:$0xf]
    %v8354 = vld [vmem:[%s19 + $0xc] sm:$0xf]
    %v8355 = vld [vmem:[%s20] sm:$0x1]
    %v8357 = vlaneseq
    %v8358 = vshrl.u32 %v8357, 7
    %v8359 = vsub.s32 0, %v8358
    %v8360 = vrot.slane %v8355, %v8359
    %v8370 = vunpack.c.l.b16 %v8343
    %v8371 = vunpack.c.l.b16 %v8344
    %v8372 = vunpack.c.l.b16 %v8345
    %v8373 = vunpack.c.l.b16 %v8346
    %v8374 = vunpack.c.l.b16 %v8347
    %v8375 = vunpack.c.l.b16 %v8348
    %v8376 = vunpack.c.l.b16 %v8349
    %v8377 = vunpack.c.l.b16 %v8350
    %v8378 = vrot.slane %v8371, 7
    %vm8379 = vcmask 1041409
    %v8380 = vsel %vm8379, %v8378, %v8370
    %v8381 = vrot.slane %v8372, 6
    %vm8382 = vcmask 1042434
    %v8383 = vsel %vm8382, %v8381, %v8380
    %v8384 = vrot.slane %v8373, 5
    %vm8385 = vcmask 1043459
    %v8386 = vsel %vm8385, %v8384, %v8383
    %v8387 = vrot.slane %v8374, 4
    %vm8388 = vcmask 1044484
    %v8389 = vsel %vm8388, %v8387, %v8386
    %v8390 = vrot.slane %v8375, 3
    %vm8391 = vcmask 1045509
    %v8392 = vsel %vm8391, %v8390, %v8389
    %v8393 = vrot.slane %v8376, 2
    %vm8394 = vcmask 1046534
    %v8395 = vsel %vm8394, %v8393, %v8392
    %v8396 = vrot.slane %v8377, 1
    %vm8397 = vcmask 1047559
    %v8398 = vsel %vm8397, %v8396, %v8395
    %v8399 = vpack.c.b16 %v8398, %v8398
    %v8404 = vunpack.c.l.b16 %v8351
    %v8405 = vunpack.c.l.b16 %v8352
    %v8406 = vunpack.c.l.b16 %v8353
    %v8407 = vunpack.c.l.b16 %v8354
    %v8408 = vpack.c.b16 %v8405, %v8404
    %v8409 = vpack.c.b16 %v8407, %v8406
    %v8413 = vsel %vm261, %v8399, 0
    %8415 = vmatprep.subr.bf16.mxu0 0
    %8416 = vmatpush1.bf16.msra.mxu0 %v8408
    %8417 = vmatprep.subr.bf16.mxu0 0
    %8418 = vmatpush1.bf16.msra.mxu0 %v8409
    %8419 = vmatprep.subr.bf16.mxu0 0
    %8420 = vmatpush1.bf16.msra.mxu0 0
    %8421 = vmatprep.subr.bf16.mxu0 0
    %8422 = vmatpush1.bf16.msra.mxu0 0
    %8423 = vmatprep.subr.bf16.mxu0 0
    %8424 = vmatpush1.bf16.msra.mxu0 0
    %8425 = vmatprep.subr.bf16.mxu0 0
    %8426 = vmatpush1.bf16.msra.mxu0 0
    %8427 = vmatprep.subr.bf16.mxu0 0
    %8428 = vmatpush1.bf16.msra.mxu0 0
    %8429 = vmatprep.subr.bf16.mxu0 0
    %8430 = vmatpush1.bf16.msra.mxu0 0
    %8431 = vmatprep.subr.bf16.mxu0 0
    %8432 = vmatpush1.bf16.msra.mxu0 0
    %8433 = vmatprep.subr.bf16.mxu0 0
    %8434 = vmatpush1.bf16.msra.mxu0 0
    %8435 = vmatprep.subr.bf16.mxu0 0
    %8436 = vmatpush1.bf16.msra.mxu0 0
    %8437 = vmatprep.subr.bf16.mxu0 0
    %8438 = vmatpush1.bf16.msra.mxu0 0
    %8439 = vmatprep.subr.bf16.mxu0 0
    %8440 = vmatpush1.bf16.msra.mxu0 0
    %8441 = vmatprep.subr.bf16.mxu0 0
    %8442 = vmatpush1.bf16.msra.mxu0 0
    %8443 = vmatprep.subr.bf16.mxu0 0
    %8444 = vmatpush1.bf16.msra.mxu0 0
    %8445 = vmatprep.subr.bf16.mxu0 0
    %8446 = vmatpush1.bf16.msra.mxu0 0
    %8447 = vmatprep.mubr.bf16.mxu0 0
    %8448 = vmatmul.mubr.bf16.gmra.mrb[0].mxu0 %v8413
    %v8449 = vpop.f32.mrb[0].mxu0
    %v8450 = vadd.f32 %v8360, %v8449
    %v8451 = vpop.f32.mrb[0].mxu0
    %v8452 = vpop.f32.mrb[0].mxu0
    %v8453 = vpop.f32.mrb[0].mxu0
    %8454 = vdwg.mxu0
    %v8455 = vxor.u32 %v8450, 2147483648
    %v8456 = vmul.f32 %v8455, 1.442695
    %v8457 = vpow.pop %v8456
    %v8458 = vadd.f32 %v8457, 1.0
    %v8459 = vrcp.pop %v8458
    %v8460 = vmul.f32 1.0, %v8459
    %8461 = vst [vmem:[#allocation2] sm:$0xff] %v8460
    // Predicated region
    $region98: #{tpu_custom_call.1} parent=1 // pred_check
      _
    $region99: #{tpu_custom_call.1} parent=1 // pred_check_branch
      %8463 = sbr.rel (0) target = $region101
    $region100: #{tpu_custom_call.1} parent=1 // pred_region
      %s8465 = ssub.s32 128, 128
      %8466 = vsyncadd [#allocation3], %s8465
      %s8468 = sshll.u32 [#allocation2], 4
      %s8469 = int_to_ptr.vmem [resolvable:$true] %s8468
      %8471 = dma.vmem_to_hbm [thread:$0]  %s8469, 128, %s24, [#allocation3]
    $region101: #{tpu_custom_call.1} parent=1 // pred_fallthru
      _
    // Predicated region
    $region102: #{tpu_custom_call.1} parent=1 // pred_check
      _
    $region103: #{tpu_custom_call.1} parent=1 // pred_check_branch
      %8473 = sbr.rel (0) target = $region105
    $region104: #{tpu_custom_call.1} parent=1 // pred_region
      %8474 = dma.done [#allocation3], 128
    $region105: #{tpu_custom_call.1} parent=1 // pred_fallthru
      _
    %8475 = vsyncpa [#allocation3], 1

</llo_original>
